<compile_context>
chip_gen: v7x
topology: tpu7x:2x2x1
jax: 0.10.0
libtpu: 0.0.40
codegen_flags: <defaults>
</compile_context>

<pallas_src>
import jax
import jax.numpy as jnp
from jax import lax
from jax.experimental import pallas as pl
from jax.experimental.pallas import tpu as pltpu

N_OBS = 8        # n_obs (time steps)
N_FACTORS = 4    # k: factor dimension (columns of x)
N_Z = 8          # number of assets -> Q is (n_obs, n_z, n_z)
DCC_A = 0.05     # DCC "alpha" (innovation weight)
DCC_B = 0.90     # DCC "beta"  (persistence)
N_ITERS = 64     # fixed-point iterations of the risk-parity (RPTH) solver

NZT = N_OBS * N_Z          # 64 : flattened (time, asset) lane axis
NK = N_OBS * N_FACTORS     # 32 : flattened (time, factor) axis

# Packed-constant slab layout (sublane offsets; all 8-aligned slices).
OFF_C1 = 0                 # (64, 64) C1 = blockdiag(B) @ A1, zero-padded cols
OFF_MOFF = OFF_C1 + NZT    # (64, 64) same-block off-diagonal 0/1 mask
OFF_DIAG = OFF_MOFF + NZT  # (64, 64) identity 0/1 mask
OFF_BTR = OFF_DIAG + NZT   # (8, 64)  rows 0:4 = B^T replicated per time block
OFF_D = OFF_BTR + 8        # (8, 64)  row 0 = idiosyncratic variances d, tiled
CONST_ROWS = OFF_D + 8     # 208


def rpdcc_kernel(aug_ref, consts_ref, z_ref):
    """Single invocation: full RPDCC forward for all time steps.

    aug_ref    : (64, 8)  rows 0:32 cols 0:4 = stacked x_t x_t^T,
                          rows 32:36 cols 0:4 = S, rest zero.
    consts_ref : (208, 64) packed parameter-derived constants (see OFF_*).
    z_ref      : (1, 64)  output risk-parity weights, flat (t*n_z + j).
    """
    # Static, 8-aligned sublane views into the packed constant slab.
    C1 = consts_ref[OFF_C1:OFF_C1 + NZT, :]          # (64, 64)
    M_off = consts_ref[OFF_MOFF:OFF_MOFF + NZT, :]   # (64, 64)
    Dmask = consts_ref[OFF_DIAG:OFF_DIAG + NZT, :]   # (64, 64)
    BtR = consts_ref[OFF_BTR:OFF_BTR + 8, :]         # (8, 64)
    d_row = consts_ref[OFF_D:OFF_D + 1, :]           # (1, 64)

    # ---- Prologue: DCC closed form + factor covariance, 2 MXU matmuls ----
    # Sigma_rep[t*8+i, t'*8+j] = (B F_t B^T)[i, j]   (replicated across t')
    T1 = jnp.dot(aug_ref[...], BtR, preferred_element_type=jnp.float32)   # (64, 64)
    Sigma_rep = jnp.dot(C1, T1, preferred_element_type=jnp.float32)       # (64, 64)

    Sigma_off = Sigma_rep * M_off                    # block-diag, zero diagonal
    diag0 = jnp.sum(Sigma_rep * Dmask, axis=0, keepdims=True)             # (1, 64)

    # ---- Hoisted fixed-point invariants (r == 1, normalize=False) ----
    diag_q = diag0 + d_row                           # diag(Q_t) flattened
    inv_4dq = 0.25 / diag_q                          # 0.5 damping folded in
    four_dq = 4.0 * diag_q
    w0 = lax.rsqrt(diag_q)                           # sqrt(r / diag_q)

    # ---- Time-batched damped Spinu fixed point (all n_obs solves at once) ----
    def body(_, w):                                  # w: (1, 64) over (t, j)
        c = jnp.dot(w, Sigma_off, preferred_element_type=jnp.float32)
        return 0.5 * w + (jnp.sqrt(c * c + four_dq) - c) * inv_4dq

    w = lax.fori_loop(0, N_ITERS, body, w0, unroll=True)

    z_ref[...] = w                                   # single lane-dense store


@jax.jit
def rpdcc_forward(x, B, d, S):
    """x: (n_obs, k) f32, B: (n_z, k), d: (n_z,), S: (k, k). -> (n_obs, n_z, 1)."""
    n_obs, k = x.shape
    n_z = B.shape[0]
    nzt = n_obs * n_z
    nk = n_obs * k
    f32 = jnp.float32

    # --- Parameter-derived constants (tiny XLA ops, packed into one slab) ---
    t_idx = jnp.arange(n_obs, dtype=f32)
    b_pow = DCC_B ** (t_idx + 1.0)                                   # b^{t+1}
    g = (1.0 - DCC_A - DCC_B) * (1.0 - b_pow) / (1.0 - DCC_B) + b_pow
    tt = jnp.arange(n_obs)
    expo = jnp.maximum(tt[:, None] - tt[None, :], 0).astype(f32)
    L = jnp.where(tt[:, None] >= tt[None, :], DCC_B ** expo, 0.0)    # b^{t-s}

    Ik = jnp.eye(k, dtype=f32)
    # F_all = A1 @ [outer_all; S]  (closed-form DCC recursion)
    A1 = jnp.concatenate([DCC_A * jnp.kron(L, Ik),                   # (nk, nk)
                          jnp.kron(g[:, None], Ik)], axis=1)         # (nk, nk+k)
    Bbd = jnp.kron(jnp.eye(n_obs, dtype=f32), B.astype(f32))         # (nzt, nk)
    C1 = Bbd @ A1                                                    # (nzt, nk+k)
    C1pad = jnp.zeros((nzt, nzt), f32).at[:, :nk + k].set(C1)        # (64, 64)

    # Fold the lane-replication selector R (R[j, t*nz+j] = 1) into B^T.
    BtR = jnp.tile(B.T.astype(f32), (1, n_obs))                      # (k, nzt)
    BtR8 = jnp.zeros((8, nzt), f32).at[:k, :].set(BtR)

    off_blk = jnp.ones((n_z, n_z), f32) - jnp.eye(n_z, dtype=f32)
    M_off = jnp.kron(jnp.eye(n_obs, dtype=f32), off_blk)             # (64, 64)
    Dmask = jnp.eye(nzt, dtype=f32)                                  # (64, 64)

    d_slab = jnp.zeros((8, nzt), f32).at[0, :].set(jnp.tile(d.astype(f32), n_obs))

    consts = jnp.concatenate([C1pad, M_off, Dmask, BtR8, d_slab], axis=0)  # (208, 64)

    # --- Dynamic slab: per-t outer products + S (one DMA instead of two) ---
    outer_all = jnp.einsum('ta,tb->tab', x, x).reshape(nk, k).astype(f32)
    aug = jnp.zeros((nzt, 8), f32)
    aug = aug.at[:nk, :k].set(outer_all).at[nk:nk + k, :k].set(S.astype(f32))

    z_flat = pl.pallas_call(
        rpdcc_kernel,
        out_shape=jax.ShapeDtypeStruct((1, nzt), jnp.float32),
        in_specs=[pl.BlockSpec(memory_space=pltpu.MemorySpace.VMEM)] * 2,
        out_specs=pl.BlockSpec(memory_space=pltpu.MemorySpace.VMEM),
    )(aug, consts)

    # PyTorch convention (n_obs, n_z, 1): pure metadata reshape, no transpose.
    return z_flat.reshape(n_obs, n_z, 1)


@jax.jit
def rpdcc_reference(x, B, d, S):
    """Pure-JAX reference with identical semantics (serial DCC recursion)."""
    n_obs, _ = x.shape
    n_z = B.shape[0]
    c0S = (1.0 - DCC_A - DCC_B) * S

    def step(F, xt):
        F = c0S + DCC_A * jnp.outer(xt, xt) + DCC_B * F
        return F, F

    _, F_all = lax.scan(step, S, x)                                  # (t, k, k)
    Q = jnp.einsum('za,tab,yb->tzy', B, F_all, B) + jnp.diag(d)[None]
    diag_q = jnp.diagonal(Q, axis1=1, axis2=2)                       # (t, n_z)
    Q_off = Q * (1.0 - jnp.eye(n_z, dtype=Q.dtype))[None]
    w = lax.rsqrt(diag_q)

    def body(_, w):
        c = jnp.einsum('tij,tj->ti', Q_off, w)
        return 0.5 * w + (jnp.sqrt(c * c + 4.0 * diag_q) - c) * (0.25 / diag_q)

    w = lax.fori_loop(0, N_ITERS, body, w)
    return w.reshape(n_obs, n_z, 1)


if __name__ == "__main__":
    key = jax.random.PRNGKey(0)
    kx, kb, kd = jax.random.split(key, 3)

    # Factor return series (input x of the module's forward).
    x = 0.01 * jax.random.normal(kx, (N_OBS, N_FACTORS), dtype=jnp.float32)

    # Deterministic "init='random'" parameters (loadings B, idiosyncratic d).
    B = 0.3 * jax.random.normal(kb, (N_Z, N_FACTORS), dtype=jnp.float32)
    d = 0.05 + 0.10 * jax.random.uniform(kd, (N_Z,), dtype=jnp.float32)

    # Unconditional factor covariance S = x^T x / n_obs + eps*I (glue, JAX).
    S = (x.T @ x) / N_OBS + 1e-3 * jnp.eye(N_FACTORS, dtype=jnp.float32)

    z = jax.block_until_ready(rpdcc_forward(x, B, d, S))

    assert z.shape == (N_OBS, N_Z, 1)
    assert bool(jnp.all(jnp.isfinite(z))) and bool(jnp.all(z > 0.0))

    # Tolerance check against the pure-JAX reference (review request).
    z_ref = jax.block_until_ready(rpdcc_reference(x, B, d, S))
    max_err = float(jnp.max(jnp.abs(z - z_ref)))
    assert max_err < 2e-3, f"kernel/reference mismatch: max_err={max_err}"

    print("KERNEL_OK")
</pallas_src>

<mosaic_0001>
module attributes {stable_mosaic.version = 11 : i64} {
  func.func @rpdcc_kernel(%arg0: memref<64x8xf32, #tpu.memory_space<vmem>>, %arg1: memref<208x64xf32, #tpu.memory_space<vmem>>, %arg2: memref<1x64xf32, #tpu.memory_space<vmem>>) attributes {dimension_semantics = [], scalar_prefetch = 0 : i64, scratch_operands = 0 : i64, tpu.core_type = #tpu.core_type<tc>} {
    %c0 = arith.constant 0 : index
    %c0_0 = arith.constant 0 : index
    %0 = vector.load %arg1[%c0, %c0_0] : memref<208x64xf32, #tpu.memory_space<vmem>>, vector<64x64xf32>
    %c64 = arith.constant 64 : index
    %c0_1 = arith.constant 0 : index
    %1 = vector.load %arg1[%c64, %c0_1] : memref<208x64xf32, #tpu.memory_space<vmem>>, vector<64x64xf32>
    %c128 = arith.constant 128 : index
    %c0_2 = arith.constant 0 : index
    %2 = vector.load %arg1[%c128, %c0_2] : memref<208x64xf32, #tpu.memory_space<vmem>>, vector<64x64xf32>
    %c192 = arith.constant 192 : index
    %c0_3 = arith.constant 0 : index
    %3 = vector.load %arg1[%c192, %c0_3] : memref<208x64xf32, #tpu.memory_space<vmem>>, vector<8x64xf32>
    %c200 = arith.constant 200 : index
    %c0_4 = arith.constant 0 : index
    %4 = vector.load %arg1[%c200, %c0_4] : memref<208x64xf32, #tpu.memory_space<vmem>>, vector<1x64xf32>
    %c0_5 = arith.constant 0 : index
    %c0_6 = arith.constant 0 : index
    %5 = vector.load %arg0[%c0_5, %c0_6] : memref<64x8xf32, #tpu.memory_space<vmem>>, vector<64x8xf32>
    %cst = arith.constant dense<0.000000e+00> : vector<64x64xf32>
    %6 = tpu.matmul %5, %3, %cst {dimension_numbers = #tpu.dot_dimension_numbers<[1], [0], [0], [1], [0, 0, 1, 1], [], []>} : vector<64x8xf32>, vector<8x64xf32>, vector<64x64xf32> -> vector<64x64xf32>
    %cst_7 = arith.constant dense<0.000000e+00> : vector<64x64xf32>
    %7 = tpu.matmul %0, %6, %cst_7 {dimension_numbers = #tpu.dot_dimension_numbers<[1], [0], [0], [1], [0, 0, 1, 1], [], []>} : vector<64x64xf32>, vector<64x64xf32>, vector<64x64xf32> -> vector<64x64xf32>
    %8 = arith.mulf %7, %1 : vector<64x64xf32>
    %9 = arith.mulf %7, %2 : vector<64x64xf32>
    %cst_8 = arith.constant dense<0.000000e+00> : vector<64xf32>
    %10 = vector.multi_reduction <add>, %9, %cst_8 [0] : vector<64x64xf32> to vector<64xf32>
    %11 = vector.shape_cast %10 : vector<64xf32> to vector<1x64xf32>
    %12 = arith.addf %11, %4 : vector<1x64xf32>
    %cst_9 = arith.constant 2.500000e-01 : f32
    %13 = vector.broadcast %cst_9 : f32 to vector<1x64xf32>
    %14 = arith.divf %13, %12 : vector<1x64xf32>
    %cst_10 = arith.constant 4.000000e+00 : f32
    %15 = vector.broadcast %cst_10 : f32 to vector<1x64xf32>
    %16 = arith.mulf %15, %12 : vector<1x64xf32>
    %17 = math.rsqrt %12 : vector<1x64xf32>
    %c0_i32 = arith.constant 0 : i32
    %cst_11 = arith.constant dense<0.000000e+00> : vector<1x64xf32>
    %18 = tpu.matmul %17, %8, %cst_11 {dimension_numbers = #tpu.dot_dimension_numbers<[1], [0], [0], [1], [0, 0, 1, 1], [], []>} : vector<1x64xf32>, vector<64x64xf32>, vector<1x64xf32> -> vector<1x64xf32>
    %cst_12 = arith.constant 5.000000e-01 : f32
    %19 = vector.broadcast %cst_12 : f32 to vector<1x64xf32>
    %20 = arith.mulf %19, %17 : vector<1x64xf32>
    %21 = arith.mulf %18, %18 : vector<1x64xf32>
    %22 = arith.addf %21, %16 : vector<1x64xf32>
    %23 = math.sqrt %22 : vector<1x64xf32>
    %24 = arith.subf %23, %18 : vector<1x64xf32>
    %25 = arith.mulf %24, %14 : vector<1x64xf32>
    %26 = arith.addf %20, %25 : vector<1x64xf32>
    %c1_i32 = arith.constant 1 : i32
    %cst_13 = arith.constant dense<0.000000e+00> : vector<1x64xf32>
    %27 = tpu.matmul %26, %8, %cst_13 {dimension_numbers = #tpu.dot_dimension_numbers<[1], [0], [0], [1], [0, 0, 1, 1], [], []>} : vector<1x64xf32>, vector<64x64xf32>, vector<1x64xf32> -> vector<1x64xf32>
    %cst_14 = arith.constant 5.000000e-01 : f32
    %28 = vector.broadcast %cst_14 : f32 to vector<1x64xf32>
    %29 = arith.mulf %28, %26 : vector<1x64xf32>
    %30 = arith.mulf %27, %27 : vector<1x64xf32>
    %31 = arith.addf %30, %16 : vector<1x64xf32>
    %32 = math.sqrt %31 : vector<1x64xf32>
    %33 = arith.subf %32, %27 : vector<1x64xf32>
    %34 = arith.mulf %33, %14 : vector<1x64xf32>
    %35 = arith.addf %29, %34 : vector<1x64xf32>
    %c2_i32 = arith.constant 2 : i32
    %cst_15 = arith.constant dense<0.000000e+00> : vector<1x64xf32>
    %36 = tpu.matmul %35, %8, %cst_15 {dimension_numbers = #tpu.dot_dimension_numbers<[1], [0], [0], [1], [0, 0, 1, 1], [], []>} : vector<1x64xf32>, vector<64x64xf32>, vector<1x64xf32> -> vector<1x64xf32>
    %cst_16 = arith.constant 5.000000e-01 : f32
    %37 = vector.broadcast %cst_16 : f32 to vector<1x64xf32>
    %38 = arith.mulf %37, %35 : vector<1x64xf32>
    %39 = arith.mulf %36, %36 : vector<1x64xf32>
    %40 = arith.addf %39, %16 : vector<1x64xf32>
    %41 = math.sqrt %40 : vector<1x64xf32>
    %42 = arith.subf %41, %36 : vector<1x64xf32>
    %43 = arith.mulf %42, %14 : vector<1x64xf32>
    %44 = arith.addf %38, %43 : vector<1x64xf32>
    %c3_i32 = arith.constant 3 : i32
    %cst_17 = arith.constant dense<0.000000e+00> : vector<1x64xf32>
    %45 = tpu.matmul %44, %8, %cst_17 {dimension_numbers = #tpu.dot_dimension_numbers<[1], [0], [0], [1], [0, 0, 1, 1], [], []>} : vector<1x64xf32>, vector<64x64xf32>, vector<1x64xf32> -> vector<1x64xf32>
    %cst_18 = arith.constant 5.000000e-01 : f32
    %46 = vector.broadcast %cst_18 : f32 to vector<1x64xf32>
    %47 = arith.mulf %46, %44 : vector<1x64xf32>
    %48 = arith.mulf %45, %45 : vector<1x64xf32>
    %49 = arith.addf %48, %16 : vector<1x64xf32>
    %50 = math.sqrt %49 : vector<1x64xf32>
    %51 = arith.subf %50, %45 : vector<1x64xf32>
    %52 = arith.mulf %51, %14 : vector<1x64xf32>
    %53 = arith.addf %47, %52 : vector<1x64xf32>
    %c4_i32 = arith.constant 4 : i32
    %cst_19 = arith.constant dense<0.000000e+00> : vector<1x64xf32>
    %54 = tpu.matmul %53, %8, %cst_19 {dimension_numbers = #tpu.dot_dimension_numbers<[1], [0], [0], [1], [0, 0, 1, 1], [], []>} : vector<1x64xf32>, vector<64x64xf32>, vector<1x64xf32> -> vector<1x64xf32>
    %cst_20 = arith.constant 5.000000e-01 : f32
    %55 = vector.broadcast %cst_20 : f32 to vector<1x64xf32>
    %56 = arith.mulf %55, %53 : vector<1x64xf32>
    %57 = arith.mulf %54, %54 : vector<1x64xf32>
    %58 = arith.addf %57, %16 : vector<1x64xf32>
    %59 = math.sqrt %58 : vector<1x64xf32>
    %60 = arith.subf %59, %54 : vector<1x64xf32>
    %61 = arith.mulf %60, %14 : vector<1x64xf32>
    %62 = arith.addf %56, %61 : vector<1x64xf32>
    %c5_i32 = arith.constant 5 : i32
    %cst_21 = arith.constant dense<0.000000e+00> : vector<1x64xf32>
    %63 = tpu.matmul %62, %8, %cst_21 {dimension_numbers = #tpu.dot_dimension_numbers<[1], [0], [0], [1], [0, 0, 1, 1], [], []>} : vector<1x64xf32>, vector<64x64xf32>, vector<1x64xf32> -> vector<1x64xf32>
    %cst_22 = arith.constant 5.000000e-01 : f32
    %64 = vector.broadcast %cst_22 : f32 to vector<1x64xf32>
    %65 = arith.mulf %64, %62 : vector<1x64xf32>
    %66 = arith.mulf %63, %63 : vector<1x64xf32>
    %67 = arith.addf %66, %16 : vector<1x64xf32>
    %68 = math.sqrt %67 : vector<1x64xf32>
    %69 = arith.subf %68, %63 : vector<1x64xf32>
    %70 = arith.mulf %69, %14 : vector<1x64xf32>
    %71 = arith.addf %65, %70 : vector<1x64xf32>
    %c6_i32 = arith.constant 6 : i32
    %cst_23 = arith.constant dense<0.000000e+00> : vector<1x64xf32>
    %72 = tpu.matmul %71, %8, %cst_23 {dimension_numbers = #tpu.dot_dimension_numbers<[1], [0], [0], [1], [0, 0, 1, 1], [], []>} : vector<1x64xf32>, vector<64x64xf32>, vector<1x64xf32> -> vector<1x64xf32>
    %cst_24 = arith.constant 5.000000e-01 : f32
    %73 = vector.broadcast %cst_24 : f32 to vector<1x64xf32>
    %74 = arith.mulf %73, %71 : vector<1x64xf32>
    %75 = arith.mulf %72, %72 : vector<1x64xf32>
    %76 = arith.addf %75, %16 : vector<1x64xf32>
    %77 = math.sqrt %76 : vector<1x64xf32>
    %78 = arith.subf %77, %72 : vector<1x64xf32>
    %79 = arith.mulf %78, %14 : vector<1x64xf32>
    %80 = arith.addf %74, %79 : vector<1x64xf32>
    %c7_i32 = arith.constant 7 : i32
    %cst_25 = arith.constant dense<0.000000e+00> : vector<1x64xf32>
    %81 = tpu.matmul %80, %8, %cst_25 {dimension_numbers = #tpu.dot_dimension_numbers<[1], [0], [0], [1], [0, 0, 1, 1], [], []>} : vector<1x64xf32>, vector<64x64xf32>, vector<1x64xf32> -> vector<1x64xf32>
    %cst_26 = arith.constant 5.000000e-01 : f32
    %82 = vector.broadcast %cst_26 : f32 to vector<1x64xf32>
    %83 = arith.mulf %82, %80 : vector<1x64xf32>
    %84 = arith.mulf %81, %81 : vector<1x64xf32>
    %85 = arith.addf %84, %16 : vector<1x64xf32>
    %86 = math.sqrt %85 : vector<1x64xf32>
    %87 = arith.subf %86, %81 : vector<1x64xf32>
    %88 = arith.mulf %87, %14 : vector<1x64xf32>
    %89 = arith.addf %83, %88 : vector<1x64xf32>
    %c8_i32 = arith.constant 8 : i32
    %cst_27 = arith.constant dense<0.000000e+00> : vector<1x64xf32>
    %90 = tpu.matmul %89, %8, %cst_27 {dimension_numbers = #tpu.dot_dimension_numbers<[1], [0], [0], [1], [0, 0, 1, 1], [], []>} : vector<1x64xf32>, vector<64x64xf32>, vector<1x64xf32> -> vector<1x64xf32>
    %cst_28 = arith.constant 5.000000e-01 : f32
    %91 = vector.broadcast %cst_28 : f32 to vector<1x64xf32>
    %92 = arith.mulf %91, %89 : vector<1x64xf32>
    %93 = arith.mulf %90, %90 : vector<1x64xf32>
    %94 = arith.addf %93, %16 : vector<1x64xf32>
    %95 = math.sqrt %94 : vector<1x64xf32>
    %96 = arith.subf %95, %90 : vector<1x64xf32>
    %97 = arith.mulf %96, %14 : vector<1x64xf32>
    %98 = arith.addf %92, %97 : vector<1x64xf32>
    %c9_i32 = arith.constant 9 : i32
    %cst_29 = arith.constant dense<0.000000e+00> : vector<1x64xf32>
    %99 = tpu.matmul %98, %8, %cst_29 {dimension_numbers = #tpu.dot_dimension_numbers<[1], [0], [0], [1], [0, 0, 1, 1], [], []>} : vector<1x64xf32>, vector<64x64xf32>, vector<1x64xf32> -> vector<1x64xf32>
    %cst_30 = arith.constant 5.000000e-01 : f32
    %100 = vector.broadcast %cst_30 : f32 to vector<1x64xf32>
    %101 = arith.mulf %100, %98 : vector<1x64xf32>
    %102 = arith.mulf %99, %99 : vector<1x64xf32>
    %103 = arith.addf %102, %16 : vector<1x64xf32>
    %104 = math.sqrt %103 : vector<1x64xf32>
    %105 = arith.subf %104, %99 : vector<1x64xf32>
    %106 = arith.mulf %105, %14 : vector<1x64xf32>
    %107 = arith.addf %101, %106 : vector<1x64xf32>
    %c10_i32 = arith.constant 10 : i32
    %cst_31 = arith.constant dense<0.000000e+00> : vector<1x64xf32>
    %108 = tpu.matmul %107, %8, %cst_31 {dimension_numbers = #tpu.dot_dimension_numbers<[1], [0], [0], [1], [0, 0, 1, 1], [], []>} : vector<1x64xf32>, vector<64x64xf32>, vector<1x64xf32> -> vector<1x64xf32>
    %cst_32 = arith.constant 5.000000e-01 : f32
    %109 = vector.broadcast %cst_32 : f32 to vector<1x64xf32>
    %110 = arith.mulf %109, %107 : vector<1x64xf32>
    %111 = arith.mulf %108, %108 : vector<1x64xf32>
    %112 = arith.addf %111, %16 : vector<1x64xf32>
    %113 = math.sqrt %112 : vector<1x64xf32>
    %114 = arith.subf %113, %108 : vector<1x64xf32>
    %115 = arith.mulf %114, %14 : vector<1x64xf32>
    %116 = arith.addf %110, %115 : vector<1x64xf32>
    %c11_i32 = arith.constant 11 : i32
    %cst_33 = arith.constant dense<0.000000e+00> : vector<1x64xf32>
    %117 = tpu.matmul %116, %8, %cst_33 {dimension_numbers = #tpu.dot_dimension_numbers<[1], [0], [0], [1], [0, 0, 1, 1], [], []>} : vector<1x64xf32>, vector<64x64xf32>, vector<1x64xf32> -> vector<1x64xf32>
    %cst_34 = arith.constant 5.000000e-01 : f32
    %118 = vector.broadcast %cst_34 : f32 to vector<1x64xf32>
    %119 = arith.mulf %118, %116 : vector<1x64xf32>
    %120 = arith.mulf %117, %117 : vector<1x64xf32>
    %121 = arith.addf %120, %16 : vector<1x64xf32>
    %122 = math.sqrt %121 : vector<1x64xf32>
    %123 = arith.subf %122, %117 : vector<1x64xf32>
    %124 = arith.mulf %123, %14 : vector<1x64xf32>
    %125 = arith.addf %119, %124 : vector<1x64xf32>
    %c12_i32 = arith.constant 12 : i32
    %cst_35 = arith.constant dense<0.000000e+00> : vector<1x64xf32>
    %126 = tpu.matmul %125, %8, %cst_35 {dimension_numbers = #tpu.dot_dimension_numbers<[1], [0], [0], [1], [0, 0, 1, 1], [], []>} : vector<1x64xf32>, vector<64x64xf32>, vector<1x64xf32> -> vector<1x64xf32>
    %cst_36 = arith.constant 5.000000e-01 : f32
    %127 = vector.broadcast %cst_36 : f32 to vector<1x64xf32>
    %128 = arith.mulf %127, %125 : vector<1x64xf32>
    %129 = arith.mulf %126, %126 : vector<1x64xf32>
    %130 = arith.addf %129, %16 : vector<1x64xf32>
    %131 = math.sqrt %130 : vector<1x64xf32>
    %132 = arith.subf %131, %126 : vector<1x64xf32>
    %133 = arith.mulf %132, %14 : vector<1x64xf32>
    %134 = arith.addf %128, %133 : vector<1x64xf32>
    %c13_i32 = arith.constant 13 : i32
    %cst_37 = arith.constant dense<0.000000e+00> : vector<1x64xf32>
    %135 = tpu.matmul %134, %8, %cst_37 {dimension_numbers = #tpu.dot_dimension_numbers<[1], [0], [0], [1], [0, 0, 1, 1], [], []>} : vector<1x64xf32>, vector<64x64xf32>, vector<1x64xf32> -> vector<1x64xf32>
    %cst_38 = arith.constant 5.000000e-01 : f32
    %136 = vector.broadcast %cst_38 : f32 to vector<1x64xf32>
    %137 = arith.mulf %136, %134 : vector<1x64xf32>
    %138 = arith.mulf %135, %135 : vector<1x64xf32>
    %139 = arith.addf %138, %16 : vector<1x64xf32>
    %140 = math.sqrt %139 : vector<1x64xf32>
    %141 = arith.subf %140, %135 : vector<1x64xf32>
    %142 = arith.mulf %141, %14 : vector<1x64xf32>
    %143 = arith.addf %137, %142 : vector<1x64xf32>
    %c14_i32 = arith.constant 14 : i32
    %cst_39 = arith.constant dense<0.000000e+00> : vector<1x64xf32>
    %144 = tpu.matmul %143, %8, %cst_39 {dimension_numbers = #tpu.dot_dimension_numbers<[1], [0], [0], [1], [0, 0, 1, 1], [], []>} : vector<1x64xf32>, vector<64x64xf32>, vector<1x64xf32> -> vector<1x64xf32>
    %cst_40 = arith.constant 5.000000e-01 : f32
    %145 = vector.broadcast %cst_40 : f32 to vector<1x64xf32>
    %146 = arith.mulf %145, %143 : vector<1x64xf32>
    %147 = arith.mulf %144, %144 : vector<1x64xf32>
    %148 = arith.addf %147, %16 : vector<1x64xf32>
    %149 = math.sqrt %148 : vector<1x64xf32>
    %150 = arith.subf %149, %144 : vector<1x64xf32>
    %151 = arith.mulf %150, %14 : vector<1x64xf32>
    %152 = arith.addf %146, %151 : vector<1x64xf32>
    %c15_i32 = arith.constant 15 : i32
    %cst_41 = arith.constant dense<0.000000e+00> : vector<1x64xf32>
    %153 = tpu.matmul %152, %8, %cst_41 {dimension_numbers = #tpu.dot_dimension_numbers<[1], [0], [0], [1], [0, 0, 1, 1], [], []>} : vector<1x64xf32>, vector<64x64xf32>, vector<1x64xf32> -> vector<1x64xf32>
    %cst_42 = arith.constant 5.000000e-01 : f32
    %154 = vector.broadcast %cst_42 : f32 to vector<1x64xf32>
    %155 = arith.mulf %154, %152 : vector<1x64xf32>
    %156 = arith.mulf %153, %153 : vector<1x64xf32>
    %157 = arith.addf %156, %16 : vector<1x64xf32>
    %158 = math.sqrt %157 : vector<1x64xf32>
    %159 = arith.subf %158, %153 : vector<1x64xf32>
    %160 = arith.mulf %159, %14 : vector<1x64xf32>
    %161 = arith.addf %155, %160 : vector<1x64xf32>
    %c16_i32 = arith.constant 16 : i32
    %cst_43 = arith.constant dense<0.000000e+00> : vector<1x64xf32>
    %162 = tpu.matmul %161, %8, %cst_43 {dimension_numbers = #tpu.dot_dimension_numbers<[1], [0], [0], [1], [0, 0, 1, 1], [], []>} : vector<1x64xf32>, vector<64x64xf32>, vector<1x64xf32> -> vector<1x64xf32>
    %cst_44 = arith.constant 5.000000e-01 : f32
    %163 = vector.broadcast %cst_44 : f32 to vector<1x64xf32>
    %164 = arith.mulf %163, %161 : vector<1x64xf32>
    %165 = arith.mulf %162, %162 : vector<1x64xf32>
    %166 = arith.addf %165, %16 : vector<1x64xf32>
    %167 = math.sqrt %166 : vector<1x64xf32>
    %168 = arith.subf %167, %162 : vector<1x64xf32>
    %169 = arith.mulf %168, %14 : vector<1x64xf32>
    %170 = arith.addf %164, %169 : vector<1x64xf32>
    %c17_i32 = arith.constant 17 : i32
    %cst_45 = arith.constant dense<0.000000e+00> : vector<1x64xf32>
    %171 = tpu.matmul %170, %8, %cst_45 {dimension_numbers = #tpu.dot_dimension_numbers<[1], [0], [0], [1], [0, 0, 1, 1], [], []>} : vector<1x64xf32>, vector<64x64xf32>, vector<1x64xf32> -> vector<1x64xf32>
    %cst_46 = arith.constant 5.000000e-01 : f32
    %172 = vector.broadcast %cst_46 : f32 to vector<1x64xf32>
    %173 = arith.mulf %172, %170 : vector<1x64xf32>
    %174 = arith.mulf %171, %171 : vector<1x64xf32>
    %175 = arith.addf %174, %16 : vector<1x64xf32>
    %176 = math.sqrt %175 : vector<1x64xf32>
    %177 = arith.subf %176, %171 : vector<1x64xf32>
    %178 = arith.mulf %177, %14 : vector<1x64xf32>
    %179 = arith.addf %173, %178 : vector<1x64xf32>
    %c18_i32 = arith.constant 18 : i32
    %cst_47 = arith.constant dense<0.000000e+00> : vector<1x64xf32>
    %180 = tpu.matmul %179, %8, %cst_47 {dimension_numbers = #tpu.dot_dimension_numbers<[1], [0], [0], [1], [0, 0, 1, 1], [], []>} : vector<1x64xf32>, vector<64x64xf32>, vector<1x64xf32> -> vector<1x64xf32>
    %cst_48 = arith.constant 5.000000e-01 : f32
    %181 = vector.broadcast %cst_48 : f32 to vector<1x64xf32>
    %182 = arith.mulf %181, %179 : vector<1x64xf32>
    %183 = arith.mulf %180, %180 : vector<1x64xf32>
    %184 = arith.addf %183, %16 : vector<1x64xf32>
    %185 = math.sqrt %184 : vector<1x64xf32>
    %186 = arith.subf %185, %180 : vector<1x64xf32>
    %187 = arith.mulf %186, %14 : vector<1x64xf32>
    %188 = arith.addf %182, %187 : vector<1x64xf32>
    %c19_i32 = arith.constant 19 : i32
    %cst_49 = arith.constant dense<0.000000e+00> : vector<1x64xf32>
    %189 = tpu.matmul %188, %8, %cst_49 {dimension_numbers = #tpu.dot_dimension_numbers<[1], [0], [0], [1], [0, 0, 1, 1], [], []>} : vector<1x64xf32>, vector<64x64xf32>, vector<1x64xf32> -> vector<1x64xf32>
    %cst_50 = arith.constant 5.000000e-01 : f32
    %190 = vector.broadcast %cst_50 : f32 to vector<1x64xf32>
    %191 = arith.mulf %190, %188 : vector<1x64xf32>
    %192 = arith.mulf %189, %189 : vector<1x64xf32>
    %193 = arith.addf %192, %16 : vector<1x64xf32>
    %194 = math.sqrt %193 : vector<1x64xf32>
    %195 = arith.subf %194, %189 : vector<1x64xf32>
    %196 = arith.mulf %195, %14 : vector<1x64xf32>
    %197 = arith.addf %191, %196 : vector<1x64xf32>
    %c20_i32 = arith.constant 20 : i32
    %cst_51 = arith.constant dense<0.000000e+00> : vector<1x64xf32>
    %198 = tpu.matmul %197, %8, %cst_51 {dimension_numbers = #tpu.dot_dimension_numbers<[1], [0], [0], [1], [0, 0, 1, 1], [], []>} : vector<1x64xf32>, vector<64x64xf32>, vector<1x64xf32> -> vector<1x64xf32>
    %cst_52 = arith.constant 5.000000e-01 : f32
    %199 = vector.broadcast %cst_52 : f32 to vector<1x64xf32>
    %200 = arith.mulf %199, %197 : vector<1x64xf32>
    %201 = arith.mulf %198, %198 : vector<1x64xf32>
    %202 = arith.addf %201, %16 : vector<1x64xf32>
    %203 = math.sqrt %202 : vector<1x64xf32>
    %204 = arith.subf %203, %198 : vector<1x64xf32>
    %205 = arith.mulf %204, %14 : vector<1x64xf32>
    %206 = arith.addf %200, %205 : vector<1x64xf32>
    %c21_i32 = arith.constant 21 : i32
    %cst_53 = arith.constant dense<0.000000e+00> : vector<1x64xf32>
    %207 = tpu.matmul %206, %8, %cst_53 {dimension_numbers = #tpu.dot_dimension_numbers<[1], [0], [0], [1], [0, 0, 1, 1], [], []>} : vector<1x64xf32>, vector<64x64xf32>, vector<1x64xf32> -> vector<1x64xf32>
    %cst_54 = arith.constant 5.000000e-01 : f32
    %208 = vector.broadcast %cst_54 : f32 to vector<1x64xf32>
    %209 = arith.mulf %208, %206 : vector<1x64xf32>
    %210 = arith.mulf %207, %207 : vector<1x64xf32>
    %211 = arith.addf %210, %16 : vector<1x64xf32>
    %212 = math.sqrt %211 : vector<1x64xf32>
    %213 = arith.subf %212, %207 : vector<1x64xf32>
    %214 = arith.mulf %213, %14 : vector<1x64xf32>
    %215 = arith.addf %209, %214 : vector<1x64xf32>
    %c22_i32 = arith.constant 22 : i32
    %cst_55 = arith.constant dense<0.000000e+00> : vector<1x64xf32>
    %216 = tpu.matmul %215, %8, %cst_55 {dimension_numbers = #tpu.dot_dimension_numbers<[1], [0], [0], [1], [0, 0, 1, 1], [], []>} : vector<1x64xf32>, vector<64x64xf32>, vector<1x64xf32> -> vector<1x64xf32>
    %cst_56 = arith.constant 5.000000e-01 : f32
    %217 = vector.broadcast %cst_56 : f32 to vector<1x64xf32>
    %218 = arith.mulf %217, %215 : vector<1x64xf32>
    %219 = arith.mulf %216, %216 : vector<1x64xf32>
    %220 = arith.addf %219, %16 : vector<1x64xf32>
    %221 = math.sqrt %220 : vector<1x64xf32>
    %222 = arith.subf %221, %216 : vector<1x64xf32>
    %223 = arith.mulf %222, %14 : vector<1x64xf32>
    %224 = arith.addf %218, %223 : vector<1x64xf32>
    %c23_i32 = arith.constant 23 : i32
    %cst_57 = arith.constant dense<0.000000e+00> : vector<1x64xf32>
    %225 = tpu.matmul %224, %8, %cst_57 {dimension_numbers = #tpu.dot_dimension_numbers<[1], [0], [0], [1], [0, 0, 1, 1], [], []>} : vector<1x64xf32>, vector<64x64xf32>, vector<1x64xf32> -> vector<1x64xf32>
    %cst_58 = arith.constant 5.000000e-01 : f32
    %226 = vector.broadcast %cst_58 : f32 to vector<1x64xf32>
    %227 = arith.mulf %226, %224 : vector<1x64xf32>
    %228 = arith.mulf %225, %225 : vector<1x64xf32>
    %229 = arith.addf %228, %16 : vector<1x64xf32>
    %230 = math.sqrt %229 : vector<1x64xf32>
    %231 = arith.subf %230, %225 : vector<1x64xf32>
    %232 = arith.mulf %231, %14 : vector<1x64xf32>
    %233 = arith.addf %227, %232 : vector<1x64xf32>
    %c24_i32 = arith.constant 24 : i32
    %cst_59 = arith.constant dense<0.000000e+00> : vector<1x64xf32>
    %234 = tpu.matmul %233, %8, %cst_59 {dimension_numbers = #tpu.dot_dimension_numbers<[1], [0], [0], [1], [0, 0, 1, 1], [], []>} : vector<1x64xf32>, vector<64x64xf32>, vector<1x64xf32> -> vector<1x64xf32>
    %cst_60 = arith.constant 5.000000e-01 : f32
    %235 = vector.broadcast %cst_60 : f32 to vector<1x64xf32>
    %236 = arith.mulf %235, %233 : vector<1x64xf32>
    %237 = arith.mulf %234, %234 : vector<1x64xf32>
    %238 = arith.addf %237, %16 : vector<1x64xf32>
    %239 = math.sqrt %238 : vector<1x64xf32>
    %240 = arith.subf %239, %234 : vector<1x64xf32>
    %241 = arith.mulf %240, %14 : vector<1x64xf32>
    %242 = arith.addf %236, %241 : vector<1x64xf32>
    %c25_i32 = arith.constant 25 : i32
    %cst_61 = arith.constant dense<0.000000e+00> : vector<1x64xf32>
    %243 = tpu.matmul %242, %8, %cst_61 {dimension_numbers = #tpu.dot_dimension_numbers<[1], [0], [0], [1], [0, 0, 1, 1], [], []>} : vector<1x64xf32>, vector<64x64xf32>, vector<1x64xf32> -> vector<1x64xf32>
    %cst_62 = arith.constant 5.000000e-01 : f32
    %244 = vector.broadcast %cst_62 : f32 to vector<1x64xf32>
    %245 = arith.mulf %244, %242 : vector<1x64xf32>
    %246 = arith.mulf %243, %243 : vector<1x64xf32>
    %247 = arith.addf %246, %16 : vector<1x64xf32>
    %248 = math.sqrt %247 : vector<1x64xf32>
    %249 = arith.subf %248, %243 : vector<1x64xf32>
    %250 = arith.mulf %249, %14 : vector<1x64xf32>
    %251 = arith.addf %245, %250 : vector<1x64xf32>
    %c26_i32 = arith.constant 26 : i32
    %cst_63 = arith.constant dense<0.000000e+00> : vector<1x64xf32>
    %252 = tpu.matmul %251, %8, %cst_63 {dimension_numbers = #tpu.dot_dimension_numbers<[1], [0], [0], [1], [0, 0, 1, 1], [], []>} : vector<1x64xf32>, vector<64x64xf32>, vector<1x64xf32> -> vector<1x64xf32>
    %cst_64 = arith.constant 5.000000e-01 : f32
    %253 = vector.broadcast %cst_64 : f32 to vector<1x64xf32>
    %254 = arith.mulf %253, %251 : vector<1x64xf32>
    %255 = arith.mulf %252, %252 : vector<1x64xf32>
    %256 = arith.addf %255, %16 : vector<1x64xf32>
    %257 = math.sqrt %256 : vector<1x64xf32>
    %258 = arith.subf %257, %252 : vector<1x64xf32>
    %259 = arith.mulf %258, %14 : vector<1x64xf32>
    %260 = arith.addf %254, %259 : vector<1x64xf32>
    %c27_i32 = arith.constant 27 : i32
    %cst_65 = arith.constant dense<0.000000e+00> : vector<1x64xf32>
    %261 = tpu.matmul %260, %8, %cst_65 {dimension_numbers = #tpu.dot_dimension_numbers<[1], [0], [0], [1], [0, 0, 1, 1], [], []>} : vector<1x64xf32>, vector<64x64xf32>, vector<1x64xf32> -> vector<1x64xf32>
    %cst_66 = arith.constant 5.000000e-01 : f32
    %262 = vector.broadcast %cst_66 : f32 to vector<1x64xf32>
    %263 = arith.mulf %262, %260 : vector<1x64xf32>
    %264 = arith.mulf %261, %261 : vector<1x64xf32>
    %265 = arith.addf %264, %16 : vector<1x64xf32>
    %266 = math.sqrt %265 : vector<1x64xf32>
    %267 = arith.subf %266, %261 : vector<1x64xf32>
    %268 = arith.mulf %267, %14 : vector<1x64xf32>
    %269 = arith.addf %263, %268 : vector<1x64xf32>
    %c28_i32 = arith.constant 28 : i32
    %cst_67 = arith.constant dense<0.000000e+00> : vector<1x64xf32>
    %270 = tpu.matmul %269, %8, %cst_67 {dimension_numbers = #tpu.dot_dimension_numbers<[1], [0], [0], [1], [0, 0, 1, 1], [], []>} : vector<1x64xf32>, vector<64x64xf32>, vector<1x64xf32> -> vector<1x64xf32>
    %cst_68 = arith.constant 5.000000e-01 : f32
    %271 = vector.broadcast %cst_68 : f32 to vector<1x64xf32>
    %272 = arith.mulf %271, %269 : vector<1x64xf32>
    %273 = arith.mulf %270, %270 : vector<1x64xf32>
    %274 = arith.addf %273, %16 : vector<1x64xf32>
    %275 = math.sqrt %274 : vector<1x64xf32>
    %276 = arith.subf %275, %270 : vector<1x64xf32>
    %277 = arith.mulf %276, %14 : vector<1x64xf32>
    %278 = arith.addf %272, %277 : vector<1x64xf32>
    %c29_i32 = arith.constant 29 : i32
    %cst_69 = arith.constant dense<0.000000e+00> : vector<1x64xf32>
    %279 = tpu.matmul %278, %8, %cst_69 {dimension_numbers = #tpu.dot_dimension_numbers<[1], [0], [0], [1], [0, 0, 1, 1], [], []>} : vector<1x64xf32>, vector<64x64xf32>, vector<1x64xf32> -> vector<1x64xf32>
    %cst_70 = arith.constant 5.000000e-01 : f32
    %280 = vector.broadcast %cst_70 : f32 to vector<1x64xf32>
    %281 = arith.mulf %280, %278 : vector<1x64xf32>
    %282 = arith.mulf %279, %279 : vector<1x64xf32>
    %283 = arith.addf %282, %16 : vector<1x64xf32>
    %284 = math.sqrt %283 : vector<1x64xf32>
    %285 = arith.subf %284, %279 : vector<1x64xf32>
    %286 = arith.mulf %285, %14 : vector<1x64xf32>
    %287 = arith.addf %281, %286 : vector<1x64xf32>
    %c30_i32 = arith.constant 30 : i32
    %cst_71 = arith.constant dense<0.000000e+00> : vector<1x64xf32>
    %288 = tpu.matmul %287, %8, %cst_71 {dimension_numbers = #tpu.dot_dimension_numbers<[1], [0], [0], [1], [0, 0, 1, 1], [], []>} : vector<1x64xf32>, vector<64x64xf32>, vector<1x64xf32> -> vector<1x64xf32>
    %cst_72 = arith.constant 5.000000e-01 : f32
    %289 = vector.broadcast %cst_72 : f32 to vector<1x64xf32>
    %290 = arith.mulf %289, %287 : vector<1x64xf32>
    %291 = arith.mulf %288, %288 : vector<1x64xf32>
    %292 = arith.addf %291, %16 : vector<1x64xf32>
    %293 = math.sqrt %292 : vector<1x64xf32>
    %294 = arith.subf %293, %288 : vector<1x64xf32>
    %295 = arith.mulf %294, %14 : vector<1x64xf32>
    %296 = arith.addf %290, %295 : vector<1x64xf32>
    %c31_i32 = arith.constant 31 : i32
    %cst_73 = arith.constant dense<0.000000e+00> : vector<1x64xf32>
    %297 = tpu.matmul %296, %8, %cst_73 {dimension_numbers = #tpu.dot_dimension_numbers<[1], [0], [0], [1], [0, 0, 1, 1], [], []>} : vector<1x64xf32>, vector<64x64xf32>, vector<1x64xf32> -> vector<1x64xf32>
    %cst_74 = arith.constant 5.000000e-01 : f32
    %298 = vector.broadcast %cst_74 : f32 to vector<1x64xf32>
    %299 = arith.mulf %298, %296 : vector<1x64xf32>
    %300 = arith.mulf %297, %297 : vector<1x64xf32>
    %301 = arith.addf %300, %16 : vector<1x64xf32>
    %302 = math.sqrt %301 : vector<1x64xf32>
    %303 = arith.subf %302, %297 : vector<1x64xf32>
    %304 = arith.mulf %303, %14 : vector<1x64xf32>
    %305 = arith.addf %299, %304 : vector<1x64xf32>
    %c32_i32 = arith.constant 32 : i32
    %cst_75 = arith.constant dense<0.000000e+00> : vector<1x64xf32>
    %306 = tpu.matmul %305, %8, %cst_75 {dimension_numbers = #tpu.dot_dimension_numbers<[1], [0], [0], [1], [0, 0, 1, 1], [], []>} : vector<1x64xf32>, vector<64x64xf32>, vector<1x64xf32> -> vector<1x64xf32>
    %cst_76 = arith.constant 5.000000e-01 : f32
    %307 = vector.broadcast %cst_76 : f32 to vector<1x64xf32>
    %308 = arith.mulf %307, %305 : vector<1x64xf32>
    %309 = arith.mulf %306, %306 : vector<1x64xf32>
    %310 = arith.addf %309, %16 : vector<1x64xf32>
    %311 = math.sqrt %310 : vector<1x64xf32>
    %312 = arith.subf %311, %306 : vector<1x64xf32>
    %313 = arith.mulf %312, %14 : vector<1x64xf32>
    %314 = arith.addf %308, %313 : vector<1x64xf32>
    %c33_i32 = arith.constant 33 : i32
    %cst_77 = arith.constant dense<0.000000e+00> : vector<1x64xf32>
    %315 = tpu.matmul %314, %8, %cst_77 {dimension_numbers = #tpu.dot_dimension_numbers<[1], [0], [0], [1], [0, 0, 1, 1], [], []>} : vector<1x64xf32>, vector<64x64xf32>, vector<1x64xf32> -> vector<1x64xf32>
    %cst_78 = arith.constant 5.000000e-01 : f32
    %316 = vector.broadcast %cst_78 : f32 to vector<1x64xf32>
    %317 = arith.mulf %316, %314 : vector<1x64xf32>
    %318 = arith.mulf %315, %315 : vector<1x64xf32>
    %319 = arith.addf %318, %16 : vector<1x64xf32>
    %320 = math.sqrt %319 : vector<1x64xf32>
    %321 = arith.subf %320, %315 : vector<1x64xf32>
    %322 = arith.mulf %321, %14 : vector<1x64xf32>
    %323 = arith.addf %317, %322 : vector<1x64xf32>
    %c34_i32 = arith.constant 34 : i32
    %cst_79 = arith.constant dense<0.000000e+00> : vector<1x64xf32>
    %324 = tpu.matmul %323, %8, %cst_79 {dimension_numbers = #tpu.dot_dimension_numbers<[1], [0], [0], [1], [0, 0, 1, 1], [], []>} : vector<1x64xf32>, vector<64x64xf32>, vector<1x64xf32> -> vector<1x64xf32>
    %cst_80 = arith.constant 5.000000e-01 : f32
    %325 = vector.broadcast %cst_80 : f32 to vector<1x64xf32>
    %326 = arith.mulf %325, %323 : vector<1x64xf32>
    %327 = arith.mulf %324, %324 : vector<1x64xf32>
    %328 = arith.addf %327, %16 : vector<1x64xf32>
    %329 = math.sqrt %328 : vector<1x64xf32>
    %330 = arith.subf %329, %324 : vector<1x64xf32>
    %331 = arith.mulf %330, %14 : vector<1x64xf32>
    %332 = arith.addf %326, %331 : vector<1x64xf32>
    %c35_i32 = arith.constant 35 : i32
    %cst_81 = arith.constant dense<0.000000e+00> : vector<1x64xf32>
    %333 = tpu.matmul %332, %8, %cst_81 {dimension_numbers = #tpu.dot_dimension_numbers<[1], [0], [0], [1], [0, 0, 1, 1], [], []>} : vector<1x64xf32>, vector<64x64xf32>, vector<1x64xf32> -> vector<1x64xf32>
    %cst_82 = arith.constant 5.000000e-01 : f32
    %334 = vector.broadcast %cst_82 : f32 to vector<1x64xf32>
    %335 = arith.mulf %334, %332 : vector<1x64xf32>
    %336 = arith.mulf %333, %333 : vector<1x64xf32>
    %337 = arith.addf %336, %16 : vector<1x64xf32>
    %338 = math.sqrt %337 : vector<1x64xf32>
    %339 = arith.subf %338, %333 : vector<1x64xf32>
    %340 = arith.mulf %339, %14 : vector<1x64xf32>
    %341 = arith.addf %335, %340 : vector<1x64xf32>
    %c36_i32 = arith.constant 36 : i32
    %cst_83 = arith.constant dense<0.000000e+00> : vector<1x64xf32>
    %342 = tpu.matmul %341, %8, %cst_83 {dimension_numbers = #tpu.dot_dimension_numbers<[1], [0], [0], [1], [0, 0, 1, 1], [], []>} : vector<1x64xf32>, vector<64x64xf32>, vector<1x64xf32> -> vector<1x64xf32>
    %cst_84 = arith.constant 5.000000e-01 : f32
    %343 = vector.broadcast %cst_84 : f32 to vector<1x64xf32>
    %344 = arith.mulf %343, %341 : vector<1x64xf32>
    %345 = arith.mulf %342, %342 : vector<1x64xf32>
    %346 = arith.addf %345, %16 : vector<1x64xf32>
    %347 = math.sqrt %346 : vector<1x64xf32>
    %348 = arith.subf %347, %342 : vector<1x64xf32>
    %349 = arith.mulf %348, %14 : vector<1x64xf32>
    %350 = arith.addf %344, %349 : vector<1x64xf32>
    %c37_i32 = arith.constant 37 : i32
    %cst_85 = arith.constant dense<0.000000e+00> : vector<1x64xf32>
    %351 = tpu.matmul %350, %8, %cst_85 {dimension_numbers = #tpu.dot_dimension_numbers<[1], [0], [0], [1], [0, 0, 1, 1], [], []>} : vector<1x64xf32>, vector<64x64xf32>, vector<1x64xf32> -> vector<1x64xf32>
    %cst_86 = arith.constant 5.000000e-01 : f32
    %352 = vector.broadcast %cst_86 : f32 to vector<1x64xf32>
    %353 = arith.mulf %352, %350 : vector<1x64xf32>
    %354 = arith.mulf %351, %351 : vector<1x64xf32>
    %355 = arith.addf %354, %16 : vector<1x64xf32>
    %356 = math.sqrt %355 : vector<1x64xf32>
    %357 = arith.subf %356, %351 : vector<1x64xf32>
    %358 = arith.mulf %357, %14 : vector<1x64xf32>
    %359 = arith.addf %353, %358 : vector<1x64xf32>
    %c38_i32 = arith.constant 38 : i32
    %cst_87 = arith.constant dense<0.000000e+00> : vector<1x64xf32>
    %360 = tpu.matmul %359, %8, %cst_87 {dimension_numbers = #tpu.dot_dimension_numbers<[1], [0], [0], [1], [0, 0, 1, 1], [], []>} : vector<1x64xf32>, vector<64x64xf32>, vector<1x64xf32> -> vector<1x64xf32>
    %cst_88 = arith.constant 5.000000e-01 : f32
    %361 = vector.broadcast %cst_88 : f32 to vector<1x64xf32>
    %362 = arith.mulf %361, %359 : vector<1x64xf32>
    %363 = arith.mulf %360, %360 : vector<1x64xf32>
    %364 = arith.addf %363, %16 : vector<1x64xf32>
    %365 = math.sqrt %364 : vector<1x64xf32>
    %366 = arith.subf %365, %360 : vector<1x64xf32>
    %367 = arith.mulf %366, %14 : vector<1x64xf32>
    %368 = arith.addf %362, %367 : vector<1x64xf32>
    %c39_i32 = arith.constant 39 : i32
    %cst_89 = arith.constant dense<0.000000e+00> : vector<1x64xf32>
    %369 = tpu.matmul %368, %8, %cst_89 {dimension_numbers = #tpu.dot_dimension_numbers<[1], [0], [0], [1], [0, 0, 1, 1], [], []>} : vector<1x64xf32>, vector<64x64xf32>, vector<1x64xf32> -> vector<1x64xf32>
    %cst_90 = arith.constant 5.000000e-01 : f32
    %370 = vector.broadcast %cst_90 : f32 to vector<1x64xf32>
    %371 = arith.mulf %370, %368 : vector<1x64xf32>
    %372 = arith.mulf %369, %369 : vector<1x64xf32>
    %373 = arith.addf %372, %16 : vector<1x64xf32>
    %374 = math.sqrt %373 : vector<1x64xf32>
    %375 = arith.subf %374, %369 : vector<1x64xf32>
    %376 = arith.mulf %375, %14 : vector<1x64xf32>
    %377 = arith.addf %371, %376 : vector<1x64xf32>
    %c40_i32 = arith.constant 40 : i32
    %cst_91 = arith.constant dense<0.000000e+00> : vector<1x64xf32>
    %378 = tpu.matmul %377, %8, %cst_91 {dimension_numbers = #tpu.dot_dimension_numbers<[1], [0], [0], [1], [0, 0, 1, 1], [], []>} : vector<1x64xf32>, vector<64x64xf32>, vector<1x64xf32> -> vector<1x64xf32>
    %cst_92 = arith.constant 5.000000e-01 : f32
    %379 = vector.broadcast %cst_92 : f32 to vector<1x64xf32>
    %380 = arith.mulf %379, %377 : vector<1x64xf32>
    %381 = arith.mulf %378, %378 : vector<1x64xf32>
    %382 = arith.addf %381, %16 : vector<1x64xf32>
    %383 = math.sqrt %382 : vector<1x64xf32>
    %384 = arith.subf %383, %378 : vector<1x64xf32>
    %385 = arith.mulf %384, %14 : vector<1x64xf32>
    %386 = arith.addf %380, %385 : vector<1x64xf32>
    %c41_i32 = arith.constant 41 : i32
    %cst_93 = arith.constant dense<0.000000e+00> : vector<1x64xf32>
    %387 = tpu.matmul %386, %8, %cst_93 {dimension_numbers = #tpu.dot_dimension_numbers<[1], [0], [0], [1], [0, 0, 1, 1], [], []>} : vector<1x64xf32>, vector<64x64xf32>, vector<1x64xf32> -> vector<1x64xf32>
    %cst_94 = arith.constant 5.000000e-01 : f32
    %388 = vector.broadcast %cst_94 : f32 to vector<1x64xf32>
    %389 = arith.mulf %388, %386 : vector<1x64xf32>
    %390 = arith.mulf %387, %387 : vector<1x64xf32>
    %391 = arith.addf %390, %16 : vector<1x64xf32>
    %392 = math.sqrt %391 : vector<1x64xf32>
    %393 = arith.subf %392, %387 : vector<1x64xf32>
    %394 = arith.mulf %393, %14 : vector<1x64xf32>
    %395 = arith.addf %389, %394 : vector<1x64xf32>
    %c42_i32 = arith.constant 42 : i32
    %cst_95 = arith.constant dense<0.000000e+00> : vector<1x64xf32>
    %396 = tpu.matmul %395, %8, %cst_95 {dimension_numbers = #tpu.dot_dimension_numbers<[1], [0], [0], [1], [0, 0, 1, 1], [], []>} : vector<1x64xf32>, vector<64x64xf32>, vector<1x64xf32> -> vector<1x64xf32>
    %cst_96 = arith.constant 5.000000e-01 : f32
    %397 = vector.broadcast %cst_96 : f32 to vector<1x64xf32>
    %398 = arith.mulf %397, %395 : vector<1x64xf32>
    %399 = arith.mulf %396, %396 : vector<1x64xf32>
    %400 = arith.addf %399, %16 : vector<1x64xf32>
    %401 = math.sqrt %400 : vector<1x64xf32>
    %402 = arith.subf %401, %396 : vector<1x64xf32>
    %403 = arith.mulf %402, %14 : vector<1x64xf32>
    %404 = arith.addf %398, %403 : vector<1x64xf32>
    %c43_i32 = arith.constant 43 : i32
    %cst_97 = arith.constant dense<0.000000e+00> : vector<1x64xf32>
    %405 = tpu.matmul %404, %8, %cst_97 {dimension_numbers = #tpu.dot_dimension_numbers<[1], [0], [0], [1], [0, 0, 1, 1], [], []>} : vector<1x64xf32>, vector<64x64xf32>, vector<1x64xf32> -> vector<1x64xf32>
    %cst_98 = arith.constant 5.000000e-01 : f32
    %406 = vector.broadcast %cst_98 : f32 to vector<1x64xf32>
    %407 = arith.mulf %406, %404 : vector<1x64xf32>
    %408 = arith.mulf %405, %405 : vector<1x64xf32>
    %409 = arith.addf %408, %16 : vector<1x64xf32>
    %410 = math.sqrt %409 : vector<1x64xf32>
    %411 = arith.subf %410, %405 : vector<1x64xf32>
    %412 = arith.mulf %411, %14 : vector<1x64xf32>
    %413 = arith.addf %407, %412 : vector<1x64xf32>
    %c44_i32 = arith.constant 44 : i32
    %cst_99 = arith.constant dense<0.000000e+00> : vector<1x64xf32>
    %414 = tpu.matmul %413, %8, %cst_99 {dimension_numbers = #tpu.dot_dimension_numbers<[1], [0], [0], [1], [0, 0, 1, 1], [], []>} : vector<1x64xf32>, vector<64x64xf32>, vector<1x64xf32> -> vector<1x64xf32>
    %cst_100 = arith.constant 5.000000e-01 : f32
    %415 = vector.broadcast %cst_100 : f32 to vector<1x64xf32>
    %416 = arith.mulf %415, %413 : vector<1x64xf32>
    %417 = arith.mulf %414, %414 : vector<1x64xf32>
    %418 = arith.addf %417, %16 : vector<1x64xf32>
    %419 = math.sqrt %418 : vector<1x64xf32>
    %420 = arith.subf %419, %414 : vector<1x64xf32>
    %421 = arith.mulf %420, %14 : vector<1x64xf32>
    %422 = arith.addf %416, %421 : vector<1x64xf32>
    %c45_i32 = arith.constant 45 : i32
    %cst_101 = arith.constant dense<0.000000e+00> : vector<1x64xf32>
    %423 = tpu.matmul %422, %8, %cst_101 {dimension_numbers = #tpu.dot_dimension_numbers<[1], [0], [0], [1], [0, 0, 1, 1], [], []>} : vector<1x64xf32>, vector<64x64xf32>, vector<1x64xf32> -> vector<1x64xf32>
    %cst_102 = arith.constant 5.000000e-01 : f32
    %424 = vector.broadcast %cst_102 : f32 to vector<1x64xf32>
    %425 = arith.mulf %424, %422 : vector<1x64xf32>
    %426 = arith.mulf %423, %423 : vector<1x64xf32>
    %427 = arith.addf %426, %16 : vector<1x64xf32>
    %428 = math.sqrt %427 : vector<1x64xf32>
    %429 = arith.subf %428, %423 : vector<1x64xf32>
    %430 = arith.mulf %429, %14 : vector<1x64xf32>
    %431 = arith.addf %425, %430 : vector<1x64xf32>
    %c46_i32 = arith.constant 46 : i32
    %cst_103 = arith.constant dense<0.000000e+00> : vector<1x64xf32>
    %432 = tpu.matmul %431, %8, %cst_103 {dimension_numbers = #tpu.dot_dimension_numbers<[1], [0], [0], [1], [0, 0, 1, 1], [], []>} : vector<1x64xf32>, vector<64x64xf32>, vector<1x64xf32> -> vector<1x64xf32>
    %cst_104 = arith.constant 5.000000e-01 : f32
    %433 = vector.broadcast %cst_104 : f32 to vector<1x64xf32>
    %434 = arith.mulf %433, %431 : vector<1x64xf32>
    %435 = arith.mulf %432, %432 : vector<1x64xf32>
    %436 = arith.addf %435, %16 : vector<1x64xf32>
    %437 = math.sqrt %436 : vector<1x64xf32>
    %438 = arith.subf %437, %432 : vector<1x64xf32>
    %439 = arith.mulf %438, %14 : vector<1x64xf32>
    %440 = arith.addf %434, %439 : vector<1x64xf32>
    %c47_i32 = arith.constant 47 : i32
    %cst_105 = arith.constant dense<0.000000e+00> : vector<1x64xf32>
    %441 = tpu.matmul %440, %8, %cst_105 {dimension_numbers = #tpu.dot_dimension_numbers<[1], [0], [0], [1], [0, 0, 1, 1], [], []>} : vector<1x64xf32>, vector<64x64xf32>, vector<1x64xf32> -> vector<1x64xf32>
    %cst_106 = arith.constant 5.000000e-01 : f32
    %442 = vector.broadcast %cst_106 : f32 to vector<1x64xf32>
    %443 = arith.mulf %442, %440 : vector<1x64xf32>
    %444 = arith.mulf %441, %441 : vector<1x64xf32>
    %445 = arith.addf %444, %16 : vector<1x64xf32>
    %446 = math.sqrt %445 : vector<1x64xf32>
    %447 = arith.subf %446, %441 : vector<1x64xf32>
    %448 = arith.mulf %447, %14 : vector<1x64xf32>
    %449 = arith.addf %443, %448 : vector<1x64xf32>
    %c48_i32 = arith.constant 48 : i32
    %cst_107 = arith.constant dense<0.000000e+00> : vector<1x64xf32>
    %450 = tpu.matmul %449, %8, %cst_107 {dimension_numbers = #tpu.dot_dimension_numbers<[1], [0], [0], [1], [0, 0, 1, 1], [], []>} : vector<1x64xf32>, vector<64x64xf32>, vector<1x64xf32> -> vector<1x64xf32>
    %cst_108 = arith.constant 5.000000e-01 : f32
    %451 = vector.broadcast %cst_108 : f32 to vector<1x64xf32>
    %452 = arith.mulf %451, %449 : vector<1x64xf32>
    %453 = arith.mulf %450, %450 : vector<1x64xf32>
    %454 = arith.addf %453, %16 : vector<1x64xf32>
    %455 = math.sqrt %454 : vector<1x64xf32>
    %456 = arith.subf %455, %450 : vector<1x64xf32>
    %457 = arith.mulf %456, %14 : vector<1x64xf32>
    %458 = arith.addf %452, %457 : vector<1x64xf32>
    %c49_i32 = arith.constant 49 : i32
    %cst_109 = arith.constant dense<0.000000e+00> : vector<1x64xf32>
    %459 = tpu.matmul %458, %8, %cst_109 {dimension_numbers = #tpu.dot_dimension_numbers<[1], [0], [0], [1], [0, 0, 1, 1], [], []>} : vector<1x64xf32>, vector<64x64xf32>, vector<1x64xf32> -> vector<1x64xf32>
    %cst_110 = arith.constant 5.000000e-01 : f32
    %460 = vector.broadcast %cst_110 : f32 to vector<1x64xf32>
    %461 = arith.mulf %460, %458 : vector<1x64xf32>
    %462 = arith.mulf %459, %459 : vector<1x64xf32>
    %463 = arith.addf %462, %16 : vector<1x64xf32>
    %464 = math.sqrt %463 : vector<1x64xf32>
    %465 = arith.subf %464, %459 : vector<1x64xf32>
    %466 = arith.mulf %465, %14 : vector<1x64xf32>
    %467 = arith.addf %461, %466 : vector<1x64xf32>
    %c50_i32 = arith.constant 50 : i32
    %cst_111 = arith.constant dense<0.000000e+00> : vector<1x64xf32>
    %468 = tpu.matmul %467, %8, %cst_111 {dimension_numbers = #tpu.dot_dimension_numbers<[1], [0], [0], [1], [0, 0, 1, 1], [], []>} : vector<1x64xf32>, vector<64x64xf32>, vector<1x64xf32> -> vector<1x64xf32>
    %cst_112 = arith.constant 5.000000e-01 : f32
    %469 = vector.broadcast %cst_112 : f32 to vector<1x64xf32>
    %470 = arith.mulf %469, %467 : vector<1x64xf32>
    %471 = arith.mulf %468, %468 : vector<1x64xf32>
    %472 = arith.addf %471, %16 : vector<1x64xf32>
    %473 = math.sqrt %472 : vector<1x64xf32>
    %474 = arith.subf %473, %468 : vector<1x64xf32>
    %475 = arith.mulf %474, %14 : vector<1x64xf32>
    %476 = arith.addf %470, %475 : vector<1x64xf32>
    %c51_i32 = arith.constant 51 : i32
    %cst_113 = arith.constant dense<0.000000e+00> : vector<1x64xf32>
    %477 = tpu.matmul %476, %8, %cst_113 {dimension_numbers = #tpu.dot_dimension_numbers<[1], [0], [0], [1], [0, 0, 1, 1], [], []>} : vector<1x64xf32>, vector<64x64xf32>, vector<1x64xf32> -> vector<1x64xf32>
    %cst_114 = arith.constant 5.000000e-01 : f32
    %478 = vector.broadcast %cst_114 : f32 to vector<1x64xf32>
    %479 = arith.mulf %478, %476 : vector<1x64xf32>
    %480 = arith.mulf %477, %477 : vector<1x64xf32>
    %481 = arith.addf %480, %16 : vector<1x64xf32>
    %482 = math.sqrt %481 : vector<1x64xf32>
    %483 = arith.subf %482, %477 : vector<1x64xf32>
    %484 = arith.mulf %483, %14 : vector<1x64xf32>
    %485 = arith.addf %479, %484 : vector<1x64xf32>
    %c52_i32 = arith.constant 52 : i32
    %cst_115 = arith.constant dense<0.000000e+00> : vector<1x64xf32>
    %486 = tpu.matmul %485, %8, %cst_115 {dimension_numbers = #tpu.dot_dimension_numbers<[1], [0], [0], [1], [0, 0, 1, 1], [], []>} : vector<1x64xf32>, vector<64x64xf32>, vector<1x64xf32> -> vector<1x64xf32>
    %cst_116 = arith.constant 5.000000e-01 : f32
    %487 = vector.broadcast %cst_116 : f32 to vector<1x64xf32>
    %488 = arith.mulf %487, %485 : vector<1x64xf32>
    %489 = arith.mulf %486, %486 : vector<1x64xf32>
    %490 = arith.addf %489, %16 : vector<1x64xf32>
    %491 = math.sqrt %490 : vector<1x64xf32>
    %492 = arith.subf %491, %486 : vector<1x64xf32>
    %493 = arith.mulf %492, %14 : vector<1x64xf32>
    %494 = arith.addf %488, %493 : vector<1x64xf32>
    %c53_i32 = arith.constant 53 : i32
    %cst_117 = arith.constant dense<0.000000e+00> : vector<1x64xf32>
    %495 = tpu.matmul %494, %8, %cst_117 {dimension_numbers = #tpu.dot_dimension_numbers<[1], [0], [0], [1], [0, 0, 1, 1], [], []>} : vector<1x64xf32>, vector<64x64xf32>, vector<1x64xf32> -> vector<1x64xf32>
    %cst_118 = arith.constant 5.000000e-01 : f32
    %496 = vector.broadcast %cst_118 : f32 to vector<1x64xf32>
    %497 = arith.mulf %496, %494 : vector<1x64xf32>
    %498 = arith.mulf %495, %495 : vector<1x64xf32>
    %499 = arith.addf %498, %16 : vector<1x64xf32>
    %500 = math.sqrt %499 : vector<1x64xf32>
    %501 = arith.subf %500, %495 : vector<1x64xf32>
    %502 = arith.mulf %501, %14 : vector<1x64xf32>
    %503 = arith.addf %497, %502 : vector<1x64xf32>
    %c54_i32 = arith.constant 54 : i32
    %cst_119 = arith.constant dense<0.000000e+00> : vector<1x64xf32>
    %504 = tpu.matmul %503, %8, %cst_119 {dimension_numbers = #tpu.dot_dimension_numbers<[1], [0], [0], [1], [0, 0, 1, 1], [], []>} : vector<1x64xf32>, vector<64x64xf32>, vector<1x64xf32> -> vector<1x64xf32>
    %cst_120 = arith.constant 5.000000e-01 : f32
    %505 = vector.broadcast %cst_120 : f32 to vector<1x64xf32>
    %506 = arith.mulf %505, %503 : vector<1x64xf32>
    %507 = arith.mulf %504, %504 : vector<1x64xf32>
    %508 = arith.addf %507, %16 : vector<1x64xf32>
    %509 = math.sqrt %508 : vector<1x64xf32>
    %510 = arith.subf %509, %504 : vector<1x64xf32>
    %511 = arith.mulf %510, %14 : vector<1x64xf32>
    %512 = arith.addf %506, %511 : vector<1x64xf32>
    %c55_i32 = arith.constant 55 : i32
    %cst_121 = arith.constant dense<0.000000e+00> : vector<1x64xf32>
    %513 = tpu.matmul %512, %8, %cst_121 {dimension_numbers = #tpu.dot_dimension_numbers<[1], [0], [0], [1], [0, 0, 1, 1], [], []>} : vector<1x64xf32>, vector<64x64xf32>, vector<1x64xf32> -> vector<1x64xf32>
    %cst_122 = arith.constant 5.000000e-01 : f32
    %514 = vector.broadcast %cst_122 : f32 to vector<1x64xf32>
    %515 = arith.mulf %514, %512 : vector<1x64xf32>
    %516 = arith.mulf %513, %513 : vector<1x64xf32>
    %517 = arith.addf %516, %16 : vector<1x64xf32>
    %518 = math.sqrt %517 : vector<1x64xf32>
    %519 = arith.subf %518, %513 : vector<1x64xf32>
    %520 = arith.mulf %519, %14 : vector<1x64xf32>
    %521 = arith.addf %515, %520 : vector<1x64xf32>
    %c56_i32 = arith.constant 56 : i32
    %cst_123 = arith.constant dense<0.000000e+00> : vector<1x64xf32>
    %522 = tpu.matmul %521, %8, %cst_123 {dimension_numbers = #tpu.dot_dimension_numbers<[1], [0], [0], [1], [0, 0, 1, 1], [], []>} : vector<1x64xf32>, vector<64x64xf32>, vector<1x64xf32> -> vector<1x64xf32>
    %cst_124 = arith.constant 5.000000e-01 : f32
    %523 = vector.broadcast %cst_124 : f32 to vector<1x64xf32>
    %524 = arith.mulf %523, %521 : vector<1x64xf32>
    %525 = arith.mulf %522, %522 : vector<1x64xf32>
    %526 = arith.addf %525, %16 : vector<1x64xf32>
    %527 = math.sqrt %526 : vector<1x64xf32>
    %528 = arith.subf %527, %522 : vector<1x64xf32>
    %529 = arith.mulf %528, %14 : vector<1x64xf32>
    %530 = arith.addf %524, %529 : vector<1x64xf32>
    %c57_i32 = arith.constant 57 : i32
    %cst_125 = arith.constant dense<0.000000e+00> : vector<1x64xf32>
    %531 = tpu.matmul %530, %8, %cst_125 {dimension_numbers = #tpu.dot_dimension_numbers<[1], [0], [0], [1], [0, 0, 1, 1], [], []>} : vector<1x64xf32>, vector<64x64xf32>, vector<1x64xf32> -> vector<1x64xf32>
    %cst_126 = arith.constant 5.000000e-01 : f32
    %532 = vector.broadcast %cst_126 : f32 to vector<1x64xf32>
    %533 = arith.mulf %532, %530 : vector<1x64xf32>
    %534 = arith.mulf %531, %531 : vector<1x64xf32>
    %535 = arith.addf %534, %16 : vector<1x64xf32>
    %536 = math.sqrt %535 : vector<1x64xf32>
    %537 = arith.subf %536, %531 : vector<1x64xf32>
    %538 = arith.mulf %537, %14 : vector<1x64xf32>
    %539 = arith.addf %533, %538 : vector<1x64xf32>
    %c58_i32 = arith.constant 58 : i32
    %cst_127 = arith.constant dense<0.000000e+00> : vector<1x64xf32>
    %540 = tpu.matmul %539, %8, %cst_127 {dimension_numbers = #tpu.dot_dimension_numbers<[1], [0], [0], [1], [0, 0, 1, 1], [], []>} : vector<1x64xf32>, vector<64x64xf32>, vector<1x64xf32> -> vector<1x64xf32>
    %cst_128 = arith.constant 5.000000e-01 : f32
    %541 = vector.broadcast %cst_128 : f32 to vector<1x64xf32>
    %542 = arith.mulf %541, %539 : vector<1x64xf32>
    %543 = arith.mulf %540, %540 : vector<1x64xf32>
    %544 = arith.addf %543, %16 : vector<1x64xf32>
    %545 = math.sqrt %544 : vector<1x64xf32>
    %546 = arith.subf %545, %540 : vector<1x64xf32>
    %547 = arith.mulf %546, %14 : vector<1x64xf32>
    %548 = arith.addf %542, %547 : vector<1x64xf32>
    %c59_i32 = arith.constant 59 : i32
    %cst_129 = arith.constant dense<0.000000e+00> : vector<1x64xf32>
    %549 = tpu.matmul %548, %8, %cst_129 {dimension_numbers = #tpu.dot_dimension_numbers<[1], [0], [0], [1], [0, 0, 1, 1], [], []>} : vector<1x64xf32>, vector<64x64xf32>, vector<1x64xf32> -> vector<1x64xf32>
    %cst_130 = arith.constant 5.000000e-01 : f32
    %550 = vector.broadcast %cst_130 : f32 to vector<1x64xf32>
    %551 = arith.mulf %550, %548 : vector<1x64xf32>
    %552 = arith.mulf %549, %549 : vector<1x64xf32>
    %553 = arith.addf %552, %16 : vector<1x64xf32>
    %554 = math.sqrt %553 : vector<1x64xf32>
    %555 = arith.subf %554, %549 : vector<1x64xf32>
    %556 = arith.mulf %555, %14 : vector<1x64xf32>
    %557 = arith.addf %551, %556 : vector<1x64xf32>
    %c60_i32 = arith.constant 60 : i32
    %cst_131 = arith.constant dense<0.000000e+00> : vector<1x64xf32>
    %558 = tpu.matmul %557, %8, %cst_131 {dimension_numbers = #tpu.dot_dimension_numbers<[1], [0], [0], [1], [0, 0, 1, 1], [], []>} : vector<1x64xf32>, vector<64x64xf32>, vector<1x64xf32> -> vector<1x64xf32>
    %cst_132 = arith.constant 5.000000e-01 : f32
    %559 = vector.broadcast %cst_132 : f32 to vector<1x64xf32>
    %560 = arith.mulf %559, %557 : vector<1x64xf32>
    %561 = arith.mulf %558, %558 : vector<1x64xf32>
    %562 = arith.addf %561, %16 : vector<1x64xf32>
    %563 = math.sqrt %562 : vector<1x64xf32>
    %564 = arith.subf %563, %558 : vector<1x64xf32>
    %565 = arith.mulf %564, %14 : vector<1x64xf32>
    %566 = arith.addf %560, %565 : vector<1x64xf32>
    %c61_i32 = arith.constant 61 : i32
    %cst_133 = arith.constant dense<0.000000e+00> : vector<1x64xf32>
    %567 = tpu.matmul %566, %8, %cst_133 {dimension_numbers = #tpu.dot_dimension_numbers<[1], [0], [0], [1], [0, 0, 1, 1], [], []>} : vector<1x64xf32>, vector<64x64xf32>, vector<1x64xf32> -> vector<1x64xf32>
    %cst_134 = arith.constant 5.000000e-01 : f32
    %568 = vector.broadcast %cst_134 : f32 to vector<1x64xf32>
    %569 = arith.mulf %568, %566 : vector<1x64xf32>
    %570 = arith.mulf %567, %567 : vector<1x64xf32>
    %571 = arith.addf %570, %16 : vector<1x64xf32>
    %572 = math.sqrt %571 : vector<1x64xf32>
    %573 = arith.subf %572, %567 : vector<1x64xf32>
    %574 = arith.mulf %573, %14 : vector<1x64xf32>
    %575 = arith.addf %569, %574 : vector<1x64xf32>
    %c62_i32 = arith.constant 62 : i32
    %cst_135 = arith.constant dense<0.000000e+00> : vector<1x64xf32>
    %576 = tpu.matmul %575, %8, %cst_135 {dimension_numbers = #tpu.dot_dimension_numbers<[1], [0], [0], [1], [0, 0, 1, 1], [], []>} : vector<1x64xf32>, vector<64x64xf32>, vector<1x64xf32> -> vector<1x64xf32>
    %cst_136 = arith.constant 5.000000e-01 : f32
    %577 = vector.broadcast %cst_136 : f32 to vector<1x64xf32>
    %578 = arith.mulf %577, %575 : vector<1x64xf32>
    %579 = arith.mulf %576, %576 : vector<1x64xf32>
    %580 = arith.addf %579, %16 : vector<1x64xf32>
    %581 = math.sqrt %580 : vector<1x64xf32>
    %582 = arith.subf %581, %576 : vector<1x64xf32>
    %583 = arith.mulf %582, %14 : vector<1x64xf32>
    %584 = arith.addf %578, %583 : vector<1x64xf32>
    %c63_i32 = arith.constant 63 : i32
    %cst_137 = arith.constant dense<0.000000e+00> : vector<1x64xf32>
    %585 = tpu.matmul %584, %8, %cst_137 {dimension_numbers = #tpu.dot_dimension_numbers<[1], [0], [0], [1], [0, 0, 1, 1], [], []>} : vector<1x64xf32>, vector<64x64xf32>, vector<1x64xf32> -> vector<1x64xf32>
    %cst_138 = arith.constant 5.000000e-01 : f32
    %586 = vector.broadcast %cst_138 : f32 to vector<1x64xf32>
    %587 = arith.mulf %586, %584 : vector<1x64xf32>
    %588 = arith.mulf %585, %585 : vector<1x64xf32>
    %589 = arith.addf %588, %16 : vector<1x64xf32>
    %590 = math.sqrt %589 : vector<1x64xf32>
    %591 = arith.subf %590, %585 : vector<1x64xf32>
    %592 = arith.mulf %591, %14 : vector<1x64xf32>
    %593 = arith.addf %587, %592 : vector<1x64xf32>
    %c0_139 = arith.constant 0 : index
    %c0_140 = arith.constant 0 : index
    %594 = vector.load %arg2[%c0_139, %c0_140] : memref<1x64xf32, #tpu.memory_space<vmem>>, vector<1x64xf32>
    tpu.vector_store %arg2[%c0_139, %c0_140], %593 {strides = array<i32>} : memref<1x64xf32, #tpu.memory_space<vmem>>, vector<1x64xf32>,
    return
  }
}

</mosaic_0001>

<llo_original>
// kernel: tile.18
$region0: #{tile.18}
  #allocation0 [shape = 's32[1]{0}', space=sflag, size = 0x4, scoped, tag = 'scoped memory for tile.18']
  %s0 = inlined_call_operand.vmem [shape: f32[8], index: 0, kind: input, shape index: {}]
  %s1 = inlined_call_operand.vmem [shape: f32[8,8], index: 1, kind: output, shape index: {}]
  // Predicated region
  $region2: #{tile.18} parent=0 // pred_check
    _
  $region3: #{tile.18} parent=0 // pred_check_branch
    %3 = sbr.rel (0) target = $region5
  $region4: #{tile.18} parent=0 // pred_region
    _
  $region5: #{tile.18} parent=0 // pred_fallthru
    _
  %v4 = vld [vmem:[%s0] ss:$0 sm:$0xff]
  %5 = vst [vmem:[%s1] sm:$0xff] %v4

// kernel: rpdcc_forward.1
$region0: #{rpdcc_forward.1}
  #allocation0 [shape = 'u32[]', space=smem, size = 0x4, offset = 0x4, fixed_abs, tag = 'smem constant byte address 0x4 - core index']
  #allocation1 [shape = 'u32[144,128]{1,0:T(1,128)}', space=vmem, size = 0x12000, scoped, tag = 'internal scratch']
  %s0 = inlined_call_operand.vmem [shape: f32[64,8], index: 0, kind: input, shape index: {}]
  %s1 = inlined_call_operand.vmem [shape: f32[208,64], index: 1, kind: input, shape index: {}]
  %s2 = inlined_call_operand.vmem [shape: f32[1,64], index: 2, kind: output, shape index: {}]
  %s3 = sld [smem:[#allocation0]]
  $region18: #{rpdcc_forward.1} parent=0
    _
  %s5 = ssub.s32 1, %s3
  %s6 = scalar_select 0, %s5, %s3
  // Predicated region
  $region2: #{rpdcc_forward.1} parent=0 // pred_check
    _
  $region3: #{rpdcc_forward.1} parent=0 // pred_check_branch
    %8 = sbr.rel (0) target = $region5
  $region4: #{rpdcc_forward.1} parent=0 // pred_region
    _
  $region5: #{rpdcc_forward.1} parent=0 // pred_fallthru
    _
  // Predicated region
  $region6: #{rpdcc_forward.1} parent=0 // pred_check
    _
  $region7: #{rpdcc_forward.1} parent=0 // pred_check_branch
    %10 = sbr.rel (0) target = $region9
  $region8: #{rpdcc_forward.1} parent=0 // pred_region
    _
  $region9: #{rpdcc_forward.1} parent=0 // pred_fallthru
    _
  %v11 = vld [vmem:[%s1] sm:$0xff]
  %v12 = vld [vmem:[%s1 + $0x8] sm:$0xff]
  %v13 = vld [vmem:[%s1 + $0x10] sm:$0xff]
  %v14 = vld [vmem:[%s1 + $0x18] sm:$0xff]
  %v15 = vld [vmem:[%s1 + $0x20] sm:$0xff]
  %v16 = vld [vmem:[%s1 + $0x28] sm:$0xff]
  %v17 = vld [vmem:[%s1 + $0x30] sm:$0xff]
  %v18 = vld [vmem:[%s1 + $0x38] sm:$0xff]
  %v19 = vld [vmem:[%s1 + $0x40] sm:$0xff]
  %v20 = vld [vmem:[%s1 + $0x48] sm:$0xff]
  %v21 = vld [vmem:[%s1 + $0x50] sm:$0xff]
  %v22 = vld [vmem:[%s1 + $0x58] sm:$0xff]
  %v23 = vld [vmem:[%s1 + $0x60] sm:$0xff]
  %v24 = vld [vmem:[%s1 + $0x68] sm:$0xff]
  %v25 = vld [vmem:[%s1 + $0x70] sm:$0xff]
  %v26 = vld [vmem:[%s1 + $0x78] sm:$0xff]
  %v27 = vld [vmem:[%s1 + $0x80] sm:$0xff]
  %v28 = vld [vmem:[%s1 + $0x88] sm:$0xff]
  %v29 = vld [vmem:[%s1 + $0x90] sm:$0xff]
  %v30 = vld [vmem:[%s1 + $0x98] sm:$0xff]
  %v31 = vld [vmem:[%s1 + $0xa0] sm:$0xff]
  %v32 = vld [vmem:[%s1 + $0xa8] sm:$0xff]
  %v33 = vld [vmem:[%s1 + $0xb0] sm:$0xff]
  %v34 = vld [vmem:[%s1 + $0xb8] sm:$0xff]
  %v35 = vld [vmem:[%s1 + $0xc0] sm:$0xff]
  %v36 = vld [vmem:[%s1 + $0xc8] sm:$0x1]
  %v37 = vld [vmem:[%s0] sm:$0xff]
  %v38 = vld [vmem:[%s0 + $0x8] sm:$0xff]
  %v39 = vld [vmem:[%s0 + $0x10] sm:$0xff]
  %v40 = vld [vmem:[%s0 + $0x18] sm:$0xff]
  %v41 = vld [vmem:[%s0 + $0x20] sm:$0xff]
  %v42 = vld [vmem:[%s0 + $0x28] sm:$0xff]
  %v43 = vld [vmem:[%s0 + $0x30] sm:$0xff]
  %v44 = vld [vmem:[%s0 + $0x38] sm:$0xff]
  %vm45 = vcmask 64512
  %v47 = vsel %vm45, %v37, 0
  %v50 = vsel %vm45, %v38, 0
  %v53 = vsel %vm45, %v39, 0
  %v56 = vsel %vm45, %v40, 0
  %v59 = vsel %vm45, %v41, 0
  %v62 = vsel %vm45, %v42, 0
  %v65 = vsel %vm45, %v43, 0
  %v68 = vsel %vm45, %v44, 0
  %70 = vmatprep.subr.mxu0 0.0
  %71 = vmatpush1.msra.mxu0 %v35
  %72 = vmatprep.subr.mxu0 0.0
  %73 = vmatpush1.msra.mxu0 0.0
  %74 = vmatprep.subr.mxu0 0.0
  %75 = vmatpush1.msra.mxu0 0.0
  %76 = vmatprep.subr.mxu0 0.0
  %77 = vmatpush1.msra.mxu0 0.0
  %78 = vmatprep.subr.mxu0 0.0
  %79 = vmatpush1.msra.mxu0 0.0
  %80 = vmatprep.subr.mxu0 0.0
  %81 = vmatpush1.msra.mxu0 0.0
  %82 = vmatprep.subr.mxu0 0.0
  %83 = vmatpush1.msra.mxu0 0.0
  %84 = vmatprep.subr.mxu0 0.0
  %85 = vmatpush1.msra.mxu0 0.0
  %86 = vmatprep.subr.mxu0 0.0
  %87 = vmatpush1.msra.mxu0 0.0
  %88 = vmatprep.subr.mxu0 0.0
  %89 = vmatpush1.msra.mxu0 0.0
  %90 = vmatprep.subr.mxu0 0.0
  %91 = vmatpush1.msra.mxu0 0.0
  %92 = vmatprep.subr.mxu0 0.0
  %93 = vmatpush1.msra.mxu0 0.0
  %94 = vmatprep.subr.mxu0 0.0
  %95 = vmatpush1.msra.mxu0 0.0
  %96 = vmatprep.subr.mxu0 0.0
  %97 = vmatpush1.msra.mxu0 0.0
  %98 = vmatprep.subr.mxu0 0.0
  %99 = vmatpush1.msra.mxu0 0.0
  %100 = vmatprep.subr.mxu0 0.0
  %101 = vmatpush1.msra.mxu0 0.0
  %102 = vmatprep.subr.mxu0 0.0
  %103 = vmatpush1.msra.mxu0 0.0
  %104 = vmatprep.subr.mxu0 0.0
  %105 = vmatpush1.msra.mxu0 0.0
  %106 = vmatprep.subr.mxu0 0.0
  %107 = vmatpush1.msra.mxu0 0.0
  %108 = vmatprep.subr.mxu0 0.0
  %109 = vmatpush1.msra.mxu0 0.0
  %110 = vmatprep.subr.mxu0 0.0
  %111 = vmatpush1.msra.mxu0 0.0
  %112 = vmatprep.subr.mxu0 0.0
  %113 = vmatpush1.msra.mxu0 0.0
  %114 = vmatprep.subr.mxu0 0.0
  %115 = vmatpush1.msra.mxu0 0.0
  %116 = vmatprep.subr.mxu0 0.0
  %117 = vmatpush1.msra.mxu0 0.0
  %118 = vmatprep.subr.mxu0 0.0
  %119 = vmatpush1.msra.mxu0 0.0
  %120 = vmatprep.subr.mxu0 0.0
  %121 = vmatpush1.msra.mxu0 0.0
  %122 = vmatprep.subr.mxu0 0.0
  %123 = vmatpush1.msra.mxu0 0.0
  %124 = vmatprep.subr.mxu0 0.0
  %125 = vmatpush1.msra.mxu0 0.0
  %126 = vmatprep.subr.mxu0 0.0
  %127 = vmatpush1.msra.mxu0 0.0
  %128 = vmatprep.subr.mxu0 0.0
  %129 = vmatpush1.msra.mxu0 0.0
  %130 = vmatprep.subr.mxu0 0.0
  %131 = vmatpush1.msra.mxu0 0.0
  %132 = vmatprep.subr.mxu0 0.0
  %133 = vmatpush1.msra.mxu0 0.0
  %134 = vmatprep.mubr.f32.mxu0 0.0
  %135 = vmatmul.mubr.f32.gmra.mrb[0].mxu0 %v47
  %v136 = vpop.f32.mrb[0].mxu0
  %v137 = vadd.f32 0.0, %v136
  %v138 = vpop.f32.mrb[0].mxu0
  %139 = vmatprep.mubr.f32.mxu0 0.0
  %140 = vmatmul.mubr.f32.gmra.mrb[0].mxu0 %v50
  %v141 = vpop.f32.mrb[0].mxu0
  %v142 = vadd.f32 0.0, %v141
  %v143 = vpop.f32.mrb[0].mxu0
  %144 = vmatprep.mubr.f32.mxu0 0.0
  %145 = vmatmul.mubr.f32.gmra.mrb[0].mxu0 %v53
  %v146 = vpop.f32.mrb[0].mxu0
  %v147 = vadd.f32 0.0, %v146
  %v148 = vpop.f32.mrb[0].mxu0
  %149 = vmatprep.mubr.f32.mxu0 0.0
  %150 = vmatmul.mubr.f32.gmra.mrb[0].mxu0 %v56
  %v151 = vpop.f32.mrb[0].mxu0
  %v152 = vadd.f32 0.0, %v151
  %v153 = vpop.f32.mrb[0].mxu0
  %154 = vmatprep.mubr.f32.mxu0 0.0
  %155 = vmatmul.mubr.f32.gmra.mrb[0].mxu0 %v59
  %v156 = vpop.f32.mrb[0].mxu0
  %v157 = vadd.f32 0.0, %v156
  %v158 = vpop.f32.mrb[0].mxu0
  %159 = vmatprep.mubr.f32.mxu0 0.0
  %160 = vmatmul.mubr.f32.gmra.mrb[0].mxu0 %v62
  %v161 = vpop.f32.mrb[0].mxu0
  %v162 = vadd.f32 0.0, %v161
  %v163 = vpop.f32.mrb[0].mxu0
  %164 = vmatprep.mubr.f32.mxu0 0.0
  %165 = vmatmul.mubr.f32.gmra.mrb[0].mxu0 %v65
  %v166 = vpop.f32.mrb[0].mxu0
  %v167 = vadd.f32 0.0, %v166
  %v168 = vpop.f32.mrb[0].mxu0
  %169 = vmatprep.mubr.f32.mxu0 0.0
  %170 = vmatmul.mubr.f32.gmra.mrb[0].mxu0 %v68
  %v171 = vpop.f32.mrb[0].mxu0
  %v172 = vadd.f32 0.0, %v171
  %v173 = vpop.f32.mrb[0].mxu0
  %174 = vdwg.mxu0
  %vm175 = vcmask 523264
  %v177 = vsel %vm175, %v11, 0
  %v180 = vsel %vm175, %v12, 0
  %v183 = vsel %vm175, %v13, 0
  %v186 = vsel %vm175, %v14, 0
  %v189 = vsel %vm175, %v15, 0
  %v192 = vsel %vm175, %v16, 0
  %v195 = vsel %vm175, %v17, 0
  %v198 = vsel %vm175, %v18, 0
  %200 = vmatprep.subr.mxu0 0.0
  %201 = vmatpush1.msra.mxu0 %v137
  %202 = vmatprep.subr.mxu0 0.0
  %203 = vmatpush1.msra.mxu0 %v142
  %204 = vmatprep.subr.mxu0 0.0
  %205 = vmatpush1.msra.mxu0 %v147
  %206 = vmatprep.subr.mxu0 0.0
  %207 = vmatpush1.msra.mxu0 %v152
  %208 = vmatprep.subr.mxu0 0.0
  %209 = vmatpush1.msra.mxu0 %v157
  %210 = vmatprep.subr.mxu0 0.0
  %211 = vmatpush1.msra.mxu0 %v162
  %212 = vmatprep.subr.mxu0 0.0
  %213 = vmatpush1.msra.mxu0 %v167
  %214 = vmatprep.subr.mxu0 0.0
  %215 = vmatpush1.msra.mxu0 %v172
  %216 = vmatprep.subr.mxu0 0.0
  %217 = vmatpush1.msra.mxu0 0.0
  %218 = vmatprep.subr.mxu0 0.0
  %219 = vmatpush1.msra.mxu0 0.0
  %220 = vmatprep.subr.mxu0 0.0
  %221 = vmatpush1.msra.mxu0 0.0
  %222 = vmatprep.subr.mxu0 0.0
  %223 = vmatpush1.msra.mxu0 0.0
  %224 = vmatprep.subr.mxu0 0.0
  %225 = vmatpush1.msra.mxu0 0.0
  %226 = vmatprep.subr.mxu0 0.0
  %227 = vmatpush1.msra.mxu0 0.0
  %228 = vmatprep.subr.mxu0 0.0
  %229 = vmatpush1.msra.mxu0 0.0
  %230 = vmatprep.subr.mxu0 0.0
  %231 = vmatpush1.msra.mxu0 0.0
  %232 = vmatprep.subr.mxu0 0.0
  %233 = vmatpush1.msra.mxu0 0.0
  %234 = vmatprep.subr.mxu0 0.0
  %235 = vmatpush1.msra.mxu0 0.0
  %236 = vmatprep.subr.mxu0 0.0
  %237 = vmatpush1.msra.mxu0 0.0
  %238 = vmatprep.subr.mxu0 0.0
  %239 = vmatpush1.msra.mxu0 0.0
  %240 = vmatprep.subr.mxu0 0.0
  %241 = vmatpush1.msra.mxu0 0.0
  %242 = vmatprep.subr.mxu0 0.0
  %243 = vmatpush1.msra.mxu0 0.0
  %244 = vmatprep.subr.mxu0 0.0
  %245 = vmatpush1.msra.mxu0 0.0
  %246 = vmatprep.subr.mxu0 0.0
  %247 = vmatpush1.msra.mxu0 0.0
  %248 = vmatprep.subr.mxu0 0.0
  %249 = vmatpush1.msra.mxu0 0.0
  %250 = vmatprep.subr.mxu0 0.0
  %251 = vmatpush1.msra.mxu0 0.0
  %252 = vmatprep.subr.mxu0 0.0
  %253 = vmatpush1.msra.mxu0 0.0
  %254 = vmatprep.subr.mxu0 0.0
  %255 = vmatpush1.msra.mxu0 0.0
  %256 = vmatprep.subr.mxu0 0.0
  %257 = vmatpush1.msra.mxu0 0.0
  %258 = vmatprep.subr.mxu0 0.0
  %259 = vmatpush1.msra.mxu0 0.0
  %260 = vmatprep.subr.mxu0 0.0
  %261 = vmatpush1.msra.mxu0 0.0
  %262 = vmatprep.subr.mxu0 0.0
  %263 = vmatpush1.msra.mxu0 0.0
  %264 = vmatprep.mubr.f32.mxu0 0.0
  %265 = vmatmul.mubr.f32.gmra.mrb[0].mxu0 %v177
  %v266 = vpop.f32.mrb[0].mxu0
  %v267 = vadd.f32 0.0, %v266
  %v268 = vpop.f32.mrb[0].mxu0
  %269 = vmatprep.mubr.f32.mxu0 0.0
  %270 = vmatmul.mubr.f32.gmra.mrb[0].mxu0 %v180
  %v271 = vpop.f32.mrb[0].mxu0
  %v272 = vadd.f32 0.0, %v271
  %v273 = vpop.f32.mrb[0].mxu0
  %274 = vmatprep.mubr.f32.mxu0 0.0
  %275 = vmatmul.mubr.f32.gmra.mrb[0].mxu0 %v183
  %v276 = vpop.f32.mrb[0].mxu0
  %v277 = vadd.f32 0.0, %v276
  %v278 = vpop.f32.mrb[0].mxu0
  %279 = vmatprep.mubr.f32.mxu0 0.0
  %280 = vmatmul.mubr.f32.gmra.mrb[0].mxu0 %v186
  %v281 = vpop.f32.mrb[0].mxu0
  %v282 = vadd.f32 0.0, %v281
  %v283 = vpop.f32.mrb[0].mxu0
  %284 = vmatprep.mubr.f32.mxu0 0.0
  %285 = vmatmul.mubr.f32.gmra.mrb[0].mxu0 %v189
  %v286 = vpop.f32.mrb[0].mxu0
  %v287 = vadd.f32 0.0, %v286
  %v288 = vpop.f32.mrb[0].mxu0
  %289 = vmatprep.mubr.f32.mxu0 0.0
  %290 = vmatmul.mubr.f32.gmra.mrb[0].mxu0 %v192
  %v291 = vpop.f32.mrb[0].mxu0
  %v292 = vadd.f32 0.0, %v291
  %v293 = vpop.f32.mrb[0].mxu0
  %294 = vmatprep.mubr.f32.mxu0 0.0
  %295 = vmatmul.mubr.f32.gmra.mrb[0].mxu0 %v195
  %v296 = vpop.f32.mrb[0].mxu0
  %v297 = vadd.f32 0.0, %v296
  %v298 = vpop.f32.mrb[0].mxu0
  %299 = vmatprep.mubr.f32.mxu0 0.0
  %300 = vmatmul.mubr.f32.gmra.mrb[0].mxu0 %v198
  %v301 = vpop.f32.mrb[0].mxu0
  %v302 = vadd.f32 0.0, %v301
  %v303 = vpop.f32.mrb[0].mxu0
  %304 = vdwg.mxu0
  %v305 = vmul.f32 %v267, %v19
  %v306 = vmul.f32 %v272, %v20
  %v307 = vmul.f32 %v277, %v21
  %v308 = vmul.f32 %v282, %v22
  %v309 = vmul.f32 %v287, %v23
  %v310 = vmul.f32 %v292, %v24
  %v311 = vmul.f32 %v297, %v25
  %v312 = vmul.f32 %v302, %v26
  %v313 = vmul.f32 %v267, %v27
  %v314 = vmul.f32 %v272, %v28
  %v315 = vmul.f32 %v277, %v29
  %v316 = vmul.f32 %v282, %v30
  %v317 = vmul.f32 %v287, %v31
  %v318 = vmul.f32 %v292, %v32
  %v319 = vmul.f32 %v297, %v33
  %v320 = vmul.f32 %v302, %v34
  %v321 = vsel %vm175, %v313, 0.0
  %v322 = vsel %vm175, %v314, 0.0
  %v323 = vadd.f32 %v321, %v322
  %v324 = vsel %vm175, %v315, 0.0
  %v325 = vadd.f32 %v323, %v324
  %v326 = vsel %vm175, %v316, 0.0
  %v327 = vadd.f32 %v325, %v326
  %v328 = vsel %vm175, %v317, 0.0
  %v329 = vadd.f32 %v327, %v328
  %v330 = vsel %vm175, %v318, 0.0
  %v331 = vadd.f32 %v329, %v330
  %v332 = vsel %vm175, %v319, 0.0
  %v333 = vadd.f32 %v331, %v332
  %v334 = vsel %vm175, %v320, 0.0
  %v335 = vadd.f32 %v333, %v334
  %v336 = vrot.slane %v335, 4
  %v337 = vadd.f32 %v335, %v336
  %v338 = vrot.slane %v337, 2
  %v339 = vadd.f32 %v337, %v338
  %v340 = vrot.slane %v339, 1
  %v341 = vadd.f32 %v339, %v340
  %v342 = vadd.f32 %v341, %v36
  %v343 = vrcp.pop %v342
  %v344 = vmul.f32 0.25, %v343
  %v345 = vmul.f32 %v342, 4.0
  %v346 = vrsqrt.pop %v342
  %v348 = vsel %vm175, %v346, 0
  %350 = vmatprep.subr.mxu0 0.0
  %351 = vmatpush1.msra.mxu0 %v305
  %352 = vmatprep.subr.mxu0 0.0
  %353 = vmatpush1.msra.mxu0 %v306
  %354 = vmatprep.subr.mxu0 0.0
  %355 = vmatpush1.msra.mxu0 %v307
  %356 = vmatprep.subr.mxu0 0.0
  %357 = vmatpush1.msra.mxu0 %v308
  %358 = vmatprep.subr.mxu0 0.0
  %359 = vmatpush1.msra.mxu0 %v309
  %360 = vmatprep.subr.mxu0 0.0
  %361 = vmatpush1.msra.mxu0 %v310
  %362 = vmatprep.subr.mxu0 0.0
  %363 = vmatpush1.msra.mxu0 %v311
  %364 = vmatprep.subr.mxu0 0.0
  %365 = vmatpush1.msra.mxu0 %v312
  %366 = vmatprep.subr.mxu0 0.0
  %367 = vmatpush1.msra.mxu0 0.0
  %368 = vmatprep.subr.mxu0 0.0
  %369 = vmatpush1.msra.mxu0 0.0
  %370 = vmatprep.subr.mxu0 0.0
  %371 = vmatpush1.msra.mxu0 0.0
  %372 = vmatprep.subr.mxu0 0.0
  %373 = vmatpush1.msra.mxu0 0.0
  %374 = vmatprep.subr.mxu0 0.0
  %375 = vmatpush1.msra.mxu0 0.0
  %376 = vmatprep.subr.mxu0 0.0
  %377 = vmatpush1.msra.mxu0 0.0
  %378 = vmatprep.subr.mxu0 0.0
  %379 = vmatpush1.msra.mxu0 0.0
  %380 = vmatprep.subr.mxu0 0.0
  %381 = vmatpush1.msra.mxu0 0.0
  %382 = vmatprep.subr.mxu0 0.0
  %383 = vmatpush1.msra.mxu0 0.0
  %384 = vmatprep.subr.mxu0 0.0
  %385 = vmatpush1.msra.mxu0 0.0
  %386 = vmatprep.subr.mxu0 0.0
  %387 = vmatpush1.msra.mxu0 0.0
  %388 = vmatprep.subr.mxu0 0.0
  %389 = vmatpush1.msra.mxu0 0.0
  %390 = vmatprep.subr.mxu0 0.0
  %391 = vmatpush1.msra.mxu0 0.0
  %392 = vmatprep.subr.mxu0 0.0
  %393 = vmatpush1.msra.mxu0 0.0
  %394 = vmatprep.subr.mxu0 0.0
  %395 = vmatpush1.msra.mxu0 0.0
  %396 = vmatprep.subr.mxu0 0.0
  %397 = vmatpush1.msra.mxu0 0.0
  %398 = vmatprep.subr.mxu0 0.0
  %399 = vmatpush1.msra.mxu0 0.0
  %400 = vmatprep.subr.mxu0 0.0
  %401 = vmatpush1.msra.mxu0 0.0
  %402 = vmatprep.subr.mxu0 0.0
  %403 = vmatpush1.msra.mxu0 0.0
  %404 = vmatprep.subr.mxu0 0.0
  %405 = vmatpush1.msra.mxu0 0.0
  %406 = vmatprep.subr.mxu0 0.0
  %407 = vmatpush1.msra.mxu0 0.0
  %408 = vmatprep.subr.mxu0 0.0
  %409 = vmatpush1.msra.mxu0 0.0
  %410 = vmatprep.subr.mxu0 0.0
  %411 = vmatpush1.msra.mxu0 0.0
  %412 = vmatprep.subr.mxu0 0.0
  %413 = vmatpush1.msra.mxu0 0.0
  %414 = vmatprep.mubr.f32.mxu0 0.0
  %415 = vmatmul.mubr.f32.gmra.mrb[0].mxu0 %v348
  %v416 = vpop.f32.mrb[0].mxu0
  %v417 = vadd.f32 0.0, %v416
  %v418 = vpop.f32.mrb[0].mxu0
  %419 = vdwg.mxu0
  %v420 = vmul.f32 %v346, 0.5
  %v421 = vmul.f32 %v417, %v417
  %v422 = vadd.f32 %v421, %v345
  %v423 = vrsqrt.pop %v422
  %v424 = vmul.f32 %v422, %v423
  %vm425 = vcmp.eq.f32.partialorder %v422, inf
  %v426 = vsel %vm425, %v422, %v424
  %vm427 = vcmp.eq.f32.partialorder %v422, 0.0
  %v428 = vand.u32 %v422, 2147483648
  %v429 = vsel %vm427, %v428, %v426
  %v430 = vsub.f32 %v429, %v417
  %v431 = vmul.f32 %v430, %v344
  %v432 = vadd.f32 %v420, %v431
  %v434 = vsel %vm175, %v432, 0
  %436 = vmatprep.subr.mxu0 0.0
  %437 = vmatpush1.msra.mxu0 %v305
  %438 = vmatprep.subr.mxu0 0.0
  %439 = vmatpush1.msra.mxu0 %v306
  %440 = vmatprep.subr.mxu0 0.0
  %441 = vmatpush1.msra.mxu0 %v307
  %442 = vmatprep.subr.mxu0 0.0
  %443 = vmatpush1.msra.mxu0 %v308
  %444 = vmatprep.subr.mxu0 0.0
  %445 = vmatpush1.msra.mxu0 %v309
  %446 = vmatprep.subr.mxu0 0.0
  %447 = vmatpush1.msra.mxu0 %v310
  %448 = vmatprep.subr.mxu0 0.0
  %449 = vmatpush1.msra.mxu0 %v311
  %450 = vmatprep.subr.mxu0 0.0
  %451 = vmatpush1.msra.mxu0 %v312
  %452 = vmatprep.subr.mxu0 0.0
  %453 = vmatpush1.msra.mxu0 0.0
  %454 = vmatprep.subr.mxu0 0.0
  %455 = vmatpush1.msra.mxu0 0.0
  %456 = vmatprep.subr.mxu0 0.0
  %457 = vmatpush1.msra.mxu0 0.0
  %458 = vmatprep.subr.mxu0 0.0
  %459 = vmatpush1.msra.mxu0 0.0
  %460 = vmatprep.subr.mxu0 0.0
  %461 = vmatpush1.msra.mxu0 0.0
  %462 = vmatprep.subr.mxu0 0.0
  %463 = vmatpush1.msra.mxu0 0.0
  %464 = vmatprep.subr.mxu0 0.0
  %465 = vmatpush1.msra.mxu0 0.0
  %466 = vmatprep.subr.mxu0 0.0
  %467 = vmatpush1.msra.mxu0 0.0
  %468 = vmatprep.subr.mxu0 0.0
  %469 = vmatpush1.msra.mxu0 0.0
  %470 = vmatprep.subr.mxu0 0.0
  %471 = vmatpush1.msra.mxu0 0.0
  %472 = vmatprep.subr.mxu0 0.0
  %473 = vmatpush1.msra.mxu0 0.0
  %474 = vmatprep.subr.mxu0 0.0
  %475 = vmatpush1.msra.mxu0 0.0
  %476 = vmatprep.subr.mxu0 0.0
  %477 = vmatpush1.msra.mxu0 0.0
  %478 = vmatprep.subr.mxu0 0.0
  %479 = vmatpush1.msra.mxu0 0.0
  %480 = vmatprep.subr.mxu0 0.0
  %481 = vmatpush1.msra.mxu0 0.0
  %482 = vmatprep.subr.mxu0 0.0
  %483 = vmatpush1.msra.mxu0 0.0
  %484 = vmatprep.subr.mxu0 0.0
  %485 = vmatpush1.msra.mxu0 0.0
  %486 = vmatprep.subr.mxu0 0.0
  %487 = vmatpush1.msra.mxu0 0.0
  %488 = vmatprep.subr.mxu0 0.0
  %489 = vmatpush1.msra.mxu0 0.0
  %490 = vmatprep.subr.mxu0 0.0
  %491 = vmatpush1.msra.mxu0 0.0
  %492 = vmatprep.subr.mxu0 0.0
  %493 = vmatpush1.msra.mxu0 0.0
  %494 = vmatprep.subr.mxu0 0.0
  %495 = vmatpush1.msra.mxu0 0.0
  %496 = vmatprep.subr.mxu0 0.0
  %497 = vmatpush1.msra.mxu0 0.0
  %498 = vmatprep.subr.mxu0 0.0
  %499 = vmatpush1.msra.mxu0 0.0
  %500 = vmatprep.mubr.f32.mxu0 0.0
  %501 = vmatmul.mubr.f32.gmra.mrb[0].mxu0 %v434
  %v502 = vpop.f32.mrb[0].mxu0
  %v503 = vadd.f32 0.0, %v502
  %v504 = vpop.f32.mrb[0].mxu0
  %505 = vdwg.mxu0
  %v506 = vmul.f32 %v432, 0.5
  %v507 = vmul.f32 %v503, %v503
  %v508 = vadd.f32 %v507, %v345
  %v509 = vrsqrt.pop %v508
  %v510 = vmul.f32 %v508, %v509
  %vm511 = vcmp.eq.f32.partialorder %v508, inf
  %v512 = vsel %vm511, %v508, %v510
  %vm513 = vcmp.eq.f32.partialorder %v508, 0.0
  %v514 = vand.u32 %v508, 2147483648
  %v515 = vsel %vm513, %v514, %v512
  %v516 = vsub.f32 %v515, %v503
  %v517 = vmul.f32 %v516, %v344
  %v518 = vadd.f32 %v506, %v517
  %v520 = vsel %vm175, %v518, 0
  %522 = vmatprep.subr.mxu0 0.0
  %523 = vmatpush1.msra.mxu0 %v305
  %524 = vmatprep.subr.mxu0 0.0
  %525 = vmatpush1.msra.mxu0 %v306
  %526 = vmatprep.subr.mxu0 0.0
  %527 = vmatpush1.msra.mxu0 %v307
  %528 = vmatprep.subr.mxu0 0.0
  %529 = vmatpush1.msra.mxu0 %v308
  %530 = vmatprep.subr.mxu0 0.0
  %531 = vmatpush1.msra.mxu0 %v309
  %532 = vmatprep.subr.mxu0 0.0
  %533 = vmatpush1.msra.mxu0 %v310
  %534 = vmatprep.subr.mxu0 0.0
  %535 = vmatpush1.msra.mxu0 %v311
  %536 = vmatprep.subr.mxu0 0.0
  %537 = vmatpush1.msra.mxu0 %v312
  %538 = vmatprep.subr.mxu0 0.0
  %539 = vmatpush1.msra.mxu0 0.0
  %540 = vmatprep.subr.mxu0 0.0
  %541 = vmatpush1.msra.mxu0 0.0
  %542 = vmatprep.subr.mxu0 0.0
  %543 = vmatpush1.msra.mxu0 0.0
  %544 = vmatprep.subr.mxu0 0.0
  %545 = vmatpush1.msra.mxu0 0.0
  %546 = vmatprep.subr.mxu0 0.0
  %547 = vmatpush1.msra.mxu0 0.0
  %548 = vmatprep.subr.mxu0 0.0
  %549 = vmatpush1.msra.mxu0 0.0
  %550 = vmatprep.subr.mxu0 0.0
  %551 = vmatpush1.msra.mxu0 0.0
  %552 = vmatprep.subr.mxu0 0.0
  %553 = vmatpush1.msra.mxu0 0.0
  %554 = vmatprep.subr.mxu0 0.0
  %555 = vmatpush1.msra.mxu0 0.0
  %556 = vmatprep.subr.mxu0 0.0
  %557 = vmatpush1.msra.mxu0 0.0
  %558 = vmatprep.subr.mxu0 0.0
  %559 = vmatpush1.msra.mxu0 0.0
  %560 = vmatprep.subr.mxu0 0.0
  %561 = vmatpush1.msra.mxu0 0.0
  %562 = vmatprep.subr.mxu0 0.0
  %563 = vmatpush1.msra.mxu0 0.0
  %564 = vmatprep.subr.mxu0 0.0
  %565 = vmatpush1.msra.mxu0 0.0
  %566 = vmatprep.subr.mxu0 0.0
  %567 = vmatpush1.msra.mxu0 0.0
  %568 = vmatprep.subr.mxu0 0.0
  %569 = vmatpush1.msra.mxu0 0.0
  %570 = vmatprep.subr.mxu0 0.0
  %571 = vmatpush1.msra.mxu0 0.0
  %572 = vmatprep.subr.mxu0 0.0
  %573 = vmatpush1.msra.mxu0 0.0
  %574 = vmatprep.subr.mxu0 0.0
  %575 = vmatpush1.msra.mxu0 0.0
  %576 = vmatprep.subr.mxu0 0.0
  %577 = vmatpush1.msra.mxu0 0.0
  %578 = vmatprep.subr.mxu0 0.0
  %579 = vmatpush1.msra.mxu0 0.0
  %580 = vmatprep.subr.mxu0 0.0
  %581 = vmatpush1.msra.mxu0 0.0
  %582 = vmatprep.subr.mxu0 0.0
  %583 = vmatpush1.msra.mxu0 0.0
  %584 = vmatprep.subr.mxu0 0.0
  %585 = vmatpush1.msra.mxu0 0.0
  %586 = vmatprep.mubr.f32.mxu0 0.0
  %587 = vmatmul.mubr.f32.gmra.mrb[0].mxu0 %v520
  %v588 = vpop.f32.mrb[0].mxu0
  %v589 = vadd.f32 0.0, %v588
  %v590 = vpop.f32.mrb[0].mxu0
  %591 = vdwg.mxu0
  %v592 = vmul.f32 %v518, 0.5
  %v593 = vmul.f32 %v589, %v589
  %v594 = vadd.f32 %v593, %v345
  %v595 = vrsqrt.pop %v594
  %v596 = vmul.f32 %v594, %v595
  %vm597 = vcmp.eq.f32.partialorder %v594, inf
  %v598 = vsel %vm597, %v594, %v596
  %vm599 = vcmp.eq.f32.partialorder %v594, 0.0
  %v600 = vand.u32 %v594, 2147483648
  %v601 = vsel %vm599, %v600, %v598
  %v602 = vsub.f32 %v601, %v589
  %v603 = vmul.f32 %v602, %v344
  %v604 = vadd.f32 %v592, %v603
  %v606 = vsel %vm175, %v604, 0
  %608 = vmatprep.subr.mxu0 0.0
  %609 = vmatpush1.msra.mxu0 %v305
  %610 = vmatprep.subr.mxu0 0.0
  %611 = vmatpush1.msra.mxu0 %v306
  %612 = vmatprep.subr.mxu0 0.0
  %613 = vmatpush1.msra.mxu0 %v307
  %614 = vmatprep.subr.mxu0 0.0
  %615 = vmatpush1.msra.mxu0 %v308
  %616 = vmatprep.subr.mxu0 0.0
  %617 = vmatpush1.msra.mxu0 %v309
  %618 = vmatprep.subr.mxu0 0.0
  %619 = vmatpush1.msra.mxu0 %v310
  %620 = vmatprep.subr.mxu0 0.0
  %621 = vmatpush1.msra.mxu0 %v311
  %622 = vmatprep.subr.mxu0 0.0
  %623 = vmatpush1.msra.mxu0 %v312
  %624 = vmatprep.subr.mxu0 0.0
  %625 = vmatpush1.msra.mxu0 0.0
  %626 = vmatprep.subr.mxu0 0.0
  %627 = vmatpush1.msra.mxu0 0.0
  %628 = vmatprep.subr.mxu0 0.0
  %629 = vmatpush1.msra.mxu0 0.0
  %630 = vmatprep.subr.mxu0 0.0
  %631 = vmatpush1.msra.mxu0 0.0
  %632 = vmatprep.subr.mxu0 0.0
  %633 = vmatpush1.msra.mxu0 0.0
  %634 = vmatprep.subr.mxu0 0.0
  %635 = vmatpush1.msra.mxu0 0.0
  %636 = vmatprep.subr.mxu0 0.0
  %637 = vmatpush1.msra.mxu0 0.0
  %638 = vmatprep.subr.mxu0 0.0
  %639 = vmatpush1.msra.mxu0 0.0
  %640 = vmatprep.subr.mxu0 0.0
  %641 = vmatpush1.msra.mxu0 0.0
  %642 = vmatprep.subr.mxu0 0.0
  %643 = vmatpush1.msra.mxu0 0.0
  %644 = vmatprep.subr.mxu0 0.0
  %645 = vmatpush1.msra.mxu0 0.0
  %646 = vmatprep.subr.mxu0 0.0
  %647 = vmatpush1.msra.mxu0 0.0
  %648 = vmatprep.subr.mxu0 0.0
  %649 = vmatpush1.msra.mxu0 0.0
  %650 = vmatprep.subr.mxu0 0.0
  %651 = vmatpush1.msra.mxu0 0.0
  %652 = vmatprep.subr.mxu0 0.0
  %653 = vmatpush1.msra.mxu0 0.0
  %654 = vmatprep.subr.mxu0 0.0
  %655 = vmatpush1.msra.mxu0 0.0
  %656 = vmatprep.subr.mxu0 0.0
  %657 = vmatpush1.msra.mxu0 0.0
  %658 = vmatprep.subr.mxu0 0.0
  %659 = vmatpush1.msra.mxu0 0.0
  %660 = vmatprep.subr.mxu0 0.0
  %661 = vmatpush1.msra.mxu0 0.0
  %662 = vmatprep.subr.mxu0 0.0
  %663 = vmatpush1.msra.mxu0 0.0
  %664 = vmatprep.subr.mxu0 0.0
  %665 = vmatpush1.msra.mxu0 0.0
  %666 = vmatprep.subr.mxu0 0.0
  %667 = vmatpush1.msra.mxu0 0.0
  %668 = vmatprep.subr.mxu0 0.0
  %669 = vmatpush1.msra.mxu0 0.0
  %670 = vmatprep.subr.mxu0 0.0
  %671 = vmatpush1.msra.mxu0 0.0
  %672 = vmatprep.mubr.f32.mxu0 0.0
  %673 = vmatmul.mubr.f32.gmra.mrb[0].mxu0 %v606
  %v674 = vpop.f32.mrb[0].mxu0
  %v675 = vadd.f32 0.0, %v674
  %v676 = vpop.f32.mrb[0].mxu0
  %677 = vdwg.mxu0
  %v678 = vmul.f32 %v604, 0.5
  %v679 = vmul.f32 %v675, %v675
  %v680 = vadd.f32 %v679, %v345
  %v681 = vrsqrt.pop %v680
  %v682 = vmul.f32 %v680, %v681
  %vm683 = vcmp.eq.f32.partialorder %v680, inf
  %v684 = vsel %vm683, %v680, %v682
  %vm685 = vcmp.eq.f32.partialorder %v680, 0.0
  %v686 = vand.u32 %v680, 2147483648
  %v687 = vsel %vm685, %v686, %v684
  %v688 = vsub.f32 %v687, %v675
  %v689 = vmul.f32 %v688, %v344
  %v690 = vadd.f32 %v678, %v689
  %v692 = vsel %vm175, %v690, 0
  %694 = vmatprep.subr.mxu0 0.0
  %695 = vmatpush1.msra.mxu0 %v305
  %696 = vmatprep.subr.mxu0 0.0
  %697 = vmatpush1.msra.mxu0 %v306
  %698 = vmatprep.subr.mxu0 0.0
  %699 = vmatpush1.msra.mxu0 %v307
  %700 = vmatprep.subr.mxu0 0.0
  %701 = vmatpush1.msra.mxu0 %v308
  %702 = vmatprep.subr.mxu0 0.0
  %703 = vmatpush1.msra.mxu0 %v309
  %704 = vmatprep.subr.mxu0 0.0
  %705 = vmatpush1.msra.mxu0 %v310
  %706 = vmatprep.subr.mxu0 0.0
  %707 = vmatpush1.msra.mxu0 %v311
  %708 = vmatprep.subr.mxu0 0.0
  %709 = vmatpush1.msra.mxu0 %v312
  %710 = vmatprep.subr.mxu0 0.0
  %711 = vmatpush1.msra.mxu0 0.0
  %712 = vmatprep.subr.mxu0 0.0
  %713 = vmatpush1.msra.mxu0 0.0
  %714 = vmatprep.subr.mxu0 0.0
  %715 = vmatpush1.msra.mxu0 0.0
  %716 = vmatprep.subr.mxu0 0.0
  %717 = vmatpush1.msra.mxu0 0.0
  %718 = vmatprep.subr.mxu0 0.0
  %719 = vmatpush1.msra.mxu0 0.0
  %720 = vmatprep.subr.mxu0 0.0
  %721 = vmatpush1.msra.mxu0 0.0
  %722 = vmatprep.subr.mxu0 0.0
  %723 = vmatpush1.msra.mxu0 0.0
  %724 = vmatprep.subr.mxu0 0.0
  %725 = vmatpush1.msra.mxu0 0.0
  %726 = vmatprep.subr.mxu0 0.0
  %727 = vmatpush1.msra.mxu0 0.0
  %728 = vmatprep.subr.mxu0 0.0
  %729 = vmatpush1.msra.mxu0 0.0
  %730 = vmatprep.subr.mxu0 0.0
  %731 = vmatpush1.msra.mxu0 0.0
  %732 = vmatprep.subr.mxu0 0.0
  %733 = vmatpush1.msra.mxu0 0.0
  %734 = vmatprep.subr.mxu0 0.0
  %735 = vmatpush1.msra.mxu0 0.0
  %736 = vmatprep.subr.mxu0 0.0
  %737 = vmatpush1.msra.mxu0 0.0
  %738 = vmatprep.subr.mxu0 0.0
  %739 = vmatpush1.msra.mxu0 0.0
  %740 = vmatprep.subr.mxu0 0.0
  %741 = vmatpush1.msra.mxu0 0.0
  %742 = vmatprep.subr.mxu0 0.0
  %743 = vmatpush1.msra.mxu0 0.0
  %744 = vmatprep.subr.mxu0 0.0
  %745 = vmatpush1.msra.mxu0 0.0
  %746 = vmatprep.subr.mxu0 0.0
  %747 = vmatpush1.msra.mxu0 0.0
  %748 = vmatprep.subr.mxu0 0.0
  %749 = vmatpush1.msra.mxu0 0.0
  %750 = vmatprep.subr.mxu0 0.0
  %751 = vmatpush1.msra.mxu0 0.0
  %752 = vmatprep.subr.mxu0 0.0
  %753 = vmatpush1.msra.mxu0 0.0
  %754 = vmatprep.subr.mxu0 0.0
  %755 = vmatpush1.msra.mxu0 0.0
  %756 = vmatprep.subr.mxu0 0.0
  %757 = vmatpush1.msra.mxu0 0.0
  %758 = vmatprep.mubr.f32.mxu0 0.0
  %759 = vmatmul.mubr.f32.gmra.mrb[0].mxu0 %v692
  %v760 = vpop.f32.mrb[0].mxu0
  %v761 = vadd.f32 0.0, %v760
  %v762 = vpop.f32.mrb[0].mxu0
  %763 = vdwg.mxu0
  %v764 = vmul.f32 %v690, 0.5
  %v765 = vmul.f32 %v761, %v761
  %v766 = vadd.f32 %v765, %v345
  %v767 = vrsqrt.pop %v766
  %v768 = vmul.f32 %v766, %v767
  %vm769 = vcmp.eq.f32.partialorder %v766, inf
  %v770 = vsel %vm769, %v766, %v768
  %vm771 = vcmp.eq.f32.partialorder %v766, 0.0
  %v772 = vand.u32 %v766, 2147483648
  %v773 = vsel %vm771, %v772, %v770
  %v774 = vsub.f32 %v773, %v761
  %v775 = vmul.f32 %v774, %v344
  %v776 = vadd.f32 %v764, %v775
  %v778 = vsel %vm175, %v776, 0
  %780 = vmatprep.subr.mxu0 0.0
  %781 = vmatpush1.msra.mxu0 %v305
  %782 = vmatprep.subr.mxu0 0.0
  %783 = vmatpush1.msra.mxu0 %v306
  %784 = vmatprep.subr.mxu0 0.0
  %785 = vmatpush1.msra.mxu0 %v307
  %786 = vmatprep.subr.mxu0 0.0
  %787 = vmatpush1.msra.mxu0 %v308
  %788 = vmatprep.subr.mxu0 0.0
  %789 = vmatpush1.msra.mxu0 %v309
  %790 = vmatprep.subr.mxu0 0.0
  %791 = vmatpush1.msra.mxu0 %v310
  %792 = vmatprep.subr.mxu0 0.0
  %793 = vmatpush1.msra.mxu0 %v311
  %794 = vmatprep.subr.mxu0 0.0
  %795 = vmatpush1.msra.mxu0 %v312
  %796 = vmatprep.subr.mxu0 0.0
  %797 = vmatpush1.msra.mxu0 0.0
  %798 = vmatprep.subr.mxu0 0.0
  %799 = vmatpush1.msra.mxu0 0.0
  %800 = vmatprep.subr.mxu0 0.0
  %801 = vmatpush1.msra.mxu0 0.0
  %802 = vmatprep.subr.mxu0 0.0
  %803 = vmatpush1.msra.mxu0 0.0
  %804 = vmatprep.subr.mxu0 0.0
  %805 = vmatpush1.msra.mxu0 0.0
  %806 = vmatprep.subr.mxu0 0.0
  %807 = vmatpush1.msra.mxu0 0.0
  %808 = vmatprep.subr.mxu0 0.0
  %809 = vmatpush1.msra.mxu0 0.0
  %810 = vmatprep.subr.mxu0 0.0
  %811 = vmatpush1.msra.mxu0 0.0
  %812 = vmatprep.subr.mxu0 0.0
  %813 = vmatpush1.msra.mxu0 0.0
  %814 = vmatprep.subr.mxu0 0.0
  %815 = vmatpush1.msra.mxu0 0.0
  %816 = vmatprep.subr.mxu0 0.0
  %817 = vmatpush1.msra.mxu0 0.0
  %818 = vmatprep.subr.mxu0 0.0
  %819 = vmatpush1.msra.mxu0 0.0
  %820 = vmatprep.subr.mxu0 0.0
  %821 = vmatpush1.msra.mxu0 0.0
  %822 = vmatprep.subr.mxu0 0.0
  %823 = vmatpush1.msra.mxu0 0.0
  %824 = vmatprep.subr.mxu0 0.0
  %825 = vmatpush1.msra.mxu0 0.0
  %826 = vmatprep.subr.mxu0 0.0
  %827 = vmatpush1.msra.mxu0 0.0
  %828 = vmatprep.subr.mxu0 0.0
  %829 = vmatpush1.msra.mxu0 0.0
  %830 = vmatprep.subr.mxu0 0.0
  %831 = vmatpush1.msra.mxu0 0.0
  %832 = vmatprep.subr.mxu0 0.0
  %833 = vmatpush1.msra.mxu0 0.0
  %834 = vmatprep.subr.mxu0 0.0
  %835 = vmatpush1.msra.mxu0 0.0
  %836 = vmatprep.subr.mxu0 0.0
  %837 = vmatpush1.msra.mxu0 0.0
  %838 = vmatprep.subr.mxu0 0.0
  %839 = vmatpush1.msra.mxu0 0.0
  %840 = vmatprep.subr.mxu0 0.0
  %841 = vmatpush1.msra.mxu0 0.0
  %842 = vmatprep.subr.mxu0 0.0
  %843 = vmatpush1.msra.mxu0 0.0
  %844 = vmatprep.mubr.f32.mxu0 0.0
  %845 = vmatmul.mubr.f32.gmra.mrb[0].mxu0 %v778
  %v846 = vpop.f32.mrb[0].mxu0
  %v847 = vadd.f32 0.0, %v846
  %v848 = vpop.f32.mrb[0].mxu0
  %849 = vdwg.mxu0
  %v850 = vmul.f32 %v776, 0.5
  %v851 = vmul.f32 %v847, %v847
  %v852 = vadd.f32 %v851, %v345
  %v853 = vrsqrt.pop %v852
  %v854 = vmul.f32 %v852, %v853
  %vm855 = vcmp.eq.f32.partialorder %v852, inf
  %v856 = vsel %vm855, %v852, %v854
  %vm857 = vcmp.eq.f32.partialorder %v852, 0.0
  %v858 = vand.u32 %v852, 2147483648
  %v859 = vsel %vm857, %v858, %v856
  %v860 = vsub.f32 %v859, %v847
  %v861 = vmul.f32 %v860, %v344
  %v862 = vadd.f32 %v850, %v861
  %v864 = vsel %vm175, %v862, 0
  %866 = vmatprep.subr.mxu0 0.0
  %867 = vmatpush1.msra.mxu0 %v305
  %868 = vmatprep.subr.mxu0 0.0
  %869 = vmatpush1.msra.mxu0 %v306
  %870 = vmatprep.subr.mxu0 0.0
  %871 = vmatpush1.msra.mxu0 %v307
  %872 = vmatprep.subr.mxu0 0.0
  %873 = vmatpush1.msra.mxu0 %v308
  %874 = vmatprep.subr.mxu0 0.0
  %875 = vmatpush1.msra.mxu0 %v309
  %876 = vmatprep.subr.mxu0 0.0
  %877 = vmatpush1.msra.mxu0 %v310
  %878 = vmatprep.subr.mxu0 0.0
  %879 = vmatpush1.msra.mxu0 %v311
  %880 = vmatprep.subr.mxu0 0.0
  %881 = vmatpush1.msra.mxu0 %v312
  %882 = vmatprep.subr.mxu0 0.0
  %883 = vmatpush1.msra.mxu0 0.0
  %884 = vmatprep.subr.mxu0 0.0
  %885 = vmatpush1.msra.mxu0 0.0
  %886 = vmatprep.subr.mxu0 0.0
  %887 = vmatpush1.msra.mxu0 0.0
  %888 = vmatprep.subr.mxu0 0.0
  %889 = vmatpush1.msra.mxu0 0.0
  %890 = vmatprep.subr.mxu0 0.0
  %891 = vmatpush1.msra.mxu0 0.0
  %892 = vmatprep.subr.mxu0 0.0
  %893 = vmatpush1.msra.mxu0 0.0
  %894 = vmatprep.subr.mxu0 0.0
  %895 = vmatpush1.msra.mxu0 0.0
  %896 = vmatprep.subr.mxu0 0.0
  %897 = vmatpush1.msra.mxu0 0.0
  %898 = vmatprep.subr.mxu0 0.0
  %899 = vmatpush1.msra.mxu0 0.0
  %900 = vmatprep.subr.mxu0 0.0
  %901 = vmatpush1.msra.mxu0 0.0
  %902 = vmatprep.subr.mxu0 0.0
  %903 = vmatpush1.msra.mxu0 0.0
  %904 = vmatprep.subr.mxu0 0.0
  %905 = vmatpush1.msra.mxu0 0.0
  %906 = vmatprep.subr.mxu0 0.0
  %907 = vmatpush1.msra.mxu0 0.0
  %908 = vmatprep.subr.mxu0 0.0
  %909 = vmatpush1.msra.mxu0 0.0
  %910 = vmatprep.subr.mxu0 0.0
  %911 = vmatpush1.msra.mxu0 0.0
  %912 = vmatprep.subr.mxu0 0.0
  %913 = vmatpush1.msra.mxu0 0.0
  %914 = vmatprep.subr.mxu0 0.0
  %915 = vmatpush1.msra.mxu0 0.0
  %916 = vmatprep.subr.mxu0 0.0
  %917 = vmatpush1.msra.mxu0 0.0
  %918 = vmatprep.subr.mxu0 0.0
  %919 = vmatpush1.msra.mxu0 0.0
  %920 = vmatprep.subr.mxu0 0.0
  %921 = vmatpush1.msra.mxu0 0.0
  %922 = vmatprep.subr.mxu0 0.0
  %923 = vmatpush1.msra.mxu0 0.0
  %924 = vmatprep.subr.mxu0 0.0
  %925 = vmatpush1.msra.mxu0 0.0
  %926 = vmatprep.subr.mxu0 0.0
  %927 = vmatpush1.msra.mxu0 0.0
  %928 = vmatprep.subr.mxu0 0.0
  %929 = vmatpush1.msra.mxu0 0.0
  %930 = vmatprep.mubr.f32.mxu0 0.0
  %931 = vmatmul.mubr.f32.gmra.mrb[0].mxu0 %v864
  %v932 = vpop.f32.mrb[0].mxu0
  %v933 = vadd.f32 0.0, %v932
  %v934 = vpop.f32.mrb[0].mxu0
  %935 = vdwg.mxu0
  %v936 = vmul.f32 %v862, 0.5
  %v937 = vmul.f32 %v933, %v933
  %v938 = vadd.f32 %v937, %v345
  %v939 = vrsqrt.pop %v938
  %v940 = vmul.f32 %v938, %v939
  %vm941 = vcmp.eq.f32.partialorder %v938, inf
  %v942 = vsel %vm941, %v938, %v940
  %vm943 = vcmp.eq.f32.partialorder %v938, 0.0
  %v944 = vand.u32 %v938, 2147483648
  %v945 = vsel %vm943, %v944, %v942
  %v946 = vsub.f32 %v945, %v933
  %v947 = vmul.f32 %v946, %v344
  %v948 = vadd.f32 %v936, %v947
  %v950 = vsel %vm175, %v948, 0
  %952 = vmatprep.subr.mxu0 0.0
  %953 = vmatpush1.msra.mxu0 %v305
  %954 = vmatprep.subr.mxu0 0.0
  %955 = vmatpush1.msra.mxu0 %v306
  %956 = vmatprep.subr.mxu0 0.0
  %957 = vmatpush1.msra.mxu0 %v307
  %958 = vmatprep.subr.mxu0 0.0
  %959 = vmatpush1.msra.mxu0 %v308
  %960 = vmatprep.subr.mxu0 0.0
  %961 = vmatpush1.msra.mxu0 %v309
  %962 = vmatprep.subr.mxu0 0.0
  %963 = vmatpush1.msra.mxu0 %v310
  %964 = vmatprep.subr.mxu0 0.0
  %965 = vmatpush1.msra.mxu0 %v311
  %966 = vmatprep.subr.mxu0 0.0
  %967 = vmatpush1.msra.mxu0 %v312
  %968 = vmatprep.subr.mxu0 0.0
  %969 = vmatpush1.msra.mxu0 0.0
  %970 = vmatprep.subr.mxu0 0.0
  %971 = vmatpush1.msra.mxu0 0.0
  %972 = vmatprep.subr.mxu0 0.0
  %973 = vmatpush1.msra.mxu0 0.0
  %974 = vmatprep.subr.mxu0 0.0
  %975 = vmatpush1.msra.mxu0 0.0
  %976 = vmatprep.subr.mxu0 0.0
  %977 = vmatpush1.msra.mxu0 0.0
  %978 = vmatprep.subr.mxu0 0.0
  %979 = vmatpush1.msra.mxu0 0.0
  %980 = vmatprep.subr.mxu0 0.0
  %981 = vmatpush1.msra.mxu0 0.0
  %982 = vmatprep.subr.mxu0 0.0
  %983 = vmatpush1.msra.mxu0 0.0
  %984 = vmatprep.subr.mxu0 0.0
  %985 = vmatpush1.msra.mxu0 0.0
  %986 = vmatprep.subr.mxu0 0.0
  %987 = vmatpush1.msra.mxu0 0.0
  %988 = vmatprep.subr.mxu0 0.0
  %989 = vmatpush1.msra.mxu0 0.0
  %990 = vmatprep.subr.mxu0 0.0
  %991 = vmatpush1.msra.mxu0 0.0
  %992 = vmatprep.subr.mxu0 0.0
  %993 = vmatpush1.msra.mxu0 0.0
  %994 = vmatprep.subr.mxu0 0.0
  %995 = vmatpush1.msra.mxu0 0.0
  %996 = vmatprep.subr.mxu0 0.0
  %997 = vmatpush1.msra.mxu0 0.0
  %998 = vmatprep.subr.mxu0 0.0
  %999 = vmatpush1.msra.mxu0 0.0
  %1000 = vmatprep.subr.mxu0 0.0
  %1001 = vmatpush1.msra.mxu0 0.0
  %1002 = vmatprep.subr.mxu0 0.0
  %1003 = vmatpush1.msra.mxu0 0.0
  %1004 = vmatprep.subr.mxu0 0.0
  %1005 = vmatpush1.msra.mxu0 0.0
  %1006 = vmatprep.subr.mxu0 0.0
  %1007 = vmatpush1.msra.mxu0 0.0
  %1008 = vmatprep.subr.mxu0 0.0
  %1009 = vmatpush1.msra.mxu0 0.0
  %1010 = vmatprep.subr.mxu0 0.0
  %1011 = vmatpush1.msra.mxu0 0.0
  %1012 = vmatprep.subr.mxu0 0.0
  %1013 = vmatpush1.msra.mxu0 0.0
  %1014 = vmatprep.subr.mxu0 0.0
  %1015 = vmatpush1.msra.mxu0 0.0
  %1016 = vmatprep.mubr.f32.mxu0 0.0
  %1017 = vmatmul.mubr.f32.gmra.mrb[0].mxu0 %v950
  %v1018 = vpop.f32.mrb[0].mxu0
  %v1019 = vadd.f32 0.0, %v1018
  %v1020 = vpop.f32.mrb[0].mxu0
  %1021 = vdwg.mxu0
  %v1022 = vmul.f32 %v948, 0.5
  %v1023 = vmul.f32 %v1019, %v1019
  %v1024 = vadd.f32 %v1023, %v345
  %v1025 = vrsqrt.pop %v1024
  %v1026 = vmul.f32 %v1024, %v1025
  %vm1027 = vcmp.eq.f32.partialorder %v1024, inf
  %v1028 = vsel %vm1027, %v1024, %v1026
  %vm1029 = vcmp.eq.f32.partialorder %v1024, 0.0
  %v1030 = vand.u32 %v1024, 2147483648
  %v1031 = vsel %vm1029, %v1030, %v1028
  %v1032 = vsub.f32 %v1031, %v1019
  %v1033 = vmul.f32 %v1032, %v344
  %v1034 = vadd.f32 %v1022, %v1033
  %v1036 = vsel %vm175, %v1034, 0
  %1038 = vmatprep.subr.mxu0 0.0
  %1039 = vmatpush1.msra.mxu0 %v305
  %1040 = vmatprep.subr.mxu0 0.0
  %1041 = vmatpush1.msra.mxu0 %v306
  %1042 = vmatprep.subr.mxu0 0.0
  %1043 = vmatpush1.msra.mxu0 %v307
  %1044 = vmatprep.subr.mxu0 0.0
  %1045 = vmatpush1.msra.mxu0 %v308
  %1046 = vmatprep.subr.mxu0 0.0
  %1047 = vmatpush1.msra.mxu0 %v309
  %1048 = vmatprep.subr.mxu0 0.0
  %1049 = vmatpush1.msra.mxu0 %v310
  %1050 = vmatprep.subr.mxu0 0.0
  %1051 = vmatpush1.msra.mxu0 %v311
  %1052 = vmatprep.subr.mxu0 0.0
  %1053 = vmatpush1.msra.mxu0 %v312
  %1054 = vmatprep.subr.mxu0 0.0
  %1055 = vmatpush1.msra.mxu0 0.0
  %1056 = vmatprep.subr.mxu0 0.0
  %1057 = vmatpush1.msra.mxu0 0.0
  %1058 = vmatprep.subr.mxu0 0.0
  %1059 = vmatpush1.msra.mxu0 0.0
  %1060 = vmatprep.subr.mxu0 0.0
  %1061 = vmatpush1.msra.mxu0 0.0
  %1062 = vmatprep.subr.mxu0 0.0
  %1063 = vmatpush1.msra.mxu0 0.0
  %1064 = vmatprep.subr.mxu0 0.0
  %1065 = vmatpush1.msra.mxu0 0.0
  %1066 = vmatprep.subr.mxu0 0.0
  %1067 = vmatpush1.msra.mxu0 0.0
  %1068 = vmatprep.subr.mxu0 0.0
  %1069 = vmatpush1.msra.mxu0 0.0
  %1070 = vmatprep.subr.mxu0 0.0
  %1071 = vmatpush1.msra.mxu0 0.0
  %1072 = vmatprep.subr.mxu0 0.0
  %1073 = vmatpush1.msra.mxu0 0.0
  %1074 = vmatprep.subr.mxu0 0.0
  %1075 = vmatpush1.msra.mxu0 0.0
  %1076 = vmatprep.subr.mxu0 0.0
  %1077 = vmatpush1.msra.mxu0 0.0
  %1078 = vmatprep.subr.mxu0 0.0
  %1079 = vmatpush1.msra.mxu0 0.0
  %1080 = vmatprep.subr.mxu0 0.0
  %1081 = vmatpush1.msra.mxu0 0.0
  %1082 = vmatprep.subr.mxu0 0.0
  %1083 = vmatpush1.msra.mxu0 0.0
  %1084 = vmatprep.subr.mxu0 0.0
  %1085 = vmatpush1.msra.mxu0 0.0
  %1086 = vmatprep.subr.mxu0 0.0
  %1087 = vmatpush1.msra.mxu0 0.0
  %1088 = vmatprep.subr.mxu0 0.0
  %1089 = vmatpush1.msra.mxu0 0.0
  %1090 = vmatprep.subr.mxu0 0.0
  %1091 = vmatpush1.msra.mxu0 0.0
  %1092 = vmatprep.subr.mxu0 0.0
  %1093 = vmatpush1.msra.mxu0 0.0
  %1094 = vmatprep.subr.mxu0 0.0
  %1095 = vmatpush1.msra.mxu0 0.0
  %1096 = vmatprep.subr.mxu0 0.0
  %1097 = vmatpush1.msra.mxu0 0.0
  %1098 = vmatprep.subr.mxu0 0.0
  %1099 = vmatpush1.msra.mxu0 0.0
  %1100 = vmatprep.subr.mxu0 0.0
  %1101 = vmatpush1.msra.mxu0 0.0
  %1102 = vmatprep.mubr.f32.mxu0 0.0
  %1103 = vmatmul.mubr.f32.gmra.mrb[0].mxu0 %v1036
  %v1104 = vpop.f32.mrb[0].mxu0
  %v1105 = vadd.f32 0.0, %v1104
  %v1106 = vpop.f32.mrb[0].mxu0
  %1107 = vdwg.mxu0
  %v1108 = vmul.f32 %v1034, 0.5
  %v1109 = vmul.f32 %v1105, %v1105
  %v1110 = vadd.f32 %v1109, %v345
  %v1111 = vrsqrt.pop %v1110
  %v1112 = vmul.f32 %v1110, %v1111
  %vm1113 = vcmp.eq.f32.partialorder %v1110, inf
  %v1114 = vsel %vm1113, %v1110, %v1112
  %vm1115 = vcmp.eq.f32.partialorder %v1110, 0.0
  %v1116 = vand.u32 %v1110, 2147483648
  %v1117 = vsel %vm1115, %v1116, %v1114
  %v1118 = vsub.f32 %v1117, %v1105
  %v1119 = vmul.f32 %v1118, %v344
  %v1120 = vadd.f32 %v1108, %v1119
  %v1122 = vsel %vm175, %v1120, 0
  %1124 = vmatprep.subr.mxu0 0.0
  %1125 = vmatpush1.msra.mxu0 %v305
  %1126 = vmatprep.subr.mxu0 0.0
  %1127 = vmatpush1.msra.mxu0 %v306
  %1128 = vmatprep.subr.mxu0 0.0
  %1129 = vmatpush1.msra.mxu0 %v307
  %1130 = vmatprep.subr.mxu0 0.0
  %1131 = vmatpush1.msra.mxu0 %v308
  %1132 = vmatprep.subr.mxu0 0.0
  %1133 = vmatpush1.msra.mxu0 %v309
  %1134 = vmatprep.subr.mxu0 0.0
  %1135 = vmatpush1.msra.mxu0 %v310
  %1136 = vmatprep.subr.mxu0 0.0
  %1137 = vmatpush1.msra.mxu0 %v311
  %1138 = vmatprep.subr.mxu0 0.0
  %1139 = vmatpush1.msra.mxu0 %v312
  %1140 = vmatprep.subr.mxu0 0.0
  %1141 = vmatpush1.msra.mxu0 0.0
  %1142 = vmatprep.subr.mxu0 0.0
  %1143 = vmatpush1.msra.mxu0 0.0
  %1144 = vmatprep.subr.mxu0 0.0
  %1145 = vmatpush1.msra.mxu0 0.0
  %1146 = vmatprep.subr.mxu0 0.0
  %1147 = vmatpush1.msra.mxu0 0.0
  %1148 = vmatprep.subr.mxu0 0.0
  %1149 = vmatpush1.msra.mxu0 0.0
  %1150 = vmatprep.subr.mxu0 0.0
  %1151 = vmatpush1.msra.mxu0 0.0
  %1152 = vmatprep.subr.mxu0 0.0
  %1153 = vmatpush1.msra.mxu0 0.0
  %1154 = vmatprep.subr.mxu0 0.0
  %1155 = vmatpush1.msra.mxu0 0.0
  %1156 = vmatprep.subr.mxu0 0.0
  %1157 = vmatpush1.msra.mxu0 0.0
  %1158 = vmatprep.subr.mxu0 0.0
  %1159 = vmatpush1.msra.mxu0 0.0
  %1160 = vmatprep.subr.mxu0 0.0
  %1161 = vmatpush1.msra.mxu0 0.0
  %1162 = vmatprep.subr.mxu0 0.0
  %1163 = vmatpush1.msra.mxu0 0.0
  %1164 = vmatprep.subr.mxu0 0.0
  %1165 = vmatpush1.msra.mxu0 0.0
  %1166 = vmatprep.subr.mxu0 0.0
  %1167 = vmatpush1.msra.mxu0 0.0
  %1168 = vmatprep.subr.mxu0 0.0
  %1169 = vmatpush1.msra.mxu0 0.0
  %1170 = vmatprep.subr.mxu0 0.0
  %1171 = vmatpush1.msra.mxu0 0.0
  %1172 = vmatprep.subr.mxu0 0.0
  %1173 = vmatpush1.msra.mxu0 0.0
  %1174 = vmatprep.subr.mxu0 0.0
  %1175 = vmatpush1.msra.mxu0 0.0
  %1176 = vmatprep.subr.mxu0 0.0
  %1177 = vmatpush1.msra.mxu0 0.0
  %1178 = vmatprep.subr.mxu0 0.0
  %1179 = vmatpush1.msra.mxu0 0.0
  %1180 = vmatprep.subr.mxu0 0.0
  %1181 = vmatpush1.msra.mxu0 0.0
  %1182 = vmatprep.subr.mxu0 0.0
  %1183 = vmatpush1.msra.mxu0 0.0
  %1184 = vmatprep.subr.mxu0 0.0
  %1185 = vmatpush1.msra.mxu0 0.0
  %1186 = vmatprep.subr.mxu0 0.0
  %1187 = vmatpush1.msra.mxu0 0.0
  %1188 = vmatprep.mubr.f32.mxu0 0.0
  %1189 = vmatmul.mubr.f32.gmra.mrb[0].mxu0 %v1122
  %v1190 = vpop.f32.mrb[0].mxu0
  %v1191 = vadd.f32 0.0, %v1190
  %v1192 = vpop.f32.mrb[0].mxu0
  %1193 = vdwg.mxu0
  %v1194 = vmul.f32 %v1120, 0.5
  %v1195 = vmul.f32 %v1191, %v1191
  %v1196 = vadd.f32 %v1195, %v345
  %v1197 = vrsqrt.pop %v1196
  %v1198 = vmul.f32 %v1196, %v1197
  %vm1199 = vcmp.eq.f32.partialorder %v1196, inf
  %v1200 = vsel %vm1199, %v1196, %v1198
  %vm1201 = vcmp.eq.f32.partialorder %v1196, 0.0
  %v1202 = vand.u32 %v1196, 2147483648
  %v1203 = vsel %vm1201, %v1202, %v1200
  %v1204 = vsub.f32 %v1203, %v1191
  %v1205 = vmul.f32 %v1204, %v344
  %v1206 = vadd.f32 %v1194, %v1205
  %v1208 = vsel %vm175, %v1206, 0
  %1210 = vmatprep.subr.mxu0 0.0
  %1211 = vmatpush1.msra.mxu0 %v305
  %1212 = vmatprep.subr.mxu0 0.0
  %1213 = vmatpush1.msra.mxu0 %v306
  %1214 = vmatprep.subr.mxu0 0.0
  %1215 = vmatpush1.msra.mxu0 %v307
  %1216 = vmatprep.subr.mxu0 0.0
  %1217 = vmatpush1.msra.mxu0 %v308
  %1218 = vmatprep.subr.mxu0 0.0
  %1219 = vmatpush1.msra.mxu0 %v309
  %1220 = vmatprep.subr.mxu0 0.0
  %1221 = vmatpush1.msra.mxu0 %v310
  %1222 = vmatprep.subr.mxu0 0.0
  %1223 = vmatpush1.msra.mxu0 %v311
  %1224 = vmatprep.subr.mxu0 0.0
  %1225 = vmatpush1.msra.mxu0 %v312
  %1226 = vmatprep.subr.mxu0 0.0
  %1227 = vmatpush1.msra.mxu0 0.0
  %1228 = vmatprep.subr.mxu0 0.0
  %1229 = vmatpush1.msra.mxu0 0.0
  %1230 = vmatprep.subr.mxu0 0.0
  %1231 = vmatpush1.msra.mxu0 0.0
  %1232 = vmatprep.subr.mxu0 0.0
  %1233 = vmatpush1.msra.mxu0 0.0
  %1234 = vmatprep.subr.mxu0 0.0
  %1235 = vmatpush1.msra.mxu0 0.0
  %1236 = vmatprep.subr.mxu0 0.0
  %1237 = vmatpush1.msra.mxu0 0.0
  %1238 = vmatprep.subr.mxu0 0.0
  %1239 = vmatpush1.msra.mxu0 0.0
  %1240 = vmatprep.subr.mxu0 0.0
  %1241 = vmatpush1.msra.mxu0 0.0
  %1242 = vmatprep.subr.mxu0 0.0
  %1243 = vmatpush1.msra.mxu0 0.0
  %1244 = vmatprep.subr.mxu0 0.0
  %1245 = vmatpush1.msra.mxu0 0.0
  %1246 = vmatprep.subr.mxu0 0.0
  %1247 = vmatpush1.msra.mxu0 0.0
  %1248 = vmatprep.subr.mxu0 0.0
  %1249 = vmatpush1.msra.mxu0 0.0
  %1250 = vmatprep.subr.mxu0 0.0
  %1251 = vmatpush1.msra.mxu0 0.0
  %1252 = vmatprep.subr.mxu0 0.0
  %1253 = vmatpush1.msra.mxu0 0.0
  %1254 = vmatprep.subr.mxu0 0.0
  %1255 = vmatpush1.msra.mxu0 0.0
  %1256 = vmatprep.subr.mxu0 0.0
  %1257 = vmatpush1.msra.mxu0 0.0
  %1258 = vmatprep.subr.mxu0 0.0
  %1259 = vmatpush1.msra.mxu0 0.0
  %1260 = vmatprep.subr.mxu0 0.0
  %1261 = vmatpush1.msra.mxu0 0.0
  %1262 = vmatprep.subr.mxu0 0.0
  %1263 = vmatpush1.msra.mxu0 0.0
  %1264 = vmatprep.subr.mxu0 0.0
  %1265 = vmatpush1.msra.mxu0 0.0
  %1266 = vmatprep.subr.mxu0 0.0
  %1267 = vmatpush1.msra.mxu0 0.0
  %1268 = vmatprep.subr.mxu0 0.0
  %1269 = vmatpush1.msra.mxu0 0.0
  %1270 = vmatprep.subr.mxu0 0.0
  %1271 = vmatpush1.msra.mxu0 0.0
  %1272 = vmatprep.subr.mxu0 0.0
  %1273 = vmatpush1.msra.mxu0 0.0
  %1274 = vmatprep.mubr.f32.mxu0 0.0
  %1275 = vmatmul.mubr.f32.gmra.mrb[0].mxu0 %v1208
  %v1276 = vpop.f32.mrb[0].mxu0
  %v1277 = vadd.f32 0.0, %v1276
  %v1278 = vpop.f32.mrb[0].mxu0
  %1279 = vdwg.mxu0
  %v1280 = vmul.f32 %v1206, 0.5
  %v1281 = vmul.f32 %v1277, %v1277
  %v1282 = vadd.f32 %v1281, %v345
  %v1283 = vrsqrt.pop %v1282
  %v1284 = vmul.f32 %v1282, %v1283
  %vm1285 = vcmp.eq.f32.partialorder %v1282, inf
  %v1286 = vsel %vm1285, %v1282, %v1284
  %vm1287 = vcmp.eq.f32.partialorder %v1282, 0.0
  %v1288 = vand.u32 %v1282, 2147483648
  %v1289 = vsel %vm1287, %v1288, %v1286
  %v1290 = vsub.f32 %v1289, %v1277
  %v1291 = vmul.f32 %v1290, %v344
  %v1292 = vadd.f32 %v1280, %v1291
  %v1294 = vsel %vm175, %v1292, 0
  %1296 = vmatprep.subr.mxu0 0.0
  %1297 = vmatpush1.msra.mxu0 %v305
  %1298 = vmatprep.subr.mxu0 0.0
  %1299 = vmatpush1.msra.mxu0 %v306
  %1300 = vmatprep.subr.mxu0 0.0
  %1301 = vmatpush1.msra.mxu0 %v307
  %1302 = vmatprep.subr.mxu0 0.0
  %1303 = vmatpush1.msra.mxu0 %v308
  %1304 = vmatprep.subr.mxu0 0.0
  %1305 = vmatpush1.msra.mxu0 %v309
  %1306 = vmatprep.subr.mxu0 0.0
  %1307 = vmatpush1.msra.mxu0 %v310
  %1308 = vmatprep.subr.mxu0 0.0
  %1309 = vmatpush1.msra.mxu0 %v311
  %1310 = vmatprep.subr.mxu0 0.0
  %1311 = vmatpush1.msra.mxu0 %v312
  %1312 = vmatprep.subr.mxu0 0.0
  %1313 = vmatpush1.msra.mxu0 0.0
  %1314 = vmatprep.subr.mxu0 0.0
  %1315 = vmatpush1.msra.mxu0 0.0
  %1316 = vmatprep.subr.mxu0 0.0
  %1317 = vmatpush1.msra.mxu0 0.0
  %1318 = vmatprep.subr.mxu0 0.0
  %1319 = vmatpush1.msra.mxu0 0.0
  %1320 = vmatprep.subr.mxu0 0.0
  %1321 = vmatpush1.msra.mxu0 0.0
  %1322 = vmatprep.subr.mxu0 0.0
  %1323 = vmatpush1.msra.mxu0 0.0
  %1324 = vmatprep.subr.mxu0 0.0
  %1325 = vmatpush1.msra.mxu0 0.0
  %1326 = vmatprep.subr.mxu0 0.0
  %1327 = vmatpush1.msra.mxu0 0.0
  %1328 = vmatprep.subr.mxu0 0.0
  %1329 = vmatpush1.msra.mxu0 0.0
  %1330 = vmatprep.subr.mxu0 0.0
  %1331 = vmatpush1.msra.mxu0 0.0
  %1332 = vmatprep.subr.mxu0 0.0
  %1333 = vmatpush1.msra.mxu0 0.0
  %1334 = vmatprep.subr.mxu0 0.0
  %1335 = vmatpush1.msra.mxu0 0.0
  %1336 = vmatprep.subr.mxu0 0.0
  %1337 = vmatpush1.msra.mxu0 0.0
  %1338 = vmatprep.subr.mxu0 0.0
  %1339 = vmatpush1.msra.mxu0 0.0
  %1340 = vmatprep.subr.mxu0 0.0
  %1341 = vmatpush1.msra.mxu0 0.0
  %1342 = vmatprep.subr.mxu0 0.0
  %1343 = vmatpush1.msra.mxu0 0.0
  %1344 = vmatprep.subr.mxu0 0.0
  %1345 = vmatpush1.msra.mxu0 0.0
  %1346 = vmatprep.subr.mxu0 0.0
  %1347 = vmatpush1.msra.mxu0 0.0
  %1348 = vmatprep.subr.mxu0 0.0
  %1349 = vmatpush1.msra.mxu0 0.0
  %1350 = vmatprep.subr.mxu0 0.0
  %1351 = vmatpush1.msra.mxu0 0.0
  %1352 = vmatprep.subr.mxu0 0.0
  %1353 = vmatpush1.msra.mxu0 0.0
  %1354 = vmatprep.subr.mxu0 0.0
  %1355 = vmatpush1.msra.mxu0 0.0
  %1356 = vmatprep.subr.mxu0 0.0
  %1357 = vmatpush1.msra.mxu0 0.0
  %1358 = vmatprep.subr.mxu0 0.0
  %1359 = vmatpush1.msra.mxu0 0.0
  %1360 = vmatprep.mubr.f32.mxu0 0.0
  %1361 = vmatmul.mubr.f32.gmra.mrb[0].mxu0 %v1294
  %v1362 = vpop.f32.mrb[0].mxu0
  %v1363 = vadd.f32 0.0, %v1362
  %v1364 = vpop.f32.mrb[0].mxu0
  %1365 = vdwg.mxu0
  %v1366 = vmul.f32 %v1292, 0.5
  %v1367 = vmul.f32 %v1363, %v1363
  %v1368 = vadd.f32 %v1367, %v345
  %v1369 = vrsqrt.pop %v1368
  %v1370 = vmul.f32 %v1368, %v1369
  %vm1371 = vcmp.eq.f32.partialorder %v1368, inf
  %v1372 = vsel %vm1371, %v1368, %v1370
  %vm1373 = vcmp.eq.f32.partialorder %v1368, 0.0
  %v1374 = vand.u32 %v1368, 2147483648
  %v1375 = vsel %vm1373, %v1374, %v1372
  %v1376 = vsub.f32 %v1375, %v1363
  %v1377 = vmul.f32 %v1376, %v344
  %v1378 = vadd.f32 %v1366, %v1377
  %v1380 = vsel %vm175, %v1378, 0
  %1382 = vmatprep.subr.mxu0 0.0
  %1383 = vmatpush1.msra.mxu0 %v305
  %1384 = vmatprep.subr.mxu0 0.0
  %1385 = vmatpush1.msra.mxu0 %v306
  %1386 = vmatprep.subr.mxu0 0.0
  %1387 = vmatpush1.msra.mxu0 %v307
  %1388 = vmatprep.subr.mxu0 0.0
  %1389 = vmatpush1.msra.mxu0 %v308
  %1390 = vmatprep.subr.mxu0 0.0
  %1391 = vmatpush1.msra.mxu0 %v309
  %1392 = vmatprep.subr.mxu0 0.0
  %1393 = vmatpush1.msra.mxu0 %v310
  %1394 = vmatprep.subr.mxu0 0.0
  %1395 = vmatpush1.msra.mxu0 %v311
  %1396 = vmatprep.subr.mxu0 0.0
  %1397 = vmatpush1.msra.mxu0 %v312
  %1398 = vmatprep.subr.mxu0 0.0
  %1399 = vmatpush1.msra.mxu0 0.0
  %1400 = vmatprep.subr.mxu0 0.0
  %1401 = vmatpush1.msra.mxu0 0.0
  %1402 = vmatprep.subr.mxu0 0.0
  %1403 = vmatpush1.msra.mxu0 0.0
  %1404 = vmatprep.subr.mxu0 0.0
  %1405 = vmatpush1.msra.mxu0 0.0
  %1406 = vmatprep.subr.mxu0 0.0
  %1407 = vmatpush1.msra.mxu0 0.0
  %1408 = vmatprep.subr.mxu0 0.0
  %1409 = vmatpush1.msra.mxu0 0.0
  %1410 = vmatprep.subr.mxu0 0.0
  %1411 = vmatpush1.msra.mxu0 0.0
  %1412 = vmatprep.subr.mxu0 0.0
  %1413 = vmatpush1.msra.mxu0 0.0
  %1414 = vmatprep.subr.mxu0 0.0
  %1415 = vmatpush1.msra.mxu0 0.0
  %1416 = vmatprep.subr.mxu0 0.0
  %1417 = vmatpush1.msra.mxu0 0.0
  %1418 = vmatprep.subr.mxu0 0.0
  %1419 = vmatpush1.msra.mxu0 0.0
  %1420 = vmatprep.subr.mxu0 0.0
  %1421 = vmatpush1.msra.mxu0 0.0
  %1422 = vmatprep.subr.mxu0 0.0
  %1423 = vmatpush1.msra.mxu0 0.0
  %1424 = vmatprep.subr.mxu0 0.0
  %1425 = vmatpush1.msra.mxu0 0.0
  %1426 = vmatprep.subr.mxu0 0.0
  %1427 = vmatpush1.msra.mxu0 0.0
  %1428 = vmatprep.subr.mxu0 0.0
  %1429 = vmatpush1.msra.mxu0 0.0
  %1430 = vmatprep.subr.mxu0 0.0
  %1431 = vmatpush1.msra.mxu0 0.0
  %1432 = vmatprep.subr.mxu0 0.0
  %1433 = vmatpush1.msra.mxu0 0.0
  %1434 = vmatprep.subr.mxu0 0.0
  %1435 = vmatpush1.msra.mxu0 0.0
  %1436 = vmatprep.subr.mxu0 0.0
  %1437 = vmatpush1.msra.mxu0 0.0
  %1438 = vmatprep.subr.mxu0 0.0
  %1439 = vmatpush1.msra.mxu0 0.0
  %1440 = vmatprep.subr.mxu0 0.0
  %1441 = vmatpush1.msra.mxu0 0.0
  %1442 = vmatprep.subr.mxu0 0.0
  %1443 = vmatpush1.msra.mxu0 0.0
  %1444 = vmatprep.subr.mxu0 0.0
  %1445 = vmatpush1.msra.mxu0 0.0
  %1446 = vmatprep.mubr.f32.mxu0 0.0
  %1447 = vmatmul.mubr.f32.gmra.mrb[0].mxu0 %v1380
  %v1448 = vpop.f32.mrb[0].mxu0
  %v1449 = vadd.f32 0.0, %v1448
  %v1450 = vpop.f32.mrb[0].mxu0
  %1451 = vdwg.mxu0
  %v1452 = vmul.f32 %v1378, 0.5
  %v1453 = vmul.f32 %v1449, %v1449
  %v1454 = vadd.f32 %v1453, %v345
  %v1455 = vrsqrt.pop %v1454
  %v1456 = vmul.f32 %v1454, %v1455
  %vm1457 = vcmp.eq.f32.partialorder %v1454, inf
  %v1458 = vsel %vm1457, %v1454, %v1456
  %vm1459 = vcmp.eq.f32.partialorder %v1454, 0.0
  %v1460 = vand.u32 %v1454, 2147483648
  %v1461 = vsel %vm1459, %v1460, %v1458
  %v1462 = vsub.f32 %v1461, %v1449
  %v1463 = vmul.f32 %v1462, %v344
  %v1464 = vadd.f32 %v1452, %v1463
  %v1466 = vsel %vm175, %v1464, 0
  %1468 = vmatprep.subr.mxu0 0.0
  %1469 = vmatpush1.msra.mxu0 %v305
  %1470 = vmatprep.subr.mxu0 0.0
  %1471 = vmatpush1.msra.mxu0 %v306
  %1472 = vmatprep.subr.mxu0 0.0
  %1473 = vmatpush1.msra.mxu0 %v307
  %1474 = vmatprep.subr.mxu0 0.0
  %1475 = vmatpush1.msra.mxu0 %v308
  %1476 = vmatprep.subr.mxu0 0.0
  %1477 = vmatpush1.msra.mxu0 %v309
  %1478 = vmatprep.subr.mxu0 0.0
  %1479 = vmatpush1.msra.mxu0 %v310
  %1480 = vmatprep.subr.mxu0 0.0
  %1481 = vmatpush1.msra.mxu0 %v311
  %1482 = vmatprep.subr.mxu0 0.0
  %1483 = vmatpush1.msra.mxu0 %v312
  %1484 = vmatprep.subr.mxu0 0.0
  %1485 = vmatpush1.msra.mxu0 0.0
  %1486 = vmatprep.subr.mxu0 0.0
  %1487 = vmatpush1.msra.mxu0 0.0
  %1488 = vmatprep.subr.mxu0 0.0
  %1489 = vmatpush1.msra.mxu0 0.0
  %1490 = vmatprep.subr.mxu0 0.0
  %1491 = vmatpush1.msra.mxu0 0.0
  %1492 = vmatprep.subr.mxu0 0.0
  %1493 = vmatpush1.msra.mxu0 0.0
  %1494 = vmatprep.subr.mxu0 0.0
  %1495 = vmatpush1.msra.mxu0 0.0
  %1496 = vmatprep.subr.mxu0 0.0
  %1497 = vmatpush1.msra.mxu0 0.0
  %1498 = vmatprep.subr.mxu0 0.0
  %1499 = vmatpush1.msra.mxu0 0.0
  %1500 = vmatprep.subr.mxu0 0.0
  %1501 = vmatpush1.msra.mxu0 0.0
  %1502 = vmatprep.subr.mxu0 0.0
  %1503 = vmatpush1.msra.mxu0 0.0
  %1504 = vmatprep.subr.mxu0 0.0
  %1505 = vmatpush1.msra.mxu0 0.0
  %1506 = vmatprep.subr.mxu0 0.0
  %1507 = vmatpush1.msra.mxu0 0.0
  %1508 = vmatprep.subr.mxu0 0.0
  %1509 = vmatpush1.msra.mxu0 0.0
  %1510 = vmatprep.subr.mxu0 0.0
  %1511 = vmatpush1.msra.mxu0 0.0
  %1512 = vmatprep.subr.mxu0 0.0
  %1513 = vmatpush1.msra.mxu0 0.0
  %1514 = vmatprep.subr.mxu0 0.0
  %1515 = vmatpush1.msra.mxu0 0.0
  %1516 = vmatprep.subr.mxu0 0.0
  %1517 = vmatpush1.msra.mxu0 0.0
  %1518 = vmatprep.subr.mxu0 0.0
  %1519 = vmatpush1.msra.mxu0 0.0
  %1520 = vmatprep.subr.mxu0 0.0
  %1521 = vmatpush1.msra.mxu0 0.0
  %1522 = vmatprep.subr.mxu0 0.0
  %1523 = vmatpush1.msra.mxu0 0.0
  %1524 = vmatprep.subr.mxu0 0.0
  %1525 = vmatpush1.msra.mxu0 0.0
  %1526 = vmatprep.subr.mxu0 0.0
  %1527 = vmatpush1.msra.mxu0 0.0
  %1528 = vmatprep.subr.mxu0 0.0
  %1529 = vmatpush1.msra.mxu0 0.0
  %1530 = vmatprep.subr.mxu0 0.0
  %1531 = vmatpush1.msra.mxu0 0.0
  %1532 = vmatprep.mubr.f32.mxu0 0.0
  %1533 = vmatmul.mubr.f32.gmra.mrb[0].mxu0 %v1466
  %v1534 = vpop.f32.mrb[0].mxu0
  %v1535 = vadd.f32 0.0, %v1534
  %v1536 = vpop.f32.mrb[0].mxu0
  %1537 = vdwg.mxu0
  %v1538 = vmul.f32 %v1464, 0.5
  %v1539 = vmul.f32 %v1535, %v1535
  %v1540 = vadd.f32 %v1539, %v345
  %v1541 = vrsqrt.pop %v1540
  %v1542 = vmul.f32 %v1540, %v1541
  %vm1543 = vcmp.eq.f32.partialorder %v1540, inf
  %v1544 = vsel %vm1543, %v1540, %v1542
  %vm1545 = vcmp.eq.f32.partialorder %v1540, 0.0
  %v1546 = vand.u32 %v1540, 2147483648
  %v1547 = vsel %vm1545, %v1546, %v1544
  %v1548 = vsub.f32 %v1547, %v1535
  %v1549 = vmul.f32 %v1548, %v344
  %v1550 = vadd.f32 %v1538, %v1549
  %v1552 = vsel %vm175, %v1550, 0
  %1554 = vmatprep.subr.mxu0 0.0
  %1555 = vmatpush1.msra.mxu0 %v305
  %1556 = vmatprep.subr.mxu0 0.0
  %1557 = vmatpush1.msra.mxu0 %v306
  %1558 = vmatprep.subr.mxu0 0.0
  %1559 = vmatpush1.msra.mxu0 %v307
  %1560 = vmatprep.subr.mxu0 0.0
  %1561 = vmatpush1.msra.mxu0 %v308
  %1562 = vmatprep.subr.mxu0 0.0
  %1563 = vmatpush1.msra.mxu0 %v309
  %1564 = vmatprep.subr.mxu0 0.0
  %1565 = vmatpush1.msra.mxu0 %v310
  %1566 = vmatprep.subr.mxu0 0.0
  %1567 = vmatpush1.msra.mxu0 %v311
  %1568 = vmatprep.subr.mxu0 0.0
  %1569 = vmatpush1.msra.mxu0 %v312
  %1570 = vmatprep.subr.mxu0 0.0
  %1571 = vmatpush1.msra.mxu0 0.0
  %1572 = vmatprep.subr.mxu0 0.0
  %1573 = vmatpush1.msra.mxu0 0.0
  %1574 = vmatprep.subr.mxu0 0.0
  %1575 = vmatpush1.msra.mxu0 0.0
  %1576 = vmatprep.subr.mxu0 0.0
  %1577 = vmatpush1.msra.mxu0 0.0
  %1578 = vmatprep.subr.mxu0 0.0
  %1579 = vmatpush1.msra.mxu0 0.0
  %1580 = vmatprep.subr.mxu0 0.0
  %1581 = vmatpush1.msra.mxu0 0.0
  %1582 = vmatprep.subr.mxu0 0.0
  %1583 = vmatpush1.msra.mxu0 0.0
  %1584 = vmatprep.subr.mxu0 0.0
  %1585 = vmatpush1.msra.mxu0 0.0
  %1586 = vmatprep.subr.mxu0 0.0
  %1587 = vmatpush1.msra.mxu0 0.0
  %1588 = vmatprep.subr.mxu0 0.0
  %1589 = vmatpush1.msra.mxu0 0.0
  %1590 = vmatprep.subr.mxu0 0.0
  %1591 = vmatpush1.msra.mxu0 0.0
  %1592 = vmatprep.subr.mxu0 0.0
  %1593 = vmatpush1.msra.mxu0 0.0
  %1594 = vmatprep.subr.mxu0 0.0
  %1595 = vmatpush1.msra.mxu0 0.0
  %1596 = vmatprep.subr.mxu0 0.0
  %1597 = vmatpush1.msra.mxu0 0.0
  %1598 = vmatprep.subr.mxu0 0.0
  %1599 = vmatpush1.msra.mxu0 0.0
  %1600 = vmatprep.subr.mxu0 0.0
  %1601 = vmatpush1.msra.mxu0 0.0
  %1602 = vmatprep.subr.mxu0 0.0
  %1603 = vmatpush1.msra.mxu0 0.0
  %1604 = vmatprep.subr.mxu0 0.0
  %1605 = vmatpush1.msra.mxu0 0.0
  %1606 = vmatprep.subr.mxu0 0.0
  %1607 = vmatpush1.msra.mxu0 0.0
  %1608 = vmatprep.subr.mxu0 0.0
  %1609 = vmatpush1.msra.mxu0 0.0
  %1610 = vmatprep.subr.mxu0 0.0
  %1611 = vmatpush1.msra.mxu0 0.0
  %1612 = vmatprep.subr.mxu0 0.0
  %1613 = vmatpush1.msra.mxu0 0.0
  %1614 = vmatprep.subr.mxu0 0.0
  %1615 = vmatpush1.msra.mxu0 0.0
  %1616 = vmatprep.subr.mxu0 0.0
  %1617 = vmatpush1.msra.mxu0 0.0
  %1618 = vmatprep.mubr.f32.mxu0 0.0
  %1619 = vmatmul.mubr.f32.gmra.mrb[0].mxu0 %v1552
  %v1620 = vpop.f32.mrb[0].mxu0
  %v1621 = vadd.f32 0.0, %v1620
  %v1622 = vpop.f32.mrb[0].mxu0
  %1623 = vdwg.mxu0
  %v1624 = vmul.f32 %v1550, 0.5
  %v1625 = vmul.f32 %v1621, %v1621
  %v1626 = vadd.f32 %v1625, %v345
  %v1627 = vrsqrt.pop %v1626
  %v1628 = vmul.f32 %v1626, %v1627
  %vm1629 = vcmp.eq.f32.partialorder %v1626, inf
  %v1630 = vsel %vm1629, %v1626, %v1628
  %vm1631 = vcmp.eq.f32.partialorder %v1626, 0.0
  %v1632 = vand.u32 %v1626, 2147483648
  %v1633 = vsel %vm1631, %v1632, %v1630
  %v1634 = vsub.f32 %v1633, %v1621
  %v1635 = vmul.f32 %v1634, %v344
  %v1636 = vadd.f32 %v1624, %v1635
  %v1638 = vsel %vm175, %v1636, 0
  %1640 = vmatprep.subr.mxu0 0.0
  %1641 = vmatpush1.msra.mxu0 %v305
  %1642 = vmatprep.subr.mxu0 0.0
  %1643 = vmatpush1.msra.mxu0 %v306
  %1644 = vmatprep.subr.mxu0 0.0
  %1645 = vmatpush1.msra.mxu0 %v307
  %1646 = vmatprep.subr.mxu0 0.0
  %1647 = vmatpush1.msra.mxu0 %v308
  %1648 = vmatprep.subr.mxu0 0.0
  %1649 = vmatpush1.msra.mxu0 %v309
  %1650 = vmatprep.subr.mxu0 0.0
  %1651 = vmatpush1.msra.mxu0 %v310
  %1652 = vmatprep.subr.mxu0 0.0
  %1653 = vmatpush1.msra.mxu0 %v311
  %1654 = vmatprep.subr.mxu0 0.0
  %1655 = vmatpush1.msra.mxu0 %v312
  %1656 = vmatprep.subr.mxu0 0.0
  %1657 = vmatpush1.msra.mxu0 0.0
  %1658 = vmatprep.subr.mxu0 0.0
  %1659 = vmatpush1.msra.mxu0 0.0
  %1660 = vmatprep.subr.mxu0 0.0
  %1661 = vmatpush1.msra.mxu0 0.0
  %1662 = vmatprep.subr.mxu0 0.0
  %1663 = vmatpush1.msra.mxu0 0.0
  %1664 = vmatprep.subr.mxu0 0.0
  %1665 = vmatpush1.msra.mxu0 0.0
  %1666 = vmatprep.subr.mxu0 0.0
  %1667 = vmatpush1.msra.mxu0 0.0
  %1668 = vmatprep.subr.mxu0 0.0
  %1669 = vmatpush1.msra.mxu0 0.0
  %1670 = vmatprep.subr.mxu0 0.0
  %1671 = vmatpush1.msra.mxu0 0.0
  %1672 = vmatprep.subr.mxu0 0.0
  %1673 = vmatpush1.msra.mxu0 0.0
  %1674 = vmatprep.subr.mxu0 0.0
  %1675 = vmatpush1.msra.mxu0 0.0
  %1676 = vmatprep.subr.mxu0 0.0
  %1677 = vmatpush1.msra.mxu0 0.0
  %1678 = vmatprep.subr.mxu0 0.0
  %1679 = vmatpush1.msra.mxu0 0.0
  %1680 = vmatprep.subr.mxu0 0.0
  %1681 = vmatpush1.msra.mxu0 0.0
  %1682 = vmatprep.subr.mxu0 0.0
  %1683 = vmatpush1.msra.mxu0 0.0
  %1684 = vmatprep.subr.mxu0 0.0
  %1685 = vmatpush1.msra.mxu0 0.0
  %1686 = vmatprep.subr.mxu0 0.0
  %1687 = vmatpush1.msra.mxu0 0.0
  %1688 = vmatprep.subr.mxu0 0.0
  %1689 = vmatpush1.msra.mxu0 0.0
  %1690 = vmatprep.subr.mxu0 0.0
  %1691 = vmatpush1.msra.mxu0 0.0
  %1692 = vmatprep.subr.mxu0 0.0
  %1693 = vmatpush1.msra.mxu0 0.0
  %1694 = vmatprep.subr.mxu0 0.0
  %1695 = vmatpush1.msra.mxu0 0.0
  %1696 = vmatprep.subr.mxu0 0.0
  %1697 = vmatpush1.msra.mxu0 0.0
  %1698 = vmatprep.subr.mxu0 0.0
  %1699 = vmatpush1.msra.mxu0 0.0
  %1700 = vmatprep.subr.mxu0 0.0
  %1701 = vmatpush1.msra.mxu0 0.0
  %1702 = vmatprep.subr.mxu0 0.0
  %1703 = vmatpush1.msra.mxu0 0.0
  %1704 = vmatprep.mubr.f32.mxu0 0.0
  %1705 = vmatmul.mubr.f32.gmra.mrb[0].mxu0 %v1638
  %v1706 = vpop.f32.mrb[0].mxu0
  %v1707 = vadd.f32 0.0, %v1706
  %v1708 = vpop.f32.mrb[0].mxu0
  %1709 = vdwg.mxu0
  %v1710 = vmul.f32 %v1636, 0.5
  %v1711 = vmul.f32 %v1707, %v1707
  %v1712 = vadd.f32 %v1711, %v345
  %v1713 = vrsqrt.pop %v1712
  %v1714 = vmul.f32 %v1712, %v1713
  %vm1715 = vcmp.eq.f32.partialorder %v1712, inf
  %v1716 = vsel %vm1715, %v1712, %v1714
  %vm1717 = vcmp.eq.f32.partialorder %v1712, 0.0
  %v1718 = vand.u32 %v1712, 2147483648
  %v1719 = vsel %vm1717, %v1718, %v1716
  %v1720 = vsub.f32 %v1719, %v1707
  %v1721 = vmul.f32 %v1720, %v344
  %v1722 = vadd.f32 %v1710, %v1721
  %v1724 = vsel %vm175, %v1722, 0
  %1726 = vmatprep.subr.mxu0 0.0
  %1727 = vmatpush1.msra.mxu0 %v305
  %1728 = vmatprep.subr.mxu0 0.0
  %1729 = vmatpush1.msra.mxu0 %v306
  %1730 = vmatprep.subr.mxu0 0.0
  %1731 = vmatpush1.msra.mxu0 %v307
  %1732 = vmatprep.subr.mxu0 0.0
  %1733 = vmatpush1.msra.mxu0 %v308
  %1734 = vmatprep.subr.mxu0 0.0
  %1735 = vmatpush1.msra.mxu0 %v309
  %1736 = vmatprep.subr.mxu0 0.0
  %1737 = vmatpush1.msra.mxu0 %v310
  %1738 = vmatprep.subr.mxu0 0.0
  %1739 = vmatpush1.msra.mxu0 %v311
  %1740 = vmatprep.subr.mxu0 0.0
  %1741 = vmatpush1.msra.mxu0 %v312
  %1742 = vmatprep.subr.mxu0 0.0
  %1743 = vmatpush1.msra.mxu0 0.0
  %1744 = vmatprep.subr.mxu0 0.0
  %1745 = vmatpush1.msra.mxu0 0.0
  %1746 = vmatprep.subr.mxu0 0.0
  %1747 = vmatpush1.msra.mxu0 0.0
  %1748 = vmatprep.subr.mxu0 0.0
  %1749 = vmatpush1.msra.mxu0 0.0
  %1750 = vmatprep.subr.mxu0 0.0
  %1751 = vmatpush1.msra.mxu0 0.0
  %1752 = vmatprep.subr.mxu0 0.0
  %1753 = vmatpush1.msra.mxu0 0.0
  %1754 = vmatprep.subr.mxu0 0.0
  %1755 = vmatpush1.msra.mxu0 0.0
  %1756 = vmatprep.subr.mxu0 0.0
  %1757 = vmatpush1.msra.mxu0 0.0
  %1758 = vmatprep.subr.mxu0 0.0
  %1759 = vmatpush1.msra.mxu0 0.0
  %1760 = vmatprep.subr.mxu0 0.0
  %1761 = vmatpush1.msra.mxu0 0.0
  %1762 = vmatprep.subr.mxu0 0.0
  %1763 = vmatpush1.msra.mxu0 0.0
  %1764 = vmatprep.subr.mxu0 0.0
  %1765 = vmatpush1.msra.mxu0 0.0
  %1766 = vmatprep.subr.mxu0 0.0
  %1767 = vmatpush1.msra.mxu0 0.0
  %1768 = vmatprep.subr.mxu0 0.0
  %1769 = vmatpush1.msra.mxu0 0.0
  %1770 = vmatprep.subr.mxu0 0.0
  %1771 = vmatpush1.msra.mxu0 0.0
  %1772 = vmatprep.subr.mxu0 0.0
  %1773 = vmatpush1.msra.mxu0 0.0
  %1774 = vmatprep.subr.mxu0 0.0
  %1775 = vmatpush1.msra.mxu0 0.0
  %1776 = vmatprep.subr.mxu0 0.0
  %1777 = vmatpush1.msra.mxu0 0.0
  %1778 = vmatprep.subr.mxu0 0.0
  %1779 = vmatpush1.msra.mxu0 0.0
  %1780 = vmatprep.subr.mxu0 0.0
  %1781 = vmatpush1.msra.mxu0 0.0
  %1782 = vmatprep.subr.mxu0 0.0
  %1783 = vmatpush1.msra.mxu0 0.0
  %1784 = vmatprep.subr.mxu0 0.0
  %1785 = vmatpush1.msra.mxu0 0.0
  %1786 = vmatprep.subr.mxu0 0.0
  %1787 = vmatpush1.msra.mxu0 0.0
  %1788 = vmatprep.subr.mxu0 0.0
  %1789 = vmatpush1.msra.mxu0 0.0
  %1790 = vmatprep.mubr.f32.mxu0 0.0
  %1791 = vmatmul.mubr.f32.gmra.mrb[0].mxu0 %v1724
  %v1792 = vpop.f32.mrb[0].mxu0
  %v1793 = vadd.f32 0.0, %v1792
  %v1794 = vpop.f32.mrb[0].mxu0
  %1795 = vdwg.mxu0
  %v1796 = vmul.f32 %v1722, 0.5
  %v1797 = vmul.f32 %v1793, %v1793
  %v1798 = vadd.f32 %v1797, %v345
  %v1799 = vrsqrt.pop %v1798
  %v1800 = vmul.f32 %v1798, %v1799
  %vm1801 = vcmp.eq.f32.partialorder %v1798, inf
  %v1802 = vsel %vm1801, %v1798, %v1800
  %vm1803 = vcmp.eq.f32.partialorder %v1798, 0.0
  %v1804 = vand.u32 %v1798, 2147483648
  %v1805 = vsel %vm1803, %v1804, %v1802
  %v1806 = vsub.f32 %v1805, %v1793
  %v1807 = vmul.f32 %v1806, %v344
  %v1808 = vadd.f32 %v1796, %v1807
  %v1810 = vsel %vm175, %v1808, 0
  %1812 = vmatprep.subr.mxu0 0.0
  %1813 = vmatpush1.msra.mxu0 %v305
  %1814 = vmatprep.subr.mxu0 0.0
  %1815 = vmatpush1.msra.mxu0 %v306
  %1816 = vmatprep.subr.mxu0 0.0
  %1817 = vmatpush1.msra.mxu0 %v307
  %1818 = vmatprep.subr.mxu0 0.0
  %1819 = vmatpush1.msra.mxu0 %v308
  %1820 = vmatprep.subr.mxu0 0.0
  %1821 = vmatpush1.msra.mxu0 %v309
  %1822 = vmatprep.subr.mxu0 0.0
  %1823 = vmatpush1.msra.mxu0 %v310
  %1824 = vmatprep.subr.mxu0 0.0
  %1825 = vmatpush1.msra.mxu0 %v311
  %1826 = vmatprep.subr.mxu0 0.0
  %1827 = vmatpush1.msra.mxu0 %v312
  %1828 = vmatprep.subr.mxu0 0.0
  %1829 = vmatpush1.msra.mxu0 0.0
  %1830 = vmatprep.subr.mxu0 0.0
  %1831 = vmatpush1.msra.mxu0 0.0
  %1832 = vmatprep.subr.mxu0 0.0
  %1833 = vmatpush1.msra.mxu0 0.0
  %1834 = vmatprep.subr.mxu0 0.0
  %1835 = vmatpush1.msra.mxu0 0.0
  %1836 = vmatprep.subr.mxu0 0.0
  %1837 = vmatpush1.msra.mxu0 0.0
  %1838 = vmatprep.subr.mxu0 0.0
  %1839 = vmatpush1.msra.mxu0 0.0
  %1840 = vmatprep.subr.mxu0 0.0
  %1841 = vmatpush1.msra.mxu0 0.0
  %1842 = vmatprep.subr.mxu0 0.0
  %1843 = vmatpush1.msra.mxu0 0.0
  %1844 = vmatprep.subr.mxu0 0.0
  %1845 = vmatpush1.msra.mxu0 0.0
  %1846 = vmatprep.subr.mxu0 0.0
  %1847 = vmatpush1.msra.mxu0 0.0
  %1848 = vmatprep.subr.mxu0 0.0
  %1849 = vmatpush1.msra.mxu0 0.0
  %1850 = vmatprep.subr.mxu0 0.0
  %1851 = vmatpush1.msra.mxu0 0.0
  %1852 = vmatprep.subr.mxu0 0.0
  %1853 = vmatpush1.msra.mxu0 0.0
  %1854 = vmatprep.subr.mxu0 0.0
  %1855 = vmatpush1.msra.mxu0 0.0
  %1856 = vmatprep.subr.mxu0 0.0
  %1857 = vmatpush1.msra.mxu0 0.0
  %1858 = vmatprep.subr.mxu0 0.0
  %1859 = vmatpush1.msra.mxu0 0.0
  %1860 = vmatprep.subr.mxu0 0.0
  %1861 = vmatpush1.msra.mxu0 0.0
  %1862 = vmatprep.subr.mxu0 0.0
  %1863 = vmatpush1.msra.mxu0 0.0
  %1864 = vmatprep.subr.mxu0 0.0
  %1865 = vmatpush1.msra.mxu0 0.0
  %1866 = vmatprep.subr.mxu0 0.0
  %1867 = vmatpush1.msra.mxu0 0.0
  %1868 = vmatprep.subr.mxu0 0.0
  %1869 = vmatpush1.msra.mxu0 0.0
  %1870 = vmatprep.subr.mxu0 0.0
  %1871 = vmatpush1.msra.mxu0 0.0
  %1872 = vmatprep.subr.mxu0 0.0
  %1873 = vmatpush1.msra.mxu0 0.0
  %1874 = vmatprep.subr.mxu0 0.0
  %1875 = vmatpush1.msra.mxu0 0.0
  %1876 = vmatprep.mubr.f32.mxu0 0.0
  %1877 = vmatmul.mubr.f32.gmra.mrb[0].mxu0 %v1810
  %v1878 = vpop.f32.mrb[0].mxu0
  %v1879 = vadd.f32 0.0, %v1878
  %v1880 = vpop.f32.mrb[0].mxu0
  %1881 = vdwg.mxu0
  %v1882 = vmul.f32 %v1808, 0.5
  %v1883 = vmul.f32 %v1879, %v1879
  %v1884 = vadd.f32 %v1883, %v345
  %v1885 = vrsqrt.pop %v1884
  %v1886 = vmul.f32 %v1884, %v1885
  %vm1887 = vcmp.eq.f32.partialorder %v1884, inf
  %v1888 = vsel %vm1887, %v1884, %v1886
  %vm1889 = vcmp.eq.f32.partialorder %v1884, 0.0
  %v1890 = vand.u32 %v1884, 2147483648
  %v1891 = vsel %vm1889, %v1890, %v1888
  %v1892 = vsub.f32 %v1891, %v1879
  %v1893 = vmul.f32 %v1892, %v344
  %v1894 = vadd.f32 %v1882, %v1893
  %v1896 = vsel %vm175, %v1894, 0
  %1898 = vmatprep.subr.mxu0 0.0
  %1899 = vmatpush1.msra.mxu0 %v305
  %1900 = vmatprep.subr.mxu0 0.0
  %1901 = vmatpush1.msra.mxu0 %v306
  %1902 = vmatprep.subr.mxu0 0.0
  %1903 = vmatpush1.msra.mxu0 %v307
  %1904 = vmatprep.subr.mxu0 0.0
  %1905 = vmatpush1.msra.mxu0 %v308
  %1906 = vmatprep.subr.mxu0 0.0
  %1907 = vmatpush1.msra.mxu0 %v309
  %1908 = vmatprep.subr.mxu0 0.0
  %1909 = vmatpush1.msra.mxu0 %v310
  %1910 = vmatprep.subr.mxu0 0.0
  %1911 = vmatpush1.msra.mxu0 %v311
  %1912 = vmatprep.subr.mxu0 0.0
  %1913 = vmatpush1.msra.mxu0 %v312
  %1914 = vmatprep.subr.mxu0 0.0
  %1915 = vmatpush1.msra.mxu0 0.0
  %1916 = vmatprep.subr.mxu0 0.0
  %1917 = vmatpush1.msra.mxu0 0.0
  %1918 = vmatprep.subr.mxu0 0.0
  %1919 = vmatpush1.msra.mxu0 0.0
  %1920 = vmatprep.subr.mxu0 0.0
  %1921 = vmatpush1.msra.mxu0 0.0
  %1922 = vmatprep.subr.mxu0 0.0
  %1923 = vmatpush1.msra.mxu0 0.0
  %1924 = vmatprep.subr.mxu0 0.0
  %1925 = vmatpush1.msra.mxu0 0.0
  %1926 = vmatprep.subr.mxu0 0.0
  %1927 = vmatpush1.msra.mxu0 0.0
  %1928 = vmatprep.subr.mxu0 0.0
  %1929 = vmatpush1.msra.mxu0 0.0
  %1930 = vmatprep.subr.mxu0 0.0
  %1931 = vmatpush1.msra.mxu0 0.0
  %1932 = vmatprep.subr.mxu0 0.0
  %1933 = vmatpush1.msra.mxu0 0.0
  %1934 = vmatprep.subr.mxu0 0.0
  %1935 = vmatpush1.msra.mxu0 0.0
  %1936 = vmatprep.subr.mxu0 0.0
  %1937 = vmatpush1.msra.mxu0 0.0
  %1938 = vmatprep.subr.mxu0 0.0
  %1939 = vmatpush1.msra.mxu0 0.0
  %1940 = vmatprep.subr.mxu0 0.0
  %1941 = vmatpush1.msra.mxu0 0.0
  %1942 = vmatprep.subr.mxu0 0.0
  %1943 = vmatpush1.msra.mxu0 0.0
  %1944 = vmatprep.subr.mxu0 0.0
  %1945 = vmatpush1.msra.mxu0 0.0
  %1946 = vmatprep.subr.mxu0 0.0
  %1947 = vmatpush1.msra.mxu0 0.0
  %1948 = vmatprep.subr.mxu0 0.0
  %1949 = vmatpush1.msra.mxu0 0.0
  %1950 = vmatprep.subr.mxu0 0.0
  %1951 = vmatpush1.msra.mxu0 0.0
  %1952 = vmatprep.subr.mxu0 0.0
  %1953 = vmatpush1.msra.mxu0 0.0
  %1954 = vmatprep.subr.mxu0 0.0
  %1955 = vmatpush1.msra.mxu0 0.0
  %1956 = vmatprep.subr.mxu0 0.0
  %1957 = vmatpush1.msra.mxu0 0.0
  %1958 = vmatprep.subr.mxu0 0.0
  %1959 = vmatpush1.msra.mxu0 0.0
  %1960 = vmatprep.subr.mxu0 0.0
  %1961 = vmatpush1.msra.mxu0 0.0
  %1962 = vmatprep.mubr.f32.mxu0 0.0
  %1963 = vmatmul.mubr.f32.gmra.mrb[0].mxu0 %v1896
  %v1964 = vpop.f32.mrb[0].mxu0
  %v1965 = vadd.f32 0.0, %v1964
  %v1966 = vpop.f32.mrb[0].mxu0
  %1967 = vdwg.mxu0
  %v1968 = vmul.f32 %v1894, 0.5
  %v1969 = vmul.f32 %v1965, %v1965
  %v1970 = vadd.f32 %v1969, %v345
  %v1971 = vrsqrt.pop %v1970
  %v1972 = vmul.f32 %v1970, %v1971
  %vm1973 = vcmp.eq.f32.partialorder %v1970, inf
  %v1974 = vsel %vm1973, %v1970, %v1972
  %vm1975 = vcmp.eq.f32.partialorder %v1970, 0.0
  %v1976 = vand.u32 %v1970, 2147483648
  %v1977 = vsel %vm1975, %v1976, %v1974
  %v1978 = vsub.f32 %v1977, %v1965
  %v1979 = vmul.f32 %v1978, %v344
  %v1980 = vadd.f32 %v1968, %v1979
  %v1982 = vsel %vm175, %v1980, 0
  %1984 = vmatprep.subr.mxu0 0.0
  %1985 = vmatpush1.msra.mxu0 %v305
  %1986 = vmatprep.subr.mxu0 0.0
  %1987 = vmatpush1.msra.mxu0 %v306
  %1988 = vmatprep.subr.mxu0 0.0
  %1989 = vmatpush1.msra.mxu0 %v307
  %1990 = vmatprep.subr.mxu0 0.0
  %1991 = vmatpush1.msra.mxu0 %v308
  %1992 = vmatprep.subr.mxu0 0.0
  %1993 = vmatpush1.msra.mxu0 %v309
  %1994 = vmatprep.subr.mxu0 0.0
  %1995 = vmatpush1.msra.mxu0 %v310
  %1996 = vmatprep.subr.mxu0 0.0
  %1997 = vmatpush1.msra.mxu0 %v311
  %1998 = vmatprep.subr.mxu0 0.0
  %1999 = vmatpush1.msra.mxu0 %v312
  %2000 = vmatprep.subr.mxu0 0.0
  %2001 = vmatpush1.msra.mxu0 0.0
  %2002 = vmatprep.subr.mxu0 0.0
  %2003 = vmatpush1.msra.mxu0 0.0
  %2004 = vmatprep.subr.mxu0 0.0
  %2005 = vmatpush1.msra.mxu0 0.0
  %2006 = vmatprep.subr.mxu0 0.0
  %2007 = vmatpush1.msra.mxu0 0.0
  %2008 = vmatprep.subr.mxu0 0.0
  %2009 = vmatpush1.msra.mxu0 0.0
  %2010 = vmatprep.subr.mxu0 0.0
  %2011 = vmatpush1.msra.mxu0 0.0
  %2012 = vmatprep.subr.mxu0 0.0
  %2013 = vmatpush1.msra.mxu0 0.0
  %2014 = vmatprep.subr.mxu0 0.0
  %2015 = vmatpush1.msra.mxu0 0.0
  %2016 = vmatprep.subr.mxu0 0.0
  %2017 = vmatpush1.msra.mxu0 0.0
  %2018 = vmatprep.subr.mxu0 0.0
  %2019 = vmatpush1.msra.mxu0 0.0
  %2020 = vmatprep.subr.mxu0 0.0
  %2021 = vmatpush1.msra.mxu0 0.0
  %2022 = vmatprep.subr.mxu0 0.0
  %2023 = vmatpush1.msra.mxu0 0.0
  %2024 = vmatprep.subr.mxu0 0.0
  %2025 = vmatpush1.msra.mxu0 0.0
  %2026 = vmatprep.subr.mxu0 0.0
  %2027 = vmatpush1.msra.mxu0 0.0
  %2028 = vmatprep.subr.mxu0 0.0
  %2029 = vmatpush1.msra.mxu0 0.0
  %2030 = vmatprep.subr.mxu0 0.0
  %2031 = vmatpush1.msra.mxu0 0.0
  %2032 = vmatprep.subr.mxu0 0.0
  %2033 = vmatpush1.msra.mxu0 0.0
  %2034 = vmatprep.subr.mxu0 0.0
  %2035 = vmatpush1.msra.mxu0 0.0
  %2036 = vmatprep.subr.mxu0 0.0
  %2037 = vmatpush1.msra.mxu0 0.0
  %2038 = vmatprep.subr.mxu0 0.0
  %2039 = vmatpush1.msra.mxu0 0.0
  %2040 = vmatprep.subr.mxu0 0.0
  %2041 = vmatpush1.msra.mxu0 0.0
  %2042 = vmatprep.subr.mxu0 0.0
  %2043 = vmatpush1.msra.mxu0 0.0
  %2044 = vmatprep.subr.mxu0 0.0
  %2045 = vmatpush1.msra.mxu0 0.0
  %2046 = vmatprep.subr.mxu0 0.0
  %2047 = vmatpush1.msra.mxu0 0.0
  %2048 = vmatprep.mubr.f32.mxu0 0.0
  %2049 = vmatmul.mubr.f32.gmra.mrb[0].mxu0 %v1982
  %v2050 = vpop.f32.mrb[0].mxu0
  %v2051 = vadd.f32 0.0, %v2050
  %v2052 = vpop.f32.mrb[0].mxu0
  %2053 = vdwg.mxu0
  %v2054 = vmul.f32 %v1980, 0.5
  %v2055 = vmul.f32 %v2051, %v2051
  %v2056 = vadd.f32 %v2055, %v345
  %v2057 = vrsqrt.pop %v2056
  %v2058 = vmul.f32 %v2056, %v2057
  %vm2059 = vcmp.eq.f32.partialorder %v2056, inf
  %v2060 = vsel %vm2059, %v2056, %v2058
  %vm2061 = vcmp.eq.f32.partialorder %v2056, 0.0
  %v2062 = vand.u32 %v2056, 2147483648
  %v2063 = vsel %vm2061, %v2062, %v2060
  %v2064 = vsub.f32 %v2063, %v2051
  %v2065 = vmul.f32 %v2064, %v344
  %v2066 = vadd.f32 %v2054, %v2065
  %v2068 = vsel %vm175, %v2066, 0
  %2070 = vmatprep.subr.mxu0 0.0
  %2071 = vmatpush1.msra.mxu0 %v305
  %2072 = vmatprep.subr.mxu0 0.0
  %2073 = vmatpush1.msra.mxu0 %v306
  %2074 = vmatprep.subr.mxu0 0.0
  %2075 = vmatpush1.msra.mxu0 %v307
  %2076 = vmatprep.subr.mxu0 0.0
  %2077 = vmatpush1.msra.mxu0 %v308
  %2078 = vmatprep.subr.mxu0 0.0
  %2079 = vmatpush1.msra.mxu0 %v309
  %2080 = vmatprep.subr.mxu0 0.0
  %2081 = vmatpush1.msra.mxu0 %v310
  %2082 = vmatprep.subr.mxu0 0.0
  %2083 = vmatpush1.msra.mxu0 %v311
  %2084 = vmatprep.subr.mxu0 0.0
  %2085 = vmatpush1.msra.mxu0 %v312
  %2086 = vmatprep.subr.mxu0 0.0
  %2087 = vmatpush1.msra.mxu0 0.0
  %2088 = vmatprep.subr.mxu0 0.0
  %2089 = vmatpush1.msra.mxu0 0.0
  %2090 = vmatprep.subr.mxu0 0.0
  %2091 = vmatpush1.msra.mxu0 0.0
  %2092 = vmatprep.subr.mxu0 0.0
  %2093 = vmatpush1.msra.mxu0 0.0
  %2094 = vmatprep.subr.mxu0 0.0
  %2095 = vmatpush1.msra.mxu0 0.0
  %2096 = vmatprep.subr.mxu0 0.0
  %2097 = vmatpush1.msra.mxu0 0.0
  %2098 = vmatprep.subr.mxu0 0.0
  %2099 = vmatpush1.msra.mxu0 0.0
  %2100 = vmatprep.subr.mxu0 0.0
  %2101 = vmatpush1.msra.mxu0 0.0
  %2102 = vmatprep.subr.mxu0 0.0
  %2103 = vmatpush1.msra.mxu0 0.0
  %2104 = vmatprep.subr.mxu0 0.0
  %2105 = vmatpush1.msra.mxu0 0.0
  %2106 = vmatprep.subr.mxu0 0.0
  %2107 = vmatpush1.msra.mxu0 0.0
  %2108 = vmatprep.subr.mxu0 0.0
  %2109 = vmatpush1.msra.mxu0 0.0
  %2110 = vmatprep.subr.mxu0 0.0
  %2111 = vmatpush1.msra.mxu0 0.0
  %2112 = vmatprep.subr.mxu0 0.0
  %2113 = vmatpush1.msra.mxu0 0.0
  %2114 = vmatprep.subr.mxu0 0.0
  %2115 = vmatpush1.msra.mxu0 0.0
  %2116 = vmatprep.subr.mxu0 0.0
  %2117 = vmatpush1.msra.mxu0 0.0
  %2118 = vmatprep.subr.mxu0 0.0
  %2119 = vmatpush1.msra.mxu0 0.0
  %2120 = vmatprep.subr.mxu0 0.0
  %2121 = vmatpush1.msra.mxu0 0.0
  %2122 = vmatprep.subr.mxu0 0.0
  %2123 = vmatpush1.msra.mxu0 0.0
  %2124 = vmatprep.subr.mxu0 0.0
  %2125 = vmatpush1.msra.mxu0 0.0
  %2126 = vmatprep.subr.mxu0 0.0
  %2127 = vmatpush1.msra.mxu0 0.0
  %2128 = vmatprep.subr.mxu0 0.0
  %2129 = vmatpush1.msra.mxu0 0.0
  %2130 = vmatprep.subr.mxu0 0.0
  %2131 = vmatpush1.msra.mxu0 0.0
  %2132 = vmatprep.subr.mxu0 0.0
  %2133 = vmatpush1.msra.mxu0 0.0
  %2134 = vmatprep.mubr.f32.mxu0 0.0
  %2135 = vmatmul.mubr.f32.gmra.mrb[0].mxu0 %v2068
  %v2136 = vpop.f32.mrb[0].mxu0
  %v2137 = vadd.f32 0.0, %v2136
  %v2138 = vpop.f32.mrb[0].mxu0
  %2139 = vdwg.mxu0
  %v2140 = vmul.f32 %v2066, 0.5
  %v2141 = vmul.f32 %v2137, %v2137
  %v2142 = vadd.f32 %v2141, %v345
  %v2143 = vrsqrt.pop %v2142
  %v2144 = vmul.f32 %v2142, %v2143
  %vm2145 = vcmp.eq.f32.partialorder %v2142, inf
  %v2146 = vsel %vm2145, %v2142, %v2144
  %vm2147 = vcmp.eq.f32.partialorder %v2142, 0.0
  %v2148 = vand.u32 %v2142, 2147483648
  %v2149 = vsel %vm2147, %v2148, %v2146
  %v2150 = vsub.f32 %v2149, %v2137
  %v2151 = vmul.f32 %v2150, %v344
  %v2152 = vadd.f32 %v2140, %v2151
  %v2154 = vsel %vm175, %v2152, 0
  %2156 = vmatprep.subr.mxu0 0.0
  %2157 = vmatpush1.msra.mxu0 %v305
  %2158 = vmatprep.subr.mxu0 0.0
  %2159 = vmatpush1.msra.mxu0 %v306
  %2160 = vmatprep.subr.mxu0 0.0
  %2161 = vmatpush1.msra.mxu0 %v307
  %2162 = vmatprep.subr.mxu0 0.0
  %2163 = vmatpush1.msra.mxu0 %v308
  %2164 = vmatprep.subr.mxu0 0.0
  %2165 = vmatpush1.msra.mxu0 %v309
  %2166 = vmatprep.subr.mxu0 0.0
  %2167 = vmatpush1.msra.mxu0 %v310
  %2168 = vmatprep.subr.mxu0 0.0
  %2169 = vmatpush1.msra.mxu0 %v311
  %2170 = vmatprep.subr.mxu0 0.0
  %2171 = vmatpush1.msra.mxu0 %v312
  %2172 = vmatprep.subr.mxu0 0.0
  %2173 = vmatpush1.msra.mxu0 0.0
  %2174 = vmatprep.subr.mxu0 0.0
  %2175 = vmatpush1.msra.mxu0 0.0
  %2176 = vmatprep.subr.mxu0 0.0
  %2177 = vmatpush1.msra.mxu0 0.0
  %2178 = vmatprep.subr.mxu0 0.0
  %2179 = vmatpush1.msra.mxu0 0.0
  %2180 = vmatprep.subr.mxu0 0.0
  %2181 = vmatpush1.msra.mxu0 0.0
  %2182 = vmatprep.subr.mxu0 0.0
  %2183 = vmatpush1.msra.mxu0 0.0
  %2184 = vmatprep.subr.mxu0 0.0
  %2185 = vmatpush1.msra.mxu0 0.0
  %2186 = vmatprep.subr.mxu0 0.0
  %2187 = vmatpush1.msra.mxu0 0.0
  %2188 = vmatprep.subr.mxu0 0.0
  %2189 = vmatpush1.msra.mxu0 0.0
  %2190 = vmatprep.subr.mxu0 0.0
  %2191 = vmatpush1.msra.mxu0 0.0
  %2192 = vmatprep.subr.mxu0 0.0
  %2193 = vmatpush1.msra.mxu0 0.0
  %2194 = vmatprep.subr.mxu0 0.0
  %2195 = vmatpush1.msra.mxu0 0.0
  %2196 = vmatprep.subr.mxu0 0.0
  %2197 = vmatpush1.msra.mxu0 0.0
  %2198 = vmatprep.subr.mxu0 0.0
  %2199 = vmatpush1.msra.mxu0 0.0
  %2200 = vmatprep.subr.mxu0 0.0
  %2201 = vmatpush1.msra.mxu0 0.0
  %2202 = vmatprep.subr.mxu0 0.0
  %2203 = vmatpush1.msra.mxu0 0.0
  %2204 = vmatprep.subr.mxu0 0.0
  %2205 = vmatpush1.msra.mxu0 0.0
  %2206 = vmatprep.subr.mxu0 0.0
  %2207 = vmatpush1.msra.mxu0 0.0
  %2208 = vmatprep.subr.mxu0 0.0
  %2209 = vmatpush1.msra.mxu0 0.0
  %2210 = vmatprep.subr.mxu0 0.0
  %2211 = vmatpush1.msra.mxu0 0.0
  %2212 = vmatprep.subr.mxu0 0.0
  %2213 = vmatpush1.msra.mxu0 0.0
  %2214 = vmatprep.subr.mxu0 0.0
  %2215 = vmatpush1.msra.mxu0 0.0
  %2216 = vmatprep.subr.mxu0 0.0
  %2217 = vmatpush1.msra.mxu0 0.0
  %2218 = vmatprep.subr.mxu0 0.0
  %2219 = vmatpush1.msra.mxu0 0.0
  %2220 = vmatprep.mubr.f32.mxu0 0.0
  %2221 = vmatmul.mubr.f32.gmra.mrb[0].mxu0 %v2154
  %v2222 = vpop.f32.mrb[0].mxu0
  %v2223 = vadd.f32 0.0, %v2222
  %v2224 = vpop.f32.mrb[0].mxu0
  %2225 = vdwg.mxu0
  %v2226 = vmul.f32 %v2152, 0.5
  %v2227 = vmul.f32 %v2223, %v2223
  %v2228 = vadd.f32 %v2227, %v345
  %v2229 = vrsqrt.pop %v2228
  %v2230 = vmul.f32 %v2228, %v2229
  %vm2231 = vcmp.eq.f32.partialorder %v2228, inf
  %v2232 = vsel %vm2231, %v2228, %v2230
  %vm2233 = vcmp.eq.f32.partialorder %v2228, 0.0
  %v2234 = vand.u32 %v2228, 2147483648
  %v2235 = vsel %vm2233, %v2234, %v2232
  %v2236 = vsub.f32 %v2235, %v2223
  %v2237 = vmul.f32 %v2236, %v344
  %v2238 = vadd.f32 %v2226, %v2237
  %v2240 = vsel %vm175, %v2238, 0
  %2242 = vmatprep.subr.mxu0 0.0
  %2243 = vmatpush1.msra.mxu0 %v305
  %2244 = vmatprep.subr.mxu0 0.0
  %2245 = vmatpush1.msra.mxu0 %v306
  %2246 = vmatprep.subr.mxu0 0.0
  %2247 = vmatpush1.msra.mxu0 %v307
  %2248 = vmatprep.subr.mxu0 0.0
  %2249 = vmatpush1.msra.mxu0 %v308
  %2250 = vmatprep.subr.mxu0 0.0
  %2251 = vmatpush1.msra.mxu0 %v309
  %2252 = vmatprep.subr.mxu0 0.0
  %2253 = vmatpush1.msra.mxu0 %v310
  %2254 = vmatprep.subr.mxu0 0.0
  %2255 = vmatpush1.msra.mxu0 %v311
  %2256 = vmatprep.subr.mxu0 0.0
  %2257 = vmatpush1.msra.mxu0 %v312
  %2258 = vmatprep.subr.mxu0 0.0
  %2259 = vmatpush1.msra.mxu0 0.0
  %2260 = vmatprep.subr.mxu0 0.0
  %2261 = vmatpush1.msra.mxu0 0.0
  %2262 = vmatprep.subr.mxu0 0.0
  %2263 = vmatpush1.msra.mxu0 0.0
  %2264 = vmatprep.subr.mxu0 0.0
  %2265 = vmatpush1.msra.mxu0 0.0
  %2266 = vmatprep.subr.mxu0 0.0
  %2267 = vmatpush1.msra.mxu0 0.0
  %2268 = vmatprep.subr.mxu0 0.0
  %2269 = vmatpush1.msra.mxu0 0.0
  %2270 = vmatprep.subr.mxu0 0.0
  %2271 = vmatpush1.msra.mxu0 0.0
  %2272 = vmatprep.subr.mxu0 0.0
  %2273 = vmatpush1.msra.mxu0 0.0
  %2274 = vmatprep.subr.mxu0 0.0
  %2275 = vmatpush1.msra.mxu0 0.0
  %2276 = vmatprep.subr.mxu0 0.0
  %2277 = vmatpush1.msra.mxu0 0.0
  %2278 = vmatprep.subr.mxu0 0.0
  %2279 = vmatpush1.msra.mxu0 0.0
  %2280 = vmatprep.subr.mxu0 0.0
  %2281 = vmatpush1.msra.mxu0 0.0
  %2282 = vmatprep.subr.mxu0 0.0
  %2283 = vmatpush1.msra.mxu0 0.0
  %2284 = vmatprep.subr.mxu0 0.0
  %2285 = vmatpush1.msra.mxu0 0.0
  %2286 = vmatprep.subr.mxu0 0.0
  %2287 = vmatpush1.msra.mxu0 0.0
  %2288 = vmatprep.subr.mxu0 0.0
  %2289 = vmatpush1.msra.mxu0 0.0
  %2290 = vmatprep.subr.mxu0 0.0
  %2291 = vmatpush1.msra.mxu0 0.0
  %2292 = vmatprep.subr.mxu0 0.0
  %2293 = vmatpush1.msra.mxu0 0.0
  %2294 = vmatprep.subr.mxu0 0.0
  %2295 = vmatpush1.msra.mxu0 0.0
  %2296 = vmatprep.subr.mxu0 0.0
  %2297 = vmatpush1.msra.mxu0 0.0
  %2298 = vmatprep.subr.mxu0 0.0
  %2299 = vmatpush1.msra.mxu0 0.0
  %2300 = vmatprep.subr.mxu0 0.0
  %2301 = vmatpush1.msra.mxu0 0.0
  %2302 = vmatprep.subr.mxu0 0.0
  %2303 = vmatpush1.msra.mxu0 0.0
  %2304 = vmatprep.subr.mxu0 0.0
  %2305 = vmatpush1.msra.mxu0 0.0
  %2306 = vmatprep.mubr.f32.mxu0 0.0
  %2307 = vmatmul.mubr.f32.gmra.mrb[0].mxu0 %v2240
  %v2308 = vpop.f32.mrb[0].mxu0
  %v2309 = vadd.f32 0.0, %v2308
  %v2310 = vpop.f32.mrb[0].mxu0
  %2311 = vdwg.mxu0
  %v2312 = vmul.f32 %v2238, 0.5
  %v2313 = vmul.f32 %v2309, %v2309
  %v2314 = vadd.f32 %v2313, %v345
  %v2315 = vrsqrt.pop %v2314
  %v2316 = vmul.f32 %v2314, %v2315
  %vm2317 = vcmp.eq.f32.partialorder %v2314, inf
  %v2318 = vsel %vm2317, %v2314, %v2316
  %vm2319 = vcmp.eq.f32.partialorder %v2314, 0.0
  %v2320 = vand.u32 %v2314, 2147483648
  %v2321 = vsel %vm2319, %v2320, %v2318
  %v2322 = vsub.f32 %v2321, %v2309
  %v2323 = vmul.f32 %v2322, %v344
  %v2324 = vadd.f32 %v2312, %v2323
  %v2326 = vsel %vm175, %v2324, 0
  %2328 = vmatprep.subr.mxu0 0.0
  %2329 = vmatpush1.msra.mxu0 %v305
  %2330 = vmatprep.subr.mxu0 0.0
  %2331 = vmatpush1.msra.mxu0 %v306
  %2332 = vmatprep.subr.mxu0 0.0
  %2333 = vmatpush1.msra.mxu0 %v307
  %2334 = vmatprep.subr.mxu0 0.0
  %2335 = vmatpush1.msra.mxu0 %v308
  %2336 = vmatprep.subr.mxu0 0.0
  %2337 = vmatpush1.msra.mxu0 %v309
  %2338 = vmatprep.subr.mxu0 0.0
  %2339 = vmatpush1.msra.mxu0 %v310
  %2340 = vmatprep.subr.mxu0 0.0
  %2341 = vmatpush1.msra.mxu0 %v311
  %2342 = vmatprep.subr.mxu0 0.0
  %2343 = vmatpush1.msra.mxu0 %v312
  %2344 = vmatprep.subr.mxu0 0.0
  %2345 = vmatpush1.msra.mxu0 0.0
  %2346 = vmatprep.subr.mxu0 0.0
  %2347 = vmatpush1.msra.mxu0 0.0
  %2348 = vmatprep.subr.mxu0 0.0
  %2349 = vmatpush1.msra.mxu0 0.0
  %2350 = vmatprep.subr.mxu0 0.0
  %2351 = vmatpush1.msra.mxu0 0.0
  %2352 = vmatprep.subr.mxu0 0.0
  %2353 = vmatpush1.msra.mxu0 0.0
  %2354 = vmatprep.subr.mxu0 0.0
  %2355 = vmatpush1.msra.mxu0 0.0
  %2356 = vmatprep.subr.mxu0 0.0
  %2357 = vmatpush1.msra.mxu0 0.0
  %2358 = vmatprep.subr.mxu0 0.0
  %2359 = vmatpush1.msra.mxu0 0.0
  %2360 = vmatprep.subr.mxu0 0.0
  %2361 = vmatpush1.msra.mxu0 0.0
  %2362 = vmatprep.subr.mxu0 0.0
  %2363 = vmatpush1.msra.mxu0 0.0
  %2364 = vmatprep.subr.mxu0 0.0
  %2365 = vmatpush1.msra.mxu0 0.0
  %2366 = vmatprep.subr.mxu0 0.0
  %2367 = vmatpush1.msra.mxu0 0.0
  %2368 = vmatprep.subr.mxu0 0.0
  %2369 = vmatpush1.msra.mxu0 0.0
  %2370 = vmatprep.subr.mxu0 0.0
  %2371 = vmatpush1.msra.mxu0 0.0
  %2372 = vmatprep.subr.mxu0 0.0
  %2373 = vmatpush1.msra.mxu0 0.0
  %2374 = vmatprep.subr.mxu0 0.0
  %2375 = vmatpush1.msra.mxu0 0.0
  %2376 = vmatprep.subr.mxu0 0.0
  %2377 = vmatpush1.msra.mxu0 0.0
  %2378 = vmatprep.subr.mxu0 0.0
  %2379 = vmatpush1.msra.mxu0 0.0
  %2380 = vmatprep.subr.mxu0 0.0
  %2381 = vmatpush1.msra.mxu0 0.0
  %2382 = vmatprep.subr.mxu0 0.0
  %2383 = vmatpush1.msra.mxu0 0.0
  %2384 = vmatprep.subr.mxu0 0.0
  %2385 = vmatpush1.msra.mxu0 0.0
  %2386 = vmatprep.subr.mxu0 0.0
  %2387 = vmatpush1.msra.mxu0 0.0
  %2388 = vmatprep.subr.mxu0 0.0
  %2389 = vmatpush1.msra.mxu0 0.0
  %2390 = vmatprep.subr.mxu0 0.0
  %2391 = vmatpush1.msra.mxu0 0.0
  %2392 = vmatprep.mubr.f32.mxu0 0.0
  %2393 = vmatmul.mubr.f32.gmra.mrb[0].mxu0 %v2326
  %v2394 = vpop.f32.mrb[0].mxu0
  %v2395 = vadd.f32 0.0, %v2394
  %v2396 = vpop.f32.mrb[0].mxu0
  %2397 = vdwg.mxu0
  %v2398 = vmul.f32 %v2324, 0.5
  %v2399 = vmul.f32 %v2395, %v2395
  %v2400 = vadd.f32 %v2399, %v345
  %v2401 = vrsqrt.pop %v2400
  %v2402 = vmul.f32 %v2400, %v2401
  %vm2403 = vcmp.eq.f32.partialorder %v2400, inf
  %v2404 = vsel %vm2403, %v2400, %v2402
  %vm2405 = vcmp.eq.f32.partialorder %v2400, 0.0
  %v2406 = vand.u32 %v2400, 2147483648
  %v2407 = vsel %vm2405, %v2406, %v2404
  %v2408 = vsub.f32 %v2407, %v2395
  %v2409 = vmul.f32 %v2408, %v344
  %v2410 = vadd.f32 %v2398, %v2409
  %v2412 = vsel %vm175, %v2410, 0
  %2414 = vmatprep.subr.mxu0 0.0
  %2415 = vmatpush1.msra.mxu0 %v305
  %2416 = vmatprep.subr.mxu0 0.0
  %2417 = vmatpush1.msra.mxu0 %v306
  %2418 = vmatprep.subr.mxu0 0.0
  %2419 = vmatpush1.msra.mxu0 %v307
  %2420 = vmatprep.subr.mxu0 0.0
  %2421 = vmatpush1.msra.mxu0 %v308
  %2422 = vmatprep.subr.mxu0 0.0
  %2423 = vmatpush1.msra.mxu0 %v309
  %2424 = vmatprep.subr.mxu0 0.0
  %2425 = vmatpush1.msra.mxu0 %v310
  %2426 = vmatprep.subr.mxu0 0.0
  %2427 = vmatpush1.msra.mxu0 %v311
  %2428 = vmatprep.subr.mxu0 0.0
  %2429 = vmatpush1.msra.mxu0 %v312
  %2430 = vmatprep.subr.mxu0 0.0
  %2431 = vmatpush1.msra.mxu0 0.0
  %2432 = vmatprep.subr.mxu0 0.0
  %2433 = vmatpush1.msra.mxu0 0.0
  %2434 = vmatprep.subr.mxu0 0.0
  %2435 = vmatpush1.msra.mxu0 0.0
  %2436 = vmatprep.subr.mxu0 0.0
  %2437 = vmatpush1.msra.mxu0 0.0
  %2438 = vmatprep.subr.mxu0 0.0
  %2439 = vmatpush1.msra.mxu0 0.0
  %2440 = vmatprep.subr.mxu0 0.0
  %2441 = vmatpush1.msra.mxu0 0.0
  %2442 = vmatprep.subr.mxu0 0.0
  %2443 = vmatpush1.msra.mxu0 0.0
  %2444 = vmatprep.subr.mxu0 0.0
  %2445 = vmatpush1.msra.mxu0 0.0
  %2446 = vmatprep.subr.mxu0 0.0
  %2447 = vmatpush1.msra.mxu0 0.0
  %2448 = vmatprep.subr.mxu0 0.0
  %2449 = vmatpush1.msra.mxu0 0.0
  %2450 = vmatprep.subr.mxu0 0.0
  %2451 = vmatpush1.msra.mxu0 0.0
  %2452 = vmatprep.subr.mxu0 0.0
  %2453 = vmatpush1.msra.mxu0 0.0
  %2454 = vmatprep.subr.mxu0 0.0
  %2455 = vmatpush1.msra.mxu0 0.0
  %2456 = vmatprep.subr.mxu0 0.0
  %2457 = vmatpush1.msra.mxu0 0.0
  %2458 = vmatprep.subr.mxu0 0.0
  %2459 = vmatpush1.msra.mxu0 0.0
  %2460 = vmatprep.subr.mxu0 0.0
  %2461 = vmatpush1.msra.mxu0 0.0
  %2462 = vmatprep.subr.mxu0 0.0
  %2463 = vmatpush1.msra.mxu0 0.0
  %2464 = vmatprep.subr.mxu0 0.0
  %2465 = vmatpush1.msra.mxu0 0.0
  %2466 = vmatprep.subr.mxu0 0.0
  %2467 = vmatpush1.msra.mxu0 0.0
  %2468 = vmatprep.subr.mxu0 0.0
  %2469 = vmatpush1.msra.mxu0 0.0
  %2470 = vmatprep.subr.mxu0 0.0
  %2471 = vmatpush1.msra.mxu0 0.0
  %2472 = vmatprep.subr.mxu0 0.0
  %2473 = vmatpush1.msra.mxu0 0.0
  %2474 = vmatprep.subr.mxu0 0.0
  %2475 = vmatpush1.msra.mxu0 0.0
  %2476 = vmatprep.subr.mxu0 0.0
  %2477 = vmatpush1.msra.mxu0 0.0
  %2478 = vmatprep.mubr.f32.mxu0 0.0
  %2479 = vmatmul.mubr.f32.gmra.mrb[0].mxu0 %v2412
  %v2480 = vpop.f32.mrb[0].mxu0
  %v2481 = vadd.f32 0.0, %v2480
  %v2482 = vpop.f32.mrb[0].mxu0
  %2483 = vdwg.mxu0
  %v2484 = vmul.f32 %v2410, 0.5
  %v2485 = vmul.f32 %v2481, %v2481
  %v2486 = vadd.f32 %v2485, %v345
  %v2487 = vrsqrt.pop %v2486
  %v2488 = vmul.f32 %v2486, %v2487
  %vm2489 = vcmp.eq.f32.partialorder %v2486, inf
  %v2490 = vsel %vm2489, %v2486, %v2488
  %vm2491 = vcmp.eq.f32.partialorder %v2486, 0.0
  %v2492 = vand.u32 %v2486, 2147483648
  %v2493 = vsel %vm2491, %v2492, %v2490
  %v2494 = vsub.f32 %v2493, %v2481
  %v2495 = vmul.f32 %v2494, %v344
  %v2496 = vadd.f32 %v2484, %v2495
  %v2498 = vsel %vm175, %v2496, 0
  %2500 = vmatprep.subr.mxu0 0.0
  %2501 = vmatpush1.msra.mxu0 %v305
  %2502 = vmatprep.subr.mxu0 0.0
  %2503 = vmatpush1.msra.mxu0 %v306
  %2504 = vmatprep.subr.mxu0 0.0
  %2505 = vmatpush1.msra.mxu0 %v307
  %2506 = vmatprep.subr.mxu0 0.0
  %2507 = vmatpush1.msra.mxu0 %v308
  %2508 = vmatprep.subr.mxu0 0.0
  %2509 = vmatpush1.msra.mxu0 %v309
  %2510 = vmatprep.subr.mxu0 0.0
  %2511 = vmatpush1.msra.mxu0 %v310
  %2512 = vmatprep.subr.mxu0 0.0
  %2513 = vmatpush1.msra.mxu0 %v311
  %2514 = vmatprep.subr.mxu0 0.0
  %2515 = vmatpush1.msra.mxu0 %v312
  %2516 = vmatprep.subr.mxu0 0.0
  %2517 = vmatpush1.msra.mxu0 0.0
  %2518 = vmatprep.subr.mxu0 0.0
  %2519 = vmatpush1.msra.mxu0 0.0
  %2520 = vmatprep.subr.mxu0 0.0
  %2521 = vmatpush1.msra.mxu0 0.0
  %2522 = vmatprep.subr.mxu0 0.0
  %2523 = vmatpush1.msra.mxu0 0.0
  %2524 = vmatprep.subr.mxu0 0.0
  %2525 = vmatpush1.msra.mxu0 0.0
  %2526 = vmatprep.subr.mxu0 0.0
  %2527 = vmatpush1.msra.mxu0 0.0
  %2528 = vmatprep.subr.mxu0 0.0
  %2529 = vmatpush1.msra.mxu0 0.0
  %2530 = vmatprep.subr.mxu0 0.0
  %2531 = vmatpush1.msra.mxu0 0.0
  %2532 = vmatprep.subr.mxu0 0.0
  %2533 = vmatpush1.msra.mxu0 0.0
  %2534 = vmatprep.subr.mxu0 0.0
  %2535 = vmatpush1.msra.mxu0 0.0
  %2536 = vmatprep.subr.mxu0 0.0
  %2537 = vmatpush1.msra.mxu0 0.0
  %2538 = vmatprep.subr.mxu0 0.0
  %2539 = vmatpush1.msra.mxu0 0.0
  %2540 = vmatprep.subr.mxu0 0.0
  %2541 = vmatpush1.msra.mxu0 0.0
  %2542 = vmatprep.subr.mxu0 0.0
  %2543 = vmatpush1.msra.mxu0 0.0
  %2544 = vmatprep.subr.mxu0 0.0
  %2545 = vmatpush1.msra.mxu0 0.0
  %2546 = vmatprep.subr.mxu0 0.0
  %2547 = vmatpush1.msra.mxu0 0.0
  %2548 = vmatprep.subr.mxu0 0.0
  %2549 = vmatpush1.msra.mxu0 0.0
  %2550 = vmatprep.subr.mxu0 0.0
  %2551 = vmatpush1.msra.mxu0 0.0
  %2552 = vmatprep.subr.mxu0 0.0
  %2553 = vmatpush1.msra.mxu0 0.0
  %2554 = vmatprep.subr.mxu0 0.0
  %2555 = vmatpush1.msra.mxu0 0.0
  %2556 = vmatprep.subr.mxu0 0.0
  %2557 = vmatpush1.msra.mxu0 0.0
  %2558 = vmatprep.subr.mxu0 0.0
  %2559 = vmatpush1.msra.mxu0 0.0
  %2560 = vmatprep.subr.mxu0 0.0
  %2561 = vmatpush1.msra.mxu0 0.0
  %2562 = vmatprep.subr.mxu0 0.0
  %2563 = vmatpush1.msra.mxu0 0.0
  %2564 = vmatprep.mubr.f32.mxu0 0.0
  %2565 = vmatmul.mubr.f32.gmra.mrb[0].mxu0 %v2498
  %v2566 = vpop.f32.mrb[0].mxu0
  %v2567 = vadd.f32 0.0, %v2566
  %v2568 = vpop.f32.mrb[0].mxu0
  %2569 = vdwg.mxu0
  %v2570 = vmul.f32 %v2496, 0.5
  %v2571 = vmul.f32 %v2567, %v2567
  %v2572 = vadd.f32 %v2571, %v345
  %v2573 = vrsqrt.pop %v2572
  %v2574 = vmul.f32 %v2572, %v2573
  %vm2575 = vcmp.eq.f32.partialorder %v2572, inf
  %v2576 = vsel %vm2575, %v2572, %v2574
  %vm2577 = vcmp.eq.f32.partialorder %v2572, 0.0
  %v2578 = vand.u32 %v2572, 2147483648
  %v2579 = vsel %vm2577, %v2578, %v2576
  %v2580 = vsub.f32 %v2579, %v2567
  %v2581 = vmul.f32 %v2580, %v344
  %v2582 = vadd.f32 %v2570, %v2581
  %v2584 = vsel %vm175, %v2582, 0
  %2586 = vmatprep.subr.mxu0 0.0
  %2587 = vmatpush1.msra.mxu0 %v305
  %2588 = vmatprep.subr.mxu0 0.0
  %2589 = vmatpush1.msra.mxu0 %v306
  %2590 = vmatprep.subr.mxu0 0.0
  %2591 = vmatpush1.msra.mxu0 %v307
  %2592 = vmatprep.subr.mxu0 0.0
  %2593 = vmatpush1.msra.mxu0 %v308
  %2594 = vmatprep.subr.mxu0 0.0
  %2595 = vmatpush1.msra.mxu0 %v309
  %2596 = vmatprep.subr.mxu0 0.0
  %2597 = vmatpush1.msra.mxu0 %v310
  %2598 = vmatprep.subr.mxu0 0.0
  %2599 = vmatpush1.msra.mxu0 %v311
  %2600 = vmatprep.subr.mxu0 0.0
  %2601 = vmatpush1.msra.mxu0 %v312
  %2602 = vmatprep.subr.mxu0 0.0
  %2603 = vmatpush1.msra.mxu0 0.0
  %2604 = vmatprep.subr.mxu0 0.0
  %2605 = vmatpush1.msra.mxu0 0.0
  %2606 = vmatprep.subr.mxu0 0.0
  %2607 = vmatpush1.msra.mxu0 0.0
  %2608 = vmatprep.subr.mxu0 0.0
  %2609 = vmatpush1.msra.mxu0 0.0
  %2610 = vmatprep.subr.mxu0 0.0
  %2611 = vmatpush1.msra.mxu0 0.0
  %2612 = vmatprep.subr.mxu0 0.0
  %2613 = vmatpush1.msra.mxu0 0.0
  %2614 = vmatprep.subr.mxu0 0.0
  %2615 = vmatpush1.msra.mxu0 0.0
  %2616 = vmatprep.subr.mxu0 0.0
  %2617 = vmatpush1.msra.mxu0 0.0
  %2618 = vmatprep.subr.mxu0 0.0
  %2619 = vmatpush1.msra.mxu0 0.0
  %2620 = vmatprep.subr.mxu0 0.0
  %2621 = vmatpush1.msra.mxu0 0.0
  %2622 = vmatprep.subr.mxu0 0.0
  %2623 = vmatpush1.msra.mxu0 0.0
  %2624 = vmatprep.subr.mxu0 0.0
  %2625 = vmatpush1.msra.mxu0 0.0
  %2626 = vmatprep.subr.mxu0 0.0
  %2627 = vmatpush1.msra.mxu0 0.0
  %2628 = vmatprep.subr.mxu0 0.0
  %2629 = vmatpush1.msra.mxu0 0.0
  %2630 = vmatprep.subr.mxu0 0.0
  %2631 = vmatpush1.msra.mxu0 0.0
  %2632 = vmatprep.subr.mxu0 0.0
  %2633 = vmatpush1.msra.mxu0 0.0
  %2634 = vmatprep.subr.mxu0 0.0
  %2635 = vmatpush1.msra.mxu0 0.0
  %2636 = vmatprep.subr.mxu0 0.0
  %2637 = vmatpush1.msra.mxu0 0.0
  %2638 = vmatprep.subr.mxu0 0.0
  %2639 = vmatpush1.msra.mxu0 0.0
  %2640 = vmatprep.subr.mxu0 0.0
  %2641 = vmatpush1.msra.mxu0 0.0
  %2642 = vmatprep.subr.mxu0 0.0
  %2643 = vmatpush1.msra.mxu0 0.0
  %2644 = vmatprep.subr.mxu0 0.0
  %2645 = vmatpush1.msra.mxu0 0.0
  %2646 = vmatprep.subr.mxu0 0.0
  %2647 = vmatpush1.msra.mxu0 0.0
  %2648 = vmatprep.subr.mxu0 0.0
  %2649 = vmatpush1.msra.mxu0 0.0
  %2650 = vmatprep.mubr.f32.mxu0 0.0
  %2651 = vmatmul.mubr.f32.gmra.mrb[0].mxu0 %v2584
  %v2652 = vpop.f32.mrb[0].mxu0
  %v2653 = vadd.f32 0.0, %v2652
  %v2654 = vpop.f32.mrb[0].mxu0
  %2655 = vdwg.mxu0
  %v2656 = vmul.f32 %v2582, 0.5
  %v2657 = vmul.f32 %v2653, %v2653
  %v2658 = vadd.f32 %v2657, %v345
  %v2659 = vrsqrt.pop %v2658
  %v2660 = vmul.f32 %v2658, %v2659
  %vm2661 = vcmp.eq.f32.partialorder %v2658, inf
  %v2662 = vsel %vm2661, %v2658, %v2660
  %vm2663 = vcmp.eq.f32.partialorder %v2658, 0.0
  %v2664 = vand.u32 %v2658, 2147483648
  %v2665 = vsel %vm2663, %v2664, %v2662
  %v2666 = vsub.f32 %v2665, %v2653
  %v2667 = vmul.f32 %v2666, %v344
  %v2668 = vadd.f32 %v2656, %v2667
  %v2670 = vsel %vm175, %v2668, 0
  %2672 = vmatprep.subr.mxu0 0.0
  %2673 = vmatpush1.msra.mxu0 %v305
  %2674 = vmatprep.subr.mxu0 0.0
  %2675 = vmatpush1.msra.mxu0 %v306
  %2676 = vmatprep.subr.mxu0 0.0
  %2677 = vmatpush1.msra.mxu0 %v307
  %2678 = vmatprep.subr.mxu0 0.0
  %2679 = vmatpush1.msra.mxu0 %v308
  %2680 = vmatprep.subr.mxu0 0.0
  %2681 = vmatpush1.msra.mxu0 %v309
  %2682 = vmatprep.subr.mxu0 0.0
  %2683 = vmatpush1.msra.mxu0 %v310
  %2684 = vmatprep.subr.mxu0 0.0
  %2685 = vmatpush1.msra.mxu0 %v311
  %2686 = vmatprep.subr.mxu0 0.0
  %2687 = vmatpush1.msra.mxu0 %v312
  %2688 = vmatprep.subr.mxu0 0.0
  %2689 = vmatpush1.msra.mxu0 0.0
  %2690 = vmatprep.subr.mxu0 0.0
  %2691 = vmatpush1.msra.mxu0 0.0
  %2692 = vmatprep.subr.mxu0 0.0
  %2693 = vmatpush1.msra.mxu0 0.0
  %2694 = vmatprep.subr.mxu0 0.0
  %2695 = vmatpush1.msra.mxu0 0.0
  %2696 = vmatprep.subr.mxu0 0.0
  %2697 = vmatpush1.msra.mxu0 0.0
  %2698 = vmatprep.subr.mxu0 0.0
  %2699 = vmatpush1.msra.mxu0 0.0
  %2700 = vmatprep.subr.mxu0 0.0
  %2701 = vmatpush1.msra.mxu0 0.0
  %2702 = vmatprep.subr.mxu0 0.0
  %2703 = vmatpush1.msra.mxu0 0.0
  %2704 = vmatprep.subr.mxu0 0.0
  %2705 = vmatpush1.msra.mxu0 0.0
  %2706 = vmatprep.subr.mxu0 0.0
  %2707 = vmatpush1.msra.mxu0 0.0
  %2708 = vmatprep.subr.mxu0 0.0
  %2709 = vmatpush1.msra.mxu0 0.0
  %2710 = vmatprep.subr.mxu0 0.0
  %2711 = vmatpush1.msra.mxu0 0.0
  %2712 = vmatprep.subr.mxu0 0.0
  %2713 = vmatpush1.msra.mxu0 0.0
  %2714 = vmatprep.subr.mxu0 0.0
  %2715 = vmatpush1.msra.mxu0 0.0
  %2716 = vmatprep.subr.mxu0 0.0
  %2717 = vmatpush1.msra.mxu0 0.0
  %2718 = vmatprep.subr.mxu0 0.0
  %2719 = vmatpush1.msra.mxu0 0.0
  %2720 = vmatprep.subr.mxu0 0.0
  %2721 = vmatpush1.msra.mxu0 0.0
  %2722 = vmatprep.subr.mxu0 0.0
  %2723 = vmatpush1.msra.mxu0 0.0
  %2724 = vmatprep.subr.mxu0 0.0
  %2725 = vmatpush1.msra.mxu0 0.0
  %2726 = vmatprep.subr.mxu0 0.0
  %2727 = vmatpush1.msra.mxu0 0.0
  %2728 = vmatprep.subr.mxu0 0.0
  %2729 = vmatpush1.msra.mxu0 0.0
  %2730 = vmatprep.subr.mxu0 0.0
  %2731 = vmatpush1.msra.mxu0 0.0
  %2732 = vmatprep.subr.mxu0 0.0
  %2733 = vmatpush1.msra.mxu0 0.0
  %2734 = vmatprep.subr.mxu0 0.0
  %2735 = vmatpush1.msra.mxu0 0.0
  %2736 = vmatprep.mubr.f32.mxu0 0.0
  %2737 = vmatmul.mubr.f32.gmra.mrb[0].mxu0 %v2670
  %v2738 = vpop.f32.mrb[0].mxu0
  %v2739 = vadd.f32 0.0, %v2738
  %v2740 = vpop.f32.mrb[0].mxu0
  %2741 = vdwg.mxu0
  %v2742 = vmul.f32 %v2668, 0.5
  %v2743 = vmul.f32 %v2739, %v2739
  %v2744 = vadd.f32 %v2743, %v345
  %v2745 = vrsqrt.pop %v2744
  %v2746 = vmul.f32 %v2744, %v2745
  %vm2747 = vcmp.eq.f32.partialorder %v2744, inf
  %v2748 = vsel %vm2747, %v2744, %v2746
  %vm2749 = vcmp.eq.f32.partialorder %v2744, 0.0
  %v2750 = vand.u32 %v2744, 2147483648
  %v2751 = vsel %vm2749, %v2750, %v2748
  %v2752 = vsub.f32 %v2751, %v2739
  %v2753 = vmul.f32 %v2752, %v344
  %v2754 = vadd.f32 %v2742, %v2753
  %v2756 = vsel %vm175, %v2754, 0
  %2758 = vmatprep.subr.mxu0 0.0
  %2759 = vmatpush1.msra.mxu0 %v305
  %2760 = vmatprep.subr.mxu0 0.0
  %2761 = vmatpush1.msra.mxu0 %v306
  %2762 = vmatprep.subr.mxu0 0.0
  %2763 = vmatpush1.msra.mxu0 %v307
  %2764 = vmatprep.subr.mxu0 0.0
  %2765 = vmatpush1.msra.mxu0 %v308
  %2766 = vmatprep.subr.mxu0 0.0
  %2767 = vmatpush1.msra.mxu0 %v309
  %2768 = vmatprep.subr.mxu0 0.0
  %2769 = vmatpush1.msra.mxu0 %v310
  %2770 = vmatprep.subr.mxu0 0.0
  %2771 = vmatpush1.msra.mxu0 %v311
  %2772 = vmatprep.subr.mxu0 0.0
  %2773 = vmatpush1.msra.mxu0 %v312
  %2774 = vmatprep.subr.mxu0 0.0
  %2775 = vmatpush1.msra.mxu0 0.0
  %2776 = vmatprep.subr.mxu0 0.0
  %2777 = vmatpush1.msra.mxu0 0.0
  %2778 = vmatprep.subr.mxu0 0.0
  %2779 = vmatpush1.msra.mxu0 0.0
  %2780 = vmatprep.subr.mxu0 0.0
  %2781 = vmatpush1.msra.mxu0 0.0
  %2782 = vmatprep.subr.mxu0 0.0
  %2783 = vmatpush1.msra.mxu0 0.0
  %2784 = vmatprep.subr.mxu0 0.0
  %2785 = vmatpush1.msra.mxu0 0.0
  %2786 = vmatprep.subr.mxu0 0.0
  %2787 = vmatpush1.msra.mxu0 0.0
  %2788 = vmatprep.subr.mxu0 0.0
  %2789 = vmatpush1.msra.mxu0 0.0
  %2790 = vmatprep.subr.mxu0 0.0
  %2791 = vmatpush1.msra.mxu0 0.0
  %2792 = vmatprep.subr.mxu0 0.0
  %2793 = vmatpush1.msra.mxu0 0.0
  %2794 = vmatprep.subr.mxu0 0.0
  %2795 = vmatpush1.msra.mxu0 0.0
  %2796 = vmatprep.subr.mxu0 0.0
  %2797 = vmatpush1.msra.mxu0 0.0
  %2798 = vmatprep.subr.mxu0 0.0
  %2799 = vmatpush1.msra.mxu0 0.0
  %2800 = vmatprep.subr.mxu0 0.0
  %2801 = vmatpush1.msra.mxu0 0.0
  %2802 = vmatprep.subr.mxu0 0.0
  %2803 = vmatpush1.msra.mxu0 0.0
  %2804 = vmatprep.subr.mxu0 0.0
  %2805 = vmatpush1.msra.mxu0 0.0
  %2806 = vmatprep.subr.mxu0 0.0
  %2807 = vmatpush1.msra.mxu0 0.0
  %2808 = vmatprep.subr.mxu0 0.0
  %2809 = vmatpush1.msra.mxu0 0.0
  %2810 = vmatprep.subr.mxu0 0.0
  %2811 = vmatpush1.msra.mxu0 0.0
  %2812 = vmatprep.subr.mxu0 0.0
  %2813 = vmatpush1.msra.mxu0 0.0
  %2814 = vmatprep.subr.mxu0 0.0
  %2815 = vmatpush1.msra.mxu0 0.0
  %2816 = vmatprep.subr.mxu0 0.0
  %2817 = vmatpush1.msra.mxu0 0.0
  %2818 = vmatprep.subr.mxu0 0.0
  %2819 = vmatpush1.msra.mxu0 0.0
  %2820 = vmatprep.subr.mxu0 0.0
  %2821 = vmatpush1.msra.mxu0 0.0
  %2822 = vmatprep.mubr.f32.mxu0 0.0
  %2823 = vmatmul.mubr.f32.gmra.mrb[0].mxu0 %v2756
  %v2824 = vpop.f32.mrb[0].mxu0
  %v2825 = vadd.f32 0.0, %v2824
  %v2826 = vpop.f32.mrb[0].mxu0
  %2827 = vdwg.mxu0
  %v2828 = vmul.f32 %v2754, 0.5
  %v2829 = vmul.f32 %v2825, %v2825
  %v2830 = vadd.f32 %v2829, %v345
  %v2831 = vrsqrt.pop %v2830
  %v2832 = vmul.f32 %v2830, %v2831
  %vm2833 = vcmp.eq.f32.partialorder %v2830, inf
  %v2834 = vsel %vm2833, %v2830, %v2832
  %vm2835 = vcmp.eq.f32.partialorder %v2830, 0.0
  %v2836 = vand.u32 %v2830, 2147483648
  %v2837 = vsel %vm2835, %v2836, %v2834
  %v2838 = vsub.f32 %v2837, %v2825
  %v2839 = vmul.f32 %v2838, %v344
  %v2840 = vadd.f32 %v2828, %v2839
  %v2842 = vsel %vm175, %v2840, 0
  %2844 = vmatprep.subr.mxu0 0.0
  %2845 = vmatpush1.msra.mxu0 %v305
  %2846 = vmatprep.subr.mxu0 0.0
  %2847 = vmatpush1.msra.mxu0 %v306
  %2848 = vmatprep.subr.mxu0 0.0
  %2849 = vmatpush1.msra.mxu0 %v307
  %2850 = vmatprep.subr.mxu0 0.0
  %2851 = vmatpush1.msra.mxu0 %v308
  %2852 = vmatprep.subr.mxu0 0.0
  %2853 = vmatpush1.msra.mxu0 %v309
  %2854 = vmatprep.subr.mxu0 0.0
  %2855 = vmatpush1.msra.mxu0 %v310
  %2856 = vmatprep.subr.mxu0 0.0
  %2857 = vmatpush1.msra.mxu0 %v311
  %2858 = vmatprep.subr.mxu0 0.0
  %2859 = vmatpush1.msra.mxu0 %v312
  %2860 = vmatprep.subr.mxu0 0.0
  %2861 = vmatpush1.msra.mxu0 0.0
  %2862 = vmatprep.subr.mxu0 0.0
  %2863 = vmatpush1.msra.mxu0 0.0
  %2864 = vmatprep.subr.mxu0 0.0
  %2865 = vmatpush1.msra.mxu0 0.0
  %2866 = vmatprep.subr.mxu0 0.0
  %2867 = vmatpush1.msra.mxu0 0.0
  %2868 = vmatprep.subr.mxu0 0.0
  %2869 = vmatpush1.msra.mxu0 0.0
  %2870 = vmatprep.subr.mxu0 0.0
  %2871 = vmatpush1.msra.mxu0 0.0
  %2872 = vmatprep.subr.mxu0 0.0
  %2873 = vmatpush1.msra.mxu0 0.0
  %2874 = vmatprep.subr.mxu0 0.0
  %2875 = vmatpush1.msra.mxu0 0.0
  %2876 = vmatprep.subr.mxu0 0.0
  %2877 = vmatpush1.msra.mxu0 0.0
  %2878 = vmatprep.subr.mxu0 0.0
  %2879 = vmatpush1.msra.mxu0 0.0
  %2880 = vmatprep.subr.mxu0 0.0
  %2881 = vmatpush1.msra.mxu0 0.0
  %2882 = vmatprep.subr.mxu0 0.0
  %2883 = vmatpush1.msra.mxu0 0.0
  %2884 = vmatprep.subr.mxu0 0.0
  %2885 = vmatpush1.msra.mxu0 0.0
  %2886 = vmatprep.subr.mxu0 0.0
  %2887 = vmatpush1.msra.mxu0 0.0
  %2888 = vmatprep.subr.mxu0 0.0
  %2889 = vmatpush1.msra.mxu0 0.0
  %2890 = vmatprep.subr.mxu0 0.0
  %2891 = vmatpush1.msra.mxu0 0.0
  %2892 = vmatprep.subr.mxu0 0.0
  %2893 = vmatpush1.msra.mxu0 0.0
  %2894 = vmatprep.subr.mxu0 0.0
  %2895 = vmatpush1.msra.mxu0 0.0
  %2896 = vmatprep.subr.mxu0 0.0
  %2897 = vmatpush1.msra.mxu0 0.0
  %2898 = vmatprep.subr.mxu0 0.0
  %2899 = vmatpush1.msra.mxu0 0.0
  %2900 = vmatprep.subr.mxu0 0.0
  %2901 = vmatpush1.msra.mxu0 0.0
  %2902 = vmatprep.subr.mxu0 0.0
  %2903 = vmatpush1.msra.mxu0 0.0
  %2904 = vmatprep.subr.mxu0 0.0
  %2905 = vmatpush1.msra.mxu0 0.0
  %2906 = vmatprep.subr.mxu0 0.0
  %2907 = vmatpush1.msra.mxu0 0.0
  %2908 = vmatprep.mubr.f32.mxu0 0.0
  %2909 = vmatmul.mubr.f32.gmra.mrb[0].mxu0 %v2842
  %v2910 = vpop.f32.mrb[0].mxu0
  %v2911 = vadd.f32 0.0, %v2910
  %v2912 = vpop.f32.mrb[0].mxu0
  %2913 = vdwg.mxu0
  %v2914 = vmul.f32 %v2840, 0.5
  %v2915 = vmul.f32 %v2911, %v2911
  %v2916 = vadd.f32 %v2915, %v345
  %v2917 = vrsqrt.pop %v2916
  %v2918 = vmul.f32 %v2916, %v2917
  %vm2919 = vcmp.eq.f32.partialorder %v2916, inf
  %v2920 = vsel %vm2919, %v2916, %v2918
  %vm2921 = vcmp.eq.f32.partialorder %v2916, 0.0
  %v2922 = vand.u32 %v2916, 2147483648
  %v2923 = vsel %vm2921, %v2922, %v2920
  %v2924 = vsub.f32 %v2923, %v2911
  %v2925 = vmul.f32 %v2924, %v344
  %v2926 = vadd.f32 %v2914, %v2925
  %v2928 = vsel %vm175, %v2926, 0
  %2930 = vmatprep.subr.mxu0 0.0
  %2931 = vmatpush1.msra.mxu0 %v305
  %2932 = vmatprep.subr.mxu0 0.0
  %2933 = vmatpush1.msra.mxu0 %v306
  %2934 = vmatprep.subr.mxu0 0.0
  %2935 = vmatpush1.msra.mxu0 %v307
  %2936 = vmatprep.subr.mxu0 0.0
  %2937 = vmatpush1.msra.mxu0 %v308
  %2938 = vmatprep.subr.mxu0 0.0
  %2939 = vmatpush1.msra.mxu0 %v309
  %2940 = vmatprep.subr.mxu0 0.0
  %2941 = vmatpush1.msra.mxu0 %v310
  %2942 = vmatprep.subr.mxu0 0.0
  %2943 = vmatpush1.msra.mxu0 %v311
  %2944 = vmatprep.subr.mxu0 0.0
  %2945 = vmatpush1.msra.mxu0 %v312
  %2946 = vmatprep.subr.mxu0 0.0
  %2947 = vmatpush1.msra.mxu0 0.0
  %2948 = vmatprep.subr.mxu0 0.0
  %2949 = vmatpush1.msra.mxu0 0.0
  %2950 = vmatprep.subr.mxu0 0.0
  %2951 = vmatpush1.msra.mxu0 0.0
  %2952 = vmatprep.subr.mxu0 0.0
  %2953 = vmatpush1.msra.mxu0 0.0
  %2954 = vmatprep.subr.mxu0 0.0
  %2955 = vmatpush1.msra.mxu0 0.0
  %2956 = vmatprep.subr.mxu0 0.0
  %2957 = vmatpush1.msra.mxu0 0.0
  %2958 = vmatprep.subr.mxu0 0.0
  %2959 = vmatpush1.msra.mxu0 0.0
  %2960 = vmatprep.subr.mxu0 0.0
  %2961 = vmatpush1.msra.mxu0 0.0
  %2962 = vmatprep.subr.mxu0 0.0
  %2963 = vmatpush1.msra.mxu0 0.0
  %2964 = vmatprep.subr.mxu0 0.0
  %2965 = vmatpush1.msra.mxu0 0.0
  %2966 = vmatprep.subr.mxu0 0.0
  %2967 = vmatpush1.msra.mxu0 0.0
  %2968 = vmatprep.subr.mxu0 0.0
  %2969 = vmatpush1.msra.mxu0 0.0
  %2970 = vmatprep.subr.mxu0 0.0
  %2971 = vmatpush1.msra.mxu0 0.0
  %2972 = vmatprep.subr.mxu0 0.0
  %2973 = vmatpush1.msra.mxu0 0.0
  %2974 = vmatprep.subr.mxu0 0.0
  %2975 = vmatpush1.msra.mxu0 0.0
  %2976 = vmatprep.subr.mxu0 0.0
  %2977 = vmatpush1.msra.mxu0 0.0
  %2978 = vmatprep.subr.mxu0 0.0
  %2979 = vmatpush1.msra.mxu0 0.0
  %2980 = vmatprep.subr.mxu0 0.0
  %2981 = vmatpush1.msra.mxu0 0.0
  %2982 = vmatprep.subr.mxu0 0.0
  %2983 = vmatpush1.msra.mxu0 0.0
  %2984 = vmatprep.subr.mxu0 0.0
  %2985 = vmatpush1.msra.mxu0 0.0
  %2986 = vmatprep.subr.mxu0 0.0
  %2987 = vmatpush1.msra.mxu0 0.0
  %2988 = vmatprep.subr.mxu0 0.0
  %2989 = vmatpush1.msra.mxu0 0.0
  %2990 = vmatprep.subr.mxu0 0.0
  %2991 = vmatpush1.msra.mxu0 0.0
  %2992 = vmatprep.subr.mxu0 0.0
  %2993 = vmatpush1.msra.mxu0 0.0
  %2994 = vmatprep.mubr.f32.mxu0 0.0
  %2995 = vmatmul.mubr.f32.gmra.mrb[0].mxu0 %v2928
  %v2996 = vpop.f32.mrb[0].mxu0
  %v2997 = vadd.f32 0.0, %v2996
  %v2998 = vpop.f32.mrb[0].mxu0
  %2999 = vdwg.mxu0
  %v3000 = vmul.f32 %v2926, 0.5
  %v3001 = vmul.f32 %v2997, %v2997
  %v3002 = vadd.f32 %v3001, %v345
  %v3003 = vrsqrt.pop %v3002
  %v3004 = vmul.f32 %v3002, %v3003
  %vm3005 = vcmp.eq.f32.partialorder %v3002, inf
  %v3006 = vsel %vm3005, %v3002, %v3004
  %vm3007 = vcmp.eq.f32.partialorder %v3002, 0.0
  %v3008 = vand.u32 %v3002, 2147483648
  %v3009 = vsel %vm3007, %v3008, %v3006
  %v3010 = vsub.f32 %v3009, %v2997
  %v3011 = vmul.f32 %v3010, %v344
  %v3012 = vadd.f32 %v3000, %v3011
  %v3014 = vsel %vm175, %v3012, 0
  %3016 = vmatprep.subr.mxu0 0.0
  %3017 = vmatpush1.msra.mxu0 %v305
  %3018 = vmatprep.subr.mxu0 0.0
  %3019 = vmatpush1.msra.mxu0 %v306
  %3020 = vmatprep.subr.mxu0 0.0
  %3021 = vmatpush1.msra.mxu0 %v307
  %3022 = vmatprep.subr.mxu0 0.0
  %3023 = vmatpush1.msra.mxu0 %v308
  %3024 = vmatprep.subr.mxu0 0.0
  %3025 = vmatpush1.msra.mxu0 %v309
  %3026 = vmatprep.subr.mxu0 0.0
  %3027 = vmatpush1.msra.mxu0 %v310
  %3028 = vmatprep.subr.mxu0 0.0
  %3029 = vmatpush1.msra.mxu0 %v311
  %3030 = vmatprep.subr.mxu0 0.0
  %3031 = vmatpush1.msra.mxu0 %v312
  %3032 = vmatprep.subr.mxu0 0.0
  %3033 = vmatpush1.msra.mxu0 0.0
  %3034 = vmatprep.subr.mxu0 0.0
  %3035 = vmatpush1.msra.mxu0 0.0
  %3036 = vmatprep.subr.mxu0 0.0
  %3037 = vmatpush1.msra.mxu0 0.0
  %3038 = vmatprep.subr.mxu0 0.0
  %3039 = vmatpush1.msra.mxu0 0.0
  %3040 = vmatprep.subr.mxu0 0.0
  %3041 = vmatpush1.msra.mxu0 0.0
  %3042 = vmatprep.subr.mxu0 0.0
  %3043 = vmatpush1.msra.mxu0 0.0
  %3044 = vmatprep.subr.mxu0 0.0
  %3045 = vmatpush1.msra.mxu0 0.0
  %3046 = vmatprep.subr.mxu0 0.0
  %3047 = vmatpush1.msra.mxu0 0.0
  %3048 = vmatprep.subr.mxu0 0.0
  %3049 = vmatpush1.msra.mxu0 0.0
  %3050 = vmatprep.subr.mxu0 0.0
  %3051 = vmatpush1.msra.mxu0 0.0
  %3052 = vmatprep.subr.mxu0 0.0
  %3053 = vmatpush1.msra.mxu0 0.0
  %3054 = vmatprep.subr.mxu0 0.0
  %3055 = vmatpush1.msra.mxu0 0.0
  %3056 = vmatprep.subr.mxu0 0.0
  %3057 = vmatpush1.msra.mxu0 0.0
  %3058 = vmatprep.subr.mxu0 0.0
  %3059 = vmatpush1.msra.mxu0 0.0
  %3060 = vmatprep.subr.mxu0 0.0
  %3061 = vmatpush1.msra.mxu0 0.0
  %3062 = vmatprep.subr.mxu0 0.0
  %3063 = vmatpush1.msra.mxu0 0.0
  %3064 = vmatprep.subr.mxu0 0.0
  %3065 = vmatpush1.msra.mxu0 0.0
  %3066 = vmatprep.subr.mxu0 0.0
  %3067 = vmatpush1.msra.mxu0 0.0
  %3068 = vmatprep.subr.mxu0 0.0
  %3069 = vmatpush1.msra.mxu0 0.0
  %3070 = vmatprep.subr.mxu0 0.0
  %3071 = vmatpush1.msra.mxu0 0.0
  %3072 = vmatprep.subr.mxu0 0.0
  %3073 = vmatpush1.msra.mxu0 0.0
  %3074 = vmatprep.subr.mxu0 0.0
  %3075 = vmatpush1.msra.mxu0 0.0
  %3076 = vmatprep.subr.mxu0 0.0
  %3077 = vmatpush1.msra.mxu0 0.0
  %3078 = vmatprep.subr.mxu0 0.0
  %3079 = vmatpush1.msra.mxu0 0.0
  %3080 = vmatprep.mubr.f32.mxu0 0.0
  %3081 = vmatmul.mubr.f32.gmra.mrb[0].mxu0 %v3014
  %v3082 = vpop.f32.mrb[0].mxu0
  %v3083 = vadd.f32 0.0, %v3082
  %v3084 = vpop.f32.mrb[0].mxu0
  %3085 = vdwg.mxu0
  %v3086 = vmul.f32 %v3012, 0.5
  %v3087 = vmul.f32 %v3083, %v3083
  %v3088 = vadd.f32 %v3087, %v345
  %v3089 = vrsqrt.pop %v3088
  %v3090 = vmul.f32 %v3088, %v3089
  %vm3091 = vcmp.eq.f32.partialorder %v3088, inf
  %v3092 = vsel %vm3091, %v3088, %v3090
  %vm3093 = vcmp.eq.f32.partialorder %v3088, 0.0
  %v3094 = vand.u32 %v3088, 2147483648
  %v3095 = vsel %vm3093, %v3094, %v3092
  %v3096 = vsub.f32 %v3095, %v3083
  %v3097 = vmul.f32 %v3096, %v344
  %v3098 = vadd.f32 %v3086, %v3097
  %v3100 = vsel %vm175, %v3098, 0
  %3102 = vmatprep.subr.mxu0 0.0
  %3103 = vmatpush1.msra.mxu0 %v305
  %3104 = vmatprep.subr.mxu0 0.0
  %3105 = vmatpush1.msra.mxu0 %v306
  %3106 = vmatprep.subr.mxu0 0.0
  %3107 = vmatpush1.msra.mxu0 %v307
  %3108 = vmatprep.subr.mxu0 0.0
  %3109 = vmatpush1.msra.mxu0 %v308
  %3110 = vmatprep.subr.mxu0 0.0
  %3111 = vmatpush1.msra.mxu0 %v309
  %3112 = vmatprep.subr.mxu0 0.0
  %3113 = vmatpush1.msra.mxu0 %v310
  %3114 = vmatprep.subr.mxu0 0.0
  %3115 = vmatpush1.msra.mxu0 %v311
  %3116 = vmatprep.subr.mxu0 0.0
  %3117 = vmatpush1.msra.mxu0 %v312
  %3118 = vmatprep.subr.mxu0 0.0
  %3119 = vmatpush1.msra.mxu0 0.0
  %3120 = vmatprep.subr.mxu0 0.0
  %3121 = vmatpush1.msra.mxu0 0.0
  %3122 = vmatprep.subr.mxu0 0.0
  %3123 = vmatpush1.msra.mxu0 0.0
  %3124 = vmatprep.subr.mxu0 0.0
  %3125 = vmatpush1.msra.mxu0 0.0
  %3126 = vmatprep.subr.mxu0 0.0
  %3127 = vmatpush1.msra.mxu0 0.0
  %3128 = vmatprep.subr.mxu0 0.0
  %3129 = vmatpush1.msra.mxu0 0.0
  %3130 = vmatprep.subr.mxu0 0.0
  %3131 = vmatpush1.msra.mxu0 0.0
  %3132 = vmatprep.subr.mxu0 0.0
  %3133 = vmatpush1.msra.mxu0 0.0
  %3134 = vmatprep.subr.mxu0 0.0
  %3135 = vmatpush1.msra.mxu0 0.0
  %3136 = vmatprep.subr.mxu0 0.0
  %3137 = vmatpush1.msra.mxu0 0.0
  %3138 = vmatprep.subr.mxu0 0.0
  %3139 = vmatpush1.msra.mxu0 0.0
  %3140 = vmatprep.subr.mxu0 0.0
  %3141 = vmatpush1.msra.mxu0 0.0
  %3142 = vmatprep.subr.mxu0 0.0
  %3143 = vmatpush1.msra.mxu0 0.0
  %3144 = vmatprep.subr.mxu0 0.0
  %3145 = vmatpush1.msra.mxu0 0.0
  %3146 = vmatprep.subr.mxu0 0.0
  %3147 = vmatpush1.msra.mxu0 0.0
  %3148 = vmatprep.subr.mxu0 0.0
  %3149 = vmatpush1.msra.mxu0 0.0
  %3150 = vmatprep.subr.mxu0 0.0
  %3151 = vmatpush1.msra.mxu0 0.0
  %3152 = vmatprep.subr.mxu0 0.0
  %3153 = vmatpush1.msra.mxu0 0.0
  %3154 = vmatprep.subr.mxu0 0.0
  %3155 = vmatpush1.msra.mxu0 0.0
  %3156 = vmatprep.subr.mxu0 0.0
  %3157 = vmatpush1.msra.mxu0 0.0
  %3158 = vmatprep.subr.mxu0 0.0
  %3159 = vmatpush1.msra.mxu0 0.0
  %3160 = vmatprep.subr.mxu0 0.0
  %3161 = vmatpush1.msra.mxu0 0.0
  %3162 = vmatprep.subr.mxu0 0.0
  %3163 = vmatpush1.msra.mxu0 0.0
  %3164 = vmatprep.subr.mxu0 0.0
  %3165 = vmatpush1.msra.mxu0 0.0
  %3166 = vmatprep.mubr.f32.mxu0 0.0
  %3167 = vmatmul.mubr.f32.gmra.mrb[0].mxu0 %v3100
  %v3168 = vpop.f32.mrb[0].mxu0
  %v3169 = vadd.f32 0.0, %v3168
  %v3170 = vpop.f32.mrb[0].mxu0
  %3171 = vdwg.mxu0
  %v3172 = vmul.f32 %v3098, 0.5
  %v3173 = vmul.f32 %v3169, %v3169
  %v3174 = vadd.f32 %v3173, %v345
  %v3175 = vrsqrt.pop %v3174
  %v3176 = vmul.f32 %v3174, %v3175
  %vm3177 = vcmp.eq.f32.partialorder %v3174, inf
  %v3178 = vsel %vm3177, %v3174, %v3176
  %vm3179 = vcmp.eq.f32.partialorder %v3174, 0.0
  %v3180 = vand.u32 %v3174, 2147483648
  %v3181 = vsel %vm3179, %v3180, %v3178
  %v3182 = vsub.f32 %v3181, %v3169
  %v3183 = vmul.f32 %v3182, %v344
  %v3184 = vadd.f32 %v3172, %v3183
  %v3186 = vsel %vm175, %v3184, 0
  %3188 = vmatprep.subr.mxu0 0.0
  %3189 = vmatpush1.msra.mxu0 %v305
  %3190 = vmatprep.subr.mxu0 0.0
  %3191 = vmatpush1.msra.mxu0 %v306
  %3192 = vmatprep.subr.mxu0 0.0
  %3193 = vmatpush1.msra.mxu0 %v307
  %3194 = vmatprep.subr.mxu0 0.0
  %3195 = vmatpush1.msra.mxu0 %v308
  %3196 = vmatprep.subr.mxu0 0.0
  %3197 = vmatpush1.msra.mxu0 %v309
  %3198 = vmatprep.subr.mxu0 0.0
  %3199 = vmatpush1.msra.mxu0 %v310
  %3200 = vmatprep.subr.mxu0 0.0
  %3201 = vmatpush1.msra.mxu0 %v311
  %3202 = vmatprep.subr.mxu0 0.0
  %3203 = vmatpush1.msra.mxu0 %v312
  %3204 = vmatprep.subr.mxu0 0.0
  %3205 = vmatpush1.msra.mxu0 0.0
  %3206 = vmatprep.subr.mxu0 0.0
  %3207 = vmatpush1.msra.mxu0 0.0
  %3208 = vmatprep.subr.mxu0 0.0
  %3209 = vmatpush1.msra.mxu0 0.0
  %3210 = vmatprep.subr.mxu0 0.0
  %3211 = vmatpush1.msra.mxu0 0.0
  %3212 = vmatprep.subr.mxu0 0.0
  %3213 = vmatpush1.msra.mxu0 0.0
  %3214 = vmatprep.subr.mxu0 0.0
  %3215 = vmatpush1.msra.mxu0 0.0
  %3216 = vmatprep.subr.mxu0 0.0
  %3217 = vmatpush1.msra.mxu0 0.0
  %3218 = vmatprep.subr.mxu0 0.0
  %3219 = vmatpush1.msra.mxu0 0.0
  %3220 = vmatprep.subr.mxu0 0.0
  %3221 = vmatpush1.msra.mxu0 0.0
  %3222 = vmatprep.subr.mxu0 0.0
  %3223 = vmatpush1.msra.mxu0 0.0
  %3224 = vmatprep.subr.mxu0 0.0
  %3225 = vmatpush1.msra.mxu0 0.0
  %3226 = vmatprep.subr.mxu0 0.0
  %3227 = vmatpush1.msra.mxu0 0.0
  %3228 = vmatprep.subr.mxu0 0.0
  %3229 = vmatpush1.msra.mxu0 0.0
  %3230 = vmatprep.subr.mxu0 0.0
  %3231 = vmatpush1.msra.mxu0 0.0
  %3232 = vmatprep.subr.mxu0 0.0
  %3233 = vmatpush1.msra.mxu0 0.0
  %3234 = vmatprep.subr.mxu0 0.0
  %3235 = vmatpush1.msra.mxu0 0.0
  %3236 = vmatprep.subr.mxu0 0.0
  %3237 = vmatpush1.msra.mxu0 0.0
  %3238 = vmatprep.subr.mxu0 0.0
  %3239 = vmatpush1.msra.mxu0 0.0
  %3240 = vmatprep.subr.mxu0 0.0
  %3241 = vmatpush1.msra.mxu0 0.0
  %3242 = vmatprep.subr.mxu0 0.0
  %3243 = vmatpush1.msra.mxu0 0.0
  %3244 = vmatprep.subr.mxu0 0.0
  %3245 = vmatpush1.msra.mxu0 0.0
  %3246 = vmatprep.subr.mxu0 0.0
  %3247 = vmatpush1.msra.mxu0 0.0
  %3248 = vmatprep.subr.mxu0 0.0
  %3249 = vmatpush1.msra.mxu0 0.0
  %3250 = vmatprep.subr.mxu0 0.0
  %3251 = vmatpush1.msra.mxu0 0.0
  %3252 = vmatprep.mubr.f32.mxu0 0.0
  %3253 = vmatmul.mubr.f32.gmra.mrb[0].mxu0 %v3186
  %v3254 = vpop.f32.mrb[0].mxu0
  %v3255 = vadd.f32 0.0, %v3254
  %v3256 = vpop.f32.mrb[0].mxu0
  %3257 = vdwg.mxu0
  %v3258 = vmul.f32 %v3184, 0.5
  %v3259 = vmul.f32 %v3255, %v3255
  %v3260 = vadd.f32 %v3259, %v345
  %v3261 = vrsqrt.pop %v3260
  %v3262 = vmul.f32 %v3260, %v3261
  %vm3263 = vcmp.eq.f32.partialorder %v3260, inf
  %v3264 = vsel %vm3263, %v3260, %v3262
  %vm3265 = vcmp.eq.f32.partialorder %v3260, 0.0
  %v3266 = vand.u32 %v3260, 2147483648
  %v3267 = vsel %vm3265, %v3266, %v3264
  %v3268 = vsub.f32 %v3267, %v3255
  %v3269 = vmul.f32 %v3268, %v344
  %v3270 = vadd.f32 %v3258, %v3269
  %v3272 = vsel %vm175, %v3270, 0
  %3274 = vmatprep.subr.mxu0 0.0
  %3275 = vmatpush1.msra.mxu0 %v305
  %3276 = vmatprep.subr.mxu0 0.0
  %3277 = vmatpush1.msra.mxu0 %v306
  %3278 = vmatprep.subr.mxu0 0.0
  %3279 = vmatpush1.msra.mxu0 %v307
  %3280 = vmatprep.subr.mxu0 0.0
  %3281 = vmatpush1.msra.mxu0 %v308
  %3282 = vmatprep.subr.mxu0 0.0
  %3283 = vmatpush1.msra.mxu0 %v309
  %3284 = vmatprep.subr.mxu0 0.0
  %3285 = vmatpush1.msra.mxu0 %v310
  %3286 = vmatprep.subr.mxu0 0.0
  %3287 = vmatpush1.msra.mxu0 %v311
  %3288 = vmatprep.subr.mxu0 0.0
  %3289 = vmatpush1.msra.mxu0 %v312
  %3290 = vmatprep.subr.mxu0 0.0
  %3291 = vmatpush1.msra.mxu0 0.0
  %3292 = vmatprep.subr.mxu0 0.0
  %3293 = vmatpush1.msra.mxu0 0.0
  %3294 = vmatprep.subr.mxu0 0.0
  %3295 = vmatpush1.msra.mxu0 0.0
  %3296 = vmatprep.subr.mxu0 0.0
  %3297 = vmatpush1.msra.mxu0 0.0
  %3298 = vmatprep.subr.mxu0 0.0
  %3299 = vmatpush1.msra.mxu0 0.0
  %3300 = vmatprep.subr.mxu0 0.0
  %3301 = vmatpush1.msra.mxu0 0.0
  %3302 = vmatprep.subr.mxu0 0.0
  %3303 = vmatpush1.msra.mxu0 0.0
  %3304 = vmatprep.subr.mxu0 0.0
  %3305 = vmatpush1.msra.mxu0 0.0
  %3306 = vmatprep.subr.mxu0 0.0
  %3307 = vmatpush1.msra.mxu0 0.0
  %3308 = vmatprep.subr.mxu0 0.0
  %3309 = vmatpush1.msra.mxu0 0.0
  %3310 = vmatprep.subr.mxu0 0.0
  %3311 = vmatpush1.msra.mxu0 0.0
  %3312 = vmatprep.subr.mxu0 0.0
  %3313 = vmatpush1.msra.mxu0 0.0
  %3314 = vmatprep.subr.mxu0 0.0
  %3315 = vmatpush1.msra.mxu0 0.0
  %3316 = vmatprep.subr.mxu0 0.0
  %3317 = vmatpush1.msra.mxu0 0.0
  %3318 = vmatprep.subr.mxu0 0.0
  %3319 = vmatpush1.msra.mxu0 0.0
  %3320 = vmatprep.subr.mxu0 0.0
  %3321 = vmatpush1.msra.mxu0 0.0
  %3322 = vmatprep.subr.mxu0 0.0
  %3323 = vmatpush1.msra.mxu0 0.0
  %3324 = vmatprep.subr.mxu0 0.0
  %3325 = vmatpush1.msra.mxu0 0.0
  %3326 = vmatprep.subr.mxu0 0.0
  %3327 = vmatpush1.msra.mxu0 0.0
  %3328 = vmatprep.subr.mxu0 0.0
  %3329 = vmatpush1.msra.mxu0 0.0
  %3330 = vmatprep.subr.mxu0 0.0
  %3331 = vmatpush1.msra.mxu0 0.0
  %3332 = vmatprep.subr.mxu0 0.0
  %3333 = vmatpush1.msra.mxu0 0.0
  %3334 = vmatprep.subr.mxu0 0.0
  %3335 = vmatpush1.msra.mxu0 0.0
  %3336 = vmatprep.subr.mxu0 0.0
  %3337 = vmatpush1.msra.mxu0 0.0
  %3338 = vmatprep.mubr.f32.mxu0 0.0
  %3339 = vmatmul.mubr.f32.gmra.mrb[0].mxu0 %v3272
  %v3340 = vpop.f32.mrb[0].mxu0
  %v3341 = vadd.f32 0.0, %v3340
  %v3342 = vpop.f32.mrb[0].mxu0
  %3343 = vdwg.mxu0
  %v3344 = vmul.f32 %v3270, 0.5
  %v3345 = vmul.f32 %v3341, %v3341
  %v3346 = vadd.f32 %v3345, %v345
  %v3347 = vrsqrt.pop %v3346
  %v3348 = vmul.f32 %v3346, %v3347
  %vm3349 = vcmp.eq.f32.partialorder %v3346, inf
  %v3350 = vsel %vm3349, %v3346, %v3348
  %vm3351 = vcmp.eq.f32.partialorder %v3346, 0.0
  %v3352 = vand.u32 %v3346, 2147483648
  %v3353 = vsel %vm3351, %v3352, %v3350
  %v3354 = vsub.f32 %v3353, %v3341
  %v3355 = vmul.f32 %v3354, %v344
  %v3356 = vadd.f32 %v3344, %v3355
  %v3358 = vsel %vm175, %v3356, 0
  %3360 = vmatprep.subr.mxu0 0.0
  %3361 = vmatpush1.msra.mxu0 %v305
  %3362 = vmatprep.subr.mxu0 0.0
  %3363 = vmatpush1.msra.mxu0 %v306
  %3364 = vmatprep.subr.mxu0 0.0
  %3365 = vmatpush1.msra.mxu0 %v307
  %3366 = vmatprep.subr.mxu0 0.0
  %3367 = vmatpush1.msra.mxu0 %v308
  %3368 = vmatprep.subr.mxu0 0.0
  %3369 = vmatpush1.msra.mxu0 %v309
  %3370 = vmatprep.subr.mxu0 0.0
  %3371 = vmatpush1.msra.mxu0 %v310
  %3372 = vmatprep.subr.mxu0 0.0
  %3373 = vmatpush1.msra.mxu0 %v311
  %3374 = vmatprep.subr.mxu0 0.0
  %3375 = vmatpush1.msra.mxu0 %v312
  %3376 = vmatprep.subr.mxu0 0.0
  %3377 = vmatpush1.msra.mxu0 0.0
  %3378 = vmatprep.subr.mxu0 0.0
  %3379 = vmatpush1.msra.mxu0 0.0
  %3380 = vmatprep.subr.mxu0 0.0
  %3381 = vmatpush1.msra.mxu0 0.0
  %3382 = vmatprep.subr.mxu0 0.0
  %3383 = vmatpush1.msra.mxu0 0.0
  %3384 = vmatprep.subr.mxu0 0.0
  %3385 = vmatpush1.msra.mxu0 0.0
  %3386 = vmatprep.subr.mxu0 0.0
  %3387 = vmatpush1.msra.mxu0 0.0
  %3388 = vmatprep.subr.mxu0 0.0
  %3389 = vmatpush1.msra.mxu0 0.0
  %3390 = vmatprep.subr.mxu0 0.0
  %3391 = vmatpush1.msra.mxu0 0.0
  %3392 = vmatprep.subr.mxu0 0.0
  %3393 = vmatpush1.msra.mxu0 0.0
  %3394 = vmatprep.subr.mxu0 0.0
  %3395 = vmatpush1.msra.mxu0 0.0
  %3396 = vmatprep.subr.mxu0 0.0
  %3397 = vmatpush1.msra.mxu0 0.0
  %3398 = vmatprep.subr.mxu0 0.0
  %3399 = vmatpush1.msra.mxu0 0.0
  %3400 = vmatprep.subr.mxu0 0.0
  %3401 = vmatpush1.msra.mxu0 0.0
  %3402 = vmatprep.subr.mxu0 0.0
  %3403 = vmatpush1.msra.mxu0 0.0
  %3404 = vmatprep.subr.mxu0 0.0
  %3405 = vmatpush1.msra.mxu0 0.0
  %3406 = vmatprep.subr.mxu0 0.0
  %3407 = vmatpush1.msra.mxu0 0.0
  %3408 = vmatprep.subr.mxu0 0.0
  %3409 = vmatpush1.msra.mxu0 0.0
  %3410 = vmatprep.subr.mxu0 0.0
  %3411 = vmatpush1.msra.mxu0 0.0
  %3412 = vmatprep.subr.mxu0 0.0
  %3413 = vmatpush1.msra.mxu0 0.0
  %3414 = vmatprep.subr.mxu0 0.0
  %3415 = vmatpush1.msra.mxu0 0.0
  %3416 = vmatprep.subr.mxu0 0.0
  %3417 = vmatpush1.msra.mxu0 0.0
  %3418 = vmatprep.subr.mxu0 0.0
  %3419 = vmatpush1.msra.mxu0 0.0
  %3420 = vmatprep.subr.mxu0 0.0
  %3421 = vmatpush1.msra.mxu0 0.0
  %3422 = vmatprep.subr.mxu0 0.0
  %3423 = vmatpush1.msra.mxu0 0.0
  %3424 = vmatprep.mubr.f32.mxu0 0.0
  %3425 = vmatmul.mubr.f32.gmra.mrb[0].mxu0 %v3358
  %v3426 = vpop.f32.mrb[0].mxu0
  %v3427 = vadd.f32 0.0, %v3426
  %v3428 = vpop.f32.mrb[0].mxu0
  %3429 = vdwg.mxu0
  %v3430 = vmul.f32 %v3356, 0.5
  %v3431 = vmul.f32 %v3427, %v3427
  %v3432 = vadd.f32 %v3431, %v345
  %v3433 = vrsqrt.pop %v3432
  %v3434 = vmul.f32 %v3432, %v3433
  %vm3435 = vcmp.eq.f32.partialorder %v3432, inf
  %v3436 = vsel %vm3435, %v3432, %v3434
  %vm3437 = vcmp.eq.f32.partialorder %v3432, 0.0
  %v3438 = vand.u32 %v3432, 2147483648
  %v3439 = vsel %vm3437, %v3438, %v3436
  %v3440 = vsub.f32 %v3439, %v3427
  %v3441 = vmul.f32 %v3440, %v344
  %v3442 = vadd.f32 %v3430, %v3441
  %v3444 = vsel %vm175, %v3442, 0
  %3446 = vmatprep.subr.mxu0 0.0
  %3447 = vmatpush1.msra.mxu0 %v305
  %3448 = vmatprep.subr.mxu0 0.0
  %3449 = vmatpush1.msra.mxu0 %v306
  %3450 = vmatprep.subr.mxu0 0.0
  %3451 = vmatpush1.msra.mxu0 %v307
  %3452 = vmatprep.subr.mxu0 0.0
  %3453 = vmatpush1.msra.mxu0 %v308
  %3454 = vmatprep.subr.mxu0 0.0
  %3455 = vmatpush1.msra.mxu0 %v309
  %3456 = vmatprep.subr.mxu0 0.0
  %3457 = vmatpush1.msra.mxu0 %v310
  %3458 = vmatprep.subr.mxu0 0.0
  %3459 = vmatpush1.msra.mxu0 %v311
  %3460 = vmatprep.subr.mxu0 0.0
  %3461 = vmatpush1.msra.mxu0 %v312
  %3462 = vmatprep.subr.mxu0 0.0
  %3463 = vmatpush1.msra.mxu0 0.0
  %3464 = vmatprep.subr.mxu0 0.0
  %3465 = vmatpush1.msra.mxu0 0.0
  %3466 = vmatprep.subr.mxu0 0.0
  %3467 = vmatpush1.msra.mxu0 0.0
  %3468 = vmatprep.subr.mxu0 0.0
  %3469 = vmatpush1.msra.mxu0 0.0
  %3470 = vmatprep.subr.mxu0 0.0
  %3471 = vmatpush1.msra.mxu0 0.0
  %3472 = vmatprep.subr.mxu0 0.0
  %3473 = vmatpush1.msra.mxu0 0.0
  %3474 = vmatprep.subr.mxu0 0.0
  %3475 = vmatpush1.msra.mxu0 0.0
  %3476 = vmatprep.subr.mxu0 0.0
  %3477 = vmatpush1.msra.mxu0 0.0
  %3478 = vmatprep.subr.mxu0 0.0
  %3479 = vmatpush1.msra.mxu0 0.0
  %3480 = vmatprep.subr.mxu0 0.0
  %3481 = vmatpush1.msra.mxu0 0.0
  %3482 = vmatprep.subr.mxu0 0.0
  %3483 = vmatpush1.msra.mxu0 0.0
  %3484 = vmatprep.subr.mxu0 0.0
  %3485 = vmatpush1.msra.mxu0 0.0
  %3486 = vmatprep.subr.mxu0 0.0
  %3487 = vmatpush1.msra.mxu0 0.0
  %3488 = vmatprep.subr.mxu0 0.0
  %3489 = vmatpush1.msra.mxu0 0.0
  %3490 = vmatprep.subr.mxu0 0.0
  %3491 = vmatpush1.msra.mxu0 0.0
  %3492 = vmatprep.subr.mxu0 0.0
  %3493 = vmatpush1.msra.mxu0 0.0
  %3494 = vmatprep.subr.mxu0 0.0
  %3495 = vmatpush1.msra.mxu0 0.0
  %3496 = vmatprep.subr.mxu0 0.0
  %3497 = vmatpush1.msra.mxu0 0.0
  %3498 = vmatprep.subr.mxu0 0.0
  %3499 = vmatpush1.msra.mxu0 0.0
  %3500 = vmatprep.subr.mxu0 0.0
  %3501 = vmatpush1.msra.mxu0 0.0
  %3502 = vmatprep.subr.mxu0 0.0
  %3503 = vmatpush1.msra.mxu0 0.0
  %3504 = vmatprep.subr.mxu0 0.0
  %3505 = vmatpush1.msra.mxu0 0.0
  %3506 = vmatprep.subr.mxu0 0.0
  %3507 = vmatpush1.msra.mxu0 0.0
  %3508 = vmatprep.subr.mxu0 0.0
  %3509 = vmatpush1.msra.mxu0 0.0
  %3510 = vmatprep.mubr.f32.mxu0 0.0
  %3511 = vmatmul.mubr.f32.gmra.mrb[0].mxu0 %v3444
  %v3512 = vpop.f32.mrb[0].mxu0
  %v3513 = vadd.f32 0.0, %v3512
  %v3514 = vpop.f32.mrb[0].mxu0
  %3515 = vdwg.mxu0
  %v3516 = vmul.f32 %v3442, 0.5
  %v3517 = vmul.f32 %v3513, %v3513
  %v3518 = vadd.f32 %v3517, %v345
  %v3519 = vrsqrt.pop %v3518
  %v3520 = vmul.f32 %v3518, %v3519
  %vm3521 = vcmp.eq.f32.partialorder %v3518, inf
  %v3522 = vsel %vm3521, %v3518, %v3520
  %vm3523 = vcmp.eq.f32.partialorder %v3518, 0.0
  %v3524 = vand.u32 %v3518, 2147483648
  %v3525 = vsel %vm3523, %v3524, %v3522
  %v3526 = vsub.f32 %v3525, %v3513
  %v3527 = vmul.f32 %v3526, %v344
  %v3528 = vadd.f32 %v3516, %v3527
  %v3530 = vsel %vm175, %v3528, 0
  %3532 = vmatprep.subr.mxu0 0.0
  %3533 = vmatpush1.msra.mxu0 %v305
  %3534 = vmatprep.subr.mxu0 0.0
  %3535 = vmatpush1.msra.mxu0 %v306
  %3536 = vmatprep.subr.mxu0 0.0
  %3537 = vmatpush1.msra.mxu0 %v307
  %3538 = vmatprep.subr.mxu0 0.0
  %3539 = vmatpush1.msra.mxu0 %v308
  %3540 = vmatprep.subr.mxu0 0.0
  %3541 = vmatpush1.msra.mxu0 %v309
  %3542 = vmatprep.subr.mxu0 0.0
  %3543 = vmatpush1.msra.mxu0 %v310
  %3544 = vmatprep.subr.mxu0 0.0
  %3545 = vmatpush1.msra.mxu0 %v311
  %3546 = vmatprep.subr.mxu0 0.0
  %3547 = vmatpush1.msra.mxu0 %v312
  %3548 = vmatprep.subr.mxu0 0.0
  %3549 = vmatpush1.msra.mxu0 0.0
  %3550 = vmatprep.subr.mxu0 0.0
  %3551 = vmatpush1.msra.mxu0 0.0
  %3552 = vmatprep.subr.mxu0 0.0
  %3553 = vmatpush1.msra.mxu0 0.0
  %3554 = vmatprep.subr.mxu0 0.0
  %3555 = vmatpush1.msra.mxu0 0.0
  %3556 = vmatprep.subr.mxu0 0.0
  %3557 = vmatpush1.msra.mxu0 0.0
  %3558 = vmatprep.subr.mxu0 0.0
  %3559 = vmatpush1.msra.mxu0 0.0
  %3560 = vmatprep.subr.mxu0 0.0
  %3561 = vmatpush1.msra.mxu0 0.0
  %3562 = vmatprep.subr.mxu0 0.0
  %3563 = vmatpush1.msra.mxu0 0.0
  %3564 = vmatprep.subr.mxu0 0.0
  %3565 = vmatpush1.msra.mxu0 0.0
  %3566 = vmatprep.subr.mxu0 0.0
  %3567 = vmatpush1.msra.mxu0 0.0
  %3568 = vmatprep.subr.mxu0 0.0
  %3569 = vmatpush1.msra.mxu0 0.0
  %3570 = vmatprep.subr.mxu0 0.0
  %3571 = vmatpush1.msra.mxu0 0.0
  %3572 = vmatprep.subr.mxu0 0.0
  %3573 = vmatpush1.msra.mxu0 0.0
  %3574 = vmatprep.subr.mxu0 0.0
  %3575 = vmatpush1.msra.mxu0 0.0
  %3576 = vmatprep.subr.mxu0 0.0
  %3577 = vmatpush1.msra.mxu0 0.0
  %3578 = vmatprep.subr.mxu0 0.0
  %3579 = vmatpush1.msra.mxu0 0.0
  %3580 = vmatprep.subr.mxu0 0.0
  %3581 = vmatpush1.msra.mxu0 0.0
  %3582 = vmatprep.subr.mxu0 0.0
  %3583 = vmatpush1.msra.mxu0 0.0
  %3584 = vmatprep.subr.mxu0 0.0
  %3585 = vmatpush1.msra.mxu0 0.0
  %3586 = vmatprep.subr.mxu0 0.0
  %3587 = vmatpush1.msra.mxu0 0.0
  %3588 = vmatprep.subr.mxu0 0.0
  %3589 = vmatpush1.msra.mxu0 0.0
  %3590 = vmatprep.subr.mxu0 0.0
  %3591 = vmatpush1.msra.mxu0 0.0
  %3592 = vmatprep.subr.mxu0 0.0
  %3593 = vmatpush1.msra.mxu0 0.0
  %3594 = vmatprep.subr.mxu0 0.0
  %3595 = vmatpush1.msra.mxu0 0.0
  %3596 = vmatprep.mubr.f32.mxu0 0.0
  %3597 = vmatmul.mubr.f32.gmra.mrb[0].mxu0 %v3530
  %v3598 = vpop.f32.mrb[0].mxu0
  %v3599 = vadd.f32 0.0, %v3598
  %v3600 = vpop.f32.mrb[0].mxu0
  %3601 = vdwg.mxu0
  %v3602 = vmul.f32 %v3528, 0.5
  %v3603 = vmul.f32 %v3599, %v3599
  %v3604 = vadd.f32 %v3603, %v345
  %v3605 = vrsqrt.pop %v3604
  %v3606 = vmul.f32 %v3604, %v3605
  %vm3607 = vcmp.eq.f32.partialorder %v3604, inf
  %v3608 = vsel %vm3607, %v3604, %v3606
  %vm3609 = vcmp.eq.f32.partialorder %v3604, 0.0
  %v3610 = vand.u32 %v3604, 2147483648
  %v3611 = vsel %vm3609, %v3610, %v3608
  %v3612 = vsub.f32 %v3611, %v3599
  %v3613 = vmul.f32 %v3612, %v344
  %v3614 = vadd.f32 %v3602, %v3613
  %v3616 = vsel %vm175, %v3614, 0
  %3618 = vmatprep.subr.mxu0 0.0
  %3619 = vmatpush1.msra.mxu0 %v305
  %3620 = vmatprep.subr.mxu0 0.0
  %3621 = vmatpush1.msra.mxu0 %v306
  %3622 = vmatprep.subr.mxu0 0.0
  %3623 = vmatpush1.msra.mxu0 %v307
  %3624 = vmatprep.subr.mxu0 0.0
  %3625 = vmatpush1.msra.mxu0 %v308
  %3626 = vmatprep.subr.mxu0 0.0
  %3627 = vmatpush1.msra.mxu0 %v309
  %3628 = vmatprep.subr.mxu0 0.0
  %3629 = vmatpush1.msra.mxu0 %v310
  %3630 = vmatprep.subr.mxu0 0.0
  %3631 = vmatpush1.msra.mxu0 %v311
  %3632 = vmatprep.subr.mxu0 0.0
  %3633 = vmatpush1.msra.mxu0 %v312
  %3634 = vmatprep.subr.mxu0 0.0
  %3635 = vmatpush1.msra.mxu0 0.0
  %3636 = vmatprep.subr.mxu0 0.0
  %3637 = vmatpush1.msra.mxu0 0.0
  %3638 = vmatprep.subr.mxu0 0.0
  %3639 = vmatpush1.msra.mxu0 0.0
  %3640 = vmatprep.subr.mxu0 0.0
  %3641 = vmatpush1.msra.mxu0 0.0
  %3642 = vmatprep.subr.mxu0 0.0
  %3643 = vmatpush1.msra.mxu0 0.0
  %3644 = vmatprep.subr.mxu0 0.0
  %3645 = vmatpush1.msra.mxu0 0.0
  %3646 = vmatprep.subr.mxu0 0.0
  %3647 = vmatpush1.msra.mxu0 0.0
  %3648 = vmatprep.subr.mxu0 0.0
  %3649 = vmatpush1.msra.mxu0 0.0
  %3650 = vmatprep.subr.mxu0 0.0
  %3651 = vmatpush1.msra.mxu0 0.0
  %3652 = vmatprep.subr.mxu0 0.0
  %3653 = vmatpush1.msra.mxu0 0.0
  %3654 = vmatprep.subr.mxu0 0.0
  %3655 = vmatpush1.msra.mxu0 0.0
  %3656 = vmatprep.subr.mxu0 0.0
  %3657 = vmatpush1.msra.mxu0 0.0
  %3658 = vmatprep.subr.mxu0 0.0
  %3659 = vmatpush1.msra.mxu0 0.0
  %3660 = vmatprep.subr.mxu0 0.0
  %3661 = vmatpush1.msra.mxu0 0.0
  %3662 = vmatprep.subr.mxu0 0.0
  %3663 = vmatpush1.msra.mxu0 0.0
  %3664 = vmatprep.subr.mxu0 0.0
  %3665 = vmatpush1.msra.mxu0 0.0
  %3666 = vmatprep.subr.mxu0 0.0
  %3667 = vmatpush1.msra.mxu0 0.0
  %3668 = vmatprep.subr.mxu0 0.0
  %3669 = vmatpush1.msra.mxu0 0.0
  %3670 = vmatprep.subr.mxu0 0.0
  %3671 = vmatpush1.msra.mxu0 0.0
  %3672 = vmatprep.subr.mxu0 0.0
  %3673 = vmatpush1.msra.mxu0 0.0
  %3674 = vmatprep.subr.mxu0 0.0
  %3675 = vmatpush1.msra.mxu0 0.0
  %3676 = vmatprep.subr.mxu0 0.0
  %3677 = vmatpush1.msra.mxu0 0.0
  %3678 = vmatprep.subr.mxu0 0.0
  %3679 = vmatpush1.msra.mxu0 0.0
  %3680 = vmatprep.subr.mxu0 0.0
  %3681 = vmatpush1.msra.mxu0 0.0
  %3682 = vmatprep.mubr.f32.mxu0 0.0
  %3683 = vmatmul.mubr.f32.gmra.mrb[0].mxu0 %v3616
  %v3684 = vpop.f32.mrb[0].mxu0
  %v3685 = vadd.f32 0.0, %v3684
  %v3686 = vpop.f32.mrb[0].mxu0
  %3687 = vdwg.mxu0
  %v3688 = vmul.f32 %v3614, 0.5
  %v3689 = vmul.f32 %v3685, %v3685
  %v3690 = vadd.f32 %v3689, %v345
  %v3691 = vrsqrt.pop %v3690
  %v3692 = vmul.f32 %v3690, %v3691
  %vm3693 = vcmp.eq.f32.partialorder %v3690, inf
  %v3694 = vsel %vm3693, %v3690, %v3692
  %vm3695 = vcmp.eq.f32.partialorder %v3690, 0.0
  %v3696 = vand.u32 %v3690, 2147483648
  %v3697 = vsel %vm3695, %v3696, %v3694
  %v3698 = vsub.f32 %v3697, %v3685
  %v3699 = vmul.f32 %v3698, %v344
  %v3700 = vadd.f32 %v3688, %v3699
  %v3702 = vsel %vm175, %v3700, 0
  %3704 = vmatprep.subr.mxu0 0.0
  %3705 = vmatpush1.msra.mxu0 %v305
  %3706 = vmatprep.subr.mxu0 0.0
  %3707 = vmatpush1.msra.mxu0 %v306
  %3708 = vmatprep.subr.mxu0 0.0
  %3709 = vmatpush1.msra.mxu0 %v307
  %3710 = vmatprep.subr.mxu0 0.0
  %3711 = vmatpush1.msra.mxu0 %v308
  %3712 = vmatprep.subr.mxu0 0.0
  %3713 = vmatpush1.msra.mxu0 %v309
  %3714 = vmatprep.subr.mxu0 0.0
  %3715 = vmatpush1.msra.mxu0 %v310
  %3716 = vmatprep.subr.mxu0 0.0
  %3717 = vmatpush1.msra.mxu0 %v311
  %3718 = vmatprep.subr.mxu0 0.0
  %3719 = vmatpush1.msra.mxu0 %v312
  %3720 = vmatprep.subr.mxu0 0.0
  %3721 = vmatpush1.msra.mxu0 0.0
  %3722 = vmatprep.subr.mxu0 0.0
  %3723 = vmatpush1.msra.mxu0 0.0
  %3724 = vmatprep.subr.mxu0 0.0
  %3725 = vmatpush1.msra.mxu0 0.0
  %3726 = vmatprep.subr.mxu0 0.0
  %3727 = vmatpush1.msra.mxu0 0.0
  %3728 = vmatprep.subr.mxu0 0.0
  %3729 = vmatpush1.msra.mxu0 0.0
  %3730 = vmatprep.subr.mxu0 0.0
  %3731 = vmatpush1.msra.mxu0 0.0
  %3732 = vmatprep.subr.mxu0 0.0
  %3733 = vmatpush1.msra.mxu0 0.0
  %3734 = vmatprep.subr.mxu0 0.0
  %3735 = vmatpush1.msra.mxu0 0.0
  %3736 = vmatprep.subr.mxu0 0.0
  %3737 = vmatpush1.msra.mxu0 0.0
  %3738 = vmatprep.subr.mxu0 0.0
  %3739 = vmatpush1.msra.mxu0 0.0
  %3740 = vmatprep.subr.mxu0 0.0
  %3741 = vmatpush1.msra.mxu0 0.0
  %3742 = vmatprep.subr.mxu0 0.0
  %3743 = vmatpush1.msra.mxu0 0.0
  %3744 = vmatprep.subr.mxu0 0.0
  %3745 = vmatpush1.msra.mxu0 0.0
  %3746 = vmatprep.subr.mxu0 0.0
  %3747 = vmatpush1.msra.mxu0 0.0
  %3748 = vmatprep.subr.mxu0 0.0
  %3749 = vmatpush1.msra.mxu0 0.0
  %3750 = vmatprep.subr.mxu0 0.0
  %3751 = vmatpush1.msra.mxu0 0.0
  %3752 = vmatprep.subr.mxu0 0.0
  %3753 = vmatpush1.msra.mxu0 0.0
  %3754 = vmatprep.subr.mxu0 0.0
  %3755 = vmatpush1.msra.mxu0 0.0
  %3756 = vmatprep.subr.mxu0 0.0
  %3757 = vmatpush1.msra.mxu0 0.0
  %3758 = vmatprep.subr.mxu0 0.0
  %3759 = vmatpush1.msra.mxu0 0.0
  %3760 = vmatprep.subr.mxu0 0.0
  %3761 = vmatpush1.msra.mxu0 0.0
  %3762 = vmatprep.subr.mxu0 0.0
  %3763 = vmatpush1.msra.mxu0 0.0
  %3764 = vmatprep.subr.mxu0 0.0
  %3765 = vmatpush1.msra.mxu0 0.0
  %3766 = vmatprep.subr.mxu0 0.0
  %3767 = vmatpush1.msra.mxu0 0.0
  %3768 = vmatprep.mubr.f32.mxu0 0.0
  %3769 = vmatmul.mubr.f32.gmra.mrb[0].mxu0 %v3702
  %v3770 = vpop.f32.mrb[0].mxu0
  %v3771 = vadd.f32 0.0, %v3770
  %v3772 = vpop.f32.mrb[0].mxu0
  %3773 = vdwg.mxu0
  %v3774 = vmul.f32 %v3700, 0.5
  %v3775 = vmul.f32 %v3771, %v3771
  %v3776 = vadd.f32 %v3775, %v345
  %v3777 = vrsqrt.pop %v3776
  %v3778 = vmul.f32 %v3776, %v3777
  %vm3779 = vcmp.eq.f32.partialorder %v3776, inf
  %v3780 = vsel %vm3779, %v3776, %v3778
  %vm3781 = vcmp.eq.f32.partialorder %v3776, 0.0
  %v3782 = vand.u32 %v3776, 2147483648
  %v3783 = vsel %vm3781, %v3782, %v3780
  %v3784 = vsub.f32 %v3783, %v3771
  %v3785 = vmul.f32 %v3784, %v344
  %v3786 = vadd.f32 %v3774, %v3785
  %v3788 = vsel %vm175, %v3786, 0
  %3790 = vmatprep.subr.mxu0 0.0
  %3791 = vmatpush1.msra.mxu0 %v305
  %3792 = vmatprep.subr.mxu0 0.0
  %3793 = vmatpush1.msra.mxu0 %v306
  %3794 = vmatprep.subr.mxu0 0.0
  %3795 = vmatpush1.msra.mxu0 %v307
  %3796 = vmatprep.subr.mxu0 0.0
  %3797 = vmatpush1.msra.mxu0 %v308
  %3798 = vmatprep.subr.mxu0 0.0
  %3799 = vmatpush1.msra.mxu0 %v309
  %3800 = vmatprep.subr.mxu0 0.0
  %3801 = vmatpush1.msra.mxu0 %v310
  %3802 = vmatprep.subr.mxu0 0.0
  %3803 = vmatpush1.msra.mxu0 %v311
  %3804 = vmatprep.subr.mxu0 0.0
  %3805 = vmatpush1.msra.mxu0 %v312
  %3806 = vmatprep.subr.mxu0 0.0
  %3807 = vmatpush1.msra.mxu0 0.0
  %3808 = vmatprep.subr.mxu0 0.0
  %3809 = vmatpush1.msra.mxu0 0.0
  %3810 = vmatprep.subr.mxu0 0.0
  %3811 = vmatpush1.msra.mxu0 0.0
  %3812 = vmatprep.subr.mxu0 0.0
  %3813 = vmatpush1.msra.mxu0 0.0
  %3814 = vmatprep.subr.mxu0 0.0
  %3815 = vmatpush1.msra.mxu0 0.0
  %3816 = vmatprep.subr.mxu0 0.0
  %3817 = vmatpush1.msra.mxu0 0.0
  %3818 = vmatprep.subr.mxu0 0.0
  %3819 = vmatpush1.msra.mxu0 0.0
  %3820 = vmatprep.subr.mxu0 0.0
  %3821 = vmatpush1.msra.mxu0 0.0
  %3822 = vmatprep.subr.mxu0 0.0
  %3823 = vmatpush1.msra.mxu0 0.0
  %3824 = vmatprep.subr.mxu0 0.0
  %3825 = vmatpush1.msra.mxu0 0.0
  %3826 = vmatprep.subr.mxu0 0.0
  %3827 = vmatpush1.msra.mxu0 0.0
  %3828 = vmatprep.subr.mxu0 0.0
  %3829 = vmatpush1.msra.mxu0 0.0
  %3830 = vmatprep.subr.mxu0 0.0
  %3831 = vmatpush1.msra.mxu0 0.0
  %3832 = vmatprep.subr.mxu0 0.0
  %3833 = vmatpush1.msra.mxu0 0.0
  %3834 = vmatprep.subr.mxu0 0.0
  %3835 = vmatpush1.msra.mxu0 0.0
  %3836 = vmatprep.subr.mxu0 0.0
  %3837 = vmatpush1.msra.mxu0 0.0
  %3838 = vmatprep.subr.mxu0 0.0
  %3839 = vmatpush1.msra.mxu0 0.0
  %3840 = vmatprep.subr.mxu0 0.0
  %3841 = vmatpush1.msra.mxu0 0.0
  %3842 = vmatprep.subr.mxu0 0.0
  %3843 = vmatpush1.msra.mxu0 0.0
  %3844 = vmatprep.subr.mxu0 0.0
  %3845 = vmatpush1.msra.mxu0 0.0
  %3846 = vmatprep.subr.mxu0 0.0
  %3847 = vmatpush1.msra.mxu0 0.0
  %3848 = vmatprep.subr.mxu0 0.0
  %3849 = vmatpush1.msra.mxu0 0.0
  %3850 = vmatprep.subr.mxu0 0.0
  %3851 = vmatpush1.msra.mxu0 0.0
  %3852 = vmatprep.subr.mxu0 0.0
  %3853 = vmatpush1.msra.mxu0 0.0
  %3854 = vmatprep.mubr.f32.mxu0 0.0
  %3855 = vmatmul.mubr.f32.gmra.mrb[0].mxu0 %v3788
  %v3856 = vpop.f32.mrb[0].mxu0
  %v3857 = vadd.f32 0.0, %v3856
  %v3858 = vpop.f32.mrb[0].mxu0
  %3859 = vdwg.mxu0
  %v3860 = vmul.f32 %v3786, 0.5
  %v3861 = vmul.f32 %v3857, %v3857
  %v3862 = vadd.f32 %v3861, %v345
  %v3863 = vrsqrt.pop %v3862
  %v3864 = vmul.f32 %v3862, %v3863
  %vm3865 = vcmp.eq.f32.partialorder %v3862, inf
  %v3866 = vsel %vm3865, %v3862, %v3864
  %vm3867 = vcmp.eq.f32.partialorder %v3862, 0.0
  %v3868 = vand.u32 %v3862, 2147483648
  %v3869 = vsel %vm3867, %v3868, %v3866
  %v3870 = vsub.f32 %v3869, %v3857
  %v3871 = vmul.f32 %v3870, %v344
  %v3872 = vadd.f32 %v3860, %v3871
  %v3874 = vsel %vm175, %v3872, 0
  %3876 = vmatprep.subr.mxu0 0.0
  %3877 = vmatpush1.msra.mxu0 %v305
  %3878 = vmatprep.subr.mxu0 0.0
  %3879 = vmatpush1.msra.mxu0 %v306
  %3880 = vmatprep.subr.mxu0 0.0
  %3881 = vmatpush1.msra.mxu0 %v307
  %3882 = vmatprep.subr.mxu0 0.0
  %3883 = vmatpush1.msra.mxu0 %v308
  %3884 = vmatprep.subr.mxu0 0.0
  %3885 = vmatpush1.msra.mxu0 %v309
  %3886 = vmatprep.subr.mxu0 0.0
  %3887 = vmatpush1.msra.mxu0 %v310
  %3888 = vmatprep.subr.mxu0 0.0
  %3889 = vmatpush1.msra.mxu0 %v311
  %3890 = vmatprep.subr.mxu0 0.0
  %3891 = vmatpush1.msra.mxu0 %v312
  %3892 = vmatprep.subr.mxu0 0.0
  %3893 = vmatpush1.msra.mxu0 0.0
  %3894 = vmatprep.subr.mxu0 0.0
  %3895 = vmatpush1.msra.mxu0 0.0
  %3896 = vmatprep.subr.mxu0 0.0
  %3897 = vmatpush1.msra.mxu0 0.0
  %3898 = vmatprep.subr.mxu0 0.0
  %3899 = vmatpush1.msra.mxu0 0.0
  %3900 = vmatprep.subr.mxu0 0.0
  %3901 = vmatpush1.msra.mxu0 0.0
  %3902 = vmatprep.subr.mxu0 0.0
  %3903 = vmatpush1.msra.mxu0 0.0
  %3904 = vmatprep.subr.mxu0 0.0
  %3905 = vmatpush1.msra.mxu0 0.0
  %3906 = vmatprep.subr.mxu0 0.0
  %3907 = vmatpush1.msra.mxu0 0.0
  %3908 = vmatprep.subr.mxu0 0.0
  %3909 = vmatpush1.msra.mxu0 0.0
  %3910 = vmatprep.subr.mxu0 0.0
  %3911 = vmatpush1.msra.mxu0 0.0
  %3912 = vmatprep.subr.mxu0 0.0
  %3913 = vmatpush1.msra.mxu0 0.0
  %3914 = vmatprep.subr.mxu0 0.0
  %3915 = vmatpush1.msra.mxu0 0.0
  %3916 = vmatprep.subr.mxu0 0.0
  %3917 = vmatpush1.msra.mxu0 0.0
  %3918 = vmatprep.subr.mxu0 0.0
  %3919 = vmatpush1.msra.mxu0 0.0
  %3920 = vmatprep.subr.mxu0 0.0
  %3921 = vmatpush1.msra.mxu0 0.0
  %3922 = vmatprep.subr.mxu0 0.0
  %3923 = vmatpush1.msra.mxu0 0.0
  %3924 = vmatprep.subr.mxu0 0.0
  %3925 = vmatpush1.msra.mxu0 0.0
  %3926 = vmatprep.subr.mxu0 0.0
  %3927 = vmatpush1.msra.mxu0 0.0
  %3928 = vmatprep.subr.mxu0 0.0
  %3929 = vmatpush1.msra.mxu0 0.0
  %3930 = vmatprep.subr.mxu0 0.0
  %3931 = vmatpush1.msra.mxu0 0.0
  %3932 = vmatprep.subr.mxu0 0.0
  %3933 = vmatpush1.msra.mxu0 0.0
  %3934 = vmatprep.subr.mxu0 0.0
  %3935 = vmatpush1.msra.mxu0 0.0
  %3936 = vmatprep.subr.mxu0 0.0
  %3937 = vmatpush1.msra.mxu0 0.0
  %3938 = vmatprep.subr.mxu0 0.0
  %3939 = vmatpush1.msra.mxu0 0.0
  %3940 = vmatprep.mubr.f32.mxu0 0.0
  %3941 = vmatmul.mubr.f32.gmra.mrb[0].mxu0 %v3874
  %v3942 = vpop.f32.mrb[0].mxu0
  %v3943 = vadd.f32 0.0, %v3942
  %v3944 = vpop.f32.mrb[0].mxu0
  %3945 = vdwg.mxu0
  %v3946 = vmul.f32 %v3872, 0.5
  %v3947 = vmul.f32 %v3943, %v3943
  %v3948 = vadd.f32 %v3947, %v345
  %v3949 = vrsqrt.pop %v3948
  %v3950 = vmul.f32 %v3948, %v3949
  %vm3951 = vcmp.eq.f32.partialorder %v3948, inf
  %v3952 = vsel %vm3951, %v3948, %v3950
  %vm3953 = vcmp.eq.f32.partialorder %v3948, 0.0
  %v3954 = vand.u32 %v3948, 2147483648
  %v3955 = vsel %vm3953, %v3954, %v3952
  %v3956 = vsub.f32 %v3955, %v3943
  %v3957 = vmul.f32 %v3956, %v344
  %v3958 = vadd.f32 %v3946, %v3957
  %v3960 = vsel %vm175, %v3958, 0
  %3962 = vmatprep.subr.mxu0 0.0
  %3963 = vmatpush1.msra.mxu0 %v305
  %3964 = vmatprep.subr.mxu0 0.0
  %3965 = vmatpush1.msra.mxu0 %v306
  %3966 = vmatprep.subr.mxu0 0.0
  %3967 = vmatpush1.msra.mxu0 %v307
  %3968 = vmatprep.subr.mxu0 0.0
  %3969 = vmatpush1.msra.mxu0 %v308
  %3970 = vmatprep.subr.mxu0 0.0
  %3971 = vmatpush1.msra.mxu0 %v309
  %3972 = vmatprep.subr.mxu0 0.0
  %3973 = vmatpush1.msra.mxu0 %v310
  %3974 = vmatprep.subr.mxu0 0.0
  %3975 = vmatpush1.msra.mxu0 %v311
  %3976 = vmatprep.subr.mxu0 0.0
  %3977 = vmatpush1.msra.mxu0 %v312
  %3978 = vmatprep.subr.mxu0 0.0
  %3979 = vmatpush1.msra.mxu0 0.0
  %3980 = vmatprep.subr.mxu0 0.0
  %3981 = vmatpush1.msra.mxu0 0.0
  %3982 = vmatprep.subr.mxu0 0.0
  %3983 = vmatpush1.msra.mxu0 0.0
  %3984 = vmatprep.subr.mxu0 0.0
  %3985 = vmatpush1.msra.mxu0 0.0
  %3986 = vmatprep.subr.mxu0 0.0
  %3987 = vmatpush1.msra.mxu0 0.0
  %3988 = vmatprep.subr.mxu0 0.0
  %3989 = vmatpush1.msra.mxu0 0.0
  %3990 = vmatprep.subr.mxu0 0.0
  %3991 = vmatpush1.msra.mxu0 0.0
  %3992 = vmatprep.subr.mxu0 0.0
  %3993 = vmatpush1.msra.mxu0 0.0
  %3994 = vmatprep.subr.mxu0 0.0
  %3995 = vmatpush1.msra.mxu0 0.0
  %3996 = vmatprep.subr.mxu0 0.0
  %3997 = vmatpush1.msra.mxu0 0.0
  %3998 = vmatprep.subr.mxu0 0.0
  %3999 = vmatpush1.msra.mxu0 0.0
  %4000 = vmatprep.subr.mxu0 0.0
  %4001 = vmatpush1.msra.mxu0 0.0
  %4002 = vmatprep.subr.mxu0 0.0
  %4003 = vmatpush1.msra.mxu0 0.0
  %4004 = vmatprep.subr.mxu0 0.0
  %4005 = vmatpush1.msra.mxu0 0.0
  %4006 = vmatprep.subr.mxu0 0.0
  %4007 = vmatpush1.msra.mxu0 0.0
  %4008 = vmatprep.subr.mxu0 0.0
  %4009 = vmatpush1.msra.mxu0 0.0
  %4010 = vmatprep.subr.mxu0 0.0
  %4011 = vmatpush1.msra.mxu0 0.0
  %4012 = vmatprep.subr.mxu0 0.0
  %4013 = vmatpush1.msra.mxu0 0.0
  %4014 = vmatprep.subr.mxu0 0.0
  %4015 = vmatpush1.msra.mxu0 0.0
  %4016 = vmatprep.subr.mxu0 0.0
  %4017 = vmatpush1.msra.mxu0 0.0
  %4018 = vmatprep.subr.mxu0 0.0
  %4019 = vmatpush1.msra.mxu0 0.0
  %4020 = vmatprep.subr.mxu0 0.0
  %4021 = vmatpush1.msra.mxu0 0.0
  %4022 = vmatprep.subr.mxu0 0.0
  %4023 = vmatpush1.msra.mxu0 0.0
  %4024 = vmatprep.subr.mxu0 0.0
  %4025 = vmatpush1.msra.mxu0 0.0
  %4026 = vmatprep.mubr.f32.mxu0 0.0
  %4027 = vmatmul.mubr.f32.gmra.mrb[0].mxu0 %v3960
  %v4028 = vpop.f32.mrb[0].mxu0
  %v4029 = vadd.f32 0.0, %v4028
  %v4030 = vpop.f32.mrb[0].mxu0
  %4031 = vdwg.mxu0
  %v4032 = vmul.f32 %v3958, 0.5
  %v4033 = vmul.f32 %v4029, %v4029
  %v4034 = vadd.f32 %v4033, %v345
  %v4035 = vrsqrt.pop %v4034
  %v4036 = vmul.f32 %v4034, %v4035
  %vm4037 = vcmp.eq.f32.partialorder %v4034, inf
  %v4038 = vsel %vm4037, %v4034, %v4036
  %vm4039 = vcmp.eq.f32.partialorder %v4034, 0.0
  %v4040 = vand.u32 %v4034, 2147483648
  %v4041 = vsel %vm4039, %v4040, %v4038
  %v4042 = vsub.f32 %v4041, %v4029
  %v4043 = vmul.f32 %v4042, %v344
  %v4044 = vadd.f32 %v4032, %v4043
  %v4046 = vsel %vm175, %v4044, 0
  %4048 = vmatprep.subr.mxu0 0.0
  %4049 = vmatpush1.msra.mxu0 %v305
  %4050 = vmatprep.subr.mxu0 0.0
  %4051 = vmatpush1.msra.mxu0 %v306
  %4052 = vmatprep.subr.mxu0 0.0
  %4053 = vmatpush1.msra.mxu0 %v307
  %4054 = vmatprep.subr.mxu0 0.0
  %4055 = vmatpush1.msra.mxu0 %v308
  %4056 = vmatprep.subr.mxu0 0.0
  %4057 = vmatpush1.msra.mxu0 %v309
  %4058 = vmatprep.subr.mxu0 0.0
  %4059 = vmatpush1.msra.mxu0 %v310
  %4060 = vmatprep.subr.mxu0 0.0
  %4061 = vmatpush1.msra.mxu0 %v311
  %4062 = vmatprep.subr.mxu0 0.0
  %4063 = vmatpush1.msra.mxu0 %v312
  %4064 = vmatprep.subr.mxu0 0.0
  %4065 = vmatpush1.msra.mxu0 0.0
  %4066 = vmatprep.subr.mxu0 0.0
  %4067 = vmatpush1.msra.mxu0 0.0
  %4068 = vmatprep.subr.mxu0 0.0
  %4069 = vmatpush1.msra.mxu0 0.0
  %4070 = vmatprep.subr.mxu0 0.0
  %4071 = vmatpush1.msra.mxu0 0.0
  %4072 = vmatprep.subr.mxu0 0.0
  %4073 = vmatpush1.msra.mxu0 0.0
  %4074 = vmatprep.subr.mxu0 0.0
  %4075 = vmatpush1.msra.mxu0 0.0
  %4076 = vmatprep.subr.mxu0 0.0
  %4077 = vmatpush1.msra.mxu0 0.0
  %4078 = vmatprep.subr.mxu0 0.0
  %4079 = vmatpush1.msra.mxu0 0.0
  %4080 = vmatprep.subr.mxu0 0.0
  %4081 = vmatpush1.msra.mxu0 0.0
  %4082 = vmatprep.subr.mxu0 0.0
  %4083 = vmatpush1.msra.mxu0 0.0
  %4084 = vmatprep.subr.mxu0 0.0
  %4085 = vmatpush1.msra.mxu0 0.0
  %4086 = vmatprep.subr.mxu0 0.0
  %4087 = vmatpush1.msra.mxu0 0.0
  %4088 = vmatprep.subr.mxu0 0.0
  %4089 = vmatpush1.msra.mxu0 0.0
  %4090 = vmatprep.subr.mxu0 0.0
  %4091 = vmatpush1.msra.mxu0 0.0
  %4092 = vmatprep.subr.mxu0 0.0
  %4093 = vmatpush1.msra.mxu0 0.0
  %4094 = vmatprep.subr.mxu0 0.0
  %4095 = vmatpush1.msra.mxu0 0.0
  %4096 = vmatprep.subr.mxu0 0.0
  %4097 = vmatpush1.msra.mxu0 0.0
  %4098 = vmatprep.subr.mxu0 0.0
  %4099 = vmatpush1.msra.mxu0 0.0
  %4100 = vmatprep.subr.mxu0 0.0
  %4101 = vmatpush1.msra.mxu0 0.0
  %4102 = vmatprep.subr.mxu0 0.0
  %4103 = vmatpush1.msra.mxu0 0.0
  %4104 = vmatprep.subr.mxu0 0.0
  %4105 = vmatpush1.msra.mxu0 0.0
  %4106 = vmatprep.subr.mxu0 0.0
  %4107 = vmatpush1.msra.mxu0 0.0
  %4108 = vmatprep.subr.mxu0 0.0
  %4109 = vmatpush1.msra.mxu0 0.0
  %4110 = vmatprep.subr.mxu0 0.0
  %4111 = vmatpush1.msra.mxu0 0.0
  %4112 = vmatprep.mubr.f32.mxu0 0.0
  %4113 = vmatmul.mubr.f32.gmra.mrb[0].mxu0 %v4046
  %v4114 = vpop.f32.mrb[0].mxu0
  %v4115 = vadd.f32 0.0, %v4114
  %v4116 = vpop.f32.mrb[0].mxu0
  %4117 = vdwg.mxu0
  %v4118 = vmul.f32 %v4044, 0.5
  %v4119 = vmul.f32 %v4115, %v4115
  %v4120 = vadd.f32 %v4119, %v345
  %v4121 = vrsqrt.pop %v4120
  %v4122 = vmul.f32 %v4120, %v4121
  %vm4123 = vcmp.eq.f32.partialorder %v4120, inf
  %v4124 = vsel %vm4123, %v4120, %v4122
  %vm4125 = vcmp.eq.f32.partialorder %v4120, 0.0
  %v4126 = vand.u32 %v4120, 2147483648
  %v4127 = vsel %vm4125, %v4126, %v4124
  %v4128 = vsub.f32 %v4127, %v4115
  %v4129 = vmul.f32 %v4128, %v344
  %v4130 = vadd.f32 %v4118, %v4129
  %v4132 = vsel %vm175, %v4130, 0
  %4134 = vmatprep.subr.mxu0 0.0
  %4135 = vmatpush1.msra.mxu0 %v305
  %4136 = vmatprep.subr.mxu0 0.0
  %4137 = vmatpush1.msra.mxu0 %v306
  %4138 = vmatprep.subr.mxu0 0.0
  %4139 = vmatpush1.msra.mxu0 %v307
  %4140 = vmatprep.subr.mxu0 0.0
  %4141 = vmatpush1.msra.mxu0 %v308
  %4142 = vmatprep.subr.mxu0 0.0
  %4143 = vmatpush1.msra.mxu0 %v309
  %4144 = vmatprep.subr.mxu0 0.0
  %4145 = vmatpush1.msra.mxu0 %v310
  %4146 = vmatprep.subr.mxu0 0.0
  %4147 = vmatpush1.msra.mxu0 %v311
  %4148 = vmatprep.subr.mxu0 0.0
  %4149 = vmatpush1.msra.mxu0 %v312
  %4150 = vmatprep.subr.mxu0 0.0
  %4151 = vmatpush1.msra.mxu0 0.0
  %4152 = vmatprep.subr.mxu0 0.0
  %4153 = vmatpush1.msra.mxu0 0.0
  %4154 = vmatprep.subr.mxu0 0.0
  %4155 = vmatpush1.msra.mxu0 0.0
  %4156 = vmatprep.subr.mxu0 0.0
  %4157 = vmatpush1.msra.mxu0 0.0
  %4158 = vmatprep.subr.mxu0 0.0
  %4159 = vmatpush1.msra.mxu0 0.0
  %4160 = vmatprep.subr.mxu0 0.0
  %4161 = vmatpush1.msra.mxu0 0.0
  %4162 = vmatprep.subr.mxu0 0.0
  %4163 = vmatpush1.msra.mxu0 0.0
  %4164 = vmatprep.subr.mxu0 0.0
  %4165 = vmatpush1.msra.mxu0 0.0
  %4166 = vmatprep.subr.mxu0 0.0
  %4167 = vmatpush1.msra.mxu0 0.0
  %4168 = vmatprep.subr.mxu0 0.0
  %4169 = vmatpush1.msra.mxu0 0.0
  %4170 = vmatprep.subr.mxu0 0.0
  %4171 = vmatpush1.msra.mxu0 0.0
  %4172 = vmatprep.subr.mxu0 0.0
  %4173 = vmatpush1.msra.mxu0 0.0
  %4174 = vmatprep.subr.mxu0 0.0
  %4175 = vmatpush1.msra.mxu0 0.0
  %4176 = vmatprep.subr.mxu0 0.0
  %4177 = vmatpush1.msra.mxu0 0.0
  %4178 = vmatprep.subr.mxu0 0.0
  %4179 = vmatpush1.msra.mxu0 0.0
  %4180 = vmatprep.subr.mxu0 0.0
  %4181 = vmatpush1.msra.mxu0 0.0
  %4182 = vmatprep.subr.mxu0 0.0
  %4183 = vmatpush1.msra.mxu0 0.0
  %4184 = vmatprep.subr.mxu0 0.0
  %4185 = vmatpush1.msra.mxu0 0.0
  %4186 = vmatprep.subr.mxu0 0.0
  %4187 = vmatpush1.msra.mxu0 0.0
  %4188 = vmatprep.subr.mxu0 0.0
  %4189 = vmatpush1.msra.mxu0 0.0
  %4190 = vmatprep.subr.mxu0 0.0
  %4191 = vmatpush1.msra.mxu0 0.0
  %4192 = vmatprep.subr.mxu0 0.0
  %4193 = vmatpush1.msra.mxu0 0.0
  %4194 = vmatprep.subr.mxu0 0.0
  %4195 = vmatpush1.msra.mxu0 0.0
  %4196 = vmatprep.subr.mxu0 0.0
  %4197 = vmatpush1.msra.mxu0 0.0
  %4198 = vmatprep.mubr.f32.mxu0 0.0
  %4199 = vmatmul.mubr.f32.gmra.mrb[0].mxu0 %v4132
  %v4200 = vpop.f32.mrb[0].mxu0
  %v4201 = vadd.f32 0.0, %v4200
  %v4202 = vpop.f32.mrb[0].mxu0
  %4203 = vdwg.mxu0
  %v4204 = vmul.f32 %v4130, 0.5
  %v4205 = vmul.f32 %v4201, %v4201
  %v4206 = vadd.f32 %v4205, %v345
  %v4207 = vrsqrt.pop %v4206
  %v4208 = vmul.f32 %v4206, %v4207
  %vm4209 = vcmp.eq.f32.partialorder %v4206, inf
  %v4210 = vsel %vm4209, %v4206, %v4208
  %vm4211 = vcmp.eq.f32.partialorder %v4206, 0.0
  %v4212 = vand.u32 %v4206, 2147483648
  %v4213 = vsel %vm4211, %v4212, %v4210
  %v4214 = vsub.f32 %v4213, %v4201
  %v4215 = vmul.f32 %v4214, %v344
  %v4216 = vadd.f32 %v4204, %v4215
  %v4218 = vsel %vm175, %v4216, 0
  %4220 = vmatprep.subr.mxu0 0.0
  %4221 = vmatpush1.msra.mxu0 %v305
  %4222 = vmatprep.subr.mxu0 0.0
  %4223 = vmatpush1.msra.mxu0 %v306
  %4224 = vmatprep.subr.mxu0 0.0
  %4225 = vmatpush1.msra.mxu0 %v307
  %4226 = vmatprep.subr.mxu0 0.0
  %4227 = vmatpush1.msra.mxu0 %v308
  %4228 = vmatprep.subr.mxu0 0.0
  %4229 = vmatpush1.msra.mxu0 %v309
  %4230 = vmatprep.subr.mxu0 0.0
  %4231 = vmatpush1.msra.mxu0 %v310
  %4232 = vmatprep.subr.mxu0 0.0
  %4233 = vmatpush1.msra.mxu0 %v311
  %4234 = vmatprep.subr.mxu0 0.0
  %4235 = vmatpush1.msra.mxu0 %v312
  %4236 = vmatprep.subr.mxu0 0.0
  %4237 = vmatpush1.msra.mxu0 0.0
  %4238 = vmatprep.subr.mxu0 0.0
  %4239 = vmatpush1.msra.mxu0 0.0
  %4240 = vmatprep.subr.mxu0 0.0
  %4241 = vmatpush1.msra.mxu0 0.0
  %4242 = vmatprep.subr.mxu0 0.0
  %4243 = vmatpush1.msra.mxu0 0.0
  %4244 = vmatprep.subr.mxu0 0.0
  %4245 = vmatpush1.msra.mxu0 0.0
  %4246 = vmatprep.subr.mxu0 0.0
  %4247 = vmatpush1.msra.mxu0 0.0
  %4248 = vmatprep.subr.mxu0 0.0
  %4249 = vmatpush1.msra.mxu0 0.0
  %4250 = vmatprep.subr.mxu0 0.0
  %4251 = vmatpush1.msra.mxu0 0.0
  %4252 = vmatprep.subr.mxu0 0.0
  %4253 = vmatpush1.msra.mxu0 0.0
  %4254 = vmatprep.subr.mxu0 0.0
  %4255 = vmatpush1.msra.mxu0 0.0
  %4256 = vmatprep.subr.mxu0 0.0
  %4257 = vmatpush1.msra.mxu0 0.0
  %4258 = vmatprep.subr.mxu0 0.0
  %4259 = vmatpush1.msra.mxu0 0.0
  %4260 = vmatprep.subr.mxu0 0.0
  %4261 = vmatpush1.msra.mxu0 0.0
  %4262 = vmatprep.subr.mxu0 0.0
  %4263 = vmatpush1.msra.mxu0 0.0
  %4264 = vmatprep.subr.mxu0 0.0
  %4265 = vmatpush1.msra.mxu0 0.0
  %4266 = vmatprep.subr.mxu0 0.0
  %4267 = vmatpush1.msra.mxu0 0.0
  %4268 = vmatprep.subr.mxu0 0.0
  %4269 = vmatpush1.msra.mxu0 0.0
  %4270 = vmatprep.subr.mxu0 0.0
  %4271 = vmatpush1.msra.mxu0 0.0
  %4272 = vmatprep.subr.mxu0 0.0
  %4273 = vmatpush1.msra.mxu0 0.0
  %4274 = vmatprep.subr.mxu0 0.0
  %4275 = vmatpush1.msra.mxu0 0.0
  %4276 = vmatprep.subr.mxu0 0.0
  %4277 = vmatpush1.msra.mxu0 0.0
  %4278 = vmatprep.subr.mxu0 0.0
  %4279 = vmatpush1.msra.mxu0 0.0
  %4280 = vmatprep.subr.mxu0 0.0
  %4281 = vmatpush1.msra.mxu0 0.0
  %4282 = vmatprep.subr.mxu0 0.0
  %4283 = vmatpush1.msra.mxu0 0.0
  %4284 = vmatprep.mubr.f32.mxu0 0.0
  %4285 = vmatmul.mubr.f32.gmra.mrb[0].mxu0 %v4218
  %v4286 = vpop.f32.mrb[0].mxu0
  %v4287 = vadd.f32 0.0, %v4286
  %v4288 = vpop.f32.mrb[0].mxu0
  %4289 = vdwg.mxu0
  %v4290 = vmul.f32 %v4216, 0.5
  %v4291 = vmul.f32 %v4287, %v4287
  %v4292 = vadd.f32 %v4291, %v345
  %v4293 = vrsqrt.pop %v4292
  %v4294 = vmul.f32 %v4292, %v4293
  %vm4295 = vcmp.eq.f32.partialorder %v4292, inf
  %v4296 = vsel %vm4295, %v4292, %v4294
  %vm4297 = vcmp.eq.f32.partialorder %v4292, 0.0
  %v4298 = vand.u32 %v4292, 2147483648
  %v4299 = vsel %vm4297, %v4298, %v4296
  %v4300 = vsub.f32 %v4299, %v4287
  %v4301 = vmul.f32 %v4300, %v344
  %v4302 = vadd.f32 %v4290, %v4301
  %v4304 = vsel %vm175, %v4302, 0
  %4306 = vmatprep.subr.mxu0 0.0
  %4307 = vmatpush1.msra.mxu0 %v305
  %4308 = vmatprep.subr.mxu0 0.0
  %4309 = vmatpush1.msra.mxu0 %v306
  %4310 = vmatprep.subr.mxu0 0.0
  %4311 = vmatpush1.msra.mxu0 %v307
  %4312 = vmatprep.subr.mxu0 0.0
  %4313 = vmatpush1.msra.mxu0 %v308
  %4314 = vmatprep.subr.mxu0 0.0
  %4315 = vmatpush1.msra.mxu0 %v309
  %4316 = vmatprep.subr.mxu0 0.0
  %4317 = vmatpush1.msra.mxu0 %v310
  %4318 = vmatprep.subr.mxu0 0.0
  %4319 = vmatpush1.msra.mxu0 %v311
  %4320 = vmatprep.subr.mxu0 0.0
  %4321 = vmatpush1.msra.mxu0 %v312
  %4322 = vmatprep.subr.mxu0 0.0
  %4323 = vmatpush1.msra.mxu0 0.0
  %4324 = vmatprep.subr.mxu0 0.0
  %4325 = vmatpush1.msra.mxu0 0.0
  %4326 = vmatprep.subr.mxu0 0.0
  %4327 = vmatpush1.msra.mxu0 0.0
  %4328 = vmatprep.subr.mxu0 0.0
  %4329 = vmatpush1.msra.mxu0 0.0
  %4330 = vmatprep.subr.mxu0 0.0
  %4331 = vmatpush1.msra.mxu0 0.0
  %4332 = vmatprep.subr.mxu0 0.0
  %4333 = vmatpush1.msra.mxu0 0.0
  %4334 = vmatprep.subr.mxu0 0.0
  %4335 = vmatpush1.msra.mxu0 0.0
  %4336 = vmatprep.subr.mxu0 0.0
  %4337 = vmatpush1.msra.mxu0 0.0
  %4338 = vmatprep.subr.mxu0 0.0
  %4339 = vmatpush1.msra.mxu0 0.0
  %4340 = vmatprep.subr.mxu0 0.0
  %4341 = vmatpush1.msra.mxu0 0.0
  %4342 = vmatprep.subr.mxu0 0.0
  %4343 = vmatpush1.msra.mxu0 0.0
  %4344 = vmatprep.subr.mxu0 0.0
  %4345 = vmatpush1.msra.mxu0 0.0
  %4346 = vmatprep.subr.mxu0 0.0
  %4347 = vmatpush1.msra.mxu0 0.0
  %4348 = vmatprep.subr.mxu0 0.0
  %4349 = vmatpush1.msra.mxu0 0.0
  %4350 = vmatprep.subr.mxu0 0.0
  %4351 = vmatpush1.msra.mxu0 0.0
  %4352 = vmatprep.subr.mxu0 0.0
  %4353 = vmatpush1.msra.mxu0 0.0
  %4354 = vmatprep.subr.mxu0 0.0
  %4355 = vmatpush1.msra.mxu0 0.0
  %4356 = vmatprep.subr.mxu0 0.0
  %4357 = vmatpush1.msra.mxu0 0.0
  %4358 = vmatprep.subr.mxu0 0.0
  %4359 = vmatpush1.msra.mxu0 0.0
  %4360 = vmatprep.subr.mxu0 0.0
  %4361 = vmatpush1.msra.mxu0 0.0
  %4362 = vmatprep.subr.mxu0 0.0
  %4363 = vmatpush1.msra.mxu0 0.0
  %4364 = vmatprep.subr.mxu0 0.0
  %4365 = vmatpush1.msra.mxu0 0.0
  %4366 = vmatprep.subr.mxu0 0.0
  %4367 = vmatpush1.msra.mxu0 0.0
  %4368 = vmatprep.subr.mxu0 0.0
  %4369 = vmatpush1.msra.mxu0 0.0
  %4370 = vmatprep.mubr.f32.mxu0 0.0
  %4371 = vmatmul.mubr.f32.gmra.mrb[0].mxu0 %v4304
  %v4372 = vpop.f32.mrb[0].mxu0
  %v4373 = vadd.f32 0.0, %v4372
  %v4374 = vpop.f32.mrb[0].mxu0
  %4375 = vdwg.mxu0
  %v4376 = vmul.f32 %v4302, 0.5
  %v4377 = vmul.f32 %v4373, %v4373
  %v4378 = vadd.f32 %v4377, %v345
  %v4379 = vrsqrt.pop %v4378
  %v4380 = vmul.f32 %v4378, %v4379
  %vm4381 = vcmp.eq.f32.partialorder %v4378, inf
  %v4382 = vsel %vm4381, %v4378, %v4380
  %vm4383 = vcmp.eq.f32.partialorder %v4378, 0.0
  %v4384 = vand.u32 %v4378, 2147483648
  %v4385 = vsel %vm4383, %v4384, %v4382
  %v4386 = vsub.f32 %v4385, %v4373
  %v4387 = vmul.f32 %v4386, %v344
  %v4388 = vadd.f32 %v4376, %v4387
  %v4390 = vsel %vm175, %v4388, 0
  %4392 = vmatprep.subr.mxu0 0.0
  %4393 = vmatpush1.msra.mxu0 %v305
  %4394 = vmatprep.subr.mxu0 0.0
  %4395 = vmatpush1.msra.mxu0 %v306
  %4396 = vmatprep.subr.mxu0 0.0
  %4397 = vmatpush1.msra.mxu0 %v307
  %4398 = vmatprep.subr.mxu0 0.0
  %4399 = vmatpush1.msra.mxu0 %v308
  %4400 = vmatprep.subr.mxu0 0.0
  %4401 = vmatpush1.msra.mxu0 %v309
  %4402 = vmatprep.subr.mxu0 0.0
  %4403 = vmatpush1.msra.mxu0 %v310
  %4404 = vmatprep.subr.mxu0 0.0
  %4405 = vmatpush1.msra.mxu0 %v311
  %4406 = vmatprep.subr.mxu0 0.0
  %4407 = vmatpush1.msra.mxu0 %v312
  %4408 = vmatprep.subr.mxu0 0.0
  %4409 = vmatpush1.msra.mxu0 0.0
  %4410 = vmatprep.subr.mxu0 0.0
  %4411 = vmatpush1.msra.mxu0 0.0
  %4412 = vmatprep.subr.mxu0 0.0
  %4413 = vmatpush1.msra.mxu0 0.0
  %4414 = vmatprep.subr.mxu0 0.0
  %4415 = vmatpush1.msra.mxu0 0.0
  %4416 = vmatprep.subr.mxu0 0.0
  %4417 = vmatpush1.msra.mxu0 0.0
  %4418 = vmatprep.subr.mxu0 0.0
  %4419 = vmatpush1.msra.mxu0 0.0
  %4420 = vmatprep.subr.mxu0 0.0
  %4421 = vmatpush1.msra.mxu0 0.0
  %4422 = vmatprep.subr.mxu0 0.0
  %4423 = vmatpush1.msra.mxu0 0.0
  %4424 = vmatprep.subr.mxu0 0.0
  %4425 = vmatpush1.msra.mxu0 0.0
  %4426 = vmatprep.subr.mxu0 0.0
  %4427 = vmatpush1.msra.mxu0 0.0
  %4428 = vmatprep.subr.mxu0 0.0
  %4429 = vmatpush1.msra.mxu0 0.0
  %4430 = vmatprep.subr.mxu0 0.0
  %4431 = vmatpush1.msra.mxu0 0.0
  %4432 = vmatprep.subr.mxu0 0.0
  %4433 = vmatpush1.msra.mxu0 0.0
  %4434 = vmatprep.subr.mxu0 0.0
  %4435 = vmatpush1.msra.mxu0 0.0
  %4436 = vmatprep.subr.mxu0 0.0
  %4437 = vmatpush1.msra.mxu0 0.0
  %4438 = vmatprep.subr.mxu0 0.0
  %4439 = vmatpush1.msra.mxu0 0.0
  %4440 = vmatprep.subr.mxu0 0.0
  %4441 = vmatpush1.msra.mxu0 0.0
  %4442 = vmatprep.subr.mxu0 0.0
  %4443 = vmatpush1.msra.mxu0 0.0
  %4444 = vmatprep.subr.mxu0 0.0
  %4445 = vmatpush1.msra.mxu0 0.0
  %4446 = vmatprep.subr.mxu0 0.0
  %4447 = vmatpush1.msra.mxu0 0.0
  %4448 = vmatprep.subr.mxu0 0.0
  %4449 = vmatpush1.msra.mxu0 0.0
  %4450 = vmatprep.subr.mxu0 0.0
  %4451 = vmatpush1.msra.mxu0 0.0
  %4452 = vmatprep.subr.mxu0 0.0
  %4453 = vmatpush1.msra.mxu0 0.0
  %4454 = vmatprep.subr.mxu0 0.0
  %4455 = vmatpush1.msra.mxu0 0.0
  %4456 = vmatprep.mubr.f32.mxu0 0.0
  %4457 = vmatmul.mubr.f32.gmra.mrb[0].mxu0 %v4390
  %v4458 = vpop.f32.mrb[0].mxu0
  %v4459 = vadd.f32 0.0, %v4458
  %v4460 = vpop.f32.mrb[0].mxu0
  %4461 = vdwg.mxu0
  %v4462 = vmul.f32 %v4388, 0.5
  %v4463 = vmul.f32 %v4459, %v4459
  %v4464 = vadd.f32 %v4463, %v345
  %v4465 = vrsqrt.pop %v4464
  %v4466 = vmul.f32 %v4464, %v4465
  %vm4467 = vcmp.eq.f32.partialorder %v4464, inf
  %v4468 = vsel %vm4467, %v4464, %v4466
  %vm4469 = vcmp.eq.f32.partialorder %v4464, 0.0
  %v4470 = vand.u32 %v4464, 2147483648
  %v4471 = vsel %vm4469, %v4470, %v4468
  %v4472 = vsub.f32 %v4471, %v4459
  %v4473 = vmul.f32 %v4472, %v344
  %v4474 = vadd.f32 %v4462, %v4473
  %v4476 = vsel %vm175, %v4474, 0
  %4478 = vmatprep.subr.mxu0 0.0
  %4479 = vmatpush1.msra.mxu0 %v305
  %4480 = vmatprep.subr.mxu0 0.0
  %4481 = vmatpush1.msra.mxu0 %v306
  %4482 = vmatprep.subr.mxu0 0.0
  %4483 = vmatpush1.msra.mxu0 %v307
  %4484 = vmatprep.subr.mxu0 0.0
  %4485 = vmatpush1.msra.mxu0 %v308
  %4486 = vmatprep.subr.mxu0 0.0
  %4487 = vmatpush1.msra.mxu0 %v309
  %4488 = vmatprep.subr.mxu0 0.0
  %4489 = vmatpush1.msra.mxu0 %v310
  %4490 = vmatprep.subr.mxu0 0.0
  %4491 = vmatpush1.msra.mxu0 %v311
  %4492 = vmatprep.subr.mxu0 0.0
  %4493 = vmatpush1.msra.mxu0 %v312
  %4494 = vmatprep.subr.mxu0 0.0
  %4495 = vmatpush1.msra.mxu0 0.0
  %4496 = vmatprep.subr.mxu0 0.0
  %4497 = vmatpush1.msra.mxu0 0.0
  %4498 = vmatprep.subr.mxu0 0.0
  %4499 = vmatpush1.msra.mxu0 0.0
  %4500 = vmatprep.subr.mxu0 0.0
  %4501 = vmatpush1.msra.mxu0 0.0
  %4502 = vmatprep.subr.mxu0 0.0
  %4503 = vmatpush1.msra.mxu0 0.0
  %4504 = vmatprep.subr.mxu0 0.0
  %4505 = vmatpush1.msra.mxu0 0.0
  %4506 = vmatprep.subr.mxu0 0.0
  %4507 = vmatpush1.msra.mxu0 0.0
  %4508 = vmatprep.subr.mxu0 0.0
  %4509 = vmatpush1.msra.mxu0 0.0
  %4510 = vmatprep.subr.mxu0 0.0
  %4511 = vmatpush1.msra.mxu0 0.0
  %4512 = vmatprep.subr.mxu0 0.0
  %4513 = vmatpush1.msra.mxu0 0.0
  %4514 = vmatprep.subr.mxu0 0.0
  %4515 = vmatpush1.msra.mxu0 0.0
  %4516 = vmatprep.subr.mxu0 0.0
  %4517 = vmatpush1.msra.mxu0 0.0
  %4518 = vmatprep.subr.mxu0 0.0
  %4519 = vmatpush1.msra.mxu0 0.0
  %4520 = vmatprep.subr.mxu0 0.0
  %4521 = vmatpush1.msra.mxu0 0.0
  %4522 = vmatprep.subr.mxu0 0.0
  %4523 = vmatpush1.msra.mxu0 0.0
  %4524 = vmatprep.subr.mxu0 0.0
  %4525 = vmatpush1.msra.mxu0 0.0
  %4526 = vmatprep.subr.mxu0 0.0
  %4527 = vmatpush1.msra.mxu0 0.0
  %4528 = vmatprep.subr.mxu0 0.0
  %4529 = vmatpush1.msra.mxu0 0.0
  %4530 = vmatprep.subr.mxu0 0.0
  %4531 = vmatpush1.msra.mxu0 0.0
  %4532 = vmatprep.subr.mxu0 0.0
  %4533 = vmatpush1.msra.mxu0 0.0
  %4534 = vmatprep.subr.mxu0 0.0
  %4535 = vmatpush1.msra.mxu0 0.0
  %4536 = vmatprep.subr.mxu0 0.0
  %4537 = vmatpush1.msra.mxu0 0.0
  %4538 = vmatprep.subr.mxu0 0.0
  %4539 = vmatpush1.msra.mxu0 0.0
  %4540 = vmatprep.subr.mxu0 0.0
  %4541 = vmatpush1.msra.mxu0 0.0
  %4542 = vmatprep.mubr.f32.mxu0 0.0
  %4543 = vmatmul.mubr.f32.gmra.mrb[0].mxu0 %v4476
  %v4544 = vpop.f32.mrb[0].mxu0
  %v4545 = vadd.f32 0.0, %v4544
  %v4546 = vpop.f32.mrb[0].mxu0
  %4547 = vdwg.mxu0
  %v4548 = vmul.f32 %v4474, 0.5
  %v4549 = vmul.f32 %v4545, %v4545
  %v4550 = vadd.f32 %v4549, %v345
  %v4551 = vrsqrt.pop %v4550
  %v4552 = vmul.f32 %v4550, %v4551
  %vm4553 = vcmp.eq.f32.partialorder %v4550, inf
  %v4554 = vsel %vm4553, %v4550, %v4552
  %vm4555 = vcmp.eq.f32.partialorder %v4550, 0.0
  %v4556 = vand.u32 %v4550, 2147483648
  %v4557 = vsel %vm4555, %v4556, %v4554
  %v4558 = vsub.f32 %v4557, %v4545
  %v4559 = vmul.f32 %v4558, %v344
  %v4560 = vadd.f32 %v4548, %v4559
  %v4562 = vsel %vm175, %v4560, 0
  %4564 = vmatprep.subr.mxu0 0.0
  %4565 = vmatpush1.msra.mxu0 %v305
  %4566 = vmatprep.subr.mxu0 0.0
  %4567 = vmatpush1.msra.mxu0 %v306
  %4568 = vmatprep.subr.mxu0 0.0
  %4569 = vmatpush1.msra.mxu0 %v307
  %4570 = vmatprep.subr.mxu0 0.0
  %4571 = vmatpush1.msra.mxu0 %v308
  %4572 = vmatprep.subr.mxu0 0.0
  %4573 = vmatpush1.msra.mxu0 %v309
  %4574 = vmatprep.subr.mxu0 0.0
  %4575 = vmatpush1.msra.mxu0 %v310
  %4576 = vmatprep.subr.mxu0 0.0
  %4577 = vmatpush1.msra.mxu0 %v311
  %4578 = vmatprep.subr.mxu0 0.0
  %4579 = vmatpush1.msra.mxu0 %v312
  %4580 = vmatprep.subr.mxu0 0.0
  %4581 = vmatpush1.msra.mxu0 0.0
  %4582 = vmatprep.subr.mxu0 0.0
  %4583 = vmatpush1.msra.mxu0 0.0
  %4584 = vmatprep.subr.mxu0 0.0
  %4585 = vmatpush1.msra.mxu0 0.0
  %4586 = vmatprep.subr.mxu0 0.0
  %4587 = vmatpush1.msra.mxu0 0.0
  %4588 = vmatprep.subr.mxu0 0.0
  %4589 = vmatpush1.msra.mxu0 0.0
  %4590 = vmatprep.subr.mxu0 0.0
  %4591 = vmatpush1.msra.mxu0 0.0
  %4592 = vmatprep.subr.mxu0 0.0
  %4593 = vmatpush1.msra.mxu0 0.0
  %4594 = vmatprep.subr.mxu0 0.0
  %4595 = vmatpush1.msra.mxu0 0.0
  %4596 = vmatprep.subr.mxu0 0.0
  %4597 = vmatpush1.msra.mxu0 0.0
  %4598 = vmatprep.subr.mxu0 0.0
  %4599 = vmatpush1.msra.mxu0 0.0
  %4600 = vmatprep.subr.mxu0 0.0
  %4601 = vmatpush1.msra.mxu0 0.0
  %4602 = vmatprep.subr.mxu0 0.0
  %4603 = vmatpush1.msra.mxu0 0.0
  %4604 = vmatprep.subr.mxu0 0.0
  %4605 = vmatpush1.msra.mxu0 0.0
  %4606 = vmatprep.subr.mxu0 0.0
  %4607 = vmatpush1.msra.mxu0 0.0
  %4608 = vmatprep.subr.mxu0 0.0
  %4609 = vmatpush1.msra.mxu0 0.0
  %4610 = vmatprep.subr.mxu0 0.0
  %4611 = vmatpush1.msra.mxu0 0.0
  %4612 = vmatprep.subr.mxu0 0.0
  %4613 = vmatpush1.msra.mxu0 0.0
  %4614 = vmatprep.subr.mxu0 0.0
  %4615 = vmatpush1.msra.mxu0 0.0
  %4616 = vmatprep.subr.mxu0 0.0
  %4617 = vmatpush1.msra.mxu0 0.0
  %4618 = vmatprep.subr.mxu0 0.0
  %4619 = vmatpush1.msra.mxu0 0.0
  %4620 = vmatprep.subr.mxu0 0.0
  %4621 = vmatpush1.msra.mxu0 0.0
  %4622 = vmatprep.subr.mxu0 0.0
  %4623 = vmatpush1.msra.mxu0 0.0
  %4624 = vmatprep.subr.mxu0 0.0
  %4625 = vmatpush1.msra.mxu0 0.0
  %4626 = vmatprep.subr.mxu0 0.0
  %4627 = vmatpush1.msra.mxu0 0.0
  %4628 = vmatprep.mubr.f32.mxu0 0.0
  %4629 = vmatmul.mubr.f32.gmra.mrb[0].mxu0 %v4562
  %v4630 = vpop.f32.mrb[0].mxu0
  %v4631 = vadd.f32 0.0, %v4630
  %v4632 = vpop.f32.mrb[0].mxu0
  %4633 = vdwg.mxu0
  %v4634 = vmul.f32 %v4560, 0.5
  %v4635 = vmul.f32 %v4631, %v4631
  %v4636 = vadd.f32 %v4635, %v345
  %v4637 = vrsqrt.pop %v4636
  %v4638 = vmul.f32 %v4636, %v4637
  %vm4639 = vcmp.eq.f32.partialorder %v4636, inf
  %v4640 = vsel %vm4639, %v4636, %v4638
  %vm4641 = vcmp.eq.f32.partialorder %v4636, 0.0
  %v4642 = vand.u32 %v4636, 2147483648
  %v4643 = vsel %vm4641, %v4642, %v4640
  %v4644 = vsub.f32 %v4643, %v4631
  %v4645 = vmul.f32 %v4644, %v344
  %v4646 = vadd.f32 %v4634, %v4645
  %v4648 = vsel %vm175, %v4646, 0
  %4650 = vmatprep.subr.mxu0 0.0
  %4651 = vmatpush1.msra.mxu0 %v305
  %4652 = vmatprep.subr.mxu0 0.0
  %4653 = vmatpush1.msra.mxu0 %v306
  %4654 = vmatprep.subr.mxu0 0.0
  %4655 = vmatpush1.msra.mxu0 %v307
  %4656 = vmatprep.subr.mxu0 0.0
  %4657 = vmatpush1.msra.mxu0 %v308
  %4658 = vmatprep.subr.mxu0 0.0
  %4659 = vmatpush1.msra.mxu0 %v309
  %4660 = vmatprep.subr.mxu0 0.0
  %4661 = vmatpush1.msra.mxu0 %v310
  %4662 = vmatprep.subr.mxu0 0.0
  %4663 = vmatpush1.msra.mxu0 %v311
  %4664 = vmatprep.subr.mxu0 0.0
  %4665 = vmatpush1.msra.mxu0 %v312
  %4666 = vmatprep.subr.mxu0 0.0
  %4667 = vmatpush1.msra.mxu0 0.0
  %4668 = vmatprep.subr.mxu0 0.0
  %4669 = vmatpush1.msra.mxu0 0.0
  %4670 = vmatprep.subr.mxu0 0.0
  %4671 = vmatpush1.msra.mxu0 0.0
  %4672 = vmatprep.subr.mxu0 0.0
  %4673 = vmatpush1.msra.mxu0 0.0
  %4674 = vmatprep.subr.mxu0 0.0
  %4675 = vmatpush1.msra.mxu0 0.0
  %4676 = vmatprep.subr.mxu0 0.0
  %4677 = vmatpush1.msra.mxu0 0.0
  %4678 = vmatprep.subr.mxu0 0.0
  %4679 = vmatpush1.msra.mxu0 0.0
  %4680 = vmatprep.subr.mxu0 0.0
  %4681 = vmatpush1.msra.mxu0 0.0
  %4682 = vmatprep.subr.mxu0 0.0
  %4683 = vmatpush1.msra.mxu0 0.0
  %4684 = vmatprep.subr.mxu0 0.0
  %4685 = vmatpush1.msra.mxu0 0.0
  %4686 = vmatprep.subr.mxu0 0.0
  %4687 = vmatpush1.msra.mxu0 0.0
  %4688 = vmatprep.subr.mxu0 0.0
  %4689 = vmatpush1.msra.mxu0 0.0
  %4690 = vmatprep.subr.mxu0 0.0
  %4691 = vmatpush1.msra.mxu0 0.0
  %4692 = vmatprep.subr.mxu0 0.0
  %4693 = vmatpush1.msra.mxu0 0.0
  %4694 = vmatprep.subr.mxu0 0.0
  %4695 = vmatpush1.msra.mxu0 0.0
  %4696 = vmatprep.subr.mxu0 0.0
  %4697 = vmatpush1.msra.mxu0 0.0
  %4698 = vmatprep.subr.mxu0 0.0
  %4699 = vmatpush1.msra.mxu0 0.0
  %4700 = vmatprep.subr.mxu0 0.0
  %4701 = vmatpush1.msra.mxu0 0.0
  %4702 = vmatprep.subr.mxu0 0.0
  %4703 = vmatpush1.msra.mxu0 0.0
  %4704 = vmatprep.subr.mxu0 0.0
  %4705 = vmatpush1.msra.mxu0 0.0
  %4706 = vmatprep.subr.mxu0 0.0
  %4707 = vmatpush1.msra.mxu0 0.0
  %4708 = vmatprep.subr.mxu0 0.0
  %4709 = vmatpush1.msra.mxu0 0.0
  %4710 = vmatprep.subr.mxu0 0.0
  %4711 = vmatpush1.msra.mxu0 0.0
  %4712 = vmatprep.subr.mxu0 0.0
  %4713 = vmatpush1.msra.mxu0 0.0
  %4714 = vmatprep.mubr.f32.mxu0 0.0
  %4715 = vmatmul.mubr.f32.gmra.mrb[0].mxu0 %v4648
  %v4716 = vpop.f32.mrb[0].mxu0
  %v4717 = vadd.f32 0.0, %v4716
  %v4718 = vpop.f32.mrb[0].mxu0
  %4719 = vdwg.mxu0
  %v4720 = vmul.f32 %v4646, 0.5
  %v4721 = vmul.f32 %v4717, %v4717
  %v4722 = vadd.f32 %v4721, %v345
  %v4723 = vrsqrt.pop %v4722
  %v4724 = vmul.f32 %v4722, %v4723
  %vm4725 = vcmp.eq.f32.partialorder %v4722, inf
  %v4726 = vsel %vm4725, %v4722, %v4724
  %vm4727 = vcmp.eq.f32.partialorder %v4722, 0.0
  %v4728 = vand.u32 %v4722, 2147483648
  %v4729 = vsel %vm4727, %v4728, %v4726
  %v4730 = vsub.f32 %v4729, %v4717
  %v4731 = vmul.f32 %v4730, %v344
  %v4732 = vadd.f32 %v4720, %v4731
  %v4734 = vsel %vm175, %v4732, 0
  %4736 = vmatprep.subr.mxu0 0.0
  %4737 = vmatpush1.msra.mxu0 %v305
  %4738 = vmatprep.subr.mxu0 0.0
  %4739 = vmatpush1.msra.mxu0 %v306
  %4740 = vmatprep.subr.mxu0 0.0
  %4741 = vmatpush1.msra.mxu0 %v307
  %4742 = vmatprep.subr.mxu0 0.0
  %4743 = vmatpush1.msra.mxu0 %v308
  %4744 = vmatprep.subr.mxu0 0.0
  %4745 = vmatpush1.msra.mxu0 %v309
  %4746 = vmatprep.subr.mxu0 0.0
  %4747 = vmatpush1.msra.mxu0 %v310
  %4748 = vmatprep.subr.mxu0 0.0
  %4749 = vmatpush1.msra.mxu0 %v311
  %4750 = vmatprep.subr.mxu0 0.0
  %4751 = vmatpush1.msra.mxu0 %v312
  %4752 = vmatprep.subr.mxu0 0.0
  %4753 = vmatpush1.msra.mxu0 0.0
  %4754 = vmatprep.subr.mxu0 0.0
  %4755 = vmatpush1.msra.mxu0 0.0
  %4756 = vmatprep.subr.mxu0 0.0
  %4757 = vmatpush1.msra.mxu0 0.0
  %4758 = vmatprep.subr.mxu0 0.0
  %4759 = vmatpush1.msra.mxu0 0.0
  %4760 = vmatprep.subr.mxu0 0.0
  %4761 = vmatpush1.msra.mxu0 0.0
  %4762 = vmatprep.subr.mxu0 0.0
  %4763 = vmatpush1.msra.mxu0 0.0
  %4764 = vmatprep.subr.mxu0 0.0
  %4765 = vmatpush1.msra.mxu0 0.0
  %4766 = vmatprep.subr.mxu0 0.0
  %4767 = vmatpush1.msra.mxu0 0.0
  %4768 = vmatprep.subr.mxu0 0.0
  %4769 = vmatpush1.msra.mxu0 0.0
  %4770 = vmatprep.subr.mxu0 0.0
  %4771 = vmatpush1.msra.mxu0 0.0
  %4772 = vmatprep.subr.mxu0 0.0
  %4773 = vmatpush1.msra.mxu0 0.0
  %4774 = vmatprep.subr.mxu0 0.0
  %4775 = vmatpush1.msra.mxu0 0.0
  %4776 = vmatprep.subr.mxu0 0.0
  %4777 = vmatpush1.msra.mxu0 0.0
  %4778 = vmatprep.subr.mxu0 0.0
  %4779 = vmatpush1.msra.mxu0 0.0
  %4780 = vmatprep.subr.mxu0 0.0
  %4781 = vmatpush1.msra.mxu0 0.0
  %4782 = vmatprep.subr.mxu0 0.0
  %4783 = vmatpush1.msra.mxu0 0.0
  %4784 = vmatprep.subr.mxu0 0.0
  %4785 = vmatpush1.msra.mxu0 0.0
  %4786 = vmatprep.subr.mxu0 0.0
  %4787 = vmatpush1.msra.mxu0 0.0
  %4788 = vmatprep.subr.mxu0 0.0
  %4789 = vmatpush1.msra.mxu0 0.0
  %4790 = vmatprep.subr.mxu0 0.0
  %4791 = vmatpush1.msra.mxu0 0.0
  %4792 = vmatprep.subr.mxu0 0.0
  %4793 = vmatpush1.msra.mxu0 0.0
  %4794 = vmatprep.subr.mxu0 0.0
  %4795 = vmatpush1.msra.mxu0 0.0
  %4796 = vmatprep.subr.mxu0 0.0
  %4797 = vmatpush1.msra.mxu0 0.0
  %4798 = vmatprep.subr.mxu0 0.0
  %4799 = vmatpush1.msra.mxu0 0.0
  %4800 = vmatprep.mubr.f32.mxu0 0.0
  %4801 = vmatmul.mubr.f32.gmra.mrb[0].mxu0 %v4734
  %v4802 = vpop.f32.mrb[0].mxu0
  %v4803 = vadd.f32 0.0, %v4802
  %v4804 = vpop.f32.mrb[0].mxu0
  %4805 = vdwg.mxu0
  %v4806 = vmul.f32 %v4732, 0.5
  %v4807 = vmul.f32 %v4803, %v4803
  %v4808 = vadd.f32 %v4807, %v345
  %v4809 = vrsqrt.pop %v4808
  %v4810 = vmul.f32 %v4808, %v4809
  %vm4811 = vcmp.eq.f32.partialorder %v4808, inf
  %v4812 = vsel %vm4811, %v4808, %v4810
  %vm4813 = vcmp.eq.f32.partialorder %v4808, 0.0
  %v4814 = vand.u32 %v4808, 2147483648
  %v4815 = vsel %vm4813, %v4814, %v4812
  %v4816 = vsub.f32 %v4815, %v4803
  %v4817 = vmul.f32 %v4816, %v344
  %v4818 = vadd.f32 %v4806, %v4817
  %v4820 = vsel %vm175, %v4818, 0
  %4822 = vmatprep.subr.mxu0 0.0
  %4823 = vmatpush1.msra.mxu0 %v305
  %4824 = vmatprep.subr.mxu0 0.0
  %4825 = vmatpush1.msra.mxu0 %v306
  %4826 = vmatprep.subr.mxu0 0.0
  %4827 = vmatpush1.msra.mxu0 %v307
  %4828 = vmatprep.subr.mxu0 0.0
  %4829 = vmatpush1.msra.mxu0 %v308
  %4830 = vmatprep.subr.mxu0 0.0
  %4831 = vmatpush1.msra.mxu0 %v309
  %4832 = vmatprep.subr.mxu0 0.0
  %4833 = vmatpush1.msra.mxu0 %v310
  %4834 = vmatprep.subr.mxu0 0.0
  %4835 = vmatpush1.msra.mxu0 %v311
  %4836 = vmatprep.subr.mxu0 0.0
  %4837 = vmatpush1.msra.mxu0 %v312
  %4838 = vmatprep.subr.mxu0 0.0
  %4839 = vmatpush1.msra.mxu0 0.0
  %4840 = vmatprep.subr.mxu0 0.0
  %4841 = vmatpush1.msra.mxu0 0.0
  %4842 = vmatprep.subr.mxu0 0.0
  %4843 = vmatpush1.msra.mxu0 0.0
  %4844 = vmatprep.subr.mxu0 0.0
  %4845 = vmatpush1.msra.mxu0 0.0
  %4846 = vmatprep.subr.mxu0 0.0
  %4847 = vmatpush1.msra.mxu0 0.0
  %4848 = vmatprep.subr.mxu0 0.0
  %4849 = vmatpush1.msra.mxu0 0.0
  %4850 = vmatprep.subr.mxu0 0.0
  %4851 = vmatpush1.msra.mxu0 0.0
  %4852 = vmatprep.subr.mxu0 0.0
  %4853 = vmatpush1.msra.mxu0 0.0
  %4854 = vmatprep.subr.mxu0 0.0
  %4855 = vmatpush1.msra.mxu0 0.0
  %4856 = vmatprep.subr.mxu0 0.0
  %4857 = vmatpush1.msra.mxu0 0.0
  %4858 = vmatprep.subr.mxu0 0.0
  %4859 = vmatpush1.msra.mxu0 0.0
  %4860 = vmatprep.subr.mxu0 0.0
  %4861 = vmatpush1.msra.mxu0 0.0
  %4862 = vmatprep.subr.mxu0 0.0
  %4863 = vmatpush1.msra.mxu0 0.0
  %4864 = vmatprep.subr.mxu0 0.0
  %4865 = vmatpush1.msra.mxu0 0.0
  %4866 = vmatprep.subr.mxu0 0.0
  %4867 = vmatpush1.msra.mxu0 0.0
  %4868 = vmatprep.subr.mxu0 0.0
  %4869 = vmatpush1.msra.mxu0 0.0
  %4870 = vmatprep.subr.mxu0 0.0
  %4871 = vmatpush1.msra.mxu0 0.0
  %4872 = vmatprep.subr.mxu0 0.0
  %4873 = vmatpush1.msra.mxu0 0.0
  %4874 = vmatprep.subr.mxu0 0.0
  %4875 = vmatpush1.msra.mxu0 0.0
  %4876 = vmatprep.subr.mxu0 0.0
  %4877 = vmatpush1.msra.mxu0 0.0
  %4878 = vmatprep.subr.mxu0 0.0
  %4879 = vmatpush1.msra.mxu0 0.0
  %4880 = vmatprep.subr.mxu0 0.0
  %4881 = vmatpush1.msra.mxu0 0.0
  %4882 = vmatprep.subr.mxu0 0.0
  %4883 = vmatpush1.msra.mxu0 0.0
  %4884 = vmatprep.subr.mxu0 0.0
  %4885 = vmatpush1.msra.mxu0 0.0
  %4886 = vmatprep.mubr.f32.mxu0 0.0
  %4887 = vmatmul.mubr.f32.gmra.mrb[0].mxu0 %v4820
  %v4888 = vpop.f32.mrb[0].mxu0
  %v4889 = vadd.f32 0.0, %v4888
  %v4890 = vpop.f32.mrb[0].mxu0
  %4891 = vdwg.mxu0
  %v4892 = vmul.f32 %v4818, 0.5
  %v4893 = vmul.f32 %v4889, %v4889
  %v4894 = vadd.f32 %v4893, %v345
  %v4895 = vrsqrt.pop %v4894
  %v4896 = vmul.f32 %v4894, %v4895
  %vm4897 = vcmp.eq.f32.partialorder %v4894, inf
  %v4898 = vsel %vm4897, %v4894, %v4896
  %vm4899 = vcmp.eq.f32.partialorder %v4894, 0.0
  %v4900 = vand.u32 %v4894, 2147483648
  %v4901 = vsel %vm4899, %v4900, %v4898
  %v4902 = vsub.f32 %v4901, %v4889
  %v4903 = vmul.f32 %v4902, %v344
  %v4904 = vadd.f32 %v4892, %v4903
  %v4906 = vsel %vm175, %v4904, 0
  %4908 = vmatprep.subr.mxu0 0.0
  %4909 = vmatpush1.msra.mxu0 %v305
  %4910 = vmatprep.subr.mxu0 0.0
  %4911 = vmatpush1.msra.mxu0 %v306
  %4912 = vmatprep.subr.mxu0 0.0
  %4913 = vmatpush1.msra.mxu0 %v307
  %4914 = vmatprep.subr.mxu0 0.0
  %4915 = vmatpush1.msra.mxu0 %v308
  %4916 = vmatprep.subr.mxu0 0.0
  %4917 = vmatpush1.msra.mxu0 %v309
  %4918 = vmatprep.subr.mxu0 0.0
  %4919 = vmatpush1.msra.mxu0 %v310
  %4920 = vmatprep.subr.mxu0 0.0
  %4921 = vmatpush1.msra.mxu0 %v311
  %4922 = vmatprep.subr.mxu0 0.0
  %4923 = vmatpush1.msra.mxu0 %v312
  %4924 = vmatprep.subr.mxu0 0.0
  %4925 = vmatpush1.msra.mxu0 0.0
  %4926 = vmatprep.subr.mxu0 0.0
  %4927 = vmatpush1.msra.mxu0 0.0
  %4928 = vmatprep.subr.mxu0 0.0
  %4929 = vmatpush1.msra.mxu0 0.0
  %4930 = vmatprep.subr.mxu0 0.0
  %4931 = vmatpush1.msra.mxu0 0.0
  %4932 = vmatprep.subr.mxu0 0.0
  %4933 = vmatpush1.msra.mxu0 0.0
  %4934 = vmatprep.subr.mxu0 0.0
  %4935 = vmatpush1.msra.mxu0 0.0
  %4936 = vmatprep.subr.mxu0 0.0
  %4937 = vmatpush1.msra.mxu0 0.0
  %4938 = vmatprep.subr.mxu0 0.0
  %4939 = vmatpush1.msra.mxu0 0.0
  %4940 = vmatprep.subr.mxu0 0.0
  %4941 = vmatpush1.msra.mxu0 0.0
  %4942 = vmatprep.subr.mxu0 0.0
  %4943 = vmatpush1.msra.mxu0 0.0
  %4944 = vmatprep.subr.mxu0 0.0
  %4945 = vmatpush1.msra.mxu0 0.0
  %4946 = vmatprep.subr.mxu0 0.0
  %4947 = vmatpush1.msra.mxu0 0.0
  %4948 = vmatprep.subr.mxu0 0.0
  %4949 = vmatpush1.msra.mxu0 0.0
  %4950 = vmatprep.subr.mxu0 0.0
  %4951 = vmatpush1.msra.mxu0 0.0
  %4952 = vmatprep.subr.mxu0 0.0
  %4953 = vmatpush1.msra.mxu0 0.0
  %4954 = vmatprep.subr.mxu0 0.0
  %4955 = vmatpush1.msra.mxu0 0.0
  %4956 = vmatprep.subr.mxu0 0.0
  %4957 = vmatpush1.msra.mxu0 0.0
  %4958 = vmatprep.subr.mxu0 0.0
  %4959 = vmatpush1.msra.mxu0 0.0
  %4960 = vmatprep.subr.mxu0 0.0
  %4961 = vmatpush1.msra.mxu0 0.0
  %4962 = vmatprep.subr.mxu0 0.0
  %4963 = vmatpush1.msra.mxu0 0.0
  %4964 = vmatprep.subr.mxu0 0.0
  %4965 = vmatpush1.msra.mxu0 0.0
  %4966 = vmatprep.subr.mxu0 0.0
  %4967 = vmatpush1.msra.mxu0 0.0
  %4968 = vmatprep.subr.mxu0 0.0
  %4969 = vmatpush1.msra.mxu0 0.0
  %4970 = vmatprep.subr.mxu0 0.0
  %4971 = vmatpush1.msra.mxu0 0.0
  %4972 = vmatprep.mubr.f32.mxu0 0.0
  %4973 = vmatmul.mubr.f32.gmra.mrb[0].mxu0 %v4906
  %v4974 = vpop.f32.mrb[0].mxu0
  %v4975 = vadd.f32 0.0, %v4974
  %v4976 = vpop.f32.mrb[0].mxu0
  %4977 = vdwg.mxu0
  %v4978 = vmul.f32 %v4904, 0.5
  %v4979 = vmul.f32 %v4975, %v4975
  %v4980 = vadd.f32 %v4979, %v345
  %v4981 = vrsqrt.pop %v4980
  %v4982 = vmul.f32 %v4980, %v4981
  %vm4983 = vcmp.eq.f32.partialorder %v4980, inf
  %v4984 = vsel %vm4983, %v4980, %v4982
  %vm4985 = vcmp.eq.f32.partialorder %v4980, 0.0
  %v4986 = vand.u32 %v4980, 2147483648
  %v4987 = vsel %vm4985, %v4986, %v4984
  %v4988 = vsub.f32 %v4987, %v4975
  %v4989 = vmul.f32 %v4988, %v344
  %v4990 = vadd.f32 %v4978, %v4989
  %v4992 = vsel %vm175, %v4990, 0
  %4994 = vmatprep.subr.mxu0 0.0
  %4995 = vmatpush1.msra.mxu0 %v305
  %4996 = vmatprep.subr.mxu0 0.0
  %4997 = vmatpush1.msra.mxu0 %v306
  %4998 = vmatprep.subr.mxu0 0.0
  %4999 = vmatpush1.msra.mxu0 %v307
  %5000 = vmatprep.subr.mxu0 0.0
  %5001 = vmatpush1.msra.mxu0 %v308
  %5002 = vmatprep.subr.mxu0 0.0
  %5003 = vmatpush1.msra.mxu0 %v309
  %5004 = vmatprep.subr.mxu0 0.0
  %5005 = vmatpush1.msra.mxu0 %v310
  %5006 = vmatprep.subr.mxu0 0.0
  %5007 = vmatpush1.msra.mxu0 %v311
  %5008 = vmatprep.subr.mxu0 0.0
  %5009 = vmatpush1.msra.mxu0 %v312
  %5010 = vmatprep.subr.mxu0 0.0
  %5011 = vmatpush1.msra.mxu0 0.0
  %5012 = vmatprep.subr.mxu0 0.0
  %5013 = vmatpush1.msra.mxu0 0.0
  %5014 = vmatprep.subr.mxu0 0.0
  %5015 = vmatpush1.msra.mxu0 0.0
  %5016 = vmatprep.subr.mxu0 0.0
  %5017 = vmatpush1.msra.mxu0 0.0
  %5018 = vmatprep.subr.mxu0 0.0
  %5019 = vmatpush1.msra.mxu0 0.0
  %5020 = vmatprep.subr.mxu0 0.0
  %5021 = vmatpush1.msra.mxu0 0.0
  %5022 = vmatprep.subr.mxu0 0.0
  %5023 = vmatpush1.msra.mxu0 0.0
  %5024 = vmatprep.subr.mxu0 0.0
  %5025 = vmatpush1.msra.mxu0 0.0
  %5026 = vmatprep.subr.mxu0 0.0
  %5027 = vmatpush1.msra.mxu0 0.0
  %5028 = vmatprep.subr.mxu0 0.0
  %5029 = vmatpush1.msra.mxu0 0.0
  %5030 = vmatprep.subr.mxu0 0.0
  %5031 = vmatpush1.msra.mxu0 0.0
  %5032 = vmatprep.subr.mxu0 0.0
  %5033 = vmatpush1.msra.mxu0 0.0
  %5034 = vmatprep.subr.mxu0 0.0
  %5035 = vmatpush1.msra.mxu0 0.0
  %5036 = vmatprep.subr.mxu0 0.0
  %5037 = vmatpush1.msra.mxu0 0.0
  %5038 = vmatprep.subr.mxu0 0.0
  %5039 = vmatpush1.msra.mxu0 0.0
  %5040 = vmatprep.subr.mxu0 0.0
  %5041 = vmatpush1.msra.mxu0 0.0
  %5042 = vmatprep.subr.mxu0 0.0
  %5043 = vmatpush1.msra.mxu0 0.0
  %5044 = vmatprep.subr.mxu0 0.0
  %5045 = vmatpush1.msra.mxu0 0.0
  %5046 = vmatprep.subr.mxu0 0.0
  %5047 = vmatpush1.msra.mxu0 0.0
  %5048 = vmatprep.subr.mxu0 0.0
  %5049 = vmatpush1.msra.mxu0 0.0
  %5050 = vmatprep.subr.mxu0 0.0
  %5051 = vmatpush1.msra.mxu0 0.0
  %5052 = vmatprep.subr.mxu0 0.0
  %5053 = vmatpush1.msra.mxu0 0.0
  %5054 = vmatprep.subr.mxu0 0.0
  %5055 = vmatpush1.msra.mxu0 0.0
  %5056 = vmatprep.subr.mxu0 0.0
  %5057 = vmatpush1.msra.mxu0 0.0
  %5058 = vmatprep.mubr.f32.mxu0 0.0
  %5059 = vmatmul.mubr.f32.gmra.mrb[0].mxu0 %v4992
  %v5060 = vpop.f32.mrb[0].mxu0
  %v5061 = vadd.f32 0.0, %v5060
  %v5062 = vpop.f32.mrb[0].mxu0
  %5063 = vdwg.mxu0
  %v5064 = vmul.f32 %v4990, 0.5
  %v5065 = vmul.f32 %v5061, %v5061
  %v5066 = vadd.f32 %v5065, %v345
  %v5067 = vrsqrt.pop %v5066
  %v5068 = vmul.f32 %v5066, %v5067
  %vm5069 = vcmp.eq.f32.partialorder %v5066, inf
  %v5070 = vsel %vm5069, %v5066, %v5068
  %vm5071 = vcmp.eq.f32.partialorder %v5066, 0.0
  %v5072 = vand.u32 %v5066, 2147483648
  %v5073 = vsel %vm5071, %v5072, %v5070
  %v5074 = vsub.f32 %v5073, %v5061
  %v5075 = vmul.f32 %v5074, %v344
  %v5076 = vadd.f32 %v5064, %v5075
  %v5078 = vsel %vm175, %v5076, 0
  %5080 = vmatprep.subr.mxu0 0.0
  %5081 = vmatpush1.msra.mxu0 %v305
  %5082 = vmatprep.subr.mxu0 0.0
  %5083 = vmatpush1.msra.mxu0 %v306
  %5084 = vmatprep.subr.mxu0 0.0
  %5085 = vmatpush1.msra.mxu0 %v307
  %5086 = vmatprep.subr.mxu0 0.0
  %5087 = vmatpush1.msra.mxu0 %v308
  %5088 = vmatprep.subr.mxu0 0.0
  %5089 = vmatpush1.msra.mxu0 %v309
  %5090 = vmatprep.subr.mxu0 0.0
  %5091 = vmatpush1.msra.mxu0 %v310
  %5092 = vmatprep.subr.mxu0 0.0
  %5093 = vmatpush1.msra.mxu0 %v311
  %5094 = vmatprep.subr.mxu0 0.0
  %5095 = vmatpush1.msra.mxu0 %v312
  %5096 = vmatprep.subr.mxu0 0.0
  %5097 = vmatpush1.msra.mxu0 0.0
  %5098 = vmatprep.subr.mxu0 0.0
  %5099 = vmatpush1.msra.mxu0 0.0
  %5100 = vmatprep.subr.mxu0 0.0
  %5101 = vmatpush1.msra.mxu0 0.0
  %5102 = vmatprep.subr.mxu0 0.0
  %5103 = vmatpush1.msra.mxu0 0.0
  %5104 = vmatprep.subr.mxu0 0.0
  %5105 = vmatpush1.msra.mxu0 0.0
  %5106 = vmatprep.subr.mxu0 0.0
  %5107 = vmatpush1.msra.mxu0 0.0
  %5108 = vmatprep.subr.mxu0 0.0
  %5109 = vmatpush1.msra.mxu0 0.0
  %5110 = vmatprep.subr.mxu0 0.0
  %5111 = vmatpush1.msra.mxu0 0.0
  %5112 = vmatprep.subr.mxu0 0.0
  %5113 = vmatpush1.msra.mxu0 0.0
  %5114 = vmatprep.subr.mxu0 0.0
  %5115 = vmatpush1.msra.mxu0 0.0
  %5116 = vmatprep.subr.mxu0 0.0
  %5117 = vmatpush1.msra.mxu0 0.0
  %5118 = vmatprep.subr.mxu0 0.0
  %5119 = vmatpush1.msra.mxu0 0.0
  %5120 = vmatprep.subr.mxu0 0.0
  %5121 = vmatpush1.msra.mxu0 0.0
  %5122 = vmatprep.subr.mxu0 0.0
  %5123 = vmatpush1.msra.mxu0 0.0
  %5124 = vmatprep.subr.mxu0 0.0
  %5125 = vmatpush1.msra.mxu0 0.0
  %5126 = vmatprep.subr.mxu0 0.0
  %5127 = vmatpush1.msra.mxu0 0.0
  %5128 = vmatprep.subr.mxu0 0.0
  %5129 = vmatpush1.msra.mxu0 0.0
  %5130 = vmatprep.subr.mxu0 0.0
  %5131 = vmatpush1.msra.mxu0 0.0
  %5132 = vmatprep.subr.mxu0 0.0
  %5133 = vmatpush1.msra.mxu0 0.0
  %5134 = vmatprep.subr.mxu0 0.0
  %5135 = vmatpush1.msra.mxu0 0.0
  %5136 = vmatprep.subr.mxu0 0.0
  %5137 = vmatpush1.msra.mxu0 0.0
  %5138 = vmatprep.subr.mxu0 0.0
  %5139 = vmatpush1.msra.mxu0 0.0
  %5140 = vmatprep.subr.mxu0 0.0
  %5141 = vmatpush1.msra.mxu0 0.0
  %5142 = vmatprep.subr.mxu0 0.0
  %5143 = vmatpush1.msra.mxu0 0.0
  %5144 = vmatprep.mubr.f32.mxu0 0.0
  %5145 = vmatmul.mubr.f32.gmra.mrb[0].mxu0 %v5078
  %v5146 = vpop.f32.mrb[0].mxu0
  %v5147 = vadd.f32 0.0, %v5146
  %v5148 = vpop.f32.mrb[0].mxu0
  %5149 = vdwg.mxu0
  %v5150 = vmul.f32 %v5076, 0.5
  %v5151 = vmul.f32 %v5147, %v5147
  %v5152 = vadd.f32 %v5151, %v345
  %v5153 = vrsqrt.pop %v5152
  %v5154 = vmul.f32 %v5152, %v5153
  %vm5155 = vcmp.eq.f32.partialorder %v5152, inf
  %v5156 = vsel %vm5155, %v5152, %v5154
  %vm5157 = vcmp.eq.f32.partialorder %v5152, 0.0
  %v5158 = vand.u32 %v5152, 2147483648
  %v5159 = vsel %vm5157, %v5158, %v5156
  %v5160 = vsub.f32 %v5159, %v5147
  %v5161 = vmul.f32 %v5160, %v344
  %v5162 = vadd.f32 %v5150, %v5161
  %v5164 = vsel %vm175, %v5162, 0
  %5166 = vmatprep.subr.mxu0 0.0
  %5167 = vmatpush1.msra.mxu0 %v305
  %5168 = vmatprep.subr.mxu0 0.0
  %5169 = vmatpush1.msra.mxu0 %v306
  %5170 = vmatprep.subr.mxu0 0.0
  %5171 = vmatpush1.msra.mxu0 %v307
  %5172 = vmatprep.subr.mxu0 0.0
  %5173 = vmatpush1.msra.mxu0 %v308
  %5174 = vmatprep.subr.mxu0 0.0
  %5175 = vmatpush1.msra.mxu0 %v309
  %5176 = vmatprep.subr.mxu0 0.0
  %5177 = vmatpush1.msra.mxu0 %v310
  %5178 = vmatprep.subr.mxu0 0.0
  %5179 = vmatpush1.msra.mxu0 %v311
  %5180 = vmatprep.subr.mxu0 0.0
  %5181 = vmatpush1.msra.mxu0 %v312
  %5182 = vmatprep.subr.mxu0 0.0
  %5183 = vmatpush1.msra.mxu0 0.0
  %5184 = vmatprep.subr.mxu0 0.0
  %5185 = vmatpush1.msra.mxu0 0.0
  %5186 = vmatprep.subr.mxu0 0.0
  %5187 = vmatpush1.msra.mxu0 0.0
  %5188 = vmatprep.subr.mxu0 0.0
  %5189 = vmatpush1.msra.mxu0 0.0
  %5190 = vmatprep.subr.mxu0 0.0
  %5191 = vmatpush1.msra.mxu0 0.0
  %5192 = vmatprep.subr.mxu0 0.0
  %5193 = vmatpush1.msra.mxu0 0.0
  %5194 = vmatprep.subr.mxu0 0.0
  %5195 = vmatpush1.msra.mxu0 0.0
  %5196 = vmatprep.subr.mxu0 0.0
  %5197 = vmatpush1.msra.mxu0 0.0
  %5198 = vmatprep.subr.mxu0 0.0
  %5199 = vmatpush1.msra.mxu0 0.0
  %5200 = vmatprep.subr.mxu0 0.0
  %5201 = vmatpush1.msra.mxu0 0.0
  %5202 = vmatprep.subr.mxu0 0.0
  %5203 = vmatpush1.msra.mxu0 0.0
  %5204 = vmatprep.subr.mxu0 0.0
  %5205 = vmatpush1.msra.mxu0 0.0
  %5206 = vmatprep.subr.mxu0 0.0
  %5207 = vmatpush1.msra.mxu0 0.0
  %5208 = vmatprep.subr.mxu0 0.0
  %5209 = vmatpush1.msra.mxu0 0.0
  %5210 = vmatprep.subr.mxu0 0.0
  %5211 = vmatpush1.msra.mxu0 0.0
  %5212 = vmatprep.subr.mxu0 0.0
  %5213 = vmatpush1.msra.mxu0 0.0
  %5214 = vmatprep.subr.mxu0 0.0
  %5215 = vmatpush1.msra.mxu0 0.0
  %5216 = vmatprep.subr.mxu0 0.0
  %5217 = vmatpush1.msra.mxu0 0.0
  %5218 = vmatprep.subr.mxu0 0.0
  %5219 = vmatpush1.msra.mxu0 0.0
  %5220 = vmatprep.subr.mxu0 0.0
  %5221 = vmatpush1.msra.mxu0 0.0
  %5222 = vmatprep.subr.mxu0 0.0
  %5223 = vmatpush1.msra.mxu0 0.0
  %5224 = vmatprep.subr.mxu0 0.0
  %5225 = vmatpush1.msra.mxu0 0.0
  %5226 = vmatprep.subr.mxu0 0.0
  %5227 = vmatpush1.msra.mxu0 0.0
  %5228 = vmatprep.subr.mxu0 0.0
  %5229 = vmatpush1.msra.mxu0 0.0
  %5230 = vmatprep.mubr.f32.mxu0 0.0
  %5231 = vmatmul.mubr.f32.gmra.mrb[0].mxu0 %v5164
  %v5232 = vpop.f32.mrb[0].mxu0
  %v5233 = vadd.f32 0.0, %v5232
  %v5234 = vpop.f32.mrb[0].mxu0
  %5235 = vdwg.mxu0
  %v5236 = vmul.f32 %v5162, 0.5
  %v5237 = vmul.f32 %v5233, %v5233
  %v5238 = vadd.f32 %v5237, %v345
  %v5239 = vrsqrt.pop %v5238
  %v5240 = vmul.f32 %v5238, %v5239
  %vm5241 = vcmp.eq.f32.partialorder %v5238, inf
  %v5242 = vsel %vm5241, %v5238, %v5240
  %vm5243 = vcmp.eq.f32.partialorder %v5238, 0.0
  %v5244 = vand.u32 %v5238, 2147483648
  %v5245 = vsel %vm5243, %v5244, %v5242
  %v5246 = vsub.f32 %v5245, %v5233
  %v5247 = vmul.f32 %v5246, %v344
  %v5248 = vadd.f32 %v5236, %v5247
  %v5250 = vsel %vm175, %v5248, 0
  %5252 = vmatprep.subr.mxu0 0.0
  %5253 = vmatpush1.msra.mxu0 %v305
  %5254 = vmatprep.subr.mxu0 0.0
  %5255 = vmatpush1.msra.mxu0 %v306
  %5256 = vmatprep.subr.mxu0 0.0
  %5257 = vmatpush1.msra.mxu0 %v307
  %5258 = vmatprep.subr.mxu0 0.0
  %5259 = vmatpush1.msra.mxu0 %v308
  %5260 = vmatprep.subr.mxu0 0.0
  %5261 = vmatpush1.msra.mxu0 %v309
  %5262 = vmatprep.subr.mxu0 0.0
  %5263 = vmatpush1.msra.mxu0 %v310
  %5264 = vmatprep.subr.mxu0 0.0
  %5265 = vmatpush1.msra.mxu0 %v311
  %5266 = vmatprep.subr.mxu0 0.0
  %5267 = vmatpush1.msra.mxu0 %v312
  %5268 = vmatprep.subr.mxu0 0.0
  %5269 = vmatpush1.msra.mxu0 0.0
  %5270 = vmatprep.subr.mxu0 0.0
  %5271 = vmatpush1.msra.mxu0 0.0
  %5272 = vmatprep.subr.mxu0 0.0
  %5273 = vmatpush1.msra.mxu0 0.0
  %5274 = vmatprep.subr.mxu0 0.0
  %5275 = vmatpush1.msra.mxu0 0.0
  %5276 = vmatprep.subr.mxu0 0.0
  %5277 = vmatpush1.msra.mxu0 0.0
  %5278 = vmatprep.subr.mxu0 0.0
  %5279 = vmatpush1.msra.mxu0 0.0
  %5280 = vmatprep.subr.mxu0 0.0
  %5281 = vmatpush1.msra.mxu0 0.0
  %5282 = vmatprep.subr.mxu0 0.0
  %5283 = vmatpush1.msra.mxu0 0.0
  %5284 = vmatprep.subr.mxu0 0.0
  %5285 = vmatpush1.msra.mxu0 0.0
  %5286 = vmatprep.subr.mxu0 0.0
  %5287 = vmatpush1.msra.mxu0 0.0
  %5288 = vmatprep.subr.mxu0 0.0
  %5289 = vmatpush1.msra.mxu0 0.0
  %5290 = vmatprep.subr.mxu0 0.0
  %5291 = vmatpush1.msra.mxu0 0.0
  %5292 = vmatprep.subr.mxu0 0.0
  %5293 = vmatpush1.msra.mxu0 0.0
  %5294 = vmatprep.subr.mxu0 0.0
  %5295 = vmatpush1.msra.mxu0 0.0
  %5296 = vmatprep.subr.mxu0 0.0
  %5297 = vmatpush1.msra.mxu0 0.0
  %5298 = vmatprep.subr.mxu0 0.0
  %5299 = vmatpush1.msra.mxu0 0.0
  %5300 = vmatprep.subr.mxu0 0.0
  %5301 = vmatpush1.msra.mxu0 0.0
  %5302 = vmatprep.subr.mxu0 0.0
  %5303 = vmatpush1.msra.mxu0 0.0
  %5304 = vmatprep.subr.mxu0 0.0
  %5305 = vmatpush1.msra.mxu0 0.0
  %5306 = vmatprep.subr.mxu0 0.0
  %5307 = vmatpush1.msra.mxu0 0.0
  %5308 = vmatprep.subr.mxu0 0.0
  %5309 = vmatpush1.msra.mxu0 0.0
  %5310 = vmatprep.subr.mxu0 0.0
  %5311 = vmatpush1.msra.mxu0 0.0
  %5312 = vmatprep.subr.mxu0 0.0
  %5313 = vmatpush1.msra.mxu0 0.0
  %5314 = vmatprep.subr.mxu0 0.0
  %5315 = vmatpush1.msra.mxu0 0.0
  %5316 = vmatprep.mubr.f32.mxu0 0.0
  %5317 = vmatmul.mubr.f32.gmra.mrb[0].mxu0 %v5250
  %v5318 = vpop.f32.mrb[0].mxu0
  %v5319 = vadd.f32 0.0, %v5318
  %v5320 = vpop.f32.mrb[0].mxu0
  %5321 = vdwg.mxu0
  %v5322 = vmul.f32 %v5248, 0.5
  %v5323 = vmul.f32 %v5319, %v5319
  %v5324 = vadd.f32 %v5323, %v345
  %v5325 = vrsqrt.pop %v5324
  %v5326 = vmul.f32 %v5324, %v5325
  %vm5327 = vcmp.eq.f32.partialorder %v5324, inf
  %v5328 = vsel %vm5327, %v5324, %v5326
  %vm5329 = vcmp.eq.f32.partialorder %v5324, 0.0
  %v5330 = vand.u32 %v5324, 2147483648
  %v5331 = vsel %vm5329, %v5330, %v5328
  %v5332 = vsub.f32 %v5331, %v5319
  %v5333 = vmul.f32 %v5332, %v344
  %v5334 = vadd.f32 %v5322, %v5333
  %v5336 = vsel %vm175, %v5334, 0
  %5338 = vmatprep.subr.mxu0 0.0
  %5339 = vmatpush1.msra.mxu0 %v305
  %5340 = vmatprep.subr.mxu0 0.0
  %5341 = vmatpush1.msra.mxu0 %v306
  %5342 = vmatprep.subr.mxu0 0.0
  %5343 = vmatpush1.msra.mxu0 %v307
  %5344 = vmatprep.subr.mxu0 0.0
  %5345 = vmatpush1.msra.mxu0 %v308
  %5346 = vmatprep.subr.mxu0 0.0
  %5347 = vmatpush1.msra.mxu0 %v309
  %5348 = vmatprep.subr.mxu0 0.0
  %5349 = vmatpush1.msra.mxu0 %v310
  %5350 = vmatprep.subr.mxu0 0.0
  %5351 = vmatpush1.msra.mxu0 %v311
  %5352 = vmatprep.subr.mxu0 0.0
  %5353 = vmatpush1.msra.mxu0 %v312
  %5354 = vmatprep.subr.mxu0 0.0
  %5355 = vmatpush1.msra.mxu0 0.0
  %5356 = vmatprep.subr.mxu0 0.0
  %5357 = vmatpush1.msra.mxu0 0.0
  %5358 = vmatprep.subr.mxu0 0.0
  %5359 = vmatpush1.msra.mxu0 0.0
  %5360 = vmatprep.subr.mxu0 0.0
  %5361 = vmatpush1.msra.mxu0 0.0
  %5362 = vmatprep.subr.mxu0 0.0
  %5363 = vmatpush1.msra.mxu0 0.0
  %5364 = vmatprep.subr.mxu0 0.0
  %5365 = vmatpush1.msra.mxu0 0.0
  %5366 = vmatprep.subr.mxu0 0.0
  %5367 = vmatpush1.msra.mxu0 0.0
  %5368 = vmatprep.subr.mxu0 0.0
  %5369 = vmatpush1.msra.mxu0 0.0
  %5370 = vmatprep.subr.mxu0 0.0
  %5371 = vmatpush1.msra.mxu0 0.0
  %5372 = vmatprep.subr.mxu0 0.0
  %5373 = vmatpush1.msra.mxu0 0.0
  %5374 = vmatprep.subr.mxu0 0.0
  %5375 = vmatpush1.msra.mxu0 0.0
  %5376 = vmatprep.subr.mxu0 0.0
  %5377 = vmatpush1.msra.mxu0 0.0
  %5378 = vmatprep.subr.mxu0 0.0
  %5379 = vmatpush1.msra.mxu0 0.0
  %5380 = vmatprep.subr.mxu0 0.0
  %5381 = vmatpush1.msra.mxu0 0.0
  %5382 = vmatprep.subr.mxu0 0.0
  %5383 = vmatpush1.msra.mxu0 0.0
  %5384 = vmatprep.subr.mxu0 0.0
  %5385 = vmatpush1.msra.mxu0 0.0
  %5386 = vmatprep.subr.mxu0 0.0
  %5387 = vmatpush1.msra.mxu0 0.0
  %5388 = vmatprep.subr.mxu0 0.0
  %5389 = vmatpush1.msra.mxu0 0.0
  %5390 = vmatprep.subr.mxu0 0.0
  %5391 = vmatpush1.msra.mxu0 0.0
  %5392 = vmatprep.subr.mxu0 0.0
  %5393 = vmatpush1.msra.mxu0 0.0
  %5394 = vmatprep.subr.mxu0 0.0
  %5395 = vmatpush1.msra.mxu0 0.0
  %5396 = vmatprep.subr.mxu0 0.0
  %5397 = vmatpush1.msra.mxu0 0.0
  %5398 = vmatprep.subr.mxu0 0.0
  %5399 = vmatpush1.msra.mxu0 0.0
  %5400 = vmatprep.subr.mxu0 0.0
  %5401 = vmatpush1.msra.mxu0 0.0
  %5402 = vmatprep.mubr.f32.mxu0 0.0
  %5403 = vmatmul.mubr.f32.gmra.mrb[0].mxu0 %v5336
  %v5404 = vpop.f32.mrb[0].mxu0
  %v5405 = vadd.f32 0.0, %v5404
  %v5406 = vpop.f32.mrb[0].mxu0
  %5407 = vdwg.mxu0
  %v5408 = vmul.f32 %v5334, 0.5
  %v5409 = vmul.f32 %v5405, %v5405
  %v5410 = vadd.f32 %v5409, %v345
  %v5411 = vrsqrt.pop %v5410
  %v5412 = vmul.f32 %v5410, %v5411
  %vm5413 = vcmp.eq.f32.partialorder %v5410, inf
  %v5414 = vsel %vm5413, %v5410, %v5412
  %vm5415 = vcmp.eq.f32.partialorder %v5410, 0.0
  %v5416 = vand.u32 %v5410, 2147483648
  %v5417 = vsel %vm5415, %v5416, %v5414
  %v5418 = vsub.f32 %v5417, %v5405
  %v5419 = vmul.f32 %v5418, %v344
  %v5420 = vadd.f32 %v5408, %v5419
  %v5422 = vsel %vm175, %v5420, 0
  %5424 = vmatprep.subr.mxu0 0.0
  %5425 = vmatpush1.msra.mxu0 %v305
  %5426 = vmatprep.subr.mxu0 0.0
  %5427 = vmatpush1.msra.mxu0 %v306
  %5428 = vmatprep.subr.mxu0 0.0
  %5429 = vmatpush1.msra.mxu0 %v307
  %5430 = vmatprep.subr.mxu0 0.0
  %5431 = vmatpush1.msra.mxu0 %v308
  %5432 = vmatprep.subr.mxu0 0.0
  %5433 = vmatpush1.msra.mxu0 %v309
  %5434 = vmatprep.subr.mxu0 0.0
  %5435 = vmatpush1.msra.mxu0 %v310
  %5436 = vmatprep.subr.mxu0 0.0
  %5437 = vmatpush1.msra.mxu0 %v311
  %5438 = vmatprep.subr.mxu0 0.0
  %5439 = vmatpush1.msra.mxu0 %v312
  %5440 = vmatprep.subr.mxu0 0.0
  %5441 = vmatpush1.msra.mxu0 0.0
  %5442 = vmatprep.subr.mxu0 0.0
  %5443 = vmatpush1.msra.mxu0 0.0
  %5444 = vmatprep.subr.mxu0 0.0
  %5445 = vmatpush1.msra.mxu0 0.0
  %5446 = vmatprep.subr.mxu0 0.0
  %5447 = vmatpush1.msra.mxu0 0.0
  %5448 = vmatprep.subr.mxu0 0.0
  %5449 = vmatpush1.msra.mxu0 0.0
  %5450 = vmatprep.subr.mxu0 0.0
  %5451 = vmatpush1.msra.mxu0 0.0
  %5452 = vmatprep.subr.mxu0 0.0
  %5453 = vmatpush1.msra.mxu0 0.0
  %5454 = vmatprep.subr.mxu0 0.0
  %5455 = vmatpush1.msra.mxu0 0.0
  %5456 = vmatprep.subr.mxu0 0.0
  %5457 = vmatpush1.msra.mxu0 0.0
  %5458 = vmatprep.subr.mxu0 0.0
  %5459 = vmatpush1.msra.mxu0 0.0
  %5460 = vmatprep.subr.mxu0 0.0
  %5461 = vmatpush1.msra.mxu0 0.0
  %5462 = vmatprep.subr.mxu0 0.0
  %5463 = vmatpush1.msra.mxu0 0.0
  %5464 = vmatprep.subr.mxu0 0.0
  %5465 = vmatpush1.msra.mxu0 0.0
  %5466 = vmatprep.subr.mxu0 0.0
  %5467 = vmatpush1.msra.mxu0 0.0
  %5468 = vmatprep.subr.mxu0 0.0
  %5469 = vmatpush1.msra.mxu0 0.0
  %5470 = vmatprep.subr.mxu0 0.0
  %5471 = vmatpush1.msra.mxu0 0.0
  %5472 = vmatprep.subr.mxu0 0.0
  %5473 = vmatpush1.msra.mxu0 0.0
  %5474 = vmatprep.subr.mxu0 0.0
  %5475 = vmatpush1.msra.mxu0 0.0
  %5476 = vmatprep.subr.mxu0 0.0
  %5477 = vmatpush1.msra.mxu0 0.0
  %5478 = vmatprep.subr.mxu0 0.0
  %5479 = vmatpush1.msra.mxu0 0.0
  %5480 = vmatprep.subr.mxu0 0.0
  %5481 = vmatpush1.msra.mxu0 0.0
  %5482 = vmatprep.subr.mxu0 0.0
  %5483 = vmatpush1.msra.mxu0 0.0
  %5484 = vmatprep.subr.mxu0 0.0
  %5485 = vmatpush1.msra.mxu0 0.0
  %5486 = vmatprep.subr.mxu0 0.0
  %5487 = vmatpush1.msra.mxu0 0.0
  %5488 = vmatprep.mubr.f32.mxu0 0.0
  %5489 = vmatmul.mubr.f32.gmra.mrb[0].mxu0 %v5422
  %v5490 = vpop.f32.mrb[0].mxu0
  %v5491 = vadd.f32 0.0, %v5490
  %v5492 = vpop.f32.mrb[0].mxu0
  %5493 = vdwg.mxu0
  %v5494 = vmul.f32 %v5420, 0.5
  %v5495 = vmul.f32 %v5491, %v5491
  %v5496 = vadd.f32 %v5495, %v345
  %v5497 = vrsqrt.pop %v5496
  %v5498 = vmul.f32 %v5496, %v5497
  %vm5499 = vcmp.eq.f32.partialorder %v5496, inf
  %v5500 = vsel %vm5499, %v5496, %v5498
  %vm5501 = vcmp.eq.f32.partialorder %v5496, 0.0
  %v5502 = vand.u32 %v5496, 2147483648
  %v5503 = vsel %vm5501, %v5502, %v5500
  %v5504 = vsub.f32 %v5503, %v5491
  %v5505 = vmul.f32 %v5504, %v344
  %v5506 = vadd.f32 %v5494, %v5505
  %v5508 = vsel %vm175, %v5506, 0
  %5510 = vmatprep.subr.mxu0 0.0
  %5511 = vmatpush1.msra.mxu0 %v305
  %5512 = vmatprep.subr.mxu0 0.0
  %5513 = vmatpush1.msra.mxu0 %v306
  %5514 = vmatprep.subr.mxu0 0.0
  %5515 = vmatpush1.msra.mxu0 %v307
  %5516 = vmatprep.subr.mxu0 0.0
  %5517 = vmatpush1.msra.mxu0 %v308
  %5518 = vmatprep.subr.mxu0 0.0
  %5519 = vmatpush1.msra.mxu0 %v309
  %5520 = vmatprep.subr.mxu0 0.0
  %5521 = vmatpush1.msra.mxu0 %v310
  %5522 = vmatprep.subr.mxu0 0.0
  %5523 = vmatpush1.msra.mxu0 %v311
  %5524 = vmatprep.subr.mxu0 0.0
  %5525 = vmatpush1.msra.mxu0 %v312
  %5526 = vmatprep.subr.mxu0 0.0
  %5527 = vmatpush1.msra.mxu0 0.0
  %5528 = vmatprep.subr.mxu0 0.0
  %5529 = vmatpush1.msra.mxu0 0.0
  %5530 = vmatprep.subr.mxu0 0.0
  %5531 = vmatpush1.msra.mxu0 0.0
  %5532 = vmatprep.subr.mxu0 0.0
  %5533 = vmatpush1.msra.mxu0 0.0
  %5534 = vmatprep.subr.mxu0 0.0
  %5535 = vmatpush1.msra.mxu0 0.0
  %5536 = vmatprep.subr.mxu0 0.0
  %5537 = vmatpush1.msra.mxu0 0.0
  %5538 = vmatprep.subr.mxu0 0.0
  %5539 = vmatpush1.msra.mxu0 0.0
  %5540 = vmatprep.subr.mxu0 0.0
  %5541 = vmatpush1.msra.mxu0 0.0
  %5542 = vmatprep.subr.mxu0 0.0
  %5543 = vmatpush1.msra.mxu0 0.0
  %5544 = vmatprep.subr.mxu0 0.0
  %5545 = vmatpush1.msra.mxu0 0.0
  %5546 = vmatprep.subr.mxu0 0.0
  %5547 = vmatpush1.msra.mxu0 0.0
  %5548 = vmatprep.subr.mxu0 0.0
  %5549 = vmatpush1.msra.mxu0 0.0
  %5550 = vmatprep.subr.mxu0 0.0
  %5551 = vmatpush1.msra.mxu0 0.0
  %5552 = vmatprep.subr.mxu0 0.0
  %5553 = vmatpush1.msra.mxu0 0.0
  %5554 = vmatprep.subr.mxu0 0.0
  %5555 = vmatpush1.msra.mxu0 0.0
  %5556 = vmatprep.subr.mxu0 0.0
  %5557 = vmatpush1.msra.mxu0 0.0
  %5558 = vmatprep.subr.mxu0 0.0
  %5559 = vmatpush1.msra.mxu0 0.0
  %5560 = vmatprep.subr.mxu0 0.0
  %5561 = vmatpush1.msra.mxu0 0.0
  %5562 = vmatprep.subr.mxu0 0.0
  %5563 = vmatpush1.msra.mxu0 0.0
  %5564 = vmatprep.subr.mxu0 0.0
  %5565 = vmatpush1.msra.mxu0 0.0
  %5566 = vmatprep.subr.mxu0 0.0
  %5567 = vmatpush1.msra.mxu0 0.0
  %5568 = vmatprep.subr.mxu0 0.0
  %5569 = vmatpush1.msra.mxu0 0.0
  %5570 = vmatprep.subr.mxu0 0.0
  %5571 = vmatpush1.msra.mxu0 0.0
  %5572 = vmatprep.subr.mxu0 0.0
  %5573 = vmatpush1.msra.mxu0 0.0
  %5574 = vmatprep.mubr.f32.mxu0 0.0
  %5575 = vmatmul.mubr.f32.gmra.mrb[0].mxu0 %v5508
  %v5576 = vpop.f32.mrb[0].mxu0
  %v5577 = vadd.f32 0.0, %v5576
  %v5578 = vpop.f32.mrb[0].mxu0
  %5579 = vdwg.mxu0
  %v5580 = vmul.f32 %v5506, 0.5
  %v5581 = vmul.f32 %v5577, %v5577
  %v5582 = vadd.f32 %v5581, %v345
  %v5583 = vrsqrt.pop %v5582
  %v5584 = vmul.f32 %v5582, %v5583
  %vm5585 = vcmp.eq.f32.partialorder %v5582, inf
  %v5586 = vsel %vm5585, %v5582, %v5584
  %vm5587 = vcmp.eq.f32.partialorder %v5582, 0.0
  %v5588 = vand.u32 %v5582, 2147483648
  %v5589 = vsel %vm5587, %v5588, %v5586
  %v5590 = vsub.f32 %v5589, %v5577
  %v5591 = vmul.f32 %v5590, %v344
  %v5592 = vadd.f32 %v5580, %v5591
  %v5594 = vsel %vm175, %v5592, 0
  %5596 = vmatprep.subr.mxu0 0.0
  %5597 = vmatpush1.msra.mxu0 %v305
  %5598 = vmatprep.subr.mxu0 0.0
  %5599 = vmatpush1.msra.mxu0 %v306
  %5600 = vmatprep.subr.mxu0 0.0
  %5601 = vmatpush1.msra.mxu0 %v307
  %5602 = vmatprep.subr.mxu0 0.0
  %5603 = vmatpush1.msra.mxu0 %v308
  %5604 = vmatprep.subr.mxu0 0.0
  %5605 = vmatpush1.msra.mxu0 %v309
  %5606 = vmatprep.subr.mxu0 0.0
  %5607 = vmatpush1.msra.mxu0 %v310
  %5608 = vmatprep.subr.mxu0 0.0
  %5609 = vmatpush1.msra.mxu0 %v311
  %5610 = vmatprep.subr.mxu0 0.0
  %5611 = vmatpush1.msra.mxu0 %v312
  %5612 = vmatprep.subr.mxu0 0.0
  %5613 = vmatpush1.msra.mxu0 0.0
  %5614 = vmatprep.subr.mxu0 0.0
  %5615 = vmatpush1.msra.mxu0 0.0
  %5616 = vmatprep.subr.mxu0 0.0
  %5617 = vmatpush1.msra.mxu0 0.0
  %5618 = vmatprep.subr.mxu0 0.0
  %5619 = vmatpush1.msra.mxu0 0.0
  %5620 = vmatprep.subr.mxu0 0.0
  %5621 = vmatpush1.msra.mxu0 0.0
  %5622 = vmatprep.subr.mxu0 0.0
  %5623 = vmatpush1.msra.mxu0 0.0
  %5624 = vmatprep.subr.mxu0 0.0
  %5625 = vmatpush1.msra.mxu0 0.0
  %5626 = vmatprep.subr.mxu0 0.0
  %5627 = vmatpush1.msra.mxu0 0.0
  %5628 = vmatprep.subr.mxu0 0.0
  %5629 = vmatpush1.msra.mxu0 0.0
  %5630 = vmatprep.subr.mxu0 0.0
  %5631 = vmatpush1.msra.mxu0 0.0
  %5632 = vmatprep.subr.mxu0 0.0
  %5633 = vmatpush1.msra.mxu0 0.0
  %5634 = vmatprep.subr.mxu0 0.0
  %5635 = vmatpush1.msra.mxu0 0.0
  %5636 = vmatprep.subr.mxu0 0.0
  %5637 = vmatpush1.msra.mxu0 0.0
  %5638 = vmatprep.subr.mxu0 0.0
  %5639 = vmatpush1.msra.mxu0 0.0
  %5640 = vmatprep.subr.mxu0 0.0
  %5641 = vmatpush1.msra.mxu0 0.0
  %5642 = vmatprep.subr.mxu0 0.0
  %5643 = vmatpush1.msra.mxu0 0.0
  %5644 = vmatprep.subr.mxu0 0.0
  %5645 = vmatpush1.msra.mxu0 0.0
  %5646 = vmatprep.subr.mxu0 0.0
  %5647 = vmatpush1.msra.mxu0 0.0
  %5648 = vmatprep.subr.mxu0 0.0
  %5649 = vmatpush1.msra.mxu0 0.0
  %5650 = vmatprep.subr.mxu0 0.0
  %5651 = vmatpush1.msra.mxu0 0.0
  %5652 = vmatprep.subr.mxu0 0.0
  %5653 = vmatpush1.msra.mxu0 0.0
  %5654 = vmatprep.subr.mxu0 0.0
  %5655 = vmatpush1.msra.mxu0 0.0
  %5656 = vmatprep.subr.mxu0 0.0
  %5657 = vmatpush1.msra.mxu0 0.0
  %5658 = vmatprep.subr.mxu0 0.0
  %5659 = vmatpush1.msra.mxu0 0.0
  %5660 = vmatprep.mubr.f32.mxu0 0.0
  %5661 = vmatmul.mubr.f32.gmra.mrb[0].mxu0 %v5594
  %v5662 = vpop.f32.mrb[0].mxu0
  %v5663 = vadd.f32 0.0, %v5662
  %v5664 = vpop.f32.mrb[0].mxu0
  %5665 = vdwg.mxu0
  %v5666 = vmul.f32 %v5592, 0.5
  %v5667 = vmul.f32 %v5663, %v5663
  %v5668 = vadd.f32 %v5667, %v345
  %v5669 = vrsqrt.pop %v5668
  %v5670 = vmul.f32 %v5668, %v5669
  %vm5671 = vcmp.eq.f32.partialorder %v5668, inf
  %v5672 = vsel %vm5671, %v5668, %v5670
  %vm5673 = vcmp.eq.f32.partialorder %v5668, 0.0
  %v5674 = vand.u32 %v5668, 2147483648
  %v5675 = vsel %vm5673, %v5674, %v5672
  %v5676 = vsub.f32 %v5675, %v5663
  %v5677 = vmul.f32 %v5676, %v344
  %v5678 = vadd.f32 %v5666, %v5677
  %v5680 = vsel %vm175, %v5678, 0
  %5682 = vmatprep.subr.mxu0 0.0
  %5683 = vmatpush1.msra.mxu0 %v305
  %5684 = vmatprep.subr.mxu0 0.0
  %5685 = vmatpush1.msra.mxu0 %v306
  %5686 = vmatprep.subr.mxu0 0.0
  %5687 = vmatpush1.msra.mxu0 %v307
  %5688 = vmatprep.subr.mxu0 0.0
  %5689 = vmatpush1.msra.mxu0 %v308
  %5690 = vmatprep.subr.mxu0 0.0
  %5691 = vmatpush1.msra.mxu0 %v309
  %5692 = vmatprep.subr.mxu0 0.0
  %5693 = vmatpush1.msra.mxu0 %v310
  %5694 = vmatprep.subr.mxu0 0.0
  %5695 = vmatpush1.msra.mxu0 %v311
  %5696 = vmatprep.subr.mxu0 0.0
  %5697 = vmatpush1.msra.mxu0 %v312
  %5698 = vmatprep.subr.mxu0 0.0
  %5699 = vmatpush1.msra.mxu0 0.0
  %5700 = vmatprep.subr.mxu0 0.0
  %5701 = vmatpush1.msra.mxu0 0.0
  %5702 = vmatprep.subr.mxu0 0.0
  %5703 = vmatpush1.msra.mxu0 0.0
  %5704 = vmatprep.subr.mxu0 0.0
  %5705 = vmatpush1.msra.mxu0 0.0
  %5706 = vmatprep.subr.mxu0 0.0
  %5707 = vmatpush1.msra.mxu0 0.0
  %5708 = vmatprep.subr.mxu0 0.0
  %5709 = vmatpush1.msra.mxu0 0.0
  %5710 = vmatprep.subr.mxu0 0.0
  %5711 = vmatpush1.msra.mxu0 0.0
  %5712 = vmatprep.subr.mxu0 0.0
  %5713 = vmatpush1.msra.mxu0 0.0
  %5714 = vmatprep.subr.mxu0 0.0
  %5715 = vmatpush1.msra.mxu0 0.0
  %5716 = vmatprep.subr.mxu0 0.0
  %5717 = vmatpush1.msra.mxu0 0.0
  %5718 = vmatprep.subr.mxu0 0.0
  %5719 = vmatpush1.msra.mxu0 0.0
  %5720 = vmatprep.subr.mxu0 0.0
  %5721 = vmatpush1.msra.mxu0 0.0
  %5722 = vmatprep.subr.mxu0 0.0
  %5723 = vmatpush1.msra.mxu0 0.0
  %5724 = vmatprep.subr.mxu0 0.0
  %5725 = vmatpush1.msra.mxu0 0.0
  %5726 = vmatprep.subr.mxu0 0.0
  %5727 = vmatpush1.msra.mxu0 0.0
  %5728 = vmatprep.subr.mxu0 0.0
  %5729 = vmatpush1.msra.mxu0 0.0
  %5730 = vmatprep.subr.mxu0 0.0
  %5731 = vmatpush1.msra.mxu0 0.0
  %5732 = vmatprep.subr.mxu0 0.0
  %5733 = vmatpush1.msra.mxu0 0.0
  %5734 = vmatprep.subr.mxu0 0.0
  %5735 = vmatpush1.msra.mxu0 0.0
  %5736 = vmatprep.subr.mxu0 0.0
  %5737 = vmatpush1.msra.mxu0 0.0
  %5738 = vmatprep.subr.mxu0 0.0
  %5739 = vmatpush1.msra.mxu0 0.0
  %5740 = vmatprep.subr.mxu0 0.0
  %5741 = vmatpush1.msra.mxu0 0.0
  %5742 = vmatprep.subr.mxu0 0.0
  %5743 = vmatpush1.msra.mxu0 0.0
  %5744 = vmatprep.subr.mxu0 0.0
  %5745 = vmatpush1.msra.mxu0 0.0
  %5746 = vmatprep.mubr.f32.mxu0 0.0
  %5747 = vmatmul.mubr.f32.gmra.mrb[0].mxu0 %v5680
  %v5748 = vpop.f32.mrb[0].mxu0
  %v5749 = vadd.f32 0.0, %v5748
  %v5750 = vpop.f32.mrb[0].mxu0
  %5751 = vdwg.mxu0
  %v5752 = vmul.f32 %v5678, 0.5
  %v5753 = vmul.f32 %v5749, %v5749
  %v5754 = vadd.f32 %v5753, %v345
  %v5755 = vrsqrt.pop %v5754
  %v5756 = vmul.f32 %v5754, %v5755
  %vm5757 = vcmp.eq.f32.partialorder %v5754, inf
  %v5758 = vsel %vm5757, %v5754, %v5756
  %vm5759 = vcmp.eq.f32.partialorder %v5754, 0.0
  %v5760 = vand.u32 %v5754, 2147483648
  %v5761 = vsel %vm5759, %v5760, %v5758
  %v5762 = vsub.f32 %v5761, %v5749
  %v5763 = vmul.f32 %v5762, %v344
  %v5764 = vadd.f32 %v5752, %v5763
  %v5766 = vsel %vm175, %v5764, 0
  %5768 = vmatprep.subr.mxu0 0.0
  %5769 = vmatpush1.msra.mxu0 %v305
  %5770 = vmatprep.subr.mxu0 0.0
  %5771 = vmatpush1.msra.mxu0 %v306
  %5772 = vmatprep.subr.mxu0 0.0
  %5773 = vmatpush1.msra.mxu0 %v307
  %5774 = vmatprep.subr.mxu0 0.0
  %5775 = vmatpush1.msra.mxu0 %v308
  %5776 = vmatprep.subr.mxu0 0.0
  %5777 = vmatpush1.msra.mxu0 %v309
  %5778 = vmatprep.subr.mxu0 0.0
  %5779 = vmatpush1.msra.mxu0 %v310
  %5780 = vmatprep.subr.mxu0 0.0
  %5781 = vmatpush1.msra.mxu0 %v311
  %5782 = vmatprep.subr.mxu0 0.0
  %5783 = vmatpush1.msra.mxu0 %v312
  %5784 = vmatprep.subr.mxu0 0.0
  %5785 = vmatpush1.msra.mxu0 0.0
  %5786 = vmatprep.subr.mxu0 0.0
  %5787 = vmatpush1.msra.mxu0 0.0
  %5788 = vmatprep.subr.mxu0 0.0
  %5789 = vmatpush1.msra.mxu0 0.0
  %5790 = vmatprep.subr.mxu0 0.0
  %5791 = vmatpush1.msra.mxu0 0.0
  %5792 = vmatprep.subr.mxu0 0.0
  %5793 = vmatpush1.msra.mxu0 0.0
  %5794 = vmatprep.subr.mxu0 0.0
  %5795 = vmatpush1.msra.mxu0 0.0
  %5796 = vmatprep.subr.mxu0 0.0
  %5797 = vmatpush1.msra.mxu0 0.0
  %5798 = vmatprep.subr.mxu0 0.0
  %5799 = vmatpush1.msra.mxu0 0.0
  %5800 = vmatprep.subr.mxu0 0.0
  %5801 = vmatpush1.msra.mxu0 0.0
  %5802 = vmatprep.subr.mxu0 0.0
  %5803 = vmatpush1.msra.mxu0 0.0
  %5804 = vmatprep.subr.mxu0 0.0
  %5805 = vmatpush1.msra.mxu0 0.0
  %5806 = vmatprep.subr.mxu0 0.0
  %5807 = vmatpush1.msra.mxu0 0.0
  %5808 = vmatprep.subr.mxu0 0.0
  %5809 = vmatpush1.msra.mxu0 0.0
  %5810 = vmatprep.subr.mxu0 0.0
  %5811 = vmatpush1.msra.mxu0 0.0
  %5812 = vmatprep.subr.mxu0 0.0
  %5813 = vmatpush1.msra.mxu0 0.0
  %5814 = vmatprep.subr.mxu0 0.0
  %5815 = vmatpush1.msra.mxu0 0.0
  %5816 = vmatprep.subr.mxu0 0.0
  %5817 = vmatpush1.msra.mxu0 0.0
  %5818 = vmatprep.subr.mxu0 0.0
  %5819 = vmatpush1.msra.mxu0 0.0
  %5820 = vmatprep.subr.mxu0 0.0
  %5821 = vmatpush1.msra.mxu0 0.0
  %5822 = vmatprep.subr.mxu0 0.0
  %5823 = vmatpush1.msra.mxu0 0.0
  %5824 = vmatprep.subr.mxu0 0.0
  %5825 = vmatpush1.msra.mxu0 0.0
  %5826 = vmatprep.subr.mxu0 0.0
  %5827 = vmatpush1.msra.mxu0 0.0
  %5828 = vmatprep.subr.mxu0 0.0
  %5829 = vmatpush1.msra.mxu0 0.0
  %5830 = vmatprep.subr.mxu0 0.0
  %5831 = vmatpush1.msra.mxu0 0.0
  %5832 = vmatprep.mubr.f32.mxu0 0.0
  %5833 = vmatmul.mubr.f32.gmra.mrb[0].mxu0 %v5766
  %v5834 = vpop.f32.mrb[0].mxu0
  %v5835 = vadd.f32 0.0, %v5834
  %v5836 = vpop.f32.mrb[0].mxu0
  %5837 = vdwg.mxu0
  %v5838 = vmul.f32 %v5764, 0.5
  %v5839 = vmul.f32 %v5835, %v5835
  %v5840 = vadd.f32 %v5839, %v345
  %v5841 = vrsqrt.pop %v5840
  %v5842 = vmul.f32 %v5840, %v5841
  %vm5843 = vcmp.eq.f32.partialorder %v5840, inf
  %v5844 = vsel %vm5843, %v5840, %v5842
  %vm5845 = vcmp.eq.f32.partialorder %v5840, 0.0
  %v5846 = vand.u32 %v5840, 2147483648
  %v5847 = vsel %vm5845, %v5846, %v5844
  %v5848 = vsub.f32 %v5847, %v5835
  %v5849 = vmul.f32 %v5848, %v344
  %v5850 = vadd.f32 %v5838, %v5849
  %vm5851 = vcmask 516096
  %5852 = vst.msk [vmem:[%s2] sm:$0x1] %vm5851, %v5850
  // Predicated region
  $region10: #{rpdcc_forward.1} parent=0 // pred_check
    _
  $region11: #{rpdcc_forward.1} parent=0 // pred_check_branch
    %5854 = sbr.rel (0) target = $region13
  $region12: #{rpdcc_forward.1} parent=0 // pred_region
    _
  $region13: #{rpdcc_forward.1} parent=0 // pred_fallthru
    _
  // Predicated region
  $region14: #{rpdcc_forward.1} parent=0 // pred_check
    _
  $region15: #{rpdcc_forward.1} parent=0 // pred_check_branch
    %5856 = sbr.rel (0) target = $region17
  $region16: #{rpdcc_forward.1} parent=0 // pred_region
    _
  $region17: #{rpdcc_forward.1} parent=0 // pred_fallthru
    _

</llo_original>
